<compile_context>
chip_gen: v7x
topology: tpu7x:2x2x1
jax: 0.10.0
libtpu: 0.0.40
codegen_flags: <defaults>
</compile_context>

<pallas_src>
import jax
import jax.numpy as jnp
import numpy as np
from jax import lax
from jax.experimental import pallas as pl
from jax.experimental.pallas import tpu as pltpu


# ---------------------------------------------------------------------------
# In-kernel helpers
# ---------------------------------------------------------------------------
def _conv3x3_padded(pad_ref, x_hwc, w_ref, b_ref, H, W, relu, zero_init):
    """3x3 'same' conv on a (H, W, Cin) f32 value using a padded VMEM scratch.

    Weights are bf16 (pre-cast in the wrapper); activations are cast to bf16 at
    the MXU boundary only; accumulation is f32. Returns (H*W, Cout) f32.
    `zero_init=False` may be used on repeat calls with the same scratch: the
    interior is fully overwritten and the zero border is preserved.
    """
    cin = x_hwc.shape[-1]
    cout = w_ref.shape[-1]
    if zero_init:
        pad_ref[...] = jnp.zeros(pad_ref.shape, pad_ref.dtype)
    pad_ref[1:H + 1, 1:W + 1, :] = x_hwc
    xp = pad_ref[...]                                          # (H+2, W+2, Cin)
    acc = jnp.zeros((H * W, cout), jnp.float32)
    # NOTE: im2col packing into a single K=9*Cin matmul was considered; at this
    # tile size the lane-misaligned packing copies cost about as much as the
    # extra MXU passes, so we keep 9 shifted bf16 dots for robust lowering.
    for dy in range(3):
        for dx in range(3):
            patch = xp[dy:dy + H, dx:dx + W, :].reshape(H * W, cin)
            acc = acc + jnp.dot(patch.astype(jnp.bfloat16), w_ref[dy, dx],
                                preferred_element_type=jnp.float32)
    acc = acc + b_ref[...]
    if relu:
        acc = jnp.maximum(acc, 0.0)
    return acc


# ---------------------------------------------------------------------------
# Fused DownAtt kernel (one image per grid step)
# ---------------------------------------------------------------------------
def _down_att_kernel(x_ref, w0_ref, b0_ref, wb1_ref, bb1_ref, wb2_ref, bb2_ref,
                     wsp_ref, wca1t_ref, bca1_ref, wca2_ref, bca2_ref,
                     w11sa_ref, w11ca_ref, b11_ref, o_ref,
                     pad0_ref, padc_ref, pmax_ref, pmean_ref):
    _, H, W, Cin = x_ref.shape
    Hp, Wp = H // 2, W // 2
    C = wb1_ref.shape[-1]
    M = Hp * Wp

    # ---- MaxPool2d(2) (fused; trivial VPU work) ----
    x = x_ref[0]                                               # (H, W, Cin) f32
    xr = x.reshape(H, Wp, 2, Cin)
    x = jnp.maximum(xr[:, :, 0, :], xr[:, :, 1, :])            # (H, Wp, Cin)
    xr = x.reshape(Hp, 2, Wp, Cin)
    pooled = jnp.maximum(xr[:, 0, :, :], xr[:, 1, :, :])       # (Hp, Wp, Cin)

    # ---- DAB.conv_0: conv3x3 + ReLU ----
    conv_out = _conv3x3_padded(pad0_ref, pooled, w0_ref, b0_ref,
                               Hp, Wp, relu=True, zero_init=True)   # (M, C) f32

    # ---- DAB.body: conv3x3 + ReLU, conv3x3 (padc scratch zeroed once) ----
    h = _conv3x3_padded(padc_ref, conv_out.reshape(Hp, Wp, C),
                        wb1_ref, bb1_ref, Hp, Wp, relu=True, zero_init=True)
    res = _conv3x3_padded(padc_ref, h.reshape(Hp, Wp, C),
                          wb2_ref, bb2_ref, Hp, Wp, relu=False,
                          zero_init=False)                     # (M, C) f32
    res3 = res.reshape(Hp, Wp, C)

    # ---- DAB.SA: channel pool (max/mean) -> 3x3 conv (bias-free) -> sigmoid ----
    mx = jnp.max(res3, axis=-1, keepdims=True)                 # (Hp, Wp, 1)
    mn = jnp.mean(res3, axis=-1, keepdims=True)                # (Hp, Wp, 1)
    pmax_ref[...] = jnp.zeros(pmax_ref.shape, pmax_ref.dtype)
    pmean_ref[...] = jnp.zeros(pmean_ref.shape, pmean_ref.dtype)
    pmax_ref[1:Hp + 1, 1:Wp + 1, :] = mx
    pmean_ref[1:Hp + 1, 1:Wp + 1, :] = mn
    pm = pmax_ref[...]
    pn = pmean_ref[...]
    acc_sp = jnp.zeros((Hp, Wp, 1), jnp.float32)
    for dy in range(3):
        for dx in range(3):
            base = (dy * 3 + dx) * 2
            acc_sp = acc_sp + pm[dy:dy + Hp, dx:dx + Wp, :] * wsp_ref[base + 0]
            acc_sp = acc_sp + pn[dy:dy + Hp, dx:dx + Wp, :] * wsp_ref[base + 1]
    sa = (res3 * jax.nn.sigmoid(acc_sp)).reshape(M, C)         # (M, C) f32

    # ---- DAB.CA: squeeze-excite (VPU; M=1 matmuls would stall the MXU) ----
    y = jnp.mean(res, axis=0, keepdims=True)                   # (1, C)
    z = jnp.sum(wca1t_ref[...] * y, axis=1, keepdims=True) + bca1_ref[...]   # (Cr, 1)
    z = jnp.maximum(z, 0.0)
    s = jnp.sum(wca2_ref[...] * z, axis=0, keepdims=True) + bca2_ref[...]    # (1, C)
    ca = res * jax.nn.sigmoid(s)                               # (M, C) f32

    # ---- conv1x1 over concat([sa, ca]) as two bf16 matmuls + residual ----
    out = jnp.dot(sa.astype(jnp.bfloat16), w11sa_ref[...],
                  preferred_element_type=jnp.float32)
    out = out + jnp.dot(ca.astype(jnp.bfloat16), w11ca_ref[...],
                        preferred_element_type=jnp.float32)
    out = out + b11_ref[...] + conv_out
    o_ref[0] = out.reshape(Hp, Wp, C).astype(o_ref.dtype)


# ---------------------------------------------------------------------------
# DownAtt forward (wrapper: layout transposes + weight packing/casting)
# ---------------------------------------------------------------------------
def down_att_forward(x_nchw, p):
    x = jnp.transpose(x_nchw, (0, 2, 3, 1))                    # NCHW -> NHWC
    N, H, W, Cin = x.shape
    C = p["wb1"].shape[-1]
    Cr = p["w_ca1"].shape[-1]
    Hp, Wp = H // 2, W // 2
    bf16 = jnp.bfloat16

    # Pre-cast matmul weights to bf16 once (f32 accumulation happens in-kernel).
    w0 = p["w0"].astype(bf16)
    wb1 = p["wb1"].astype(bf16)
    wb2 = p["wb2"].astype(bf16)
    w11sa = p["w11_sa"].astype(bf16)
    w11ca = p["w11_ca"].astype(bf16)
    # Squeeze-excite weights in VPU-friendly layouts (avoid in-kernel transposes).
    wca1t = jnp.transpose(p["w_ca1"])                          # (Cr, C)
    bca1 = p["b_ca1"].reshape(Cr, 1)                           # (Cr, 1)

    out = pl.pallas_call(
        _down_att_kernel,
        out_shape=jax.ShapeDtypeStruct((N, Hp, Wp, C), x.dtype),
        grid=(N,),
        in_specs=[
            pl.BlockSpec((1, H, W, Cin), lambda n: (n, 0, 0, 0)),
            pl.BlockSpec((3, 3, Cin, C), lambda n: (0, 0, 0, 0)),
            pl.BlockSpec((1, C), lambda n: (0, 0)),
            pl.BlockSpec((3, 3, C, C), lambda n: (0, 0, 0, 0)),
            pl.BlockSpec((1, C), lambda n: (0, 0)),
            pl.BlockSpec((3, 3, C, C), lambda n: (0, 0, 0, 0)),
            pl.BlockSpec((1, C), lambda n: (0, 0)),
            pl.BlockSpec(memory_space=pltpu.MemorySpace.SMEM),   # spatial conv w
            pl.BlockSpec((Cr, C), lambda n: (0, 0)),
            pl.BlockSpec((Cr, 1), lambda n: (0, 0)),
            pl.BlockSpec((Cr, C), lambda n: (0, 0)),
            pl.BlockSpec((1, C), lambda n: (0, 0)),
            pl.BlockSpec((C, C), lambda n: (0, 0)),
            pl.BlockSpec((C, C), lambda n: (0, 0)),
            pl.BlockSpec((1, C), lambda n: (0, 0)),
        ],
        out_specs=pl.BlockSpec((1, Hp, Wp, C), lambda n: (n, 0, 0, 0)),
        scratch_shapes=[
            pltpu.VMEM((Hp + 2, Wp + 2, Cin), jnp.float32),     # padded pooled
            pltpu.VMEM((Hp + 2, Wp + 2, C), jnp.float32),       # padded body act
            pltpu.VMEM((Hp + 2, Wp + 2, 1), jnp.float32),       # padded ch-max
            pltpu.VMEM((Hp + 2, Wp + 2, 1), jnp.float32),       # padded ch-mean
        ],
        compiler_params=pltpu.CompilerParams(
            dimension_semantics=("parallel",)),
    )(x, w0, p["b0"], wb1, p["bb1"], wb2, p["bb2"], p["w_sp_flat"],
      wca1t, bca1, p["w_ca2"], p["b_ca2"], w11sa, w11ca, p["b11"])
    return jnp.transpose(out, (0, 3, 1, 2))                    # NHWC -> NCHW


# ---------------------------------------------------------------------------
# Pure-JAX reference (f32; for numerical validation)
# ---------------------------------------------------------------------------
def _conv_ref(x, w, b=None, pad=1):
    out = lax.conv_general_dilated(
        x, w, (1, 1), [(pad, pad), (pad, pad)],
        dimension_numbers=("NHWC", "HWIO", "NHWC"))
    if b is not None:
        out = out + b
    return out


def down_att_ref(x_nchw, p):
    x = jnp.transpose(x_nchw, (0, 2, 3, 1))
    N, H, W, C = x.shape
    xr = x.reshape(N, H // 2, 2, W // 2, 2, C)
    pooled = jnp.max(xr, axis=(2, 4))
    conv_out = jax.nn.relu(_conv_ref(pooled, p["w0"], p["b0"]))
    h = jax.nn.relu(_conv_ref(conv_out, p["wb1"], p["bb1"]))
    res = _conv_ref(h, p["wb2"], p["bb2"])
    # spatial attention
    mx = jnp.max(res, axis=-1, keepdims=True)
    mn = jnp.mean(res, axis=-1, keepdims=True)
    comp = jnp.concatenate([mx, mn], axis=-1)
    scale = jax.nn.sigmoid(_conv_ref(comp, p["w_sp"]))
    sa = res * scale
    # channel attention
    y = jnp.mean(res, axis=(1, 2), keepdims=True)
    z = jax.nn.relu(jnp.einsum("nijc,cr->nijr", y, p["w_ca1"]) + p["b_ca1"])
    s = jax.nn.sigmoid(jnp.einsum("nijr,rc->nijc", z, p["w_ca2"]) + p["b_ca2"])
    ca = res * s
    cat = jnp.concatenate([sa, ca], axis=-1)
    w11 = jnp.concatenate([p["w11_sa"], p["w11_ca"]], axis=0)
    out = jnp.einsum("nhwc,cd->nhwd", cat, w11) + p["b11"] + conv_out
    return jnp.transpose(out, (0, 3, 1, 2))


# ---------------------------------------------------------------------------
# Deterministic parameter init (synthetic; mirrors module __init__ shapes)
# ---------------------------------------------------------------------------
def init_params(key, in_channels, out_1, out_2, reduction=16):
    assert out_1 == out_2, "DAB requires n_feat_conv == n_feat for the residual"
    C, Cr = out_2, out_2 // reduction
    ks = jax.random.split(key, 12)

    def w(k, shape, fan_in):
        return (jax.random.normal(k, shape, jnp.float32) / np.sqrt(fan_in))

    p = {}
    p["w0"] = w(ks[0], (3, 3, in_channels, out_1), 9 * in_channels)
    p["b0"] = w(ks[1], (1, out_1), 9 * in_channels)
    p["wb1"] = w(ks[2], (3, 3, C, C), 9 * C)
    p["bb1"] = w(ks[3], (1, C), 9 * C)
    p["wb2"] = w(ks[4], (3, 3, C, C), 9 * C)
    p["bb2"] = w(ks[5], (1, C), 9 * C)
    p["w_sp"] = w(ks[6], (3, 3, 2, 1), 18)            # spatial conv, bias=False
    p["w_sp_flat"] = p["w_sp"].reshape(-1)            # (18,) SMEM scalars
    p["w_ca1"] = w(ks[7], (C, Cr), C)
    p["b_ca1"] = w(ks[8], (1, Cr), C)
    p["w_ca2"] = w(ks[9], (Cr, C), Cr)
    p["b_ca2"] = w(ks[10], (1, C), Cr)
    w11 = w(ks[11], (2 * C, C), 2 * C)
    p["w11_sa"], p["w11_ca"] = w11[:C], w11[C:]
    p["b11"] = jnp.zeros((1, C), jnp.float32)
    return p


if __name__ == "__main__":
    key = jax.random.PRNGKey(0)
    k_x, k_p = jax.random.split(key)

    N, Cin, H, W = 2, 4, 16, 16
    out_1 = out_2 = 32
    x = jax.random.normal(k_x, (N, Cin, H, W), jnp.float32)
    params = init_params(k_p, Cin, out_1, out_2)

    out = jax.jit(down_att_forward)(x, params)
    out = jax.block_until_ready(out)

    ref = jax.block_until_ready(down_att_ref(x, params))
    assert out.shape == (N, out_2, H // 2, W // 2), out.shape
    # bf16 MXU inputs (f32 accumulation) vs. f32 reference -> slightly looser tol.
    np.testing.assert_allclose(np.asarray(out), np.asarray(ref),
                               rtol=5e-2, atol=5e-2)
    print("KERNEL_OK")
</pallas_src>

<mosaic_0001>
module attributes {stable_mosaic.version = 11 : i64} {
  func.func @_down_att_kernel(%arg0: i32, %arg1: memref<1x16x16x4xf32, #tpu.memory_space<vmem>>, %arg2: memref<3x3x4x32xbf16, #tpu.memory_space<vmem>>, %arg3: memref<1x32xf32, #tpu.memory_space<vmem>>, %arg4: memref<3x3x32x32xbf16, #tpu.memory_space<vmem>>, %arg5: memref<1x32xf32, #tpu.memory_space<vmem>>, %arg6: memref<3x3x32x32xbf16, #tpu.memory_space<vmem>>, %arg7: memref<1x32xf32, #tpu.memory_space<vmem>>, %arg8: memref<18xf32, #tpu.memory_space<smem>>, %arg9: memref<2x32xf32, #tpu.memory_space<vmem>>, %arg10: memref<2x1xf32, #tpu.memory_space<vmem>>, %arg11: memref<2x32xf32, #tpu.memory_space<vmem>>, %arg12: memref<1x32xf32, #tpu.memory_space<vmem>>, %arg13: memref<32x32xbf16, #tpu.memory_space<vmem>>, %arg14: memref<32x32xbf16, #tpu.memory_space<vmem>>, %arg15: memref<1x32xf32, #tpu.memory_space<vmem>>, %arg16: memref<1x8x8x32xf32, #tpu.memory_space<vmem>>, %arg17: memref<10x10x4xf32, #tpu.memory_space<vmem>>, %arg18: memref<10x10x32xf32, #tpu.memory_space<vmem>>, %arg19: memref<10x10x1xf32, #tpu.memory_space<vmem>>, %arg20: memref<10x10x1xf32, #tpu.memory_space<vmem>>) attributes {dimension_semantics = [#tpu.dimension_semantics<parallel>], iteration_bounds = array<i64: 2>, scalar_prefetch = 0 : i64, scratch_operands = 4 : i64, tpu.core_type = #tpu.core_type<tc>, window_params = [{transform_indices = @transform_0, window_bounds = array<i64: 1, 16, 16, 4>}, {pipeline_mode = #tpu.pipeline_mode<synchronous>, transform_indices = @transform_1, window_bounds = array<i64: 3, 3, 4, 32>}, {pipeline_mode = #tpu.pipeline_mode<synchronous>, transform_indices = @transform_2, window_bounds = array<i64: 1, 32>}, {pipeline_mode = #tpu.pipeline_mode<synchronous>, transform_indices = @transform_3, window_bounds = array<i64: 3, 3, 32, 32>}, {pipeline_mode = #tpu.pipeline_mode<synchronous>, transform_indices = @transform_4, window_bounds = array<i64: 1, 32>}, {pipeline_mode = #tpu.pipeline_mode<synchronous>, transform_indices = @transform_5, window_bounds = array<i64: 3, 3, 32, 32>}, {pipeline_mode = #tpu.pipeline_mode<synchronous>, transform_indices = @transform_6, window_bounds = array<i64: 1, 32>}, {transform_indices = @transform_7, window_bounds = array<i64: 18>}, {pipeline_mode = #tpu.pipeline_mode<synchronous>, transform_indices = @transform_8, window_bounds = array<i64: 2, 32>}, {pipeline_mode = #tpu.pipeline_mode<synchronous>, transform_indices = @transform_9, window_bounds = array<i64: 2, 1>}, {pipeline_mode = #tpu.pipeline_mode<synchronous>, transform_indices = @transform_10, window_bounds = array<i64: 2, 32>}, {pipeline_mode = #tpu.pipeline_mode<synchronous>, transform_indices = @transform_11, window_bounds = array<i64: 1, 32>}, {pipeline_mode = #tpu.pipeline_mode<synchronous>, transform_indices = @transform_12, window_bounds = array<i64: 32, 32>}, {pipeline_mode = #tpu.pipeline_mode<synchronous>, transform_indices = @transform_13, window_bounds = array<i64: 32, 32>}, {pipeline_mode = #tpu.pipeline_mode<synchronous>, transform_indices = @transform_14, window_bounds = array<i64: 1, 32>}, {transform_indices = @transform_15, window_bounds = array<i64: 1, 8, 8, 32>}]} {
    %c0 = arith.constant 0 : index
    %c0_0 = arith.constant 0 : index
    %c0_1 = arith.constant 0 : index
    %c0_2 = arith.constant 0 : index
    %0 = vector.load %arg1[%c0, %c0_0, %c0_1, %c0_2] : memref<1x16x16x4xf32, #tpu.memory_space<vmem>>, vector<1x16x16x4xf32>
    %1 = vector.shape_cast %0 : vector<1x16x16x4xf32> to vector<16x16x4xf32>
    %2 = vector.shape_cast %1 : vector<16x16x4xf32> to vector<16x8x2x4xf32>
    %3 = vector.extract_strided_slice %2 {offsets = [0, 0, 0, 0], sizes = [16, 8, 1, 4], strides = [1, 1, 1, 1]} : vector<16x8x2x4xf32> to vector<16x8x1x4xf32>
    %4 = vector.shape_cast %3 : vector<16x8x1x4xf32> to vector<16x8x4xf32>
    %5 = vector.extract_strided_slice %2 {offsets = [0, 0, 1, 0], sizes = [16, 8, 1, 4], strides = [1, 1, 1, 1]} : vector<16x8x2x4xf32> to vector<16x8x1x4xf32>
    %6 = vector.shape_cast %5 : vector<16x8x1x4xf32> to vector<16x8x4xf32>
    %7 = arith.maximumf %4, %6 : vector<16x8x4xf32>
    %8 = vector.shape_cast %7 : vector<16x8x4xf32> to vector<8x2x8x4xf32>
    %9 = vector.extract_strided_slice %8 {offsets = [0, 0, 0, 0], sizes = [8, 1, 8, 4], strides = [1, 1, 1, 1]} : vector<8x2x8x4xf32> to vector<8x1x8x4xf32>
    %10 = vector.shape_cast %9 : vector<8x1x8x4xf32> to vector<8x8x4xf32>
    %11 = vector.extract_strided_slice %8 {offsets = [0, 1, 0, 0], sizes = [8, 1, 8, 4], strides = [1, 1, 1, 1]} : vector<8x2x8x4xf32> to vector<8x1x8x4xf32>
    %12 = vector.shape_cast %11 : vector<8x1x8x4xf32> to vector<8x8x4xf32>
    %13 = arith.maximumf %10, %12 : vector<8x8x4xf32>
    %cst = arith.constant 0.000000e+00 : f32
    %14 = vector.broadcast %cst : f32 to vector<10x10x4xf32>
    %c0_3 = arith.constant 0 : index
    %c0_4 = arith.constant 0 : index
    %c0_5 = arith.constant 0 : index
    %15 = vector.load %arg17[%c0_3, %c0_4, %c0_5] : memref<10x10x4xf32, #tpu.memory_space<vmem>>, vector<10x10x4xf32>
    tpu.vector_store %arg17[%c0_3, %c0_4, %c0_5], %14 {strides = array<i32>} : memref<10x10x4xf32, #tpu.memory_space<vmem>>, vector<10x10x4xf32>,
    %c1 = arith.constant 1 : index
    %c1_6 = arith.constant 1 : index
    %c0_7 = arith.constant 0 : index
    %16 = vector.load %arg17[%c1, %c1_6, %c0_7] : memref<10x10x4xf32, #tpu.memory_space<vmem>>, vector<8x8x4xf32>
    tpu.vector_store %arg17[%c1, %c1_6, %c0_7], %13 {strides = array<i32>} : memref<10x10x4xf32, #tpu.memory_space<vmem>>, vector<8x8x4xf32>,
    %c0_8 = arith.constant 0 : index
    %c0_9 = arith.constant 0 : index
    %c0_10 = arith.constant 0 : index
    %17 = vector.load %arg17[%c0_8, %c0_9, %c0_10] : memref<10x10x4xf32, #tpu.memory_space<vmem>>, vector<10x10x4xf32>
    %cst_11 = arith.constant 0.000000e+00 : f32
    %18 = vector.broadcast %cst_11 : f32 to vector<64x32xf32>
    %19 = vector.extract_strided_slice %17 {offsets = [0, 0, 0], sizes = [8, 8, 4], strides = [1, 1, 1]} : vector<10x10x4xf32> to vector<8x8x4xf32>
    %20 = vector.shape_cast %19 : vector<8x8x4xf32> to vector<64x4xf32>
    %21 = arith.truncf %20 : vector<64x4xf32> to vector<64x4xbf16>
    %c0_12 = arith.constant 0 : index
    %c0_13 = arith.constant 0 : index
    %c0_14 = arith.constant 0 : index
    %c0_15 = arith.constant 0 : index
    %22 = vector.load %arg2[%c0_12, %c0_13, %c0_14, %c0_15] : memref<3x3x4x32xbf16, #tpu.memory_space<vmem>>, vector<1x1x4x32xbf16>
    %23 = vector.shape_cast %22 : vector<1x1x4x32xbf16> to vector<4x32xbf16>
    %cst_16 = arith.constant dense<0.000000e+00> : vector<64x32xf32>
    %24 = tpu.matmul %21, %23, %cst_16 {dimension_numbers = #tpu.dot_dimension_numbers<[1], [0], [0], [1], [0, 0, 1, 1], [], []>} : vector<64x4xbf16>, vector<4x32xbf16>, vector<64x32xf32> -> vector<64x32xf32>
    %25 = arith.addf %18, %24 : vector<64x32xf32>
    %26 = vector.extract_strided_slice %17 {offsets = [0, 1, 0], sizes = [8, 8, 4], strides = [1, 1, 1]} : vector<10x10x4xf32> to vector<8x8x4xf32>
    %27 = vector.shape_cast %26 : vector<8x8x4xf32> to vector<64x4xf32>
    %28 = arith.truncf %27 : vector<64x4xf32> to vector<64x4xbf16>
    %c0_17 = arith.constant 0 : index
    %c1_18 = arith.constant 1 : index
    %c0_19 = arith.constant 0 : index
    %c0_20 = arith.constant 0 : index
    %29 = vector.load %arg2[%c0_17, %c1_18, %c0_19, %c0_20] : memref<3x3x4x32xbf16, #tpu.memory_space<vmem>>, vector<1x1x4x32xbf16>
    %30 = vector.shape_cast %29 : vector<1x1x4x32xbf16> to vector<4x32xbf16>
    %cst_21 = arith.constant dense<0.000000e+00> : vector<64x32xf32>
    %31 = tpu.matmul %28, %30, %cst_21 {dimension_numbers = #tpu.dot_dimension_numbers<[1], [0], [0], [1], [0, 0, 1, 1], [], []>} : vector<64x4xbf16>, vector<4x32xbf16>, vector<64x32xf32> -> vector<64x32xf32>
    %32 = arith.addf %25, %31 : vector<64x32xf32>
    %33 = vector.extract_strided_slice %17 {offsets = [0, 2, 0], sizes = [8, 8, 4], strides = [1, 1, 1]} : vector<10x10x4xf32> to vector<8x8x4xf32>
    %34 = vector.shape_cast %33 : vector<8x8x4xf32> to vector<64x4xf32>
    %35 = arith.truncf %34 : vector<64x4xf32> to vector<64x4xbf16>
    %c0_22 = arith.constant 0 : index
    %c2 = arith.constant 2 : index
    %c0_23 = arith.constant 0 : index
    %c0_24 = arith.constant 0 : index
    %36 = vector.load %arg2[%c0_22, %c2, %c0_23, %c0_24] : memref<3x3x4x32xbf16, #tpu.memory_space<vmem>>, vector<1x1x4x32xbf16>
    %37 = vector.shape_cast %36 : vector<1x1x4x32xbf16> to vector<4x32xbf16>
    %cst_25 = arith.constant dense<0.000000e+00> : vector<64x32xf32>
    %38 = tpu.matmul %35, %37, %cst_25 {dimension_numbers = #tpu.dot_dimension_numbers<[1], [0], [0], [1], [0, 0, 1, 1], [], []>} : vector<64x4xbf16>, vector<4x32xbf16>, vector<64x32xf32> -> vector<64x32xf32>
    %39 = arith.addf %32, %38 : vector<64x32xf32>
    %40 = vector.extract_strided_slice %17 {offsets = [1, 0, 0], sizes = [8, 8, 4], strides = [1, 1, 1]} : vector<10x10x4xf32> to vector<8x8x4xf32>
    %41 = vector.shape_cast %40 : vector<8x8x4xf32> to vector<64x4xf32>
    %42 = arith.truncf %41 : vector<64x4xf32> to vector<64x4xbf16>
    %c1_26 = arith.constant 1 : index
    %c0_27 = arith.constant 0 : index
    %c0_28 = arith.constant 0 : index
    %c0_29 = arith.constant 0 : index
    %43 = vector.load %arg2[%c1_26, %c0_27, %c0_28, %c0_29] : memref<3x3x4x32xbf16, #tpu.memory_space<vmem>>, vector<1x1x4x32xbf16>
    %44 = vector.shape_cast %43 : vector<1x1x4x32xbf16> to vector<4x32xbf16>
    %cst_30 = arith.constant dense<0.000000e+00> : vector<64x32xf32>
    %45 = tpu.matmul %42, %44, %cst_30 {dimension_numbers = #tpu.dot_dimension_numbers<[1], [0], [0], [1], [0, 0, 1, 1], [], []>} : vector<64x4xbf16>, vector<4x32xbf16>, vector<64x32xf32> -> vector<64x32xf32>
    %46 = arith.addf %39, %45 : vector<64x32xf32>
    %47 = vector.extract_strided_slice %17 {offsets = [1, 1, 0], sizes = [8, 8, 4], strides = [1, 1, 1]} : vector<10x10x4xf32> to vector<8x8x4xf32>
    %48 = vector.shape_cast %47 : vector<8x8x4xf32> to vector<64x4xf32>
    %49 = arith.truncf %48 : vector<64x4xf32> to vector<64x4xbf16>
    %c1_31 = arith.constant 1 : index
    %c1_32 = arith.constant 1 : index
    %c0_33 = arith.constant 0 : index
    %c0_34 = arith.constant 0 : index
    %50 = vector.load %arg2[%c1_31, %c1_32, %c0_33, %c0_34] : memref<3x3x4x32xbf16, #tpu.memory_space<vmem>>, vector<1x1x4x32xbf16>
    %51 = vector.shape_cast %50 : vector<1x1x4x32xbf16> to vector<4x32xbf16>
    %cst_35 = arith.constant dense<0.000000e+00> : vector<64x32xf32>
    %52 = tpu.matmul %49, %51, %cst_35 {dimension_numbers = #tpu.dot_dimension_numbers<[1], [0], [0], [1], [0, 0, 1, 1], [], []>} : vector<64x4xbf16>, vector<4x32xbf16>, vector<64x32xf32> -> vector<64x32xf32>
    %53 = arith.addf %46, %52 : vector<64x32xf32>
    %54 = vector.extract_strided_slice %17 {offsets = [1, 2, 0], sizes = [8, 8, 4], strides = [1, 1, 1]} : vector<10x10x4xf32> to vector<8x8x4xf32>
    %55 = vector.shape_cast %54 : vector<8x8x4xf32> to vector<64x4xf32>
    %56 = arith.truncf %55 : vector<64x4xf32> to vector<64x4xbf16>
    %c1_36 = arith.constant 1 : index
    %c2_37 = arith.constant 2 : index
    %c0_38 = arith.constant 0 : index
    %c0_39 = arith.constant 0 : index
    %57 = vector.load %arg2[%c1_36, %c2_37, %c0_38, %c0_39] : memref<3x3x4x32xbf16, #tpu.memory_space<vmem>>, vector<1x1x4x32xbf16>
    %58 = vector.shape_cast %57 : vector<1x1x4x32xbf16> to vector<4x32xbf16>
    %cst_40 = arith.constant dense<0.000000e+00> : vector<64x32xf32>
    %59 = tpu.matmul %56, %58, %cst_40 {dimension_numbers = #tpu.dot_dimension_numbers<[1], [0], [0], [1], [0, 0, 1, 1], [], []>} : vector<64x4xbf16>, vector<4x32xbf16>, vector<64x32xf32> -> vector<64x32xf32>
    %60 = arith.addf %53, %59 : vector<64x32xf32>
    %61 = vector.extract_strided_slice %17 {offsets = [2, 0, 0], sizes = [8, 8, 4], strides = [1, 1, 1]} : vector<10x10x4xf32> to vector<8x8x4xf32>
    %62 = vector.shape_cast %61 : vector<8x8x4xf32> to vector<64x4xf32>
    %63 = arith.truncf %62 : vector<64x4xf32> to vector<64x4xbf16>
    %c2_41 = arith.constant 2 : index
    %c0_42 = arith.constant 0 : index
    %c0_43 = arith.constant 0 : index
    %c0_44 = arith.constant 0 : index
    %64 = vector.load %arg2[%c2_41, %c0_42, %c0_43, %c0_44] : memref<3x3x4x32xbf16, #tpu.memory_space<vmem>>, vector<1x1x4x32xbf16>
    %65 = vector.shape_cast %64 : vector<1x1x4x32xbf16> to vector<4x32xbf16>
    %cst_45 = arith.constant dense<0.000000e+00> : vector<64x32xf32>
    %66 = tpu.matmul %63, %65, %cst_45 {dimension_numbers = #tpu.dot_dimension_numbers<[1], [0], [0], [1], [0, 0, 1, 1], [], []>} : vector<64x4xbf16>, vector<4x32xbf16>, vector<64x32xf32> -> vector<64x32xf32>
    %67 = arith.addf %60, %66 : vector<64x32xf32>
    %68 = vector.extract_strided_slice %17 {offsets = [2, 1, 0], sizes = [8, 8, 4], strides = [1, 1, 1]} : vector<10x10x4xf32> to vector<8x8x4xf32>
    %69 = vector.shape_cast %68 : vector<8x8x4xf32> to vector<64x4xf32>
    %70 = arith.truncf %69 : vector<64x4xf32> to vector<64x4xbf16>
    %c2_46 = arith.constant 2 : index
    %c1_47 = arith.constant 1 : index
    %c0_48 = arith.constant 0 : index
    %c0_49 = arith.constant 0 : index
    %71 = vector.load %arg2[%c2_46, %c1_47, %c0_48, %c0_49] : memref<3x3x4x32xbf16, #tpu.memory_space<vmem>>, vector<1x1x4x32xbf16>
    %72 = vector.shape_cast %71 : vector<1x1x4x32xbf16> to vector<4x32xbf16>
    %cst_50 = arith.constant dense<0.000000e+00> : vector<64x32xf32>
    %73 = tpu.matmul %70, %72, %cst_50 {dimension_numbers = #tpu.dot_dimension_numbers<[1], [0], [0], [1], [0, 0, 1, 1], [], []>} : vector<64x4xbf16>, vector<4x32xbf16>, vector<64x32xf32> -> vector<64x32xf32>
    %74 = arith.addf %67, %73 : vector<64x32xf32>
    %75 = vector.extract_strided_slice %17 {offsets = [2, 2, 0], sizes = [8, 8, 4], strides = [1, 1, 1]} : vector<10x10x4xf32> to vector<8x8x4xf32>
    %76 = vector.shape_cast %75 : vector<8x8x4xf32> to vector<64x4xf32>
    %77 = arith.truncf %76 : vector<64x4xf32> to vector<64x4xbf16>
    %c2_51 = arith.constant 2 : index
    %c2_52 = arith.constant 2 : index
    %c0_53 = arith.constant 0 : index
    %c0_54 = arith.constant 0 : index
    %78 = vector.load %arg2[%c2_51, %c2_52, %c0_53, %c0_54] : memref<3x3x4x32xbf16, #tpu.memory_space<vmem>>, vector<1x1x4x32xbf16>
    %79 = vector.shape_cast %78 : vector<1x1x4x32xbf16> to vector<4x32xbf16>
    %cst_55 = arith.constant dense<0.000000e+00> : vector<64x32xf32>
    %80 = tpu.matmul %77, %79, %cst_55 {dimension_numbers = #tpu.dot_dimension_numbers<[1], [0], [0], [1], [0, 0, 1, 1], [], []>} : vector<64x4xbf16>, vector<4x32xbf16>, vector<64x32xf32> -> vector<64x32xf32>
    %81 = arith.addf %74, %80 : vector<64x32xf32>
    %c0_56 = arith.constant 0 : index
    %c0_57 = arith.constant 0 : index
    %82 = vector.load %arg3[%c0_56, %c0_57] : memref<1x32xf32, #tpu.memory_space<vmem>>, vector<1x32xf32>
    %83 = vector.broadcast %82 : vector<1x32xf32> to vector<64x32xf32>
    %84 = arith.addf %81, %83 : vector<64x32xf32>
    %cst_58 = arith.constant 0.000000e+00 : f32
    %85 = vector.broadcast %cst_58 : f32 to vector<64x32xf32>
    %86 = arith.maximumf %84, %85 : vector<64x32xf32>
    %87 = vector.shape_cast %86 : vector<64x32xf32> to vector<8x8x32xf32>
    %cst_59 = arith.constant 0.000000e+00 : f32
    %88 = vector.broadcast %cst_59 : f32 to vector<10x10x32xf32>
    %c0_60 = arith.constant 0 : index
    %c0_61 = arith.constant 0 : index
    %c0_62 = arith.constant 0 : index
    %89 = vector.load %arg18[%c0_60, %c0_61, %c0_62] : memref<10x10x32xf32, #tpu.memory_space<vmem>>, vector<10x10x32xf32>
    tpu.vector_store %arg18[%c0_60, %c0_61, %c0_62], %88 {strides = array<i32>} : memref<10x10x32xf32, #tpu.memory_space<vmem>>, vector<10x10x32xf32>,
    %c1_63 = arith.constant 1 : index
    %c1_64 = arith.constant 1 : index
    %c0_65 = arith.constant 0 : index
    %90 = vector.load %arg18[%c1_63, %c1_64, %c0_65] : memref<10x10x32xf32, #tpu.memory_space<vmem>>, vector<8x8x32xf32>
    tpu.vector_store %arg18[%c1_63, %c1_64, %c0_65], %87 {strides = array<i32>} : memref<10x10x32xf32, #tpu.memory_space<vmem>>, vector<8x8x32xf32>,
    %c0_66 = arith.constant 0 : index
    %c0_67 = arith.constant 0 : index
    %c0_68 = arith.constant 0 : index
    %91 = vector.load %arg18[%c0_66, %c0_67, %c0_68] : memref<10x10x32xf32, #tpu.memory_space<vmem>>, vector<10x10x32xf32>
    %cst_69 = arith.constant 0.000000e+00 : f32
    %92 = vector.broadcast %cst_69 : f32 to vector<64x32xf32>
    %93 = vector.extract_strided_slice %91 {offsets = [0, 0, 0], sizes = [8, 8, 32], strides = [1, 1, 1]} : vector<10x10x32xf32> to vector<8x8x32xf32>
    %94 = vector.shape_cast %93 : vector<8x8x32xf32> to vector<64x32xf32>
    %95 = arith.truncf %94 : vector<64x32xf32> to vector<64x32xbf16>
    %c0_70 = arith.constant 0 : index
    %c0_71 = arith.constant 0 : index
    %c0_72 = arith.constant 0 : index
    %c0_73 = arith.constant 0 : index
    %96 = vector.load %arg4[%c0_70, %c0_71, %c0_72, %c0_73] : memref<3x3x32x32xbf16, #tpu.memory_space<vmem>>, vector<1x1x32x32xbf16>
    %97 = vector.shape_cast %96 : vector<1x1x32x32xbf16> to vector<32x32xbf16>
    %cst_74 = arith.constant dense<0.000000e+00> : vector<64x32xf32>
    %98 = tpu.matmul %95, %97, %cst_74 {dimension_numbers = #tpu.dot_dimension_numbers<[1], [0], [0], [1], [0, 0, 1, 1], [], []>} : vector<64x32xbf16>, vector<32x32xbf16>, vector<64x32xf32> -> vector<64x32xf32>
    %99 = arith.addf %92, %98 : vector<64x32xf32>
    %100 = vector.extract_strided_slice %91 {offsets = [0, 1, 0], sizes = [8, 8, 32], strides = [1, 1, 1]} : vector<10x10x32xf32> to vector<8x8x32xf32>
    %101 = vector.shape_cast %100 : vector<8x8x32xf32> to vector<64x32xf32>
    %102 = arith.truncf %101 : vector<64x32xf32> to vector<64x32xbf16>
    %c0_75 = arith.constant 0 : index
    %c1_76 = arith.constant 1 : index
    %c0_77 = arith.constant 0 : index
    %c0_78 = arith.constant 0 : index
    %103 = vector.load %arg4[%c0_75, %c1_76, %c0_77, %c0_78] : memref<3x3x32x32xbf16, #tpu.memory_space<vmem>>, vector<1x1x32x32xbf16>
    %104 = vector.shape_cast %103 : vector<1x1x32x32xbf16> to vector<32x32xbf16>
    %cst_79 = arith.constant dense<0.000000e+00> : vector<64x32xf32>
    %105 = tpu.matmul %102, %104, %cst_79 {dimension_numbers = #tpu.dot_dimension_numbers<[1], [0], [0], [1], [0, 0, 1, 1], [], []>} : vector<64x32xbf16>, vector<32x32xbf16>, vector<64x32xf32> -> vector<64x32xf32>
    %106 = arith.addf %99, %105 : vector<64x32xf32>
    %107 = vector.extract_strided_slice %91 {offsets = [0, 2, 0], sizes = [8, 8, 32], strides = [1, 1, 1]} : vector<10x10x32xf32> to vector<8x8x32xf32>
    %108 = vector.shape_cast %107 : vector<8x8x32xf32> to vector<64x32xf32>
    %109 = arith.truncf %108 : vector<64x32xf32> to vector<64x32xbf16>
    %c0_80 = arith.constant 0 : index
    %c2_81 = arith.constant 2 : index
    %c0_82 = arith.constant 0 : index
    %c0_83 = arith.constant 0 : index
    %110 = vector.load %arg4[%c0_80, %c2_81, %c0_82, %c0_83] : memref<3x3x32x32xbf16, #tpu.memory_space<vmem>>, vector<1x1x32x32xbf16>
    %111 = vector.shape_cast %110 : vector<1x1x32x32xbf16> to vector<32x32xbf16>
    %cst_84 = arith.constant dense<0.000000e+00> : vector<64x32xf32>
    %112 = tpu.matmul %109, %111, %cst_84 {dimension_numbers = #tpu.dot_dimension_numbers<[1], [0], [0], [1], [0, 0, 1, 1], [], []>} : vector<64x32xbf16>, vector<32x32xbf16>, vector<64x32xf32> -> vector<64x32xf32>
    %113 = arith.addf %106, %112 : vector<64x32xf32>
    %114 = vector.extract_strided_slice %91 {offsets = [1, 0, 0], sizes = [8, 8, 32], strides = [1, 1, 1]} : vector<10x10x32xf32> to vector<8x8x32xf32>
    %115 = vector.shape_cast %114 : vector<8x8x32xf32> to vector<64x32xf32>
    %116 = arith.truncf %115 : vector<64x32xf32> to vector<64x32xbf16>
    %c1_85 = arith.constant 1 : index
    %c0_86 = arith.constant 0 : index
    %c0_87 = arith.constant 0 : index
    %c0_88 = arith.constant 0 : index
    %117 = vector.load %arg4[%c1_85, %c0_86, %c0_87, %c0_88] : memref<3x3x32x32xbf16, #tpu.memory_space<vmem>>, vector<1x1x32x32xbf16>
    %118 = vector.shape_cast %117 : vector<1x1x32x32xbf16> to vector<32x32xbf16>
    %cst_89 = arith.constant dense<0.000000e+00> : vector<64x32xf32>
    %119 = tpu.matmul %116, %118, %cst_89 {dimension_numbers = #tpu.dot_dimension_numbers<[1], [0], [0], [1], [0, 0, 1, 1], [], []>} : vector<64x32xbf16>, vector<32x32xbf16>, vector<64x32xf32> -> vector<64x32xf32>
    %120 = arith.addf %113, %119 : vector<64x32xf32>
    %121 = vector.extract_strided_slice %91 {offsets = [1, 1, 0], sizes = [8, 8, 32], strides = [1, 1, 1]} : vector<10x10x32xf32> to vector<8x8x32xf32>
    %122 = vector.shape_cast %121 : vector<8x8x32xf32> to vector<64x32xf32>
    %123 = arith.truncf %122 : vector<64x32xf32> to vector<64x32xbf16>
    %c1_90 = arith.constant 1 : index
    %c1_91 = arith.constant 1 : index
    %c0_92 = arith.constant 0 : index
    %c0_93 = arith.constant 0 : index
    %124 = vector.load %arg4[%c1_90, %c1_91, %c0_92, %c0_93] : memref<3x3x32x32xbf16, #tpu.memory_space<vmem>>, vector<1x1x32x32xbf16>
    %125 = vector.shape_cast %124 : vector<1x1x32x32xbf16> to vector<32x32xbf16>
    %cst_94 = arith.constant dense<0.000000e+00> : vector<64x32xf32>
    %126 = tpu.matmul %123, %125, %cst_94 {dimension_numbers = #tpu.dot_dimension_numbers<[1], [0], [0], [1], [0, 0, 1, 1], [], []>} : vector<64x32xbf16>, vector<32x32xbf16>, vector<64x32xf32> -> vector<64x32xf32>
    %127 = arith.addf %120, %126 : vector<64x32xf32>
    %128 = vector.extract_strided_slice %91 {offsets = [1, 2, 0], sizes = [8, 8, 32], strides = [1, 1, 1]} : vector<10x10x32xf32> to vector<8x8x32xf32>
    %129 = vector.shape_cast %128 : vector<8x8x32xf32> to vector<64x32xf32>
    %130 = arith.truncf %129 : vector<64x32xf32> to vector<64x32xbf16>
    %c1_95 = arith.constant 1 : index
    %c2_96 = arith.constant 2 : index
    %c0_97 = arith.constant 0 : index
    %c0_98 = arith.constant 0 : index
    %131 = vector.load %arg4[%c1_95, %c2_96, %c0_97, %c0_98] : memref<3x3x32x32xbf16, #tpu.memory_space<vmem>>, vector<1x1x32x32xbf16>
    %132 = vector.shape_cast %131 : vector<1x1x32x32xbf16> to vector<32x32xbf16>
    %cst_99 = arith.constant dense<0.000000e+00> : vector<64x32xf32>
    %133 = tpu.matmul %130, %132, %cst_99 {dimension_numbers = #tpu.dot_dimension_numbers<[1], [0], [0], [1], [0, 0, 1, 1], [], []>} : vector<64x32xbf16>, vector<32x32xbf16>, vector<64x32xf32> -> vector<64x32xf32>
    %134 = arith.addf %127, %133 : vector<64x32xf32>
    %135 = vector.extract_strided_slice %91 {offsets = [2, 0, 0], sizes = [8, 8, 32], strides = [1, 1, 1]} : vector<10x10x32xf32> to vector<8x8x32xf32>
    %136 = vector.shape_cast %135 : vector<8x8x32xf32> to vector<64x32xf32>
    %137 = arith.truncf %136 : vector<64x32xf32> to vector<64x32xbf16>
    %c2_100 = arith.constant 2 : index
    %c0_101 = arith.constant 0 : index
    %c0_102 = arith.constant 0 : index
    %c0_103 = arith.constant 0 : index
    %138 = vector.load %arg4[%c2_100, %c0_101, %c0_102, %c0_103] : memref<3x3x32x32xbf16, #tpu.memory_space<vmem>>, vector<1x1x32x32xbf16>
    %139 = vector.shape_cast %138 : vector<1x1x32x32xbf16> to vector<32x32xbf16>
    %cst_104 = arith.constant dense<0.000000e+00> : vector<64x32xf32>
    %140 = tpu.matmul %137, %139, %cst_104 {dimension_numbers = #tpu.dot_dimension_numbers<[1], [0], [0], [1], [0, 0, 1, 1], [], []>} : vector<64x32xbf16>, vector<32x32xbf16>, vector<64x32xf32> -> vector<64x32xf32>
    %141 = arith.addf %134, %140 : vector<64x32xf32>
    %142 = vector.extract_strided_slice %91 {offsets = [2, 1, 0], sizes = [8, 8, 32], strides = [1, 1, 1]} : vector<10x10x32xf32> to vector<8x8x32xf32>
    %143 = vector.shape_cast %142 : vector<8x8x32xf32> to vector<64x32xf32>
    %144 = arith.truncf %143 : vector<64x32xf32> to vector<64x32xbf16>
    %c2_105 = arith.constant 2 : index
    %c1_106 = arith.constant 1 : index
    %c0_107 = arith.constant 0 : index
    %c0_108 = arith.constant 0 : index
    %145 = vector.load %arg4[%c2_105, %c1_106, %c0_107, %c0_108] : memref<3x3x32x32xbf16, #tpu.memory_space<vmem>>, vector<1x1x32x32xbf16>
    %146 = vector.shape_cast %145 : vector<1x1x32x32xbf16> to vector<32x32xbf16>
    %cst_109 = arith.constant dense<0.000000e+00> : vector<64x32xf32>
    %147 = tpu.matmul %144, %146, %cst_109 {dimension_numbers = #tpu.dot_dimension_numbers<[1], [0], [0], [1], [0, 0, 1, 1], [], []>} : vector<64x32xbf16>, vector<32x32xbf16>, vector<64x32xf32> -> vector<64x32xf32>
    %148 = arith.addf %141, %147 : vector<64x32xf32>
    %149 = vector.extract_strided_slice %91 {offsets = [2, 2, 0], sizes = [8, 8, 32], strides = [1, 1, 1]} : vector<10x10x32xf32> to vector<8x8x32xf32>
    %150 = vector.shape_cast %149 : vector<8x8x32xf32> to vector<64x32xf32>
    %151 = arith.truncf %150 : vector<64x32xf32> to vector<64x32xbf16>
    %c2_110 = arith.constant 2 : index
    %c2_111 = arith.constant 2 : index
    %c0_112 = arith.constant 0 : index
    %c0_113 = arith.constant 0 : index
    %152 = vector.load %arg4[%c2_110, %c2_111, %c0_112, %c0_113] : memref<3x3x32x32xbf16, #tpu.memory_space<vmem>>, vector<1x1x32x32xbf16>
    %153 = vector.shape_cast %152 : vector<1x1x32x32xbf16> to vector<32x32xbf16>
    %cst_114 = arith.constant dense<0.000000e+00> : vector<64x32xf32>
    %154 = tpu.matmul %151, %153, %cst_114 {dimension_numbers = #tpu.dot_dimension_numbers<[1], [0], [0], [1], [0, 0, 1, 1], [], []>} : vector<64x32xbf16>, vector<32x32xbf16>, vector<64x32xf32> -> vector<64x32xf32>
    %155 = arith.addf %148, %154 : vector<64x32xf32>
    %c0_115 = arith.constant 0 : index
    %c0_116 = arith.constant 0 : index
    %156 = vector.load %arg5[%c0_115, %c0_116] : memref<1x32xf32, #tpu.memory_space<vmem>>, vector<1x32xf32>
    %157 = vector.broadcast %156 : vector<1x32xf32> to vector<64x32xf32>
    %158 = arith.addf %155, %157 : vector<64x32xf32>
    %cst_117 = arith.constant 0.000000e+00 : f32
    %159 = vector.broadcast %cst_117 : f32 to vector<64x32xf32>
    %160 = arith.maximumf %158, %159 : vector<64x32xf32>
    %161 = vector.shape_cast %160 : vector<64x32xf32> to vector<8x8x32xf32>
    %c1_118 = arith.constant 1 : index
    %c1_119 = arith.constant 1 : index
    %c0_120 = arith.constant 0 : index
    %162 = vector.load %arg18[%c1_118, %c1_119, %c0_120] : memref<10x10x32xf32, #tpu.memory_space<vmem>>, vector<8x8x32xf32>
    tpu.vector_store %arg18[%c1_118, %c1_119, %c0_120], %161 {strides = array<i32>} : memref<10x10x32xf32, #tpu.memory_space<vmem>>, vector<8x8x32xf32>,
    %c0_121 = arith.constant 0 : index
    %c0_122 = arith.constant 0 : index
    %c0_123 = arith.constant 0 : index
    %163 = vector.load %arg18[%c0_121, %c0_122, %c0_123] : memref<10x10x32xf32, #tpu.memory_space<vmem>>, vector<10x10x32xf32>
    %cst_124 = arith.constant 0.000000e+00 : f32
    %164 = vector.broadcast %cst_124 : f32 to vector<64x32xf32>
    %165 = vector.extract_strided_slice %163 {offsets = [0, 0, 0], sizes = [8, 8, 32], strides = [1, 1, 1]} : vector<10x10x32xf32> to vector<8x8x32xf32>
    %166 = vector.shape_cast %165 : vector<8x8x32xf32> to vector<64x32xf32>
    %167 = arith.truncf %166 : vector<64x32xf32> to vector<64x32xbf16>
    %c0_125 = arith.constant 0 : index
    %c0_126 = arith.constant 0 : index
    %c0_127 = arith.constant 0 : index
    %c0_128 = arith.constant 0 : index
    %168 = vector.load %arg6[%c0_125, %c0_126, %c0_127, %c0_128] : memref<3x3x32x32xbf16, #tpu.memory_space<vmem>>, vector<1x1x32x32xbf16>
    %169 = vector.shape_cast %168 : vector<1x1x32x32xbf16> to vector<32x32xbf16>
    %cst_129 = arith.constant dense<0.000000e+00> : vector<64x32xf32>
    %170 = tpu.matmul %167, %169, %cst_129 {dimension_numbers = #tpu.dot_dimension_numbers<[1], [0], [0], [1], [0, 0, 1, 1], [], []>} : vector<64x32xbf16>, vector<32x32xbf16>, vector<64x32xf32> -> vector<64x32xf32>
    %171 = arith.addf %164, %170 : vector<64x32xf32>
    %172 = vector.extract_strided_slice %163 {offsets = [0, 1, 0], sizes = [8, 8, 32], strides = [1, 1, 1]} : vector<10x10x32xf32> to vector<8x8x32xf32>
    %173 = vector.shape_cast %172 : vector<8x8x32xf32> to vector<64x32xf32>
    %174 = arith.truncf %173 : vector<64x32xf32> to vector<64x32xbf16>
    %c0_130 = arith.constant 0 : index
    %c1_131 = arith.constant 1 : index
    %c0_132 = arith.constant 0 : index
    %c0_133 = arith.constant 0 : index
    %175 = vector.load %arg6[%c0_130, %c1_131, %c0_132, %c0_133] : memref<3x3x32x32xbf16, #tpu.memory_space<vmem>>, vector<1x1x32x32xbf16>
    %176 = vector.shape_cast %175 : vector<1x1x32x32xbf16> to vector<32x32xbf16>
    %cst_134 = arith.constant dense<0.000000e+00> : vector<64x32xf32>
    %177 = tpu.matmul %174, %176, %cst_134 {dimension_numbers = #tpu.dot_dimension_numbers<[1], [0], [0], [1], [0, 0, 1, 1], [], []>} : vector<64x32xbf16>, vector<32x32xbf16>, vector<64x32xf32> -> vector<64x32xf32>
    %178 = arith.addf %171, %177 : vector<64x32xf32>
    %179 = vector.extract_strided_slice %163 {offsets = [0, 2, 0], sizes = [8, 8, 32], strides = [1, 1, 1]} : vector<10x10x32xf32> to vector<8x8x32xf32>
    %180 = vector.shape_cast %179 : vector<8x8x32xf32> to vector<64x32xf32>
    %181 = arith.truncf %180 : vector<64x32xf32> to vector<64x32xbf16>
    %c0_135 = arith.constant 0 : index
    %c2_136 = arith.constant 2 : index
    %c0_137 = arith.constant 0 : index
    %c0_138 = arith.constant 0 : index
    %182 = vector.load %arg6[%c0_135, %c2_136, %c0_137, %c0_138] : memref<3x3x32x32xbf16, #tpu.memory_space<vmem>>, vector<1x1x32x32xbf16>
    %183 = vector.shape_cast %182 : vector<1x1x32x32xbf16> to vector<32x32xbf16>
    %cst_139 = arith.constant dense<0.000000e+00> : vector<64x32xf32>
    %184 = tpu.matmul %181, %183, %cst_139 {dimension_numbers = #tpu.dot_dimension_numbers<[1], [0], [0], [1], [0, 0, 1, 1], [], []>} : vector<64x32xbf16>, vector<32x32xbf16>, vector<64x32xf32> -> vector<64x32xf32>
    %185 = arith.addf %178, %184 : vector<64x32xf32>
    %186 = vector.extract_strided_slice %163 {offsets = [1, 0, 0], sizes = [8, 8, 32], strides = [1, 1, 1]} : vector<10x10x32xf32> to vector<8x8x32xf32>
    %187 = vector.shape_cast %186 : vector<8x8x32xf32> to vector<64x32xf32>
    %188 = arith.truncf %187 : vector<64x32xf32> to vector<64x32xbf16>
    %c1_140 = arith.constant 1 : index
    %c0_141 = arith.constant 0 : index
    %c0_142 = arith.constant 0 : index
    %c0_143 = arith.constant 0 : index
    %189 = vector.load %arg6[%c1_140, %c0_141, %c0_142, %c0_143] : memref<3x3x32x32xbf16, #tpu.memory_space<vmem>>, vector<1x1x32x32xbf16>
    %190 = vector.shape_cast %189 : vector<1x1x32x32xbf16> to vector<32x32xbf16>
    %cst_144 = arith.constant dense<0.000000e+00> : vector<64x32xf32>
    %191 = tpu.matmul %188, %190, %cst_144 {dimension_numbers = #tpu.dot_dimension_numbers<[1], [0], [0], [1], [0, 0, 1, 1], [], []>} : vector<64x32xbf16>, vector<32x32xbf16>, vector<64x32xf32> -> vector<64x32xf32>
    %192 = arith.addf %185, %191 : vector<64x32xf32>
    %193 = vector.extract_strided_slice %163 {offsets = [1, 1, 0], sizes = [8, 8, 32], strides = [1, 1, 1]} : vector<10x10x32xf32> to vector<8x8x32xf32>
    %194 = vector.shape_cast %193 : vector<8x8x32xf32> to vector<64x32xf32>
    %195 = arith.truncf %194 : vector<64x32xf32> to vector<64x32xbf16>
    %c1_145 = arith.constant 1 : index
    %c1_146 = arith.constant 1 : index
    %c0_147 = arith.constant 0 : index
    %c0_148 = arith.constant 0 : index
    %196 = vector.load %arg6[%c1_145, %c1_146, %c0_147, %c0_148] : memref<3x3x32x32xbf16, #tpu.memory_space<vmem>>, vector<1x1x32x32xbf16>
    %197 = vector.shape_cast %196 : vector<1x1x32x32xbf16> to vector<32x32xbf16>
    %cst_149 = arith.constant dense<0.000000e+00> : vector<64x32xf32>
    %198 = tpu.matmul %195, %197, %cst_149 {dimension_numbers = #tpu.dot_dimension_numbers<[1], [0], [0], [1], [0, 0, 1, 1], [], []>} : vector<64x32xbf16>, vector<32x32xbf16>, vector<64x32xf32> -> vector<64x32xf32>
    %199 = arith.addf %192, %198 : vector<64x32xf32>
    %200 = vector.extract_strided_slice %163 {offsets = [1, 2, 0], sizes = [8, 8, 32], strides = [1, 1, 1]} : vector<10x10x32xf32> to vector<8x8x32xf32>
    %201 = vector.shape_cast %200 : vector<8x8x32xf32> to vector<64x32xf32>
    %202 = arith.truncf %201 : vector<64x32xf32> to vector<64x32xbf16>
    %c1_150 = arith.constant 1 : index
    %c2_151 = arith.constant 2 : index
    %c0_152 = arith.constant 0 : index
    %c0_153 = arith.constant 0 : index
    %203 = vector.load %arg6[%c1_150, %c2_151, %c0_152, %c0_153] : memref<3x3x32x32xbf16, #tpu.memory_space<vmem>>, vector<1x1x32x32xbf16>
    %204 = vector.shape_cast %203 : vector<1x1x32x32xbf16> to vector<32x32xbf16>
    %cst_154 = arith.constant dense<0.000000e+00> : vector<64x32xf32>
    %205 = tpu.matmul %202, %204, %cst_154 {dimension_numbers = #tpu.dot_dimension_numbers<[1], [0], [0], [1], [0, 0, 1, 1], [], []>} : vector<64x32xbf16>, vector<32x32xbf16>, vector<64x32xf32> -> vector<64x32xf32>
    %206 = arith.addf %199, %205 : vector<64x32xf32>
    %207 = vector.extract_strided_slice %163 {offsets = [2, 0, 0], sizes = [8, 8, 32], strides = [1, 1, 1]} : vector<10x10x32xf32> to vector<8x8x32xf32>
    %208 = vector.shape_cast %207 : vector<8x8x32xf32> to vector<64x32xf32>
    %209 = arith.truncf %208 : vector<64x32xf32> to vector<64x32xbf16>
    %c2_155 = arith.constant 2 : index
    %c0_156 = arith.constant 0 : index
    %c0_157 = arith.constant 0 : index
    %c0_158 = arith.constant 0 : index
    %210 = vector.load %arg6[%c2_155, %c0_156, %c0_157, %c0_158] : memref<3x3x32x32xbf16, #tpu.memory_space<vmem>>, vector<1x1x32x32xbf16>
    %211 = vector.shape_cast %210 : vector<1x1x32x32xbf16> to vector<32x32xbf16>
    %cst_159 = arith.constant dense<0.000000e+00> : vector<64x32xf32>
    %212 = tpu.matmul %209, %211, %cst_159 {dimension_numbers = #tpu.dot_dimension_numbers<[1], [0], [0], [1], [0, 0, 1, 1], [], []>} : vector<64x32xbf16>, vector<32x32xbf16>, vector<64x32xf32> -> vector<64x32xf32>
    %213 = arith.addf %206, %212 : vector<64x32xf32>
    %214 = vector.extract_strided_slice %163 {offsets = [2, 1, 0], sizes = [8, 8, 32], strides = [1, 1, 1]} : vector<10x10x32xf32> to vector<8x8x32xf32>
    %215 = vector.shape_cast %214 : vector<8x8x32xf32> to vector<64x32xf32>
    %216 = arith.truncf %215 : vector<64x32xf32> to vector<64x32xbf16>
    %c2_160 = arith.constant 2 : index
    %c1_161 = arith.constant 1 : index
    %c0_162 = arith.constant 0 : index
    %c0_163 = arith.constant 0 : index
    %217 = vector.load %arg6[%c2_160, %c1_161, %c0_162, %c0_163] : memref<3x3x32x32xbf16, #tpu.memory_space<vmem>>, vector<1x1x32x32xbf16>
    %218 = vector.shape_cast %217 : vector<1x1x32x32xbf16> to vector<32x32xbf16>
    %cst_164 = arith.constant dense<0.000000e+00> : vector<64x32xf32>
    %219 = tpu.matmul %216, %218, %cst_164 {dimension_numbers = #tpu.dot_dimension_numbers<[1], [0], [0], [1], [0, 0, 1, 1], [], []>} : vector<64x32xbf16>, vector<32x32xbf16>, vector<64x32xf32> -> vector<64x32xf32>
    %220 = arith.addf %213, %219 : vector<64x32xf32>
    %221 = vector.extract_strided_slice %163 {offsets = [2, 2, 0], sizes = [8, 8, 32], strides = [1, 1, 1]} : vector<10x10x32xf32> to vector<8x8x32xf32>
    %222 = vector.shape_cast %221 : vector<8x8x32xf32> to vector<64x32xf32>
    %223 = arith.truncf %222 : vector<64x32xf32> to vector<64x32xbf16>
    %c2_165 = arith.constant 2 : index
    %c2_166 = arith.constant 2 : index
    %c0_167 = arith.constant 0 : index
    %c0_168 = arith.constant 0 : index
    %224 = vector.load %arg6[%c2_165, %c2_166, %c0_167, %c0_168] : memref<3x3x32x32xbf16, #tpu.memory_space<vmem>>, vector<1x1x32x32xbf16>
    %225 = vector.shape_cast %224 : vector<1x1x32x32xbf16> to vector<32x32xbf16>
    %cst_169 = arith.constant dense<0.000000e+00> : vector<64x32xf32>
    %226 = tpu.matmul %223, %225, %cst_169 {dimension_numbers = #tpu.dot_dimension_numbers<[1], [0], [0], [1], [0, 0, 1, 1], [], []>} : vector<64x32xbf16>, vector<32x32xbf16>, vector<64x32xf32> -> vector<64x32xf32>
    %227 = arith.addf %220, %226 : vector<64x32xf32>
    %c0_170 = arith.constant 0 : index
    %c0_171 = arith.constant 0 : index
    %228 = vector.load %arg7[%c0_170, %c0_171] : memref<1x32xf32, #tpu.memory_space<vmem>>, vector<1x32xf32>
    %229 = vector.broadcast %228 : vector<1x32xf32> to vector<64x32xf32>
    %230 = arith.addf %227, %229 : vector<64x32xf32>
    %231 = vector.shape_cast %230 : vector<64x32xf32> to vector<8x8x32xf32>
    %cst_172 = arith.constant dense<0xFF800000> : vector<8x8xf32>
    %232 = vector.multi_reduction <maximumf>, %231, %cst_172 [2] : vector<8x8x32xf32> to vector<8x8xf32>
    %233 = vector.shape_cast %232 : vector<8x8xf32> to vector<8x8x1xf32>
    %cst_173 = arith.constant dense<0.000000e+00> : vector<8x8xf32>
    %234 = vector.multi_reduction <add>, %231, %cst_173 [2] : vector<8x8x32xf32> to vector<8x8xf32>
    %235 = vector.shape_cast %234 : vector<8x8xf32> to vector<8x8x1xf32>
    %cst_174 = arith.constant 3.200000e+01 : f32
    %236 = vector.broadcast %cst_174 : f32 to vector<8x8x1xf32>
    %237 = arith.divf %235, %236 : vector<8x8x1xf32>
    %cst_175 = arith.constant 0.000000e+00 : f32
    %238 = vector.broadcast %cst_175 : f32 to vector<10x10x1xf32>
    %c0_176 = arith.constant 0 : index
    %c0_177 = arith.constant 0 : index
    %c0_178 = arith.constant 0 : index
    %239 = vector.load %arg19[%c0_176, %c0_177, %c0_178] : memref<10x10x1xf32, #tpu.memory_space<vmem>>, vector<10x10x1xf32>
    tpu.vector_store %arg19[%c0_176, %c0_177, %c0_178], %238 {strides = array<i32>} : memref<10x10x1xf32, #tpu.memory_space<vmem>>, vector<10x10x1xf32>,
    %cst_179 = arith.constant 0.000000e+00 : f32
    %240 = vector.broadcast %cst_179 : f32 to vector<10x10x1xf32>
    %c0_180 = arith.constant 0 : index
    %c0_181 = arith.constant 0 : index
    %c0_182 = arith.constant 0 : index
    %241 = vector.load %arg20[%c0_180, %c0_181, %c0_182] : memref<10x10x1xf32, #tpu.memory_space<vmem>>, vector<10x10x1xf32>
    tpu.vector_store %arg20[%c0_180, %c0_181, %c0_182], %240 {strides = array<i32>} : memref<10x10x1xf32, #tpu.memory_space<vmem>>, vector<10x10x1xf32>,
    %c1_183 = arith.constant 1 : index
    %c1_184 = arith.constant 1 : index
    %c0_185 = arith.constant 0 : index
    %242 = vector.load %arg19[%c1_183, %c1_184, %c0_185] : memref<10x10x1xf32, #tpu.memory_space<vmem>>, vector<8x8x1xf32>
    tpu.vector_store %arg19[%c1_183, %c1_184, %c0_185], %233 {strides = array<i32>} : memref<10x10x1xf32, #tpu.memory_space<vmem>>, vector<8x8x1xf32>,
    %c1_186 = arith.constant 1 : index
    %c1_187 = arith.constant 1 : index
    %c0_188 = arith.constant 0 : index
    %243 = vector.load %arg20[%c1_186, %c1_187, %c0_188] : memref<10x10x1xf32, #tpu.memory_space<vmem>>, vector<8x8x1xf32>
    tpu.vector_store %arg20[%c1_186, %c1_187, %c0_188], %237 {strides = array<i32>} : memref<10x10x1xf32, #tpu.memory_space<vmem>>, vector<8x8x1xf32>,
    %c0_189 = arith.constant 0 : index
    %c0_190 = arith.constant 0 : index
    %c0_191 = arith.constant 0 : index
    %244 = vector.load %arg19[%c0_189, %c0_190, %c0_191] : memref<10x10x1xf32, #tpu.memory_space<vmem>>, vector<10x10x1xf32>
    %c0_192 = arith.constant 0 : index
    %c0_193 = arith.constant 0 : index
    %c0_194 = arith.constant 0 : index
    %245 = vector.load %arg20[%c0_192, %c0_193, %c0_194] : memref<10x10x1xf32, #tpu.memory_space<vmem>>, vector<10x10x1xf32>
    %cst_195 = arith.constant 0.000000e+00 : f32
    %246 = vector.broadcast %cst_195 : f32 to vector<8x8x1xf32>
    %247 = vector.extract_strided_slice %244 {offsets = [0, 0, 0], sizes = [8, 8, 1], strides = [1, 1, 1]} : vector<10x10x1xf32> to vector<8x8x1xf32>
    %c0_196 = arith.constant 0 : index
    %248 = memref.load %arg8[%c0_196] : memref<18xf32, #tpu.memory_space<smem>>
    %249 = vector.broadcast %248 : f32 to vector<8x8x1xf32>
    %250 = arith.mulf %247, %249 : vector<8x8x1xf32>
    %251 = arith.addf %246, %250 : vector<8x8x1xf32>
    %252 = vector.extract_strided_slice %245 {offsets = [0, 0, 0], sizes = [8, 8, 1], strides = [1, 1, 1]} : vector<10x10x1xf32> to vector<8x8x1xf32>
    %c1_197 = arith.constant 1 : index
    %253 = memref.load %arg8[%c1_197] : memref<18xf32, #tpu.memory_space<smem>>
    %254 = vector.broadcast %253 : f32 to vector<8x8x1xf32>
    %255 = arith.mulf %252, %254 : vector<8x8x1xf32>
    %256 = arith.addf %251, %255 : vector<8x8x1xf32>
    %257 = vector.extract_strided_slice %244 {offsets = [0, 1, 0], sizes = [8, 8, 1], strides = [1, 1, 1]} : vector<10x10x1xf32> to vector<8x8x1xf32>
    %c2_198 = arith.constant 2 : index
    %258 = memref.load %arg8[%c2_198] : memref<18xf32, #tpu.memory_space<smem>>
    %259 = vector.broadcast %258 : f32 to vector<8x8x1xf32>
    %260 = arith.mulf %257, %259 : vector<8x8x1xf32>
    %261 = arith.addf %256, %260 : vector<8x8x1xf32>
    %262 = vector.extract_strided_slice %245 {offsets = [0, 1, 0], sizes = [8, 8, 1], strides = [1, 1, 1]} : vector<10x10x1xf32> to vector<8x8x1xf32>
    %c3 = arith.constant 3 : index
    %263 = memref.load %arg8[%c3] : memref<18xf32, #tpu.memory_space<smem>>
    %264 = vector.broadcast %263 : f32 to vector<8x8x1xf32>
    %265 = arith.mulf %262, %264 : vector<8x8x1xf32>
    %266 = arith.addf %261, %265 : vector<8x8x1xf32>
    %267 = vector.extract_strided_slice %244 {offsets = [0, 2, 0], sizes = [8, 8, 1], strides = [1, 1, 1]} : vector<10x10x1xf32> to vector<8x8x1xf32>
    %c4 = arith.constant 4 : index
    %268 = memref.load %arg8[%c4] : memref<18xf32, #tpu.memory_space<smem>>
    %269 = vector.broadcast %268 : f32 to vector<8x8x1xf32>
    %270 = arith.mulf %267, %269 : vector<8x8x1xf32>
    %271 = arith.addf %266, %270 : vector<8x8x1xf32>
    %272 = vector.extract_strided_slice %245 {offsets = [0, 2, 0], sizes = [8, 8, 1], strides = [1, 1, 1]} : vector<10x10x1xf32> to vector<8x8x1xf32>
    %c5 = arith.constant 5 : index
    %273 = memref.load %arg8[%c5] : memref<18xf32, #tpu.memory_space<smem>>
    %274 = vector.broadcast %273 : f32 to vector<8x8x1xf32>
    %275 = arith.mulf %272, %274 : vector<8x8x1xf32>
    %276 = arith.addf %271, %275 : vector<8x8x1xf32>
    %277 = vector.extract_strided_slice %244 {offsets = [1, 0, 0], sizes = [8, 8, 1], strides = [1, 1, 1]} : vector<10x10x1xf32> to vector<8x8x1xf32>
    %c6 = arith.constant 6 : index
    %278 = memref.load %arg8[%c6] : memref<18xf32, #tpu.memory_space<smem>>
    %279 = vector.broadcast %278 : f32 to vector<8x8x1xf32>
    %280 = arith.mulf %277, %279 : vector<8x8x1xf32>
    %281 = arith.addf %276, %280 : vector<8x8x1xf32>
    %282 = vector.extract_strided_slice %245 {offsets = [1, 0, 0], sizes = [8, 8, 1], strides = [1, 1, 1]} : vector<10x10x1xf32> to vector<8x8x1xf32>
    %c7 = arith.constant 7 : index
    %283 = memref.load %arg8[%c7] : memref<18xf32, #tpu.memory_space<smem>>
    %284 = vector.broadcast %283 : f32 to vector<8x8x1xf32>
    %285 = arith.mulf %282, %284 : vector<8x8x1xf32>
    %286 = arith.addf %281, %285 : vector<8x8x1xf32>
    %287 = vector.extract_strided_slice %244 {offsets = [1, 1, 0], sizes = [8, 8, 1], strides = [1, 1, 1]} : vector<10x10x1xf32> to vector<8x8x1xf32>
    %c8 = arith.constant 8 : index
    %288 = memref.load %arg8[%c8] : memref<18xf32, #tpu.memory_space<smem>>
    %289 = vector.broadcast %288 : f32 to vector<8x8x1xf32>
    %290 = arith.mulf %287, %289 : vector<8x8x1xf32>
    %291 = arith.addf %286, %290 : vector<8x8x1xf32>
    %292 = vector.extract_strided_slice %245 {offsets = [1, 1, 0], sizes = [8, 8, 1], strides = [1, 1, 1]} : vector<10x10x1xf32> to vector<8x8x1xf32>
    %c9 = arith.constant 9 : index
    %293 = memref.load %arg8[%c9] : memref<18xf32, #tpu.memory_space<smem>>
    %294 = vector.broadcast %293 : f32 to vector<8x8x1xf32>
    %295 = arith.mulf %292, %294 : vector<8x8x1xf32>
    %296 = arith.addf %291, %295 : vector<8x8x1xf32>
    %297 = vector.extract_strided_slice %244 {offsets = [1, 2, 0], sizes = [8, 8, 1], strides = [1, 1, 1]} : vector<10x10x1xf32> to vector<8x8x1xf32>
    %c10 = arith.constant 10 : index
    %298 = memref.load %arg8[%c10] : memref<18xf32, #tpu.memory_space<smem>>
    %299 = vector.broadcast %298 : f32 to vector<8x8x1xf32>
    %300 = arith.mulf %297, %299 : vector<8x8x1xf32>
    %301 = arith.addf %296, %300 : vector<8x8x1xf32>
    %302 = vector.extract_strided_slice %245 {offsets = [1, 2, 0], sizes = [8, 8, 1], strides = [1, 1, 1]} : vector<10x10x1xf32> to vector<8x8x1xf32>
    %c11 = arith.constant 11 : index
    %303 = memref.load %arg8[%c11] : memref<18xf32, #tpu.memory_space<smem>>
    %304 = vector.broadcast %303 : f32 to vector<8x8x1xf32>
    %305 = arith.mulf %302, %304 : vector<8x8x1xf32>
    %306 = arith.addf %301, %305 : vector<8x8x1xf32>
    %307 = vector.extract_strided_slice %244 {offsets = [2, 0, 0], sizes = [8, 8, 1], strides = [1, 1, 1]} : vector<10x10x1xf32> to vector<8x8x1xf32>
    %c12 = arith.constant 12 : index
    %308 = memref.load %arg8[%c12] : memref<18xf32, #tpu.memory_space<smem>>
    %309 = vector.broadcast %308 : f32 to vector<8x8x1xf32>
    %310 = arith.mulf %307, %309 : vector<8x8x1xf32>
    %311 = arith.addf %306, %310 : vector<8x8x1xf32>
    %312 = vector.extract_strided_slice %245 {offsets = [2, 0, 0], sizes = [8, 8, 1], strides = [1, 1, 1]} : vector<10x10x1xf32> to vector<8x8x1xf32>
    %c13 = arith.constant 13 : index
    %313 = memref.load %arg8[%c13] : memref<18xf32, #tpu.memory_space<smem>>
    %314 = vector.broadcast %313 : f32 to vector<8x8x1xf32>
    %315 = arith.mulf %312, %314 : vector<8x8x1xf32>
    %316 = arith.addf %311, %315 : vector<8x8x1xf32>
    %317 = vector.extract_strided_slice %244 {offsets = [2, 1, 0], sizes = [8, 8, 1], strides = [1, 1, 1]} : vector<10x10x1xf32> to vector<8x8x1xf32>
    %c14 = arith.constant 14 : index
    %318 = memref.load %arg8[%c14] : memref<18xf32, #tpu.memory_space<smem>>
    %319 = vector.broadcast %318 : f32 to vector<8x8x1xf32>
    %320 = arith.mulf %317, %319 : vector<8x8x1xf32>
    %321 = arith.addf %316, %320 : vector<8x8x1xf32>
    %322 = vector.extract_strided_slice %245 {offsets = [2, 1, 0], sizes = [8, 8, 1], strides = [1, 1, 1]} : vector<10x10x1xf32> to vector<8x8x1xf32>
    %c15 = arith.constant 15 : index
    %323 = memref.load %arg8[%c15] : memref<18xf32, #tpu.memory_space<smem>>
    %324 = vector.broadcast %323 : f32 to vector<8x8x1xf32>
    %325 = arith.mulf %322, %324 : vector<8x8x1xf32>
    %326 = arith.addf %321, %325 : vector<8x8x1xf32>
    %327 = vector.extract_strided_slice %244 {offsets = [2, 2, 0], sizes = [8, 8, 1], strides = [1, 1, 1]} : vector<10x10x1xf32> to vector<8x8x1xf32>
    %c16 = arith.constant 16 : index
    %328 = memref.load %arg8[%c16] : memref<18xf32, #tpu.memory_space<smem>>
    %329 = vector.broadcast %328 : f32 to vector<8x8x1xf32>
    %330 = arith.mulf %327, %329 : vector<8x8x1xf32>
    %331 = arith.addf %326, %330 : vector<8x8x1xf32>
    %332 = vector.extract_strided_slice %245 {offsets = [2, 2, 0], sizes = [8, 8, 1], strides = [1, 1, 1]} : vector<10x10x1xf32> to vector<8x8x1xf32>
    %c17 = arith.constant 17 : index
    %333 = memref.load %arg8[%c17] : memref<18xf32, #tpu.memory_space<smem>>
    %334 = vector.broadcast %333 : f32 to vector<8x8x1xf32>
    %335 = arith.mulf %332, %334 : vector<8x8x1xf32>
    %336 = arith.addf %331, %335 : vector<8x8x1xf32>
    %337 = arith.negf %336 : vector<8x8x1xf32>
    %338 = math.exp %337 : vector<8x8x1xf32>
    %cst_199 = arith.constant 1.000000e+00 : f32
    %339 = vector.broadcast %cst_199 : f32 to vector<8x8x1xf32>
    %340 = arith.addf %339, %338 : vector<8x8x1xf32>
    %341 = arith.divf %339, %340 : vector<8x8x1xf32>
    %342 = vector.broadcast %341 : vector<8x8x1xf32> to vector<8x8x32xf32>
    %343 = arith.mulf %231, %342 : vector<8x8x32xf32>
    %344 = vector.shape_cast %343 : vector<8x8x32xf32> to vector<64x32xf32>
    %cst_200 = arith.constant dense<0.000000e+00> : vector<32xf32>
    %345 = vector.multi_reduction <add>, %230, %cst_200 [0] : vector<64x32xf32> to vector<32xf32>
    %346 = vector.shape_cast %345 : vector<32xf32> to vector<1x32xf32>
    %cst_201 = arith.constant 6.400000e+01 : f32
    %347 = vector.broadcast %cst_201 : f32 to vector<1x32xf32>
    %348 = arith.divf %346, %347 : vector<1x32xf32>
    %c0_202 = arith.constant 0 : index
    %c0_203 = arith.constant 0 : index
    %349 = vector.load %arg9[%c0_202, %c0_203] : memref<2x32xf32, #tpu.memory_space<vmem>>, vector<2x32xf32>
    %350 = vector.broadcast %348 : vector<1x32xf32> to vector<2x32xf32>
    %351 = arith.mulf %349, %350 : vector<2x32xf32>
    %cst_204 = arith.constant dense<0.000000e+00> : vector<2xf32>
    %352 = vector.multi_reduction <add>, %351, %cst_204 [1] : vector<2x32xf32> to vector<2xf32>
    %353 = vector.shape_cast %352 : vector<2xf32> to vector<2x1xf32>
    %c0_205 = arith.constant 0 : index
    %c0_206 = arith.constant 0 : index
    %354 = vector.load %arg10[%c0_205, %c0_206] : memref<2x1xf32, #tpu.memory_space<vmem>>, vector<2x1xf32>
    %355 = arith.addf %353, %354 : vector<2x1xf32>
    %cst_207 = arith.constant 0.000000e+00 : f32
    %356 = vector.broadcast %cst_207 : f32 to vector<2x1xf32>
    %357 = arith.maximumf %355, %356 : vector<2x1xf32>
    %c0_208 = arith.constant 0 : index
    %c0_209 = arith.constant 0 : index
    %358 = vector.load %arg11[%c0_208, %c0_209] : memref<2x32xf32, #tpu.memory_space<vmem>>, vector<2x32xf32>
    %359 = vector.broadcast %357 : vector<2x1xf32> to vector<2x32xf32>
    %360 = arith.mulf %358, %359 : vector<2x32xf32>
    %cst_210 = arith.constant dense<0.000000e+00> : vector<32xf32>
    %361 = vector.multi_reduction <add>, %360, %cst_210 [0] : vector<2x32xf32> to vector<32xf32>
    %362 = vector.shape_cast %361 : vector<32xf32> to vector<1x32xf32>
    %c0_211 = arith.constant 0 : index
    %c0_212 = arith.constant 0 : index
    %363 = vector.load %arg12[%c0_211, %c0_212] : memref<1x32xf32, #tpu.memory_space<vmem>>, vector<1x32xf32>
    %364 = arith.addf %362, %363 : vector<1x32xf32>
    %365 = arith.negf %364 : vector<1x32xf32>
    %366 = math.exp %365 : vector<1x32xf32>
    %cst_213 = arith.constant 1.000000e+00 : f32
    %367 = vector.broadcast %cst_213 : f32 to vector<1x32xf32>
    %368 = arith.addf %367, %366 : vector<1x32xf32>
    %369 = arith.divf %367, %368 : vector<1x32xf32>
    %370 = vector.broadcast %369 : vector<1x32xf32> to vector<64x32xf32>
    %371 = arith.mulf %230, %370 : vector<64x32xf32>
    %372 = arith.truncf %344 : vector<64x32xf32> to vector<64x32xbf16>
    %c0_214 = arith.constant 0 : index
    %c0_215 = arith.constant 0 : index
    %373 = vector.load %arg13[%c0_214, %c0_215] : memref<32x32xbf16, #tpu.memory_space<vmem>>, vector<32x32xbf16>
    %cst_216 = arith.constant dense<0.000000e+00> : vector<64x32xf32>
    %374 = tpu.matmul %372, %373, %cst_216 {dimension_numbers = #tpu.dot_dimension_numbers<[1], [0], [0], [1], [0, 0, 1, 1], [], []>} : vector<64x32xbf16>, vector<32x32xbf16>, vector<64x32xf32> -> vector<64x32xf32>
    %375 = arith.truncf %371 : vector<64x32xf32> to vector<64x32xbf16>
    %c0_217 = arith.constant 0 : index
    %c0_218 = arith.constant 0 : index
    %376 = vector.load %arg14[%c0_217, %c0_218] : memref<32x32xbf16, #tpu.memory_space<vmem>>, vector<32x32xbf16>
    %cst_219 = arith.constant dense<0.000000e+00> : vector<64x32xf32>
    %377 = tpu.matmul %375, %376, %cst_219 {dimension_numbers = #tpu.dot_dimension_numbers<[1], [0], [0], [1], [0, 0, 1, 1], [], []>} : vector<64x32xbf16>, vector<32x32xbf16>, vector<64x32xf32> -> vector<64x32xf32>
    %378 = arith.addf %374, %377 : vector<64x32xf32>
    %c0_220 = arith.constant 0 : index
    %c0_221 = arith.constant 0 : index
    %379 = vector.load %arg15[%c0_220, %c0_221] : memref<1x32xf32, #tpu.memory_space<vmem>>, vector<1x32xf32>
    %380 = vector.broadcast %379 : vector<1x32xf32> to vector<64x32xf32>
    %381 = arith.addf %378, %380 : vector<64x32xf32>
    %382 = arith.addf %381, %86 : vector<64x32xf32>
    %383 = vector.shape_cast %382 : vector<64x32xf32> to vector<8x8x32xf32>
    %c0_222 = arith.constant 0 : index
    %c0_223 = arith.constant 0 : index
    %c0_224 = arith.constant 0 : index
    %c0_225 = arith.constant 0 : index
    %384 = vector.load %arg16[%c0_222, %c0_223, %c0_224, %c0_225] : memref<1x8x8x32xf32, #tpu.memory_space<vmem>>, vector<1x8x8x32xf32>
    %385 = vector.shape_cast %384 : vector<1x8x8x32xf32> to vector<8x8x32xf32>
    %386 = vector.shape_cast %383 : vector<8x8x32xf32> to vector<1x8x8x32xf32>
    tpu.vector_store %arg16[%c0_222, %c0_223, %c0_224, %c0_225], %386 {strides = array<i32>} : memref<1x8x8x32xf32, #tpu.memory_space<vmem>>, vector<1x8x8x32xf32>,
    return
  }
  func.func @transform_0(%arg0: i32) -> (i32, i32, i32, i32) {
    %c0_i32 = arith.constant 0 : i32
    %c0_i32_0 = arith.constant 0 : i32
    %c0_i32_1 = arith.constant 0 : i32
    %c0_i32_2 = arith.constant 0 : i32
    return %arg0, %c0_i32, %c0_i32_0, %c0_i32_1 : i32, i32, i32, i32
  }
  func.func @transform_1(%arg0: i32) -> (i32, i32, i32, i32) {
    %c0_i32 = arith.constant 0 : i32
    %c0_i32_0 = arith.constant 0 : i32
    %c0_i32_1 = arith.constant 0 : i32
    %c0_i32_2 = arith.constant 0 : i32
    %c0_i32_3 = arith.constant 0 : i32
    return %c0_i32, %c0_i32_0, %c0_i32_1, %c0_i32_2 : i32, i32, i32, i32
  }
  func.func @transform_2(%arg0: i32) -> (i32, i32) {
    %c0_i32 = arith.constant 0 : i32
    %c0_i32_0 = arith.constant 0 : i32
    %c0_i32_1 = arith.constant 0 : i32
    return %c0_i32, %c0_i32_0 : i32, i32
  }
  func.func @transform_3(%arg0: i32) -> (i32, i32, i32, i32) {
    %c0_i32 = arith.constant 0 : i32
    %c0_i32_0 = arith.constant 0 : i32
    %c0_i32_1 = arith.constant 0 : i32
    %c0_i32_2 = arith.constant 0 : i32
    %c0_i32_3 = arith.constant 0 : i32
    return %c0_i32, %c0_i32_0, %c0_i32_1, %c0_i32_2 : i32, i32, i32, i32
  }
  func.func @transform_4(%arg0: i32) -> (i32, i32) {
    %c0_i32 = arith.constant 0 : i32
    %c0_i32_0 = arith.constant 0 : i32
    %c0_i32_1 = arith.constant 0 : i32
    return %c0_i32, %c0_i32_0 : i32, i32
  }
  func.func @transform_5(%arg0: i32) -> (i32, i32, i32, i32) {
    %c0_i32 = arith.constant 0 : i32
    %c0_i32_0 = arith.constant 0 : i32
    %c0_i32_1 = arith.constant 0 : i32
    %c0_i32_2 = arith.constant 0 : i32
    %c0_i32_3 = arith.constant 0 : i32
    return %c0_i32, %c0_i32_0, %c0_i32_1, %c0_i32_2 : i32, i32, i32, i32
  }
  func.func @transform_6(%arg0: i32) -> (i32, i32) {
    %c0_i32 = arith.constant 0 : i32
    %c0_i32_0 = arith.constant 0 : i32
    %c0_i32_1 = arith.constant 0 : i32
    return %c0_i32, %c0_i32_0 : i32, i32
  }
  func.func @transform_7(%arg0: i32) -> i32 {
    %c0_i32 = arith.constant 0 : i32
    %c0_i32_0 = arith.constant 0 : i32
    return %c0_i32 : i32
  }
  func.func @transform_8(%arg0: i32) -> (i32, i32) {
    %c0_i32 = arith.constant 0 : i32
    %c0_i32_0 = arith.constant 0 : i32
    %c0_i32_1 = arith.constant 0 : i32
    return %c0_i32, %c0_i32_0 : i32, i32
  }
  func.func @transform_9(%arg0: i32) -> (i32, i32) {
    %c0_i32 = arith.constant 0 : i32
    %c0_i32_0 = arith.constant 0 : i32
    %c0_i32_1 = arith.constant 0 : i32
    return %c0_i32, %c0_i32_0 : i32, i32
  }
  func.func @transform_10(%arg0: i32) -> (i32, i32) {
    %c0_i32 = arith.constant 0 : i32
    %c0_i32_0 = arith.constant 0 : i32
    %c0_i32_1 = arith.constant 0 : i32
    return %c0_i32, %c0_i32_0 : i32, i32
  }
  func.func @transform_11(%arg0: i32) -> (i32, i32) {
    %c0_i32 = arith.constant 0 : i32
    %c0_i32_0 = arith.constant 0 : i32
    %c0_i32_1 = arith.constant 0 : i32
    return %c0_i32, %c0_i32_0 : i32, i32
  }
  func.func @transform_12(%arg0: i32) -> (i32, i32) {
    %c0_i32 = arith.constant 0 : i32
    %c0_i32_0 = arith.constant 0 : i32
    %c0_i32_1 = arith.constant 0 : i32
    return %c0_i32, %c0_i32_0 : i32, i32
  }
  func.func @transform_13(%arg0: i32) -> (i32, i32) {
    %c0_i32 = arith.constant 0 : i32
    %c0_i32_0 = arith.constant 0 : i32
    %c0_i32_1 = arith.constant 0 : i32
    return %c0_i32, %c0_i32_0 : i32, i32
  }
  func.func @transform_14(%arg0: i32) -> (i32, i32) {
    %c0_i32 = arith.constant 0 : i32
    %c0_i32_0 = arith.constant 0 : i32
    %c0_i32_1 = arith.constant 0 : i32
    return %c0_i32, %c0_i32_0 : i32, i32
  }
  func.func @transform_15(%arg0: i32) -> (i32, i32, i32, i32) {
    %c0_i32 = arith.constant 0 : i32
    %c0_i32_0 = arith.constant 0 : i32
    %c0_i32_1 = arith.constant 0 : i32
    %c0_i32_2 = arith.constant 0 : i32
    return %arg0, %c0_i32, %c0_i32_0, %c0_i32_1 : i32, i32, i32, i32
  }
}

</mosaic_0001>

<llo_original>
// kernel: down_att_forward.1
$region0: #{down_att_forward.1}
  #allocation0 [shape = 'u32[]', space=smem, size = 0x4, offset = 0x4, fixed_abs, tag = 'smem constant byte address 0x4 - core index']
  #allocation1 [shape = 'u32[144,128]{1,0:T(1,128)}', space=vmem, size = 0x12000, scoped, tag = 'internal scratch']
  #allocation2 [shape = 'f32[10,10,4]{2,1,0:T(8,128)}', space=vmem, size = 0x14000, scoped, tag = 'scratch operand']
  #allocation3 [shape = 'f32[10,10,32]{2,1,0:T(8,128)}', space=vmem, size = 0x14000, scoped, tag = 'scratch operand']
  #allocation4 [shape = 'f32[10,10,1]{2,1,0:T(8,128)}', space=vmem, size = 0x14000, scoped, tag = 'scratch operand']
  #allocation5 [shape = 'f32[10,10,1]{2,1,0:T(8,128)}', space=vmem, size = 0x14000, scoped, tag = 'scratch operand']
  %s0 = inlined_call_operand.vmem [shape: f32[2,16,16,4], index: 0, kind: input, shape index: {}]
  %s1 = inlined_call_operand.vmem [shape: bf16[3,3,4,32], index: 1, kind: input, shape index: {}]
  %s2 = inlined_call_operand.vmem [shape: f32[1,32], index: 2, kind: input, shape index: {}]
  %s3 = inlined_call_operand.vmem [shape: bf16[3,3,32,32], index: 3, kind: input, shape index: {}]
  %s4 = inlined_call_operand.vmem [shape: f32[1,32], index: 4, kind: input, shape index: {}]
  %s5 = inlined_call_operand.vmem [shape: bf16[3,3,32,32], index: 5, kind: input, shape index: {}]
  %s6 = inlined_call_operand.vmem [shape: f32[1,32], index: 6, kind: input, shape index: {}]
  %s7 = inlined_call_operand.vmem [shape: f32[18], index: 7, kind: input, shape index: {}]
  %s8 = inlined_call_operand.vmem [shape: f32[2,32], index: 8, kind: input, shape index: {}]
  %s9 = inlined_call_operand.vmem [shape: f32[2,1], index: 9, kind: input, shape index: {}]
  %s10 = inlined_call_operand.vmem [shape: f32[2,32], index: 10, kind: input, shape index: {}]
  %s11 = inlined_call_operand.vmem [shape: f32[1,32], index: 11, kind: input, shape index: {}]
  %s12 = inlined_call_operand.vmem [shape: bf16[32,32], index: 12, kind: input, shape index: {}]
  %s13 = inlined_call_operand.vmem [shape: bf16[32,32], index: 13, kind: input, shape index: {}]
  %s14 = inlined_call_operand.vmem [shape: f32[1,32], index: 14, kind: input, shape index: {}]
  %s15 = inlined_call_operand.hbm [shape: f32[2,8,8,32], index: 15, kind: output, shape index: {}]
  %s16 = sld [smem:[#allocation0]]
  $region97: #{down_att_forward.1} parent=0
    _
  %s18 = ssub.s32 1, %s16
  %s19 = scalar_select 0, %s18, %s16
  $region1: #{down_att_forward.1} parent=0
    #allocation6 [shape = 'u8[512]{0}', space=smem, size = 0x200, scoped, tag = 'input window, operand 7, single buffered']
    #allocation7 [shape = 's32[2]{0}', space=sflag, size = 0x8, scoped, tag = 'scoped memory for down_att_forward.1']
    #allocation8 [shape = 's32[2]{0}', space=sflag, size = 0x8, scoped, tag = 'scoped memory for down_att_forward.1']
    #allocation9 [shape = 'u8[65536]{0}', space=vmem, size = 0x10000, scoped, tag = 'output window, operand 0']
    %20 = vsyncpa [#allocation8], 0
    %21 = vsyncpa [#allocation7], 0
    %s22 = scalar_lea.sflag [#allocation7], 1
    %23 = vsyncpa %s22, 0
    loop: start=0, step=1, limit=4
    $region2: #{down_att_forward.1} parent=1 // loop_pre_header
      _
    $region3: #{down_att_forward.1} parent=1 // loop_header
      %s25 = sphi 0, %s29
      %p26 = scmp.ge.s32.totalorder %s25, 4
      %s35 = sphi 0, %s37
      %s38 = sphi 0, %s35
      %s39 = sphi 0, %s38
      %s55 = sphi 0, %s39
      %s59 = sphi 0, %s59
      %s61 = sphi 0, %s59
      %s62 = sphi 0, %s61
      %s76 = sphi 0, %s62
      %s80 = sphi 0, %s80
      %s82 = sphi 0, %s80
      %s83 = sphi 0, %s82
      %s97 = sphi 0, %s83
      %s101 = sphi 0, %s101
      %s103 = sphi 0, %s101
      %s104 = sphi 0, %s103
      %s118 = sphi 0, %s104
      %s122 = sphi 0, %s122
      %s124 = sphi 0, %s122
      %s125 = sphi 0, %s124
      %s139 = sphi 0, %s125
      %s143 = sphi 0, %s143
      %s145 = sphi 0, %s143
      %s146 = sphi 0, %s145
      %s160 = sphi 0, %s146
      %s164 = sphi 0, %s164
      %s166 = sphi 0, %s164
      %s167 = sphi 0, %s166
      %s181 = sphi 0, %s167
      %s185 = sphi 0, %s185
      %s187 = sphi 0, %s185
      %s188 = sphi 0, %s187
      %s202 = sphi 0, %s188
      %s206 = sphi 0, %s206
      %s208 = sphi 0, %s206
      %s209 = sphi 0, %s208
      %s223 = sphi 0, %s209
      %s227 = sphi 0, %s227
      %s229 = sphi 0, %s227
      %s230 = sphi 0, %s229
      %s244 = sphi 0, %s230
      %s248 = sphi 0, %s248
      %s250 = sphi 0, %s248
      %s251 = sphi 0, %s250
      %s265 = sphi 0, %s251
      %s269 = sphi 0, %s269
      %s271 = sphi 0, %s269
      %s272 = sphi 0, %s271
      %s286 = sphi 0, %s272
      %s290 = sphi 0, %s290
      %s292 = sphi 0, %s290
      %s293 = sphi 0, %s292
      %s307 = sphi 0, %s293
      %s311 = sphi 0, %s311
      %s313 = sphi 0, %s311
      %s314 = sphi 0, %s313
      %s328 = sphi 0, %s314
      %s332 = sphi 0, %s332
      %s334 = sphi 0, %s332
      %s335 = sphi 0, %s334
      %s349 = sphi 0, %s335
      %s355 = sphi 0, %s357
      %s358 = sphi 0, %s355
      %s359 = sphi 0, %s358
      %s375 = sphi 0, %s359
    $region4: #{down_att_forward.1} parent=1 // loop_header_branch
      %28 = sbr.rel (%p26) target = $region8
    $region5: #{down_att_forward.1} parent=1 // loop_body
      %s30 = ssub.s32 %s25, 1
      %s31 = ssub.s32 %s25, 2
      %s32 = sadd.s32 %s25, 1
      %s33 = ssub.s32 %s25, %s32
      %p34 = scmp.eq.s32.totalorder %s33, 0
      %s36 = sadd.s32 %s35, 1
      %s37 = scalar_select %p34, %s35, %s36
      %p40 = pneg %p34
      %p41 = scmp.eq.s32.totalorder %s25, 1
      %p42 = por %p40, %p41
      %p43 = scmp.ne.s32.totalorder %s35, %s38
      %p44 = scmp.eq.s32.totalorder %s25, 0
      %p45 = por %p43, %p44
      %p46 = scmp.ne.s32.totalorder %s35, %s38
      %p47 = scmp.eq.s32.totalorder %s30, 1
      %p48 = por %p46, %p47
      %p49 = scmp.ne.s32.totalorder %s38, %s39
      %p50 = scmp.eq.s32.totalorder %s30, 0
      %p51 = por %p49, %p50
      %p52 = scmp.ne.s32.totalorder %s38, %s39
      %p53 = scmp.eq.s32.totalorder %s31, 1
      %p54 = por %p52, %p53
      %p56 = scmp.ne.s32.totalorder %s39, %s55
      %p57 = scmp.eq.s32.totalorder %s31, 0
      %p58 = por %p56, %p57
      %s60 = sadd.s32 %s59, 1
      %p63 = scmp.eq.s32.totalorder %s25, 1
      %p64 = scmp.ne.s32.totalorder %s59, %s61
      %p65 = scmp.eq.s32.totalorder %s25, 0
      %p66 = por %p64, %p65
      %p67 = scmp.ne.s32.totalorder %s59, %s61
      %p68 = scmp.eq.s32.totalorder %s30, 1
      %p69 = por %p67, %p68
      %p70 = scmp.ne.s32.totalorder %s61, %s62
      %p71 = scmp.eq.s32.totalorder %s30, 0
      %p72 = por %p70, %p71
      %p73 = scmp.ne.s32.totalorder %s61, %s62
      %p74 = scmp.eq.s32.totalorder %s31, 1
      %p75 = por %p73, %p74
      %p77 = scmp.ne.s32.totalorder %s62, %s76
      %p78 = scmp.eq.s32.totalorder %s31, 0
      %p79 = por %p77, %p78
      %s81 = sadd.s32 %s80, 1
      %p84 = scmp.eq.s32.totalorder %s25, 1
      %p85 = scmp.ne.s32.totalorder %s80, %s82
      %p86 = scmp.eq.s32.totalorder %s25, 0
      %p87 = por %p85, %p86
      %p88 = scmp.ne.s32.totalorder %s80, %s82
      %p89 = scmp.eq.s32.totalorder %s30, 1
      %p90 = por %p88, %p89
      %p91 = scmp.ne.s32.totalorder %s82, %s83
      %p92 = scmp.eq.s32.totalorder %s30, 0
      %p93 = por %p91, %p92
      %p94 = scmp.ne.s32.totalorder %s82, %s83
      %p95 = scmp.eq.s32.totalorder %s31, 1
      %p96 = por %p94, %p95
      %p98 = scmp.ne.s32.totalorder %s83, %s97
      %p99 = scmp.eq.s32.totalorder %s31, 0
      %p100 = por %p98, %p99
      %s102 = sadd.s32 %s101, 1
      %p105 = scmp.eq.s32.totalorder %s25, 1
      %p106 = scmp.ne.s32.totalorder %s101, %s103
      %p107 = scmp.eq.s32.totalorder %s25, 0
      %p108 = por %p106, %p107
      %p109 = scmp.ne.s32.totalorder %s101, %s103
      %p110 = scmp.eq.s32.totalorder %s30, 1
      %p111 = por %p109, %p110
      %p112 = scmp.ne.s32.totalorder %s103, %s104
      %p113 = scmp.eq.s32.totalorder %s30, 0
      %p114 = por %p112, %p113
      %p115 = scmp.ne.s32.totalorder %s103, %s104
      %p116 = scmp.eq.s32.totalorder %s31, 1
      %p117 = por %p115, %p116
      %p119 = scmp.ne.s32.totalorder %s104, %s118
      %p120 = scmp.eq.s32.totalorder %s31, 0
      %p121 = por %p119, %p120
      %s123 = sadd.s32 %s122, 1
      %p126 = scmp.eq.s32.totalorder %s25, 1
      %p127 = scmp.ne.s32.totalorder %s122, %s124
      %p128 = scmp.eq.s32.totalorder %s25, 0
      %p129 = por %p127, %p128
      %p130 = scmp.ne.s32.totalorder %s122, %s124
      %p131 = scmp.eq.s32.totalorder %s30, 1
      %p132 = por %p130, %p131
      %p133 = scmp.ne.s32.totalorder %s124, %s125
      %p134 = scmp.eq.s32.totalorder %s30, 0
      %p135 = por %p133, %p134
      %p136 = scmp.ne.s32.totalorder %s124, %s125
      %p137 = scmp.eq.s32.totalorder %s31, 1
      %p138 = por %p136, %p137
      %p140 = scmp.ne.s32.totalorder %s125, %s139
      %p141 = scmp.eq.s32.totalorder %s31, 0
      %p142 = por %p140, %p141
      %s144 = sadd.s32 %s143, 1
      %p147 = scmp.eq.s32.totalorder %s25, 1
      %p148 = scmp.ne.s32.totalorder %s143, %s145
      %p149 = scmp.eq.s32.totalorder %s25, 0
      %p150 = por %p148, %p149
      %p151 = scmp.ne.s32.totalorder %s143, %s145
      %p152 = scmp.eq.s32.totalorder %s30, 1
      %p153 = por %p151, %p152
      %p154 = scmp.ne.s32.totalorder %s145, %s146
      %p155 = scmp.eq.s32.totalorder %s30, 0
      %p156 = por %p154, %p155
      %p157 = scmp.ne.s32.totalorder %s145, %s146
      %p158 = scmp.eq.s32.totalorder %s31, 1
      %p159 = por %p157, %p158
      %p161 = scmp.ne.s32.totalorder %s146, %s160
      %p162 = scmp.eq.s32.totalorder %s31, 0
      %p163 = por %p161, %p162
      %s165 = sadd.s32 %s164, 1
      %p168 = scmp.eq.s32.totalorder %s25, 1
      %p169 = scmp.ne.s32.totalorder %s164, %s166
      %p170 = scmp.eq.s32.totalorder %s25, 0
      %p171 = por %p169, %p170
      %p172 = scmp.ne.s32.totalorder %s164, %s166
      %p173 = scmp.eq.s32.totalorder %s30, 1
      %p174 = por %p172, %p173
      %p175 = scmp.ne.s32.totalorder %s166, %s167
      %p176 = scmp.eq.s32.totalorder %s30, 0
      %p177 = por %p175, %p176
      %p178 = scmp.ne.s32.totalorder %s166, %s167
      %p179 = scmp.eq.s32.totalorder %s31, 1
      %p180 = por %p178, %p179
      %p182 = scmp.ne.s32.totalorder %s167, %s181
      %p183 = scmp.eq.s32.totalorder %s31, 0
      %p184 = por %p182, %p183
      %s186 = sadd.s32 %s185, 1
      %p189 = scmp.eq.s32.totalorder %s25, 1
      %p190 = scmp.ne.s32.totalorder %s185, %s187
      %p191 = scmp.eq.s32.totalorder %s25, 0
      %p192 = por %p190, %p191
      %p193 = scmp.ne.s32.totalorder %s185, %s187
      %p194 = scmp.eq.s32.totalorder %s30, 1
      %p195 = por %p193, %p194
      %p196 = scmp.ne.s32.totalorder %s187, %s188
      %p197 = scmp.eq.s32.totalorder %s30, 0
      %p198 = por %p196, %p197
      %p199 = scmp.ne.s32.totalorder %s187, %s188
      %p200 = scmp.eq.s32.totalorder %s31, 1
      %p201 = por %p199, %p200
      %p203 = scmp.ne.s32.totalorder %s188, %s202
      %p204 = scmp.eq.s32.totalorder %s31, 0
      %p205 = por %p203, %p204
      %s207 = sadd.s32 %s206, 1
      %p210 = scmp.eq.s32.totalorder %s25, 1
      %p211 = scmp.ne.s32.totalorder %s206, %s208
      %p212 = scmp.eq.s32.totalorder %s25, 0
      %p213 = por %p211, %p212
      %p214 = scmp.ne.s32.totalorder %s206, %s208
      %p215 = scmp.eq.s32.totalorder %s30, 1
      %p216 = por %p214, %p215
      %p217 = scmp.ne.s32.totalorder %s208, %s209
      %p218 = scmp.eq.s32.totalorder %s30, 0
      %p219 = por %p217, %p218
      %p220 = scmp.ne.s32.totalorder %s208, %s209
      %p221 = scmp.eq.s32.totalorder %s31, 1
      %p222 = por %p220, %p221
      %p224 = scmp.ne.s32.totalorder %s209, %s223
      %p225 = scmp.eq.s32.totalorder %s31, 0
      %p226 = por %p224, %p225
      %s228 = sadd.s32 %s227, 1
      %p231 = scmp.eq.s32.totalorder %s25, 1
      %p232 = scmp.ne.s32.totalorder %s227, %s229
      %p233 = scmp.eq.s32.totalorder %s25, 0
      %p234 = por %p232, %p233
      %p235 = scmp.ne.s32.totalorder %s227, %s229
      %p236 = scmp.eq.s32.totalorder %s30, 1
      %p237 = por %p235, %p236
      %p238 = scmp.ne.s32.totalorder %s229, %s230
      %p239 = scmp.eq.s32.totalorder %s30, 0
      %p240 = por %p238, %p239
      %p241 = scmp.ne.s32.totalorder %s229, %s230
      %p242 = scmp.eq.s32.totalorder %s31, 1
      %p243 = por %p241, %p242
      %p245 = scmp.ne.s32.totalorder %s230, %s244
      %p246 = scmp.eq.s32.totalorder %s31, 0
      %p247 = por %p245, %p246
      %s249 = sadd.s32 %s248, 1
      %p252 = scmp.eq.s32.totalorder %s25, 1
      %p253 = scmp.ne.s32.totalorder %s248, %s250
      %p254 = scmp.eq.s32.totalorder %s25, 0
      %p255 = por %p253, %p254
      %p256 = scmp.ne.s32.totalorder %s248, %s250
      %p257 = scmp.eq.s32.totalorder %s30, 1
      %p258 = por %p256, %p257
      %p259 = scmp.ne.s32.totalorder %s250, %s251
      %p260 = scmp.eq.s32.totalorder %s30, 0
      %p261 = por %p259, %p260
      %p262 = scmp.ne.s32.totalorder %s250, %s251
      %p263 = scmp.eq.s32.totalorder %s31, 1
      %p264 = por %p262, %p263
      %p266 = scmp.ne.s32.totalorder %s251, %s265
      %p267 = scmp.eq.s32.totalorder %s31, 0
      %p268 = por %p266, %p267
      %s270 = sadd.s32 %s269, 1
      %p273 = scmp.eq.s32.totalorder %s25, 1
      %p274 = scmp.ne.s32.totalorder %s269, %s271
      %p275 = scmp.eq.s32.totalorder %s25, 0
      %p276 = por %p274, %p275
      %p277 = scmp.ne.s32.totalorder %s269, %s271
      %p278 = scmp.eq.s32.totalorder %s30, 1
      %p279 = por %p277, %p278
      %p280 = scmp.ne.s32.totalorder %s271, %s272
      %p281 = scmp.eq.s32.totalorder %s30, 0
      %p282 = por %p280, %p281
      %p283 = scmp.ne.s32.totalorder %s271, %s272
      %p284 = scmp.eq.s32.totalorder %s31, 1
      %p285 = por %p283, %p284
      %p287 = scmp.ne.s32.totalorder %s272, %s286
      %p288 = scmp.eq.s32.totalorder %s31, 0
      %p289 = por %p287, %p288
      %s291 = sadd.s32 %s290, 1
      %p294 = scmp.eq.s32.totalorder %s25, 1
      %p295 = scmp.ne.s32.totalorder %s290, %s292
      %p296 = scmp.eq.s32.totalorder %s25, 0
      %p297 = por %p295, %p296
      %p298 = scmp.ne.s32.totalorder %s290, %s292
      %p299 = scmp.eq.s32.totalorder %s30, 1
      %p300 = por %p298, %p299
      %p301 = scmp.ne.s32.totalorder %s292, %s293
      %p302 = scmp.eq.s32.totalorder %s30, 0
      %p303 = por %p301, %p302
      %p304 = scmp.ne.s32.totalorder %s292, %s293
      %p305 = scmp.eq.s32.totalorder %s31, 1
      %p306 = por %p304, %p305
      %p308 = scmp.ne.s32.totalorder %s293, %s307
      %p309 = scmp.eq.s32.totalorder %s31, 0
      %p310 = por %p308, %p309
      %s312 = sadd.s32 %s311, 1
      %p315 = scmp.eq.s32.totalorder %s25, 1
      %p316 = scmp.ne.s32.totalorder %s311, %s313
      %p317 = scmp.eq.s32.totalorder %s25, 0
      %p318 = por %p316, %p317
      %p319 = scmp.ne.s32.totalorder %s311, %s313
      %p320 = scmp.eq.s32.totalorder %s30, 1
      %p321 = por %p319, %p320
      %p322 = scmp.ne.s32.totalorder %s313, %s314
      %p323 = scmp.eq.s32.totalorder %s30, 0
      %p324 = por %p322, %p323
      %p325 = scmp.ne.s32.totalorder %s313, %s314
      %p326 = scmp.eq.s32.totalorder %s31, 1
      %p327 = por %p325, %p326
      %p329 = scmp.ne.s32.totalorder %s314, %s328
      %p330 = scmp.eq.s32.totalorder %s31, 0
      %p331 = por %p329, %p330
      %s333 = sadd.s32 %s332, 1
      %p336 = scmp.eq.s32.totalorder %s25, 1
      %p337 = scmp.ne.s32.totalorder %s332, %s334
      %p338 = scmp.eq.s32.totalorder %s25, 0
      %p339 = por %p337, %p338
      %p340 = scmp.ne.s32.totalorder %s332, %s334
      %p341 = scmp.eq.s32.totalorder %s30, 1
      %p342 = por %p340, %p341
      %p343 = scmp.ne.s32.totalorder %s334, %s335
      %p344 = scmp.eq.s32.totalorder %s30, 0
      %p345 = por %p343, %p344
      %p346 = scmp.ne.s32.totalorder %s334, %s335
      %p347 = scmp.eq.s32.totalorder %s31, 1
      %p348 = por %p346, %p347
      %p350 = scmp.ne.s32.totalorder %s335, %s349
      %p351 = scmp.eq.s32.totalorder %s31, 0
      %p352 = por %p350, %p351
      %s353 = ssub.s32 %s25, %s32
      %p354 = scmp.eq.s32.totalorder %s353, 0
      %s356 = sadd.s32 %s355, 1
      %s357 = scalar_select %p354, %s355, %s356
      %p360 = pneg %p354
      %p361 = scmp.eq.s32.totalorder %s25, 1
      %p362 = por %p360, %p361
      %p363 = scmp.ne.s32.totalorder %s355, %s358
      %p364 = scmp.eq.s32.totalorder %s25, 0
      %p365 = por %p363, %p364
      %p366 = scmp.ne.s32.totalorder %s355, %s358
      %p367 = scmp.eq.s32.totalorder %s30, 1
      %p368 = por %p366, %p367
      %p369 = scmp.ne.s32.totalorder %s358, %s359
      %p370 = scmp.eq.s32.totalorder %s30, 0
      %p371 = por %p369, %p370
      %p372 = scmp.ne.s32.totalorder %s358, %s359
      %p373 = scmp.eq.s32.totalorder %s31, 1
      %p374 = por %p372, %p373
      %p376 = scmp.ne.s32.totalorder %s359, %s375
      %p377 = scmp.eq.s32.totalorder %s31, 0
      %p378 = por %p376, %p377
      %p379 = scmp.le.s32.totalorder 1, %s25
      %p380 = scmp.lt.s32.totalorder %s25, 3
      %p381 = pnand %p379, %p380
      %p382 = pneg %p381
      // Predicated region
      $region9: #{down_att_forward.1} parent=5 // pred_check
        _
      $region10: #{down_att_forward.1} parent=5 // pred_check_branch
        %384 = sbr.rel (%p381) target = $region12
      $region11: #{down_att_forward.1} parent=5 // pred_region
        %s385 = ssub.s32 %s25, 1
        // Predicated region
        $region13: #{down_att_forward.1} parent=11 // pred_check
          %p386 = pneg %p72
        $region14: #{down_att_forward.1} parent=11 // pred_check_branch
          %388 = sbr.rel (%p386) target = $region16
        $region15: #{down_att_forward.1} parent=11 // pred_region
          _
        $region16: #{down_att_forward.1} parent=11 // pred_fallthru
          _
        // Predicated region
        $region17: #{down_att_forward.1} parent=11 // pred_check
          %p389 = pneg %p93
        $region18: #{down_att_forward.1} parent=11 // pred_check_branch
          %391 = sbr.rel (%p389) target = $region20
        $region19: #{down_att_forward.1} parent=11 // pred_region
          _
        $region20: #{down_att_forward.1} parent=11 // pred_fallthru
          _
        // Predicated region
        $region21: #{down_att_forward.1} parent=11 // pred_check
          %p392 = pneg %p114
        $region22: #{down_att_forward.1} parent=11 // pred_check_branch
          %394 = sbr.rel (%p392) target = $region24
        $region23: #{down_att_forward.1} parent=11 // pred_region
          _
        $region24: #{down_att_forward.1} parent=11 // pred_fallthru
          _
        // Predicated region
        $region25: #{down_att_forward.1} parent=11 // pred_check
          %p395 = pneg %p135
        $region26: #{down_att_forward.1} parent=11 // pred_check_branch
          %397 = sbr.rel (%p395) target = $region28
        $region27: #{down_att_forward.1} parent=11 // pred_region
          _
        $region28: #{down_att_forward.1} parent=11 // pred_fallthru
          _
        // Predicated region
        $region29: #{down_att_forward.1} parent=11 // pred_check
          %p398 = pneg %p156
        $region30: #{down_att_forward.1} parent=11 // pred_check_branch
          %400 = sbr.rel (%p398) target = $region32
        $region31: #{down_att_forward.1} parent=11 // pred_region
          _
        $region32: #{down_att_forward.1} parent=11 // pred_fallthru
          _
        // Predicated region
        $region33: #{down_att_forward.1} parent=11 // pred_check
          %p401 = pneg %p177
        $region34: #{down_att_forward.1} parent=11 // pred_check_branch
          %403 = sbr.rel (%p401) target = $region36
        $region35: #{down_att_forward.1} parent=11 // pred_region
          _
        $region36: #{down_att_forward.1} parent=11 // pred_fallthru
          _
        // Predicated region
        $region37: #{down_att_forward.1} parent=11 // pred_check
          %p404 = pneg %p198
        $region38: #{down_att_forward.1} parent=11 // pred_check_branch
          %406 = sbr.rel (%p404) target = $region40
        $region39: #{down_att_forward.1} parent=11 // pred_region
          %s408 = ssub.s32 16, 16
          %409 = vsyncadd [#allocation8], %s408
          %s411 = sshll.u32 %s7, 4
          %s412 = int_to_ptr.vmem [resolvable:$true] %s411
          %414 = dma.vmem_to_smem %s412, 16, [#allocation6], [#allocation8]
        $region40: #{down_att_forward.1} parent=11 // pred_fallthru
          _
        // Predicated region
        $region41: #{down_att_forward.1} parent=11 // pred_check
          %p415 = pneg %p219
        $region42: #{down_att_forward.1} parent=11 // pred_check_branch
          %417 = sbr.rel (%p415) target = $region44
        $region43: #{down_att_forward.1} parent=11 // pred_region
          _
        $region44: #{down_att_forward.1} parent=11 // pred_fallthru
          _
        // Predicated region
        $region45: #{down_att_forward.1} parent=11 // pred_check
          %p418 = pneg %p240
        $region46: #{down_att_forward.1} parent=11 // pred_check_branch
          %420 = sbr.rel (%p418) target = $region48
        $region47: #{down_att_forward.1} parent=11 // pred_region
          _
        $region48: #{down_att_forward.1} parent=11 // pred_fallthru
          _
        // Predicated region
        $region49: #{down_att_forward.1} parent=11 // pred_check
          %p421 = pneg %p261
        $region50: #{down_att_forward.1} parent=11 // pred_check_branch
          %423 = sbr.rel (%p421) target = $region52
        $region51: #{down_att_forward.1} parent=11 // pred_region
          _
        $region52: #{down_att_forward.1} parent=11 // pred_fallthru
          _
        // Predicated region
        $region53: #{down_att_forward.1} parent=11 // pred_check
          %p424 = pneg %p282
        $region54: #{down_att_forward.1} parent=11 // pred_check_branch
          %426 = sbr.rel (%p424) target = $region56
        $region55: #{down_att_forward.1} parent=11 // pred_region
          _
        $region56: #{down_att_forward.1} parent=11 // pred_fallthru
          _
        // Predicated region
        $region57: #{down_att_forward.1} parent=11 // pred_check
          %p427 = pneg %p303
        $region58: #{down_att_forward.1} parent=11 // pred_check_branch
          %429 = sbr.rel (%p427) target = $region60
        $region59: #{down_att_forward.1} parent=11 // pred_region
          _
        $region60: #{down_att_forward.1} parent=11 // pred_fallthru
          _
        // Predicated region
        $region61: #{down_att_forward.1} parent=11 // pred_check
          %p430 = pneg %p324
        $region62: #{down_att_forward.1} parent=11 // pred_check_branch
          %432 = sbr.rel (%p430) target = $region64
        $region63: #{down_att_forward.1} parent=11 // pred_region
          _
        $region64: #{down_att_forward.1} parent=11 // pred_fallthru
          _
        // Predicated region
        $region65: #{down_att_forward.1} parent=11 // pred_check
          %p433 = pneg %p345
        $region66: #{down_att_forward.1} parent=11 // pred_check_branch
          %435 = sbr.rel (%p433) target = $region68
        $region67: #{down_att_forward.1} parent=11 // pred_region
          _
        $region68: #{down_att_forward.1} parent=11 // pred_fallthru
          _
      $region12: #{down_att_forward.1} parent=5 // pred_fallthru
        _
      %p436 = scmp.lt.s32.totalorder %s25, 2
      // Predicated region
      $region69: #{down_att_forward.1} parent=5 // pred_check
        %p437 = pneg %p436
      $region70: #{down_att_forward.1} parent=5 // pred_check_branch
        %439 = sbr.rel (%p437) target = $region72
      $region71: #{down_att_forward.1} parent=5 // pred_region
        // Predicated region
        $region73: #{down_att_forward.1} parent=71 // pred_check
          %p440 = pneg %p45
        $region74: #{down_att_forward.1} parent=71 // pred_check_branch
          %442 = sbr.rel (%p440) target = $region76
        $region75: #{down_att_forward.1} parent=71 // pred_region
          %p443 = scmp.lt.s32.totalorder %s25, 1
          %s444 = scalar_select %p443, %s25, 1
          %s445 = smul.addr %s444, 32
          %s446 = smul.addr %s445, 8
          %s447 = scalar_lea.vmem %s0, %s446
        $region76: #{down_att_forward.1} parent=71 // pred_fallthru
          _
      $region72: #{down_att_forward.1} parent=5 // pred_fallthru
        _
      %p448 = scmp.le.s32.totalorder 1, %s25
      %p449 = scmp.lt.s32.totalorder %s25, 3
      %p450 = pnand %p448, %p449
      %p451 = pneg %p450
      // Predicated region
      $region77: #{down_att_forward.1} parent=5 // pred_check
        _
      $region78: #{down_att_forward.1} parent=5 // pred_check_branch
        %453 = sbr.rel (%p450) target = $region80
      $region79: #{down_att_forward.1} parent=5 // pred_region
        %s454 = ssub.s32 %s25, 1
        // Predicated region
        $region81: #{down_att_forward.1} parent=79 // pred_check
          %p455 = pneg %p198
        $region82: #{down_att_forward.1} parent=79 // pred_check_branch
          %457 = sbr.rel (%p455) target = $region84
        $region83: #{down_att_forward.1} parent=79 // pred_region
          %458 = dma.done [#allocation8], 16
        $region84: #{down_att_forward.1} parent=79 // pred_fallthru
          _
        %459 = sfence
        %p460 = scmp.lt.s32.totalorder %s30, 1
        %s461 = scalar_select %p460, %s30, 1
        %s462 = smul.addr %s461, 32
        %s463 = smul.addr %s462, 8
        %s464 = scalar_lea.vmem %s0, %s463
        %p465 = pneg %p51
        %p466 = pneg %p48
        %p467 = pneg %p72
        %p468 = pneg %p69
        %p469 = pneg %p93
        %p470 = pneg %p90
        %p471 = pneg %p114
        %p472 = pneg %p111
        %p473 = pneg %p135
        %p474 = pneg %p132
        %p475 = pneg %p156
        %p476 = pneg %p153
        %p477 = pneg %p177
        %p478 = pneg %p174
        %p479 = pneg %p198
        %p480 = pneg %p195
        %p481 = pneg %p219
        %p482 = pneg %p216
        %p483 = pneg %p240
        %p484 = pneg %p237
        %p485 = pneg %p261
        %p486 = pneg %p258
        %p487 = pneg %p282
        %p488 = pneg %p279
        %p489 = pneg %p303
        %p490 = pneg %p300
        %p491 = pneg %p324
        %p492 = pneg %p321
        %p493 = pneg %p345
        %p494 = pneg %p342
        %p495 = pneg %p371
        %p496 = pneg %p368
        %s497 = sand.u32 %s358, 1
        %s498 = scalar_lea.sflag [#allocation7], %s497
        %s499 = sand.u32 %s358, 1
        %s500 = smul.addr %s499, 64
        %s501 = scalar_lea.vmem [#allocation9], %s500
        %p502 = scmp.lt.s32.totalorder %s30, 1
        %s503 = scalar_select %p502, %s30, 1
        %s504 = smul.addr %s503, 32
        %s505 = smul.addr %s504, 8
        %s506 = scalar_lea.vmem %s0, %s505
        %v508 = vld [vmem:[%s506] sm:$0xff]
        %v509 = vld [vmem:[%s506 + $0x8] sm:$0xff]
        %v510 = vld [vmem:[%s506 + $0x10] sm:$0xff]
        %v511 = vld [vmem:[%s506 + $0x18] sm:$0xff]
        %v512 = vld [vmem:[%s506 + $0x20] sm:$0xff]
        %v513 = vld [vmem:[%s506 + $0x28] sm:$0xff]
        %v514 = vld [vmem:[%s506 + $0x30] sm:$0xff]
        %v515 = vld [vmem:[%s506 + $0x38] sm:$0xff]
        %v516 = vld [vmem:[%s506 + $0x40] sm:$0xff]
        %v517 = vld [vmem:[%s506 + $0x48] sm:$0xff]
        %v518 = vld [vmem:[%s506 + $0x50] sm:$0xff]
        %v519 = vld [vmem:[%s506 + $0x58] sm:$0xff]
        %v520 = vld [vmem:[%s506 + $0x60] sm:$0xff]
        %v521 = vld [vmem:[%s506 + $0x68] sm:$0xff]
        %v522 = vld [vmem:[%s506 + $0x70] sm:$0xff]
        %v523 = vld [vmem:[%s506 + $0x78] sm:$0xff]
        %v524 = vld [vmem:[%s506 + $0x80] sm:$0xff]
        %v525 = vld [vmem:[%s506 + $0x88] sm:$0xff]
        %v526 = vld [vmem:[%s506 + $0x90] sm:$0xff]
        %v527 = vld [vmem:[%s506 + $0x98] sm:$0xff]
        %v528 = vld [vmem:[%s506 + $0xa0] sm:$0xff]
        %v529 = vld [vmem:[%s506 + $0xa8] sm:$0xff]
        %v530 = vld [vmem:[%s506 + $0xb0] sm:$0xff]
        %v531 = vld [vmem:[%s506 + $0xb8] sm:$0xff]
        %v532 = vld [vmem:[%s506 + $0xc0] sm:$0xff]
        %v533 = vld [vmem:[%s506 + $0xc8] sm:$0xff]
        %v534 = vld [vmem:[%s506 + $0xd0] sm:$0xff]
        %v535 = vld [vmem:[%s506 + $0xd8] sm:$0xff]
        %v536 = vld [vmem:[%s506 + $0xe0] sm:$0xff]
        %v537 = vld [vmem:[%s506 + $0xe8] sm:$0xff]
        %v538 = vld [vmem:[%s506 + $0xf0] sm:$0xff]
        %v539 = vld [vmem:[%s506 + $0xf8] sm:$0xff]
        %v572 = vcombine.high %v508, %v508
        %v574 = vunpack.c.l.s4 1983009808
        %v575 = vunpack.c.0.s8 %v574
        %v576 = vlaneseq
        %v577 = vshrl.u32 %v576, 7
        %v578 = vsub.s32 %v575, %v577
        %v579 = vrot.slane %v508, %v578
        %v581 = vunpack.c.l.s4 1983009808
        %v582 = vunpack.c.0.s8 %v581
        %v583 = vlaneseq
        %v584 = vshrl.u32 %v583, 7
        %v585 = vsub.s32 %v582, %v584
        %v586 = vrot.slane %v572, %v585
        %v587 = vcombine.high %v579, %v579
        %v588 = vcombine.high %v586, %v586
        %v589 = vcombine.high %v509, %v509
        %v591 = vunpack.c.l.s4 1983009808
        %v592 = vunpack.c.0.s8 %v591
        %v593 = vlaneseq
        %v594 = vshrl.u32 %v593, 7
        %v595 = vsub.s32 %v592, %v594
        %v596 = vrot.slane %v509, %v595
        %v598 = vunpack.c.l.s4 1983009808
        %v599 = vunpack.c.0.s8 %v598
        %v600 = vlaneseq
        %v601 = vshrl.u32 %v600, 7
        %v602 = vsub.s32 %v599, %v601
        %v603 = vrot.slane %v589, %v602
        %v604 = vcombine.high %v596, %v596
        %v605 = vcombine.high %v603, %v603
        %v606 = vcombine.high %v510, %v510
        %v608 = vunpack.c.l.s4 1983009808
        %v609 = vunpack.c.0.s8 %v608
        %v610 = vlaneseq
        %v611 = vshrl.u32 %v610, 7
        %v612 = vsub.s32 %v609, %v611
        %v613 = vrot.slane %v510, %v612
        %v615 = vunpack.c.l.s4 1983009808
        %v616 = vunpack.c.0.s8 %v615
        %v617 = vlaneseq
        %v618 = vshrl.u32 %v617, 7
        %v619 = vsub.s32 %v616, %v618
        %v620 = vrot.slane %v606, %v619
        %v621 = vcombine.high %v613, %v613
        %v622 = vcombine.high %v620, %v620
        %v623 = vcombine.high %v511, %v511
        %v625 = vunpack.c.l.s4 1983009808
        %v626 = vunpack.c.0.s8 %v625
        %v627 = vlaneseq
        %v628 = vshrl.u32 %v627, 7
        %v629 = vsub.s32 %v626, %v628
        %v630 = vrot.slane %v511, %v629
        %v632 = vunpack.c.l.s4 1983009808
        %v633 = vunpack.c.0.s8 %v632
        %v634 = vlaneseq
        %v635 = vshrl.u32 %v634, 7
        %v636 = vsub.s32 %v633, %v635
        %v637 = vrot.slane %v623, %v636
        %v638 = vcombine.high %v630, %v630
        %v639 = vcombine.high %v637, %v637
        %v640 = vcombine.high %v512, %v512
        %v642 = vunpack.c.l.s4 1983009808
        %v643 = vunpack.c.0.s8 %v642
        %v644 = vlaneseq
        %v645 = vshrl.u32 %v644, 7
        %v646 = vsub.s32 %v643, %v645
        %v647 = vrot.slane %v512, %v646
        %v649 = vunpack.c.l.s4 1983009808
        %v650 = vunpack.c.0.s8 %v649
        %v651 = vlaneseq
        %v652 = vshrl.u32 %v651, 7
        %v653 = vsub.s32 %v650, %v652
        %v654 = vrot.slane %v640, %v653
        %v655 = vcombine.high %v647, %v647
        %v656 = vcombine.high %v654, %v654
        %v657 = vcombine.high %v513, %v513
        %v659 = vunpack.c.l.s4 1983009808
        %v660 = vunpack.c.0.s8 %v659
        %v661 = vlaneseq
        %v662 = vshrl.u32 %v661, 7
        %v663 = vsub.s32 %v660, %v662
        %v664 = vrot.slane %v513, %v663
        %v666 = vunpack.c.l.s4 1983009808
        %v667 = vunpack.c.0.s8 %v666
        %v668 = vlaneseq
        %v669 = vshrl.u32 %v668, 7
        %v670 = vsub.s32 %v667, %v669
        %v671 = vrot.slane %v657, %v670
        %v672 = vcombine.high %v664, %v664
        %v673 = vcombine.high %v671, %v671
        %v674 = vcombine.high %v514, %v514
        %v676 = vunpack.c.l.s4 1983009808
        %v677 = vunpack.c.0.s8 %v676
        %v678 = vlaneseq
        %v679 = vshrl.u32 %v678, 7
        %v680 = vsub.s32 %v677, %v679
        %v681 = vrot.slane %v514, %v680
        %v683 = vunpack.c.l.s4 1983009808
        %v684 = vunpack.c.0.s8 %v683
        %v685 = vlaneseq
        %v686 = vshrl.u32 %v685, 7
        %v687 = vsub.s32 %v684, %v686
        %v688 = vrot.slane %v674, %v687
        %v689 = vcombine.high %v681, %v681
        %v690 = vcombine.high %v688, %v688
        %v691 = vcombine.high %v515, %v515
        %v693 = vunpack.c.l.s4 1983009808
        %v694 = vunpack.c.0.s8 %v693
        %v695 = vlaneseq
        %v696 = vshrl.u32 %v695, 7
        %v697 = vsub.s32 %v694, %v696
        %v698 = vrot.slane %v515, %v697
        %v700 = vunpack.c.l.s4 1983009808
        %v701 = vunpack.c.0.s8 %v700
        %v702 = vlaneseq
        %v703 = vshrl.u32 %v702, 7
        %v704 = vsub.s32 %v701, %v703
        %v705 = vrot.slane %v691, %v704
        %v706 = vcombine.high %v698, %v698
        %v707 = vcombine.high %v705, %v705
        %v708 = vcombine.high %v516, %v516
        %v710 = vunpack.c.l.s4 1983009808
        %v711 = vunpack.c.0.s8 %v710
        %v712 = vlaneseq
        %v713 = vshrl.u32 %v712, 7
        %v714 = vsub.s32 %v711, %v713
        %v715 = vrot.slane %v516, %v714
        %v717 = vunpack.c.l.s4 1983009808
        %v718 = vunpack.c.0.s8 %v717
        %v719 = vlaneseq
        %v720 = vshrl.u32 %v719, 7
        %v721 = vsub.s32 %v718, %v720
        %v722 = vrot.slane %v708, %v721
        %v723 = vcombine.high %v715, %v715
        %v724 = vcombine.high %v722, %v722
        %v725 = vcombine.high %v517, %v517
        %v727 = vunpack.c.l.s4 1983009808
        %v728 = vunpack.c.0.s8 %v727
        %v729 = vlaneseq
        %v730 = vshrl.u32 %v729, 7
        %v731 = vsub.s32 %v728, %v730
        %v732 = vrot.slane %v517, %v731
        %v734 = vunpack.c.l.s4 1983009808
        %v735 = vunpack.c.0.s8 %v734
        %v736 = vlaneseq
        %v737 = vshrl.u32 %v736, 7
        %v738 = vsub.s32 %v735, %v737
        %v739 = vrot.slane %v725, %v738
        %v740 = vcombine.high %v732, %v732
        %v741 = vcombine.high %v739, %v739
        %v742 = vcombine.high %v518, %v518
        %v744 = vunpack.c.l.s4 1983009808
        %v745 = vunpack.c.0.s8 %v744
        %v746 = vlaneseq
        %v747 = vshrl.u32 %v746, 7
        %v748 = vsub.s32 %v745, %v747
        %v749 = vrot.slane %v518, %v748
        %v751 = vunpack.c.l.s4 1983009808
        %v752 = vunpack.c.0.s8 %v751
        %v753 = vlaneseq
        %v754 = vshrl.u32 %v753, 7
        %v755 = vsub.s32 %v752, %v754
        %v756 = vrot.slane %v742, %v755
        %v757 = vcombine.high %v749, %v749
        %v758 = vcombine.high %v756, %v756
        %v759 = vcombine.high %v519, %v519
        %v761 = vunpack.c.l.s4 1983009808
        %v762 = vunpack.c.0.s8 %v761
        %v763 = vlaneseq
        %v764 = vshrl.u32 %v763, 7
        %v765 = vsub.s32 %v762, %v764
        %v766 = vrot.slane %v519, %v765
        %v768 = vunpack.c.l.s4 1983009808
        %v769 = vunpack.c.0.s8 %v768
        %v770 = vlaneseq
        %v771 = vshrl.u32 %v770, 7
        %v772 = vsub.s32 %v769, %v771
        %v773 = vrot.slane %v759, %v772
        %v774 = vcombine.high %v766, %v766
        %v775 = vcombine.high %v773, %v773
        %v776 = vcombine.high %v520, %v520
        %v778 = vunpack.c.l.s4 1983009808
        %v779 = vunpack.c.0.s8 %v778
        %v780 = vlaneseq
        %v781 = vshrl.u32 %v780, 7
        %v782 = vsub.s32 %v779, %v781
        %v783 = vrot.slane %v520, %v782
        %v785 = vunpack.c.l.s4 1983009808
        %v786 = vunpack.c.0.s8 %v785
        %v787 = vlaneseq
        %v788 = vshrl.u32 %v787, 7
        %v789 = vsub.s32 %v786, %v788
        %v790 = vrot.slane %v776, %v789
        %v791 = vcombine.high %v783, %v783
        %v792 = vcombine.high %v790, %v790
        %v793 = vcombine.high %v521, %v521
        %v795 = vunpack.c.l.s4 1983009808
        %v796 = vunpack.c.0.s8 %v795
        %v797 = vlaneseq
        %v798 = vshrl.u32 %v797, 7
        %v799 = vsub.s32 %v796, %v798
        %v800 = vrot.slane %v521, %v799
        %v802 = vunpack.c.l.s4 1983009808
        %v803 = vunpack.c.0.s8 %v802
        %v804 = vlaneseq
        %v805 = vshrl.u32 %v804, 7
        %v806 = vsub.s32 %v803, %v805
        %v807 = vrot.slane %v793, %v806
        %v808 = vcombine.high %v800, %v800
        %v809 = vcombine.high %v807, %v807
        %v810 = vcombine.high %v522, %v522
        %v812 = vunpack.c.l.s4 1983009808
        %v813 = vunpack.c.0.s8 %v812
        %v814 = vlaneseq
        %v815 = vshrl.u32 %v814, 7
        %v816 = vsub.s32 %v813, %v815
        %v817 = vrot.slane %v522, %v816
        %v819 = vunpack.c.l.s4 1983009808
        %v820 = vunpack.c.0.s8 %v819
        %v821 = vlaneseq
        %v822 = vshrl.u32 %v821, 7
        %v823 = vsub.s32 %v820, %v822
        %v824 = vrot.slane %v810, %v823
        %v825 = vcombine.high %v817, %v817
        %v826 = vcombine.high %v824, %v824
        %v827 = vcombine.high %v523, %v523
        %v829 = vunpack.c.l.s4 1983009808
        %v830 = vunpack.c.0.s8 %v829
        %v831 = vlaneseq
        %v832 = vshrl.u32 %v831, 7
        %v833 = vsub.s32 %v830, %v832
        %v834 = vrot.slane %v523, %v833
        %v836 = vunpack.c.l.s4 1983009808
        %v837 = vunpack.c.0.s8 %v836
        %v838 = vlaneseq
        %v839 = vshrl.u32 %v838, 7
        %v840 = vsub.s32 %v837, %v839
        %v841 = vrot.slane %v827, %v840
        %v842 = vcombine.high %v834, %v834
        %v843 = vcombine.high %v841, %v841
        %v844 = vcombine.high %v524, %v524
        %v846 = vunpack.c.l.s4 1983009808
        %v847 = vunpack.c.0.s8 %v846
        %v848 = vlaneseq
        %v849 = vshrl.u32 %v848, 7
        %v850 = vsub.s32 %v847, %v849
        %v851 = vrot.slane %v524, %v850
        %v853 = vunpack.c.l.s4 1983009808
        %v854 = vunpack.c.0.s8 %v853
        %v855 = vlaneseq
        %v856 = vshrl.u32 %v855, 7
        %v857 = vsub.s32 %v854, %v856
        %v858 = vrot.slane %v844, %v857
        %v859 = vcombine.high %v851, %v851
        %v860 = vcombine.high %v858, %v858
        %v861 = vcombine.high %v525, %v525
        %v863 = vunpack.c.l.s4 1983009808
        %v864 = vunpack.c.0.s8 %v863
        %v865 = vlaneseq
        %v866 = vshrl.u32 %v865, 7
        %v867 = vsub.s32 %v864, %v866
        %v868 = vrot.slane %v525, %v867
        %v870 = vunpack.c.l.s4 1983009808
        %v871 = vunpack.c.0.s8 %v870
        %v872 = vlaneseq
        %v873 = vshrl.u32 %v872, 7
        %v874 = vsub.s32 %v871, %v873
        %v875 = vrot.slane %v861, %v874
        %v876 = vcombine.high %v868, %v868
        %v877 = vcombine.high %v875, %v875
        %v878 = vcombine.high %v526, %v526
        %v880 = vunpack.c.l.s4 1983009808
        %v881 = vunpack.c.0.s8 %v880
        %v882 = vlaneseq
        %v883 = vshrl.u32 %v882, 7
        %v884 = vsub.s32 %v881, %v883
        %v885 = vrot.slane %v526, %v884
        %v887 = vunpack.c.l.s4 1983009808
        %v888 = vunpack.c.0.s8 %v887
        %v889 = vlaneseq
        %v890 = vshrl.u32 %v889, 7
        %v891 = vsub.s32 %v888, %v890
        %v892 = vrot.slane %v878, %v891
        %v893 = vcombine.high %v885, %v885
        %v894 = vcombine.high %v892, %v892
        %v895 = vcombine.high %v527, %v527
        %v897 = vunpack.c.l.s4 1983009808
        %v898 = vunpack.c.0.s8 %v897
        %v899 = vlaneseq
        %v900 = vshrl.u32 %v899, 7
        %v901 = vsub.s32 %v898, %v900
        %v902 = vrot.slane %v527, %v901
        %v904 = vunpack.c.l.s4 1983009808
        %v905 = vunpack.c.0.s8 %v904
        %v906 = vlaneseq
        %v907 = vshrl.u32 %v906, 7
        %v908 = vsub.s32 %v905, %v907
        %v909 = vrot.slane %v895, %v908
        %v910 = vcombine.high %v902, %v902
        %v911 = vcombine.high %v909, %v909
        %v912 = vcombine.high %v528, %v528
        %v914 = vunpack.c.l.s4 1983009808
        %v915 = vunpack.c.0.s8 %v914
        %v916 = vlaneseq
        %v917 = vshrl.u32 %v916, 7
        %v918 = vsub.s32 %v915, %v917
        %v919 = vrot.slane %v528, %v918
        %v921 = vunpack.c.l.s4 1983009808
        %v922 = vunpack.c.0.s8 %v921
        %v923 = vlaneseq
        %v924 = vshrl.u32 %v923, 7
        %v925 = vsub.s32 %v922, %v924
        %v926 = vrot.slane %v912, %v925
        %v927 = vcombine.high %v919, %v919
        %v928 = vcombine.high %v926, %v926
        %v929 = vcombine.high %v529, %v529
        %v931 = vunpack.c.l.s4 1983009808
        %v932 = vunpack.c.0.s8 %v931
        %v933 = vlaneseq
        %v934 = vshrl.u32 %v933, 7
        %v935 = vsub.s32 %v932, %v934
        %v936 = vrot.slane %v529, %v935
        %v938 = vunpack.c.l.s4 1983009808
        %v939 = vunpack.c.0.s8 %v938
        %v940 = vlaneseq
        %v941 = vshrl.u32 %v940, 7
        %v942 = vsub.s32 %v939, %v941
        %v943 = vrot.slane %v929, %v942
        %v944 = vcombine.high %v936, %v936
        %v945 = vcombine.high %v943, %v943
        %v946 = vcombine.high %v530, %v530
        %v948 = vunpack.c.l.s4 1983009808
        %v949 = vunpack.c.0.s8 %v948
        %v950 = vlaneseq
        %v951 = vshrl.u32 %v950, 7
        %v952 = vsub.s32 %v949, %v951
        %v953 = vrot.slane %v530, %v952
        %v955 = vunpack.c.l.s4 1983009808
        %v956 = vunpack.c.0.s8 %v955
        %v957 = vlaneseq
        %v958 = vshrl.u32 %v957, 7
        %v959 = vsub.s32 %v956, %v958
        %v960 = vrot.slane %v946, %v959
        %v961 = vcombine.high %v953, %v953
        %v962 = vcombine.high %v960, %v960
        %v963 = vcombine.high %v531, %v531
        %v965 = vunpack.c.l.s4 1983009808
        %v966 = vunpack.c.0.s8 %v965
        %v967 = vlaneseq
        %v968 = vshrl.u32 %v967, 7
        %v969 = vsub.s32 %v966, %v968
        %v970 = vrot.slane %v531, %v969
        %v972 = vunpack.c.l.s4 1983009808
        %v973 = vunpack.c.0.s8 %v972
        %v974 = vlaneseq
        %v975 = vshrl.u32 %v974, 7
        %v976 = vsub.s32 %v973, %v975
        %v977 = vrot.slane %v963, %v976
        %v978 = vcombine.high %v970, %v970
        %v979 = vcombine.high %v977, %v977
        %v980 = vcombine.high %v532, %v532
        %v982 = vunpack.c.l.s4 1983009808
        %v983 = vunpack.c.0.s8 %v982
        %v984 = vlaneseq
        %v985 = vshrl.u32 %v984, 7
        %v986 = vsub.s32 %v983, %v985
        %v987 = vrot.slane %v532, %v986
        %v989 = vunpack.c.l.s4 1983009808
        %v990 = vunpack.c.0.s8 %v989
        %v991 = vlaneseq
        %v992 = vshrl.u32 %v991, 7
        %v993 = vsub.s32 %v990, %v992
        %v994 = vrot.slane %v980, %v993
        %v995 = vcombine.high %v987, %v987
        %v996 = vcombine.high %v994, %v994
        %v997 = vcombine.high %v533, %v533
        %v999 = vunpack.c.l.s4 1983009808
        %v1000 = vunpack.c.0.s8 %v999
        %v1001 = vlaneseq
        %v1002 = vshrl.u32 %v1001, 7
        %v1003 = vsub.s32 %v1000, %v1002
        %v1004 = vrot.slane %v533, %v1003
        %v1006 = vunpack.c.l.s4 1983009808
        %v1007 = vunpack.c.0.s8 %v1006
        %v1008 = vlaneseq
        %v1009 = vshrl.u32 %v1008, 7
        %v1010 = vsub.s32 %v1007, %v1009
        %v1011 = vrot.slane %v997, %v1010
        %v1012 = vcombine.high %v1004, %v1004
        %v1013 = vcombine.high %v1011, %v1011
        %v1014 = vcombine.high %v534, %v534
        %v1016 = vunpack.c.l.s4 1983009808
        %v1017 = vunpack.c.0.s8 %v1016
        %v1018 = vlaneseq
        %v1019 = vshrl.u32 %v1018, 7
        %v1020 = vsub.s32 %v1017, %v1019
        %v1021 = vrot.slane %v534, %v1020
        %v1023 = vunpack.c.l.s4 1983009808
        %v1024 = vunpack.c.0.s8 %v1023
        %v1025 = vlaneseq
        %v1026 = vshrl.u32 %v1025, 7
        %v1027 = vsub.s32 %v1024, %v1026
        %v1028 = vrot.slane %v1014, %v1027
        %v1029 = vcombine.high %v1021, %v1021
        %v1030 = vcombine.high %v1028, %v1028
        %v1031 = vcombine.high %v535, %v535
        %v1033 = vunpack.c.l.s4 1983009808
        %v1034 = vunpack.c.0.s8 %v1033
        %v1035 = vlaneseq
        %v1036 = vshrl.u32 %v1035, 7
        %v1037 = vsub.s32 %v1034, %v1036
        %v1038 = vrot.slane %v535, %v1037
        %v1040 = vunpack.c.l.s4 1983009808
        %v1041 = vunpack.c.0.s8 %v1040
        %v1042 = vlaneseq
        %v1043 = vshrl.u32 %v1042, 7
        %v1044 = vsub.s32 %v1041, %v1043
        %v1045 = vrot.slane %v1031, %v1044
        %v1046 = vcombine.high %v1038, %v1038
        %v1047 = vcombine.high %v1045, %v1045
        %v1048 = vcombine.high %v536, %v536
        %v1050 = vunpack.c.l.s4 1983009808
        %v1051 = vunpack.c.0.s8 %v1050
        %v1052 = vlaneseq
        %v1053 = vshrl.u32 %v1052, 7
        %v1054 = vsub.s32 %v1051, %v1053
        %v1055 = vrot.slane %v536, %v1054
        %v1057 = vunpack.c.l.s4 1983009808
        %v1058 = vunpack.c.0.s8 %v1057
        %v1059 = vlaneseq
        %v1060 = vshrl.u32 %v1059, 7
        %v1061 = vsub.s32 %v1058, %v1060
        %v1062 = vrot.slane %v1048, %v1061
        %v1063 = vcombine.high %v1055, %v1055
        %v1064 = vcombine.high %v1062, %v1062
        %v1065 = vcombine.high %v537, %v537
        %v1067 = vunpack.c.l.s4 1983009808
        %v1068 = vunpack.c.0.s8 %v1067
        %v1069 = vlaneseq
        %v1070 = vshrl.u32 %v1069, 7
        %v1071 = vsub.s32 %v1068, %v1070
        %v1072 = vrot.slane %v537, %v1071
        %v1074 = vunpack.c.l.s4 1983009808
        %v1075 = vunpack.c.0.s8 %v1074
        %v1076 = vlaneseq
        %v1077 = vshrl.u32 %v1076, 7
        %v1078 = vsub.s32 %v1075, %v1077
        %v1079 = vrot.slane %v1065, %v1078
        %v1080 = vcombine.high %v1072, %v1072
        %v1081 = vcombine.high %v1079, %v1079
        %v1082 = vcombine.high %v538, %v538
        %v1084 = vunpack.c.l.s4 1983009808
        %v1085 = vunpack.c.0.s8 %v1084
        %v1086 = vlaneseq
        %v1087 = vshrl.u32 %v1086, 7
        %v1088 = vsub.s32 %v1085, %v1087
        %v1089 = vrot.slane %v538, %v1088
        %v1091 = vunpack.c.l.s4 1983009808
        %v1092 = vunpack.c.0.s8 %v1091
        %v1093 = vlaneseq
        %v1094 = vshrl.u32 %v1093, 7
        %v1095 = vsub.s32 %v1092, %v1094
        %v1096 = vrot.slane %v1082, %v1095
        %v1097 = vcombine.high %v1089, %v1089
        %v1098 = vcombine.high %v1096, %v1096
        %v1099 = vcombine.high %v539, %v539
        %v1101 = vunpack.c.l.s4 1983009808
        %v1102 = vunpack.c.0.s8 %v1101
        %v1103 = vlaneseq
        %v1104 = vshrl.u32 %v1103, 7
        %v1105 = vsub.s32 %v1102, %v1104
        %v1106 = vrot.slane %v539, %v1105
        %v1108 = vunpack.c.l.s4 1983009808
        %v1109 = vunpack.c.0.s8 %v1108
        %v1110 = vlaneseq
        %v1111 = vshrl.u32 %v1110, 7
        %v1112 = vsub.s32 %v1109, %v1111
        %v1113 = vrot.slane %v1099, %v1112
        %v1114 = vcombine.high %v1106, %v1106
        %v1115 = vcombine.high %v1113, %v1113
        %v1244 = vrot.slane %v579, 7
        %v1245 = vrot.slane %v1244, 2
        %v1246 = vrot.slane %v587, 7
        %v1247 = vrot.slane %v1246, 2
        %v1248 = vrot.slane %v586, 7
        %v1249 = vrot.slane %v1248, 2
        %v1250 = vrot.slane %v588, 7
        %v1251 = vrot.slane %v1250, 2
        %v1252 = vrot.slane %v596, 7
        %v1253 = vrot.slane %v1252, 2
        %v1254 = vrot.slane %v604, 7
        %v1255 = vrot.slane %v1254, 2
        %v1256 = vrot.slane %v603, 7
        %v1257 = vrot.slane %v1256, 2
        %v1258 = vrot.slane %v605, 7
        %v1259 = vrot.slane %v1258, 2
        %v1260 = vrot.slane %v613, 7
        %v1261 = vrot.slane %v1260, 2
        %v1262 = vrot.slane %v621, 7
        %v1263 = vrot.slane %v1262, 2
        %v1264 = vrot.slane %v620, 7
        %v1265 = vrot.slane %v1264, 2
        %v1266 = vrot.slane %v622, 7
        %v1267 = vrot.slane %v1266, 2
        %v1268 = vrot.slane %v630, 7
        %v1269 = vrot.slane %v1268, 2
        %v1270 = vrot.slane %v638, 7
        %v1271 = vrot.slane %v1270, 2
        %v1272 = vrot.slane %v637, 7
        %v1273 = vrot.slane %v1272, 2
        %v1274 = vrot.slane %v639, 7
        %v1275 = vrot.slane %v1274, 2
        %v1276 = vrot.slane %v647, 7
        %v1277 = vrot.slane %v1276, 2
        %v1278 = vrot.slane %v655, 7
        %v1279 = vrot.slane %v1278, 2
        %v1280 = vrot.slane %v654, 7
        %v1281 = vrot.slane %v1280, 2
        %v1282 = vrot.slane %v656, 7
        %v1283 = vrot.slane %v1282, 2
        %v1284 = vrot.slane %v664, 7
        %v1285 = vrot.slane %v1284, 2
        %v1286 = vrot.slane %v672, 7
        %v1287 = vrot.slane %v1286, 2
        %v1288 = vrot.slane %v671, 7
        %v1289 = vrot.slane %v1288, 2
        %v1290 = vrot.slane %v673, 7
        %v1291 = vrot.slane %v1290, 2
        %v1292 = vrot.slane %v681, 7
        %v1293 = vrot.slane %v1292, 2
        %v1294 = vrot.slane %v689, 7
        %v1295 = vrot.slane %v1294, 2
        %v1296 = vrot.slane %v688, 7
        %v1297 = vrot.slane %v1296, 2
        %v1298 = vrot.slane %v690, 7
        %v1299 = vrot.slane %v1298, 2
        %v1300 = vrot.slane %v698, 7
        %v1301 = vrot.slane %v1300, 2
        %v1302 = vrot.slane %v706, 7
        %v1303 = vrot.slane %v1302, 2
        %v1304 = vrot.slane %v705, 7
        %v1305 = vrot.slane %v1304, 2
        %v1306 = vrot.slane %v707, 7
        %v1307 = vrot.slane %v1306, 2
        %v1308 = vrot.slane %v715, 7
        %v1309 = vrot.slane %v1308, 2
        %v1310 = vrot.slane %v723, 7
        %v1311 = vrot.slane %v1310, 2
        %v1312 = vrot.slane %v722, 7
        %v1313 = vrot.slane %v1312, 2
        %v1314 = vrot.slane %v724, 7
        %v1315 = vrot.slane %v1314, 2
        %v1316 = vrot.slane %v732, 7
        %v1317 = vrot.slane %v1316, 2
        %v1318 = vrot.slane %v740, 7
        %v1319 = vrot.slane %v1318, 2
        %v1320 = vrot.slane %v739, 7
        %v1321 = vrot.slane %v1320, 2
        %v1322 = vrot.slane %v741, 7
        %v1323 = vrot.slane %v1322, 2
        %v1324 = vrot.slane %v749, 7
        %v1325 = vrot.slane %v1324, 2
        %v1326 = vrot.slane %v757, 7
        %v1327 = vrot.slane %v1326, 2
        %v1328 = vrot.slane %v756, 7
        %v1329 = vrot.slane %v1328, 2
        %v1330 = vrot.slane %v758, 7
        %v1331 = vrot.slane %v1330, 2
        %v1332 = vrot.slane %v766, 7
        %v1333 = vrot.slane %v1332, 2
        %v1334 = vrot.slane %v774, 7
        %v1335 = vrot.slane %v1334, 2
        %v1336 = vrot.slane %v773, 7
        %v1337 = vrot.slane %v1336, 2
        %v1338 = vrot.slane %v775, 7
        %v1339 = vrot.slane %v1338, 2
        %v1340 = vrot.slane %v783, 7
        %v1341 = vrot.slane %v1340, 2
        %v1342 = vrot.slane %v791, 7
        %v1343 = vrot.slane %v1342, 2
        %v1344 = vrot.slane %v790, 7
        %v1345 = vrot.slane %v1344, 2
        %v1346 = vrot.slane %v792, 7
        %v1347 = vrot.slane %v1346, 2
        %v1348 = vrot.slane %v800, 7
        %v1349 = vrot.slane %v1348, 2
        %v1350 = vrot.slane %v808, 7
        %v1351 = vrot.slane %v1350, 2
        %v1352 = vrot.slane %v807, 7
        %v1353 = vrot.slane %v1352, 2
        %v1354 = vrot.slane %v809, 7
        %v1355 = vrot.slane %v1354, 2
        %v1356 = vrot.slane %v817, 7
        %v1357 = vrot.slane %v1356, 2
        %v1358 = vrot.slane %v825, 7
        %v1359 = vrot.slane %v1358, 2
        %v1360 = vrot.slane %v824, 7
        %v1361 = vrot.slane %v1360, 2
        %v1362 = vrot.slane %v826, 7
        %v1363 = vrot.slane %v1362, 2
        %v1364 = vrot.slane %v834, 7
        %v1365 = vrot.slane %v1364, 2
        %v1366 = vrot.slane %v842, 7
        %v1367 = vrot.slane %v1366, 2
        %v1368 = vrot.slane %v841, 7
        %v1369 = vrot.slane %v1368, 2
        %v1370 = vrot.slane %v843, 7
        %v1371 = vrot.slane %v1370, 2
        %v1372 = vrot.slane %v851, 7
        %v1373 = vrot.slane %v1372, 2
        %v1374 = vrot.slane %v859, 7
        %v1375 = vrot.slane %v1374, 2
        %v1376 = vrot.slane %v858, 7
        %v1377 = vrot.slane %v1376, 2
        %v1378 = vrot.slane %v860, 7
        %v1379 = vrot.slane %v1378, 2
        %v1380 = vrot.slane %v868, 7
        %v1381 = vrot.slane %v1380, 2
        %v1382 = vrot.slane %v876, 7
        %v1383 = vrot.slane %v1382, 2
        %v1384 = vrot.slane %v875, 7
        %v1385 = vrot.slane %v1384, 2
        %v1386 = vrot.slane %v877, 7
        %v1387 = vrot.slane %v1386, 2
        %v1388 = vrot.slane %v885, 7
        %v1389 = vrot.slane %v1388, 2
        %v1390 = vrot.slane %v893, 7
        %v1391 = vrot.slane %v1390, 2
        %v1392 = vrot.slane %v892, 7
        %v1393 = vrot.slane %v1392, 2
        %v1394 = vrot.slane %v894, 7
        %v1395 = vrot.slane %v1394, 2
        %v1396 = vrot.slane %v902, 7
        %v1397 = vrot.slane %v1396, 2
        %v1398 = vrot.slane %v910, 7
        %v1399 = vrot.slane %v1398, 2
        %v1400 = vrot.slane %v909, 7
        %v1401 = vrot.slane %v1400, 2
        %v1402 = vrot.slane %v911, 7
        %v1403 = vrot.slane %v1402, 2
        %v1404 = vrot.slane %v919, 7
        %v1405 = vrot.slane %v1404, 2
        %v1406 = vrot.slane %v927, 7
        %v1407 = vrot.slane %v1406, 2
        %v1408 = vrot.slane %v926, 7
        %v1409 = vrot.slane %v1408, 2
        %v1410 = vrot.slane %v928, 7
        %v1411 = vrot.slane %v1410, 2
        %v1412 = vrot.slane %v936, 7
        %v1413 = vrot.slane %v1412, 2
        %v1414 = vrot.slane %v944, 7
        %v1415 = vrot.slane %v1414, 2
        %v1416 = vrot.slane %v943, 7
        %v1417 = vrot.slane %v1416, 2
        %v1418 = vrot.slane %v945, 7
        %v1419 = vrot.slane %v1418, 2
        %v1420 = vrot.slane %v953, 7
        %v1421 = vrot.slane %v1420, 2
        %v1422 = vrot.slane %v961, 7
        %v1423 = vrot.slane %v1422, 2
        %v1424 = vrot.slane %v960, 7
        %v1425 = vrot.slane %v1424, 2
        %v1426 = vrot.slane %v962, 7
        %v1427 = vrot.slane %v1426, 2
        %v1428 = vrot.slane %v970, 7
        %v1429 = vrot.slane %v1428, 2
        %v1430 = vrot.slane %v978, 7
        %v1431 = vrot.slane %v1430, 2
        %v1432 = vrot.slane %v977, 7
        %v1433 = vrot.slane %v1432, 2
        %v1434 = vrot.slane %v979, 7
        %v1435 = vrot.slane %v1434, 2
        %v1436 = vrot.slane %v987, 7
        %v1437 = vrot.slane %v1436, 2
        %v1438 = vrot.slane %v995, 7
        %v1439 = vrot.slane %v1438, 2
        %v1440 = vrot.slane %v994, 7
        %v1441 = vrot.slane %v1440, 2
        %v1442 = vrot.slane %v996, 7
        %v1443 = vrot.slane %v1442, 2
        %v1444 = vrot.slane %v1004, 7
        %v1445 = vrot.slane %v1444, 2
        %v1446 = vrot.slane %v1012, 7
        %v1447 = vrot.slane %v1446, 2
        %v1448 = vrot.slane %v1011, 7
        %v1449 = vrot.slane %v1448, 2
        %v1450 = vrot.slane %v1013, 7
        %v1451 = vrot.slane %v1450, 2
        %v1452 = vrot.slane %v1021, 7
        %v1453 = vrot.slane %v1452, 2
        %v1454 = vrot.slane %v1029, 7
        %v1455 = vrot.slane %v1454, 2
        %v1456 = vrot.slane %v1028, 7
        %v1457 = vrot.slane %v1456, 2
        %v1458 = vrot.slane %v1030, 7
        %v1459 = vrot.slane %v1458, 2
        %v1460 = vrot.slane %v1038, 7
        %v1461 = vrot.slane %v1460, 2
        %v1462 = vrot.slane %v1046, 7
        %v1463 = vrot.slane %v1462, 2
        %v1464 = vrot.slane %v1045, 7
        %v1465 = vrot.slane %v1464, 2
        %v1466 = vrot.slane %v1047, 7
        %v1467 = vrot.slane %v1466, 2
        %v1468 = vrot.slane %v1055, 7
        %v1469 = vrot.slane %v1468, 2
        %v1470 = vrot.slane %v1063, 7
        %v1471 = vrot.slane %v1470, 2
        %v1472 = vrot.slane %v1062, 7
        %v1473 = vrot.slane %v1472, 2
        %v1474 = vrot.slane %v1064, 7
        %v1475 = vrot.slane %v1474, 2
        %v1476 = vrot.slane %v1072, 7
        %v1477 = vrot.slane %v1476, 2
        %v1478 = vrot.slane %v1080, 7
        %v1479 = vrot.slane %v1478, 2
        %v1480 = vrot.slane %v1079, 7
        %v1481 = vrot.slane %v1480, 2
        %v1482 = vrot.slane %v1081, 7
        %v1483 = vrot.slane %v1482, 2
        %v1484 = vrot.slane %v1089, 7
        %v1485 = vrot.slane %v1484, 2
        %v1486 = vrot.slane %v1097, 7
        %v1487 = vrot.slane %v1486, 2
        %v1488 = vrot.slane %v1096, 7
        %v1489 = vrot.slane %v1488, 2
        %v1490 = vrot.slane %v1098, 7
        %v1491 = vrot.slane %v1490, 2
        %v1492 = vrot.slane %v1106, 7
        %v1493 = vrot.slane %v1492, 2
        %v1494 = vrot.slane %v1114, 7
        %v1495 = vrot.slane %v1494, 2
        %v1496 = vrot.slane %v1113, 7
        %v1497 = vrot.slane %v1496, 2
        %v1498 = vrot.slane %v1115, 7
        %v1499 = vrot.slane %v1498, 2
        %v1628 = vmax.f32 %v579, %v1245
        %v1629 = vmax.f32 %v587, %v1247
        %v1630 = vmax.f32 %v586, %v1249
        %v1631 = vmax.f32 %v588, %v1251
        %v1632 = vmax.f32 %v596, %v1253
        %v1633 = vmax.f32 %v604, %v1255
        %v1634 = vmax.f32 %v603, %v1257
        %v1635 = vmax.f32 %v605, %v1259
        %v1636 = vmax.f32 %v613, %v1261
        %v1637 = vmax.f32 %v621, %v1263
        %v1638 = vmax.f32 %v620, %v1265
        %v1639 = vmax.f32 %v622, %v1267
        %v1640 = vmax.f32 %v630, %v1269
        %v1641 = vmax.f32 %v638, %v1271
        %v1642 = vmax.f32 %v637, %v1273
        %v1643 = vmax.f32 %v639, %v1275
        %v1644 = vmax.f32 %v647, %v1277
        %v1645 = vmax.f32 %v655, %v1279
        %v1646 = vmax.f32 %v654, %v1281
        %v1647 = vmax.f32 %v656, %v1283
        %v1648 = vmax.f32 %v664, %v1285
        %v1649 = vmax.f32 %v672, %v1287
        %v1650 = vmax.f32 %v671, %v1289
        %v1651 = vmax.f32 %v673, %v1291
        %v1652 = vmax.f32 %v681, %v1293
        %v1653 = vmax.f32 %v689, %v1295
        %v1654 = vmax.f32 %v688, %v1297
        %v1655 = vmax.f32 %v690, %v1299
        %v1656 = vmax.f32 %v698, %v1301
        %v1657 = vmax.f32 %v706, %v1303
        %v1658 = vmax.f32 %v705, %v1305
        %v1659 = vmax.f32 %v707, %v1307
        %v1660 = vmax.f32 %v715, %v1309
        %v1661 = vmax.f32 %v723, %v1311
        %v1662 = vmax.f32 %v722, %v1313
        %v1663 = vmax.f32 %v724, %v1315
        %v1664 = vmax.f32 %v732, %v1317
        %v1665 = vmax.f32 %v740, %v1319
        %v1666 = vmax.f32 %v739, %v1321
        %v1667 = vmax.f32 %v741, %v1323
        %v1668 = vmax.f32 %v749, %v1325
        %v1669 = vmax.f32 %v757, %v1327
        %v1670 = vmax.f32 %v756, %v1329
        %v1671 = vmax.f32 %v758, %v1331
        %v1672 = vmax.f32 %v766, %v1333
        %v1673 = vmax.f32 %v774, %v1335
        %v1674 = vmax.f32 %v773, %v1337
        %v1675 = vmax.f32 %v775, %v1339
        %v1676 = vmax.f32 %v783, %v1341
        %v1677 = vmax.f32 %v791, %v1343
        %v1678 = vmax.f32 %v790, %v1345
        %v1679 = vmax.f32 %v792, %v1347
        %v1680 = vmax.f32 %v800, %v1349
        %v1681 = vmax.f32 %v808, %v1351
        %v1682 = vmax.f32 %v807, %v1353
        %v1683 = vmax.f32 %v809, %v1355
        %v1684 = vmax.f32 %v817, %v1357
        %v1685 = vmax.f32 %v825, %v1359
        %v1686 = vmax.f32 %v824, %v1361
        %v1687 = vmax.f32 %v826, %v1363
        %v1688 = vmax.f32 %v834, %v1365
        %v1689 = vmax.f32 %v842, %v1367
        %v1690 = vmax.f32 %v841, %v1369
        %v1691 = vmax.f32 %v843, %v1371
        %v1692 = vmax.f32 %v851, %v1373
        %v1693 = vmax.f32 %v859, %v1375
        %v1694 = vmax.f32 %v858, %v1377
        %v1695 = vmax.f32 %v860, %v1379
        %v1696 = vmax.f32 %v868, %v1381
        %v1697 = vmax.f32 %v876, %v1383
        %v1698 = vmax.f32 %v875, %v1385
        %v1699 = vmax.f32 %v877, %v1387
        %v1700 = vmax.f32 %v885, %v1389
        %v1701 = vmax.f32 %v893, %v1391
        %v1702 = vmax.f32 %v892, %v1393
        %v1703 = vmax.f32 %v894, %v1395
        %v1704 = vmax.f32 %v902, %v1397
        %v1705 = vmax.f32 %v910, %v1399
        %v1706 = vmax.f32 %v909, %v1401
        %v1707 = vmax.f32 %v911, %v1403
        %v1708 = vmax.f32 %v919, %v1405
        %v1709 = vmax.f32 %v927, %v1407
        %v1710 = vmax.f32 %v926, %v1409
        %v1711 = vmax.f32 %v928, %v1411
        %v1712 = vmax.f32 %v936, %v1413
        %v1713 = vmax.f32 %v944, %v1415
        %v1714 = vmax.f32 %v943, %v1417
        %v1715 = vmax.f32 %v945, %v1419
        %v1716 = vmax.f32 %v953, %v1421
        %v1717 = vmax.f32 %v961, %v1423
        %v1718 = vmax.f32 %v960, %v1425
        %v1719 = vmax.f32 %v962, %v1427
        %v1720 = vmax.f32 %v970, %v1429
        %v1721 = vmax.f32 %v978, %v1431
        %v1722 = vmax.f32 %v977, %v1433
        %v1723 = vmax.f32 %v979, %v1435
        %v1724 = vmax.f32 %v987, %v1437
        %v1725 = vmax.f32 %v995, %v1439
        %v1726 = vmax.f32 %v994, %v1441
        %v1727 = vmax.f32 %v996, %v1443
        %v1728 = vmax.f32 %v1004, %v1445
        %v1729 = vmax.f32 %v1012, %v1447
        %v1730 = vmax.f32 %v1011, %v1449
        %v1731 = vmax.f32 %v1013, %v1451
        %v1732 = vmax.f32 %v1021, %v1453
        %v1733 = vmax.f32 %v1029, %v1455
        %v1734 = vmax.f32 %v1028, %v1457
        %v1735 = vmax.f32 %v1030, %v1459
        %v1736 = vmax.f32 %v1038, %v1461
        %v1737 = vmax.f32 %v1046, %v1463
        %v1738 = vmax.f32 %v1045, %v1465
        %v1739 = vmax.f32 %v1047, %v1467
        %v1740 = vmax.f32 %v1055, %v1469
        %v1741 = vmax.f32 %v1063, %v1471
        %v1742 = vmax.f32 %v1062, %v1473
        %v1743 = vmax.f32 %v1064, %v1475
        %v1744 = vmax.f32 %v1072, %v1477
        %v1745 = vmax.f32 %v1080, %v1479
        %v1746 = vmax.f32 %v1079, %v1481
        %v1747 = vmax.f32 %v1081, %v1483
        %v1748 = vmax.f32 %v1089, %v1485
        %v1749 = vmax.f32 %v1097, %v1487
        %v1750 = vmax.f32 %v1096, %v1489
        %v1751 = vmax.f32 %v1098, %v1491
        %v1752 = vmax.f32 %v1106, %v1493
        %v1753 = vmax.f32 %v1114, %v1495
        %v1754 = vmax.f32 %v1113, %v1497
        %v1755 = vmax.f32 %v1115, %v1499
        %v1756 = vmax.f32 %v1628, %v1636
        %v1757 = vmax.f32 %v1629, %v1637
        %v1758 = vmax.f32 %v1630, %v1638
        %v1759 = vmax.f32 %v1631, %v1639
        %v1760 = vmax.f32 %v1632, %v1640
        %v1761 = vmax.f32 %v1633, %v1641
        %v1762 = vmax.f32 %v1634, %v1642
        %v1763 = vmax.f32 %v1635, %v1643
        %v1764 = vmax.f32 %v1644, %v1652
        %v1765 = vmax.f32 %v1645, %v1653
        %v1766 = vmax.f32 %v1646, %v1654
        %v1767 = vmax.f32 %v1647, %v1655
        %v1768 = vmax.f32 %v1648, %v1656
        %v1769 = vmax.f32 %v1649, %v1657
        %v1770 = vmax.f32 %v1650, %v1658
        %v1771 = vmax.f32 %v1651, %v1659
        %v1772 = vmax.f32 %v1660, %v1668
        %v1773 = vmax.f32 %v1661, %v1669
        %v1774 = vmax.f32 %v1662, %v1670
        %v1775 = vmax.f32 %v1663, %v1671
        %v1776 = vmax.f32 %v1664, %v1672
        %v1777 = vmax.f32 %v1665, %v1673
        %v1778 = vmax.f32 %v1666, %v1674
        %v1779 = vmax.f32 %v1667, %v1675
        %v1780 = vmax.f32 %v1676, %v1684
        %v1781 = vmax.f32 %v1677, %v1685
        %v1782 = vmax.f32 %v1678, %v1686
        %v1783 = vmax.f32 %v1679, %v1687
        %v1784 = vmax.f32 %v1680, %v1688
        %v1785 = vmax.f32 %v1681, %v1689
        %v1786 = vmax.f32 %v1682, %v1690
        %v1787 = vmax.f32 %v1683, %v1691
        %v1788 = vmax.f32 %v1692, %v1700
        %v1789 = vmax.f32 %v1693, %v1701
        %v1790 = vmax.f32 %v1694, %v1702
        %v1791 = vmax.f32 %v1695, %v1703
        %v1792 = vmax.f32 %v1696, %v1704
        %v1793 = vmax.f32 %v1697, %v1705
        %v1794 = vmax.f32 %v1698, %v1706
        %v1795 = vmax.f32 %v1699, %v1707
        %v1796 = vmax.f32 %v1708, %v1716
        %v1797 = vmax.f32 %v1709, %v1717
        %v1798 = vmax.f32 %v1710, %v1718
        %v1799 = vmax.f32 %v1711, %v1719
        %v1800 = vmax.f32 %v1712, %v1720
        %v1801 = vmax.f32 %v1713, %v1721
        %v1802 = vmax.f32 %v1714, %v1722
        %v1803 = vmax.f32 %v1715, %v1723
        %v1804 = vmax.f32 %v1724, %v1732
        %v1805 = vmax.f32 %v1725, %v1733
        %v1806 = vmax.f32 %v1726, %v1734
        %v1807 = vmax.f32 %v1727, %v1735
        %v1808 = vmax.f32 %v1728, %v1736
        %v1809 = vmax.f32 %v1729, %v1737
        %v1810 = vmax.f32 %v1730, %v1738
        %v1811 = vmax.f32 %v1731, %v1739
        %v1812 = vmax.f32 %v1740, %v1748
        %v1813 = vmax.f32 %v1741, %v1749
        %v1814 = vmax.f32 %v1742, %v1750
        %v1815 = vmax.f32 %v1743, %v1751
        %v1816 = vmax.f32 %v1744, %v1752
        %v1817 = vmax.f32 %v1745, %v1753
        %v1818 = vmax.f32 %v1746, %v1754
        %v1819 = vmax.f32 %v1747, %v1755
        %vm1820 = vcmask 31744
        %1821 = vst.msk [vmem:[#allocation2] sm:$0xff] %vm1820, 0.0
        %vm1822 = vcmask 25600
        %1823 = vst.msk [vmem:[#allocation2 + $0x8] sm:$0x3] %vm1822, 0.0
        %1824 = vst.msk [vmem:[#allocation2 + $0x10] sm:$0xff] %vm1820, 0.0
        %1825 = vst.msk [vmem:[#allocation2 + $0x18] sm:$0x3] %vm1822, 0.0
        %1826 = vst.msk [vmem:[#allocation2 + $0x20] sm:$0xff] %vm1820, 0.0
        %1827 = vst.msk [vmem:[#allocation2 + $0x28] sm:$0x3] %vm1822, 0.0
        %1828 = vst.msk [vmem:[#allocation2 + $0x30] sm:$0xff] %vm1820, 0.0
        %1829 = vst.msk [vmem:[#allocation2 + $0x38] sm:$0x3] %vm1822, 0.0
        %1830 = vst.msk [vmem:[#allocation2 + $0x40] sm:$0xff] %vm1820, 0.0
        %1831 = vst.msk [vmem:[#allocation2 + $0x48] sm:$0x3] %vm1822, 0.0
        %1832 = vst.msk [vmem:[#allocation2 + $0x50] sm:$0xff] %vm1820, 0.0
        %1833 = vst.msk [vmem:[#allocation2 + $0x58] sm:$0x3] %vm1822, 0.0
        %1834 = vst.msk [vmem:[#allocation2 + $0x60] sm:$0xff] %vm1820, 0.0
        %1835 = vst.msk [vmem:[#allocation2 + $0x68] sm:$0x3] %vm1822, 0.0
        %1836 = vst.msk [vmem:[#allocation2 + $0x70] sm:$0xff] %vm1820, 0.0
        %1837 = vst.msk [vmem:[#allocation2 + $0x78] sm:$0x3] %vm1822, 0.0
        %1838 = vst.msk [vmem:[#allocation2 + $0x80] sm:$0xff] %vm1820, 0.0
        %1839 = vst.msk [vmem:[#allocation2 + $0x88] sm:$0x3] %vm1822, 0.0
        %1840 = vst.msk [vmem:[#allocation2 + $0x90] sm:$0xff] %vm1820, 0.0
        %1841 = vst.msk [vmem:[#allocation2 + $0x98] sm:$0x3] %vm1822, 0.0
        %v1906 = vlaneseq
        %v1907 = vshrl.u32 %v1906, 7
        %v1908 = vsub.s32 0, %v1907
        %v1909 = vrot.slane %v1756, %v1908
        %v1910 = vlaneseq
        %v1911 = vshrl.u32 %v1910, 7
        %v1912 = vsub.s32 0, %v1911
        %v1913 = vrot.slane %v1757, %v1912
        %v1914 = vlaneseq
        %v1915 = vshrl.u32 %v1914, 7
        %v1916 = vsub.s32 0, %v1915
        %v1917 = vrot.slane %v1758, %v1916
        %v1918 = vlaneseq
        %v1919 = vshrl.u32 %v1918, 7
        %v1920 = vsub.s32 0, %v1919
        %v1921 = vrot.slane %v1759, %v1920
        %v1922 = vlaneseq
        %v1923 = vshrl.u32 %v1922, 7
        %v1924 = vsub.s32 0, %v1923
        %v1925 = vrot.slane %v1760, %v1924
        %v1926 = vlaneseq
        %v1927 = vshrl.u32 %v1926, 7
        %v1928 = vsub.s32 0, %v1927
        %v1929 = vrot.slane %v1761, %v1928
        %v1930 = vlaneseq
        %v1931 = vshrl.u32 %v1930, 7
        %v1932 = vsub.s32 0, %v1931
        %v1933 = vrot.slane %v1762, %v1932
        %v1934 = vlaneseq
        %v1935 = vshrl.u32 %v1934, 7
        %v1936 = vsub.s32 0, %v1935
        %v1937 = vrot.slane %v1763, %v1936
        %v1938 = vlaneseq
        %v1939 = vshrl.u32 %v1938, 7
        %v1940 = vsub.s32 0, %v1939
        %v1941 = vrot.slane %v1764, %v1940
        %v1942 = vlaneseq
        %v1943 = vshrl.u32 %v1942, 7
        %v1944 = vsub.s32 0, %v1943
        %v1945 = vrot.slane %v1765, %v1944
        %v1946 = vlaneseq
        %v1947 = vshrl.u32 %v1946, 7
        %v1948 = vsub.s32 0, %v1947
        %v1949 = vrot.slane %v1766, %v1948
        %v1950 = vlaneseq
        %v1951 = vshrl.u32 %v1950, 7
        %v1952 = vsub.s32 0, %v1951
        %v1953 = vrot.slane %v1767, %v1952
        %v1954 = vlaneseq
        %v1955 = vshrl.u32 %v1954, 7
        %v1956 = vsub.s32 0, %v1955
        %v1957 = vrot.slane %v1768, %v1956
        %v1958 = vlaneseq
        %v1959 = vshrl.u32 %v1958, 7
        %v1960 = vsub.s32 0, %v1959
        %v1961 = vrot.slane %v1769, %v1960
        %v1962 = vlaneseq
        %v1963 = vshrl.u32 %v1962, 7
        %v1964 = vsub.s32 0, %v1963
        %v1965 = vrot.slane %v1770, %v1964
        %v1966 = vlaneseq
        %v1967 = vshrl.u32 %v1966, 7
        %v1968 = vsub.s32 0, %v1967
        %v1969 = vrot.slane %v1771, %v1968
        %v1970 = vlaneseq
        %v1971 = vshrl.u32 %v1970, 7
        %v1972 = vsub.s32 0, %v1971
        %v1973 = vrot.slane %v1772, %v1972
        %v1974 = vlaneseq
        %v1975 = vshrl.u32 %v1974, 7
        %v1976 = vsub.s32 0, %v1975
        %v1977 = vrot.slane %v1773, %v1976
        %v1978 = vlaneseq
        %v1979 = vshrl.u32 %v1978, 7
        %v1980 = vsub.s32 0, %v1979
        %v1981 = vrot.slane %v1774, %v1980
        %v1982 = vlaneseq
        %v1983 = vshrl.u32 %v1982, 7
        %v1984 = vsub.s32 0, %v1983
        %v1985 = vrot.slane %v1775, %v1984
        %v1986 = vlaneseq
        %v1987 = vshrl.u32 %v1986, 7
        %v1988 = vsub.s32 0, %v1987
        %v1989 = vrot.slane %v1776, %v1988
        %v1990 = vlaneseq
        %v1991 = vshrl.u32 %v1990, 7
        %v1992 = vsub.s32 0, %v1991
        %v1993 = vrot.slane %v1777, %v1992
        %v1994 = vlaneseq
        %v1995 = vshrl.u32 %v1994, 7
        %v1996 = vsub.s32 0, %v1995
        %v1997 = vrot.slane %v1778, %v1996
        %v1998 = vlaneseq
        %v1999 = vshrl.u32 %v1998, 7
        %v2000 = vsub.s32 0, %v1999
        %v2001 = vrot.slane %v1779, %v2000
        %v2002 = vlaneseq
        %v2003 = vshrl.u32 %v2002, 7
        %v2004 = vsub.s32 0, %v2003
        %v2005 = vrot.slane %v1780, %v2004
        %v2006 = vlaneseq
        %v2007 = vshrl.u32 %v2006, 7
        %v2008 = vsub.s32 0, %v2007
        %v2009 = vrot.slane %v1781, %v2008
        %v2010 = vlaneseq
        %v2011 = vshrl.u32 %v2010, 7
        %v2012 = vsub.s32 0, %v2011
        %v2013 = vrot.slane %v1782, %v2012
        %v2014 = vlaneseq
        %v2015 = vshrl.u32 %v2014, 7
        %v2016 = vsub.s32 0, %v2015
        %v2017 = vrot.slane %v1783, %v2016
        %v2018 = vlaneseq
        %v2019 = vshrl.u32 %v2018, 7
        %v2020 = vsub.s32 0, %v2019
        %v2021 = vrot.slane %v1784, %v2020
        %v2022 = vlaneseq
        %v2023 = vshrl.u32 %v2022, 7
        %v2024 = vsub.s32 0, %v2023
        %v2025 = vrot.slane %v1785, %v2024
        %v2026 = vlaneseq
        %v2027 = vshrl.u32 %v2026, 7
        %v2028 = vsub.s32 0, %v2027
        %v2029 = vrot.slane %v1786, %v2028
        %v2030 = vlaneseq
        %v2031 = vshrl.u32 %v2030, 7
        %v2032 = vsub.s32 0, %v2031
        %v2033 = vrot.slane %v1787, %v2032
        %v2034 = vlaneseq
        %v2035 = vshrl.u32 %v2034, 7
        %v2036 = vsub.s32 0, %v2035
        %v2037 = vrot.slane %v1788, %v2036
        %v2038 = vlaneseq
        %v2039 = vshrl.u32 %v2038, 7
        %v2040 = vsub.s32 0, %v2039
        %v2041 = vrot.slane %v1789, %v2040
        %v2042 = vlaneseq
        %v2043 = vshrl.u32 %v2042, 7
        %v2044 = vsub.s32 0, %v2043
        %v2045 = vrot.slane %v1790, %v2044
        %v2046 = vlaneseq
        %v2047 = vshrl.u32 %v2046, 7
        %v2048 = vsub.s32 0, %v2047
        %v2049 = vrot.slane %v1791, %v2048
        %v2050 = vlaneseq
        %v2051 = vshrl.u32 %v2050, 7
        %v2052 = vsub.s32 0, %v2051
        %v2053 = vrot.slane %v1792, %v2052
        %v2054 = vlaneseq
        %v2055 = vshrl.u32 %v2054, 7
        %v2056 = vsub.s32 0, %v2055
        %v2057 = vrot.slane %v1793, %v2056
        %v2058 = vlaneseq
        %v2059 = vshrl.u32 %v2058, 7
        %v2060 = vsub.s32 0, %v2059
        %v2061 = vrot.slane %v1794, %v2060
        %v2062 = vlaneseq
        %v2063 = vshrl.u32 %v2062, 7
        %v2064 = vsub.s32 0, %v2063
        %v2065 = vrot.slane %v1795, %v2064
        %v2066 = vlaneseq
        %v2067 = vshrl.u32 %v2066, 7
        %v2068 = vsub.s32 0, %v2067
        %v2069 = vrot.slane %v1796, %v2068
        %v2070 = vlaneseq
        %v2071 = vshrl.u32 %v2070, 7
        %v2072 = vsub.s32 0, %v2071
        %v2073 = vrot.slane %v1797, %v2072
        %v2074 = vlaneseq
        %v2075 = vshrl.u32 %v2074, 7
        %v2076 = vsub.s32 0, %v2075
        %v2077 = vrot.slane %v1798, %v2076
        %v2078 = vlaneseq
        %v2079 = vshrl.u32 %v2078, 7
        %v2080 = vsub.s32 0, %v2079
        %v2081 = vrot.slane %v1799, %v2080
        %v2082 = vlaneseq
        %v2083 = vshrl.u32 %v2082, 7
        %v2084 = vsub.s32 0, %v2083
        %v2085 = vrot.slane %v1800, %v2084
        %v2086 = vlaneseq
        %v2087 = vshrl.u32 %v2086, 7
        %v2088 = vsub.s32 0, %v2087
        %v2089 = vrot.slane %v1801, %v2088
        %v2090 = vlaneseq
        %v2091 = vshrl.u32 %v2090, 7
        %v2092 = vsub.s32 0, %v2091
        %v2093 = vrot.slane %v1802, %v2092
        %v2094 = vlaneseq
        %v2095 = vshrl.u32 %v2094, 7
        %v2096 = vsub.s32 0, %v2095
        %v2097 = vrot.slane %v1803, %v2096
        %v2098 = vlaneseq
        %v2099 = vshrl.u32 %v2098, 7
        %v2100 = vsub.s32 0, %v2099
        %v2101 = vrot.slane %v1804, %v2100
        %v2102 = vlaneseq
        %v2103 = vshrl.u32 %v2102, 7
        %v2104 = vsub.s32 0, %v2103
        %v2105 = vrot.slane %v1805, %v2104
        %v2106 = vlaneseq
        %v2107 = vshrl.u32 %v2106, 7
        %v2108 = vsub.s32 0, %v2107
        %v2109 = vrot.slane %v1806, %v2108
        %v2110 = vlaneseq
        %v2111 = vshrl.u32 %v2110, 7
        %v2112 = vsub.s32 0, %v2111
        %v2113 = vrot.slane %v1807, %v2112
        %v2114 = vlaneseq
        %v2115 = vshrl.u32 %v2114, 7
        %v2116 = vsub.s32 0, %v2115
        %v2117 = vrot.slane %v1808, %v2116
        %v2118 = vlaneseq
        %v2119 = vshrl.u32 %v2118, 7
        %v2120 = vsub.s32 0, %v2119
        %v2121 = vrot.slane %v1809, %v2120
        %v2122 = vlaneseq
        %v2123 = vshrl.u32 %v2122, 7
        %v2124 = vsub.s32 0, %v2123
        %v2125 = vrot.slane %v1810, %v2124
        %v2126 = vlaneseq
        %v2127 = vshrl.u32 %v2126, 7
        %v2128 = vsub.s32 0, %v2127
        %v2129 = vrot.slane %v1811, %v2128
        %v2130 = vlaneseq
        %v2131 = vshrl.u32 %v2130, 7
        %v2132 = vsub.s32 0, %v2131
        %v2133 = vrot.slane %v1812, %v2132
        %v2134 = vlaneseq
        %v2135 = vshrl.u32 %v2134, 7
        %v2136 = vsub.s32 0, %v2135
        %v2137 = vrot.slane %v1813, %v2136
        %v2138 = vlaneseq
        %v2139 = vshrl.u32 %v2138, 7
        %v2140 = vsub.s32 0, %v2139
        %v2141 = vrot.slane %v1814, %v2140
        %v2142 = vlaneseq
        %v2143 = vshrl.u32 %v2142, 7
        %v2144 = vsub.s32 0, %v2143
        %v2145 = vrot.slane %v1815, %v2144
        %v2146 = vlaneseq
        %v2147 = vshrl.u32 %v2146, 7
        %v2148 = vsub.s32 0, %v2147
        %v2149 = vrot.slane %v1816, %v2148
        %v2150 = vlaneseq
        %v2151 = vshrl.u32 %v2150, 7
        %v2152 = vsub.s32 0, %v2151
        %v2153 = vrot.slane %v1817, %v2152
        %v2154 = vlaneseq
        %v2155 = vshrl.u32 %v2154, 7
        %v2156 = vsub.s32 0, %v2155
        %v2157 = vrot.slane %v1818, %v2156
        %v2158 = vlaneseq
        %v2159 = vshrl.u32 %v2158, 7
        %v2160 = vsub.s32 0, %v2159
        %v2161 = vrot.slane %v1819, %v2160
        %vm2162 = vcmask 1041409
        %v2163 = vsel %vm2162, %v1913, %v1909
        %vm2164 = vcmask 1042434
        %v2165 = vsel %vm2164, %v1917, %v2163
        %vm2166 = vcmask 1043459
        %v2167 = vsel %vm2166, %v1921, %v2165
        %vm2168 = vcmask 1044484
        %v2169 = vsel %vm2168, %v1925, %v2167
        %vm2170 = vcmask 1045509
        %v2171 = vsel %vm2170, %v1929, %v2169
        %vm2172 = vcmask 1046534
        %v2173 = vsel %vm2172, %v1933, %v2171
        %vm2174 = vcmask 1047559
        %v2175 = vsel %vm2174, %v1937, %v2173
        %v2176 = vsel %vm2162, %v1945, %v1941
        %v2177 = vsel %vm2164, %v1949, %v2176
        %v2178 = vsel %vm2166, %v1953, %v2177
        %v2179 = vsel %vm2168, %v1957, %v2178
        %v2180 = vsel %vm2170, %v1961, %v2179
        %v2181 = vsel %vm2172, %v1965, %v2180
        %v2182 = vsel %vm2174, %v1969, %v2181
        %v2183 = vsel %vm2162, %v1977, %v1973
        %v2184 = vsel %vm2164, %v1981, %v2183
        %v2185 = vsel %vm2166, %v1985, %v2184
        %v2186 = vsel %vm2168, %v1989, %v2185
        %v2187 = vsel %vm2170, %v1993, %v2186
        %v2188 = vsel %vm2172, %v1997, %v2187
        %v2189 = vsel %vm2174, %v2001, %v2188
        %v2190 = vsel %vm2162, %v2009, %v2005
        %v2191 = vsel %vm2164, %v2013, %v2190
        %v2192 = vsel %vm2166, %v2017, %v2191
        %v2193 = vsel %vm2168, %v2021, %v2192
        %v2194 = vsel %vm2170, %v2025, %v2193
        %v2195 = vsel %vm2172, %v2029, %v2194
        %v2196 = vsel %vm2174, %v2033, %v2195
        %v2197 = vsel %vm2162, %v2041, %v2037
        %v2198 = vsel %vm2164, %v2045, %v2197
        %v2199 = vsel %vm2166, %v2049, %v2198
        %v2200 = vsel %vm2168, %v2053, %v2199
        %v2201 = vsel %vm2170, %v2057, %v2200
        %v2202 = vsel %vm2172, %v2061, %v2201
        %v2203 = vsel %vm2174, %v2065, %v2202
        %v2204 = vsel %vm2162, %v2073, %v2069
        %v2205 = vsel %vm2164, %v2077, %v2204
        %v2206 = vsel %vm2166, %v2081, %v2205
        %v2207 = vsel %vm2168, %v2085, %v2206
        %v2208 = vsel %vm2170, %v2089, %v2207
        %v2209 = vsel %vm2172, %v2093, %v2208
        %v2210 = vsel %vm2174, %v2097, %v2209
        %v2211 = vsel %vm2162, %v2105, %v2101
        %v2212 = vsel %vm2164, %v2109, %v2211
        %v2213 = vsel %vm2166, %v2113, %v2212
        %v2214 = vsel %vm2168, %v2117, %v2213
        %v2215 = vsel %vm2170, %v2121, %v2214
        %v2216 = vsel %vm2172, %v2125, %v2215
        %v2217 = vsel %vm2174, %v2129, %v2216
        %v2218 = vsel %vm2162, %v2137, %v2133
        %v2219 = vsel %vm2164, %v2141, %v2218
        %v2220 = vsel %vm2166, %v2145, %v2219
        %v2221 = vsel %vm2168, %v2149, %v2220
        %v2222 = vsel %vm2170, %v2153, %v2221
        %v2223 = vsel %vm2172, %v2157, %v2222
        %v2224 = vsel %vm2174, %v2161, %v2223
        %s2233 = scalar_lea.vmem [#allocation2], 16
        %2234 = vst.msk [vmem:[%s2233 + $0x1] sm:$0xff] %vm1820, %v2175
        %2235 = vst.msk [vmem:[%s2233 + $0x11] sm:$0xff] %vm1820, %v2182
        %2236 = vst.msk [vmem:[%s2233 + $0x21] sm:$0xff] %vm1820, %v2189
        %2237 = vst.msk [vmem:[%s2233 + $0x31] sm:$0xff] %vm1820, %v2196
        %2238 = vst.msk [vmem:[%s2233 + $0x41] sm:$0xff] %vm1820, %v2203
        %2239 = vst.msk [vmem:[%s2233 + $0x51] sm:$0xff] %vm1820, %v2210
        %2240 = vst.msk [vmem:[%s2233 + $0x61] sm:$0xff] %vm1820, %v2217
        %2241 = vst.msk [vmem:[%s2233 + $0x71] sm:$0xff] %vm1820, %v2224
        %v2242 = vld [vmem:[#allocation2] sm:$0xff]
        %v2243 = vld [vmem:[#allocation2 + $0x8] sm:$0x3]
        %v2244 = vld [vmem:[#allocation2 + $0x10] sm:$0xff]
        %v2245 = vld [vmem:[#allocation2 + $0x18] sm:$0x3]
        %v2246 = vld [vmem:[#allocation2 + $0x20] sm:$0xff]
        %v2247 = vld [vmem:[#allocation2 + $0x28] sm:$0x3]
        %v2248 = vld [vmem:[#allocation2 + $0x30] sm:$0xff]
        %v2249 = vld [vmem:[#allocation2 + $0x38] sm:$0x3]
        %v2250 = vld [vmem:[#allocation2 + $0x40] sm:$0xff]
        %v2251 = vld [vmem:[#allocation2 + $0x48] sm:$0x3]
        %v2252 = vld [vmem:[#allocation2 + $0x50] sm:$0xff]
        %v2253 = vld [vmem:[#allocation2 + $0x58] sm:$0x3]
        %v2254 = vld [vmem:[#allocation2 + $0x60] sm:$0xff]
        %v2255 = vld [vmem:[#allocation2 + $0x68] sm:$0x3]
        %v2256 = vld [vmem:[#allocation2 + $0x70] sm:$0xff]
        %v2257 = vld [vmem:[#allocation2 + $0x78] sm:$0x3]
        %v2258 = vld [vmem:[#allocation2 + $0x80] sm:$0xff]
        %v2259 = vld [vmem:[#allocation2 + $0x88] sm:$0x3]
        %v2260 = vld [vmem:[#allocation2 + $0x90] sm:$0xff]
        %v2261 = vld [vmem:[#allocation2 + $0x98] sm:$0x3]
        %v2262 = vpack.c.bf16 %v2244, %v2242
        %v2263 = vpack.c.bf16 %v2248, %v2246
        %v2264 = vpack.c.bf16 %v2252, %v2250
        %v2265 = vpack.c.bf16 %v2256, %v2254
        %v2266 = vld [vmem:[%s1] sm:$0x3]
        %vm2283 = vcmask 1046528
        %v2284 = vrot.slane %v2242, 1
        %v2285 = vrot.slane %v2243, 1
        %v2286 = vsel %vm2283, %v2284, %v2285
        %v2287 = vrot.slane %v2244, 1
        %v2288 = vrot.slane %v2245, 1
        %v2289 = vsel %vm2283, %v2287, %v2288
        %v2290 = vrot.slane %v2246, 1
        %v2291 = vrot.slane %v2247, 1
        %v2292 = vsel %vm2283, %v2290, %v2291
        %v2293 = vrot.slane %v2248, 1
        %v2294 = vrot.slane %v2249, 1
        %v2295 = vsel %vm2283, %v2293, %v2294
        %v2296 = vrot.slane %v2250, 1
        %v2297 = vrot.slane %v2251, 1
        %v2298 = vsel %vm2283, %v2296, %v2297
        %v2299 = vrot.slane %v2252, 1
        %v2300 = vrot.slane %v2253, 1
        %v2301 = vsel %vm2283, %v2299, %v2300
        %v2302 = vrot.slane %v2254, 1
        %v2303 = vrot.slane %v2255, 1
        %v2304 = vsel %vm2283, %v2302, %v2303
        %v2305 = vrot.slane %v2256, 1
        %v2306 = vrot.slane %v2257, 1
        %v2307 = vsel %vm2283, %v2305, %v2306
        %v2316 = vpack.c.bf16 %v2289, %v2286
        %v2317 = vpack.c.bf16 %v2295, %v2292
        %v2318 = vpack.c.bf16 %v2301, %v2298
        %v2319 = vpack.c.bf16 %v2307, %v2304
        %s2320 = scalar_lea.vmem %s1, 2
        %v2321 = vld [vmem:[%s2320] sm:$0x3]
        %v2323 = vsel %vm1820, %v2316, 0
        %v2326 = vsel %vm1820, %v2317, 0
        %v2329 = vsel %vm1820, %v2318, 0
        %v2332 = vsel %vm1820, %v2319, 0
        %vm2334 = vcmask 1041408
        %v2336 = vsel %vm2334, %v2321, 0
        %2338 = vmatprep.subr.bf16.mxu0 0
        %2339 = vmatpush1.bf16.msra.mxu0 %v2336
        %2340 = vmatprep.subr.bf16.mxu0 0
        %2341 = vmatpush1.bf16.msra.mxu0 0
        %2342 = vmatprep.subr.bf16.mxu0 0
        %2343 = vmatpush1.bf16.msra.mxu0 0
        %2344 = vmatprep.subr.bf16.mxu0 0
        %2345 = vmatpush1.bf16.msra.mxu0 0
        %2346 = vmatprep.subr.bf16.mxu0 0
        %2347 = vmatpush1.bf16.msra.mxu0 0
        %2348 = vmatprep.subr.bf16.mxu0 0
        %2349 = vmatpush1.bf16.msra.mxu0 0
        %2350 = vmatprep.subr.bf16.mxu0 0
        %2351 = vmatpush1.bf16.msra.mxu0 0
        %2352 = vmatprep.subr.bf16.mxu0 0
        %2353 = vmatpush1.bf16.msra.mxu0 0
        %2354 = vmatprep.subr.bf16.mxu0 0
        %2355 = vmatpush1.bf16.msra.mxu0 0
        %2356 = vmatprep.subr.bf16.mxu0 0
        %2357 = vmatpush1.bf16.msra.mxu0 0
        %2358 = vmatprep.subr.bf16.mxu0 0
        %2359 = vmatpush1.bf16.msra.mxu0 0
        %2360 = vmatprep.subr.bf16.mxu0 0
        %2361 = vmatpush1.bf16.msra.mxu0 0
        %2362 = vmatprep.subr.bf16.mxu0 0
        %2363 = vmatpush1.bf16.msra.mxu0 0
        %2364 = vmatprep.subr.bf16.mxu0 0
        %2365 = vmatpush1.bf16.msra.mxu0 0
        %2366 = vmatprep.subr.bf16.mxu0 0
        %2367 = vmatpush1.bf16.msra.mxu0 0
        %2368 = vmatprep.subr.bf16.mxu0 0
        %2369 = vmatpush1.bf16.msra.mxu0 0
        %2370 = vmatprep.mubr.bf16.mxu0 0
        %2371 = vmatmul.mubr.bf16.gmra.mrb[0].mxu0 %v2323
        %v2372 = vpop.f32.mrb[0].mxu0
        %v2373 = vadd.f32 0.0, %v2372
        %v2374 = vpop.f32.mrb[0].mxu0
        %v2375 = vpop.f32.mrb[0].mxu0
        %v2376 = vadd.f32 0.0, %v2375
        %v2377 = vpop.f32.mrb[0].mxu0
        %2378 = vmatprep.mubr.bf16.mxu0 0
        %2379 = vmatmul.mubr.bf16.gmra.mrb[0].mxu0 %v2326
        %v2380 = vpop.f32.mrb[0].mxu0
        %v2381 = vadd.f32 0.0, %v2380
        %v2382 = vpop.f32.mrb[0].mxu0
        %v2383 = vpop.f32.mrb[0].mxu0
        %v2384 = vadd.f32 0.0, %v2383
        %v2385 = vpop.f32.mrb[0].mxu0
        %2386 = vmatprep.mubr.bf16.mxu0 0
        %2387 = vmatmul.mubr.bf16.gmra.mrb[0].mxu0 %v2329
        %v2388 = vpop.f32.mrb[0].mxu0
        %v2389 = vadd.f32 0.0, %v2388
        %v2390 = vpop.f32.mrb[0].mxu0
        %v2391 = vpop.f32.mrb[0].mxu0
        %v2392 = vadd.f32 0.0, %v2391
        %v2393 = vpop.f32.mrb[0].mxu0
        %2394 = vmatprep.mubr.bf16.mxu0 0
        %2395 = vmatmul.mubr.bf16.gmra.mrb[0].mxu0 %v2332
        %v2396 = vpop.f32.mrb[0].mxu0
        %v2397 = vadd.f32 0.0, %v2396
        %v2398 = vpop.f32.mrb[0].mxu0
        %v2399 = vpop.f32.mrb[0].mxu0
        %v2400 = vadd.f32 0.0, %v2399
        %v2401 = vpop.f32.mrb[0].mxu0
        %2402 = vdwg.mxu0
        %v2404 = vsel %vm1820, %v2262, 0
        %v2407 = vsel %vm1820, %v2263, 0
        %v2410 = vsel %vm1820, %v2264, 0
        %v2413 = vsel %vm1820, %v2265, 0
        %v2416 = vsel %vm2334, %v2266, 0
        %2418 = vmatprep.subr.bf16.mxu0 0
        %2419 = vmatpush1.bf16.msra.mxu0 %v2416
        %2420 = vmatprep.subr.bf16.mxu0 0
        %2421 = vmatpush1.bf16.msra.mxu0 0
        %2422 = vmatprep.subr.bf16.mxu0 0
        %2423 = vmatpush1.bf16.msra.mxu0 0
        %2424 = vmatprep.subr.bf16.mxu0 0
        %2425 = vmatpush1.bf16.msra.mxu0 0
        %2426 = vmatprep.subr.bf16.mxu0 0
        %2427 = vmatpush1.bf16.msra.mxu0 0
        %2428 = vmatprep.subr.bf16.mxu0 0
        %2429 = vmatpush1.bf16.msra.mxu0 0
        %2430 = vmatprep.subr.bf16.mxu0 0
        %2431 = vmatpush1.bf16.msra.mxu0 0
        %2432 = vmatprep.subr.bf16.mxu0 0
        %2433 = vmatpush1.bf16.msra.mxu0 0
        %2434 = vmatprep.subr.bf16.mxu0 0
        %2435 = vmatpush1.bf16.msra.mxu0 0
        %2436 = vmatprep.subr.bf16.mxu0 0
        %2437 = vmatpush1.bf16.msra.mxu0 0
        %2438 = vmatprep.subr.bf16.mxu0 0
        %2439 = vmatpush1.bf16.msra.mxu0 0
        %2440 = vmatprep.subr.bf16.mxu0 0
        %2441 = vmatpush1.bf16.msra.mxu0 0
        %2442 = vmatprep.subr.bf16.mxu0 0
        %2443 = vmatpush1.bf16.msra.mxu0 0
        %2444 = vmatprep.subr.bf16.mxu0 0
        %2445 = vmatpush1.bf16.msra.mxu0 0
        %2446 = vmatprep.subr.bf16.mxu0 0
        %2447 = vmatpush1.bf16.msra.mxu0 0
        %2448 = vmatprep.subr.bf16.mxu0 0
        %2449 = vmatpush1.bf16.msra.mxu0 0
        %2450 = vmatprep.mubr.bf16.mxu0 0
        %2451 = vmatmul.mubr.bf16.gmra.mrb[0].mxu0 %v2404
        %v2452 = vpop.f32.mrb[0].mxu0
        %v2453 = vadd.f32 %v2373, %v2452
        %v2454 = vpop.f32.mrb[0].mxu0
        %v2455 = vpop.f32.mrb[0].mxu0
        %v2456 = vadd.f32 %v2376, %v2455
        %v2457 = vpop.f32.mrb[0].mxu0
        %2458 = vmatprep.mubr.bf16.mxu0 0
        %2459 = vmatmul.mubr.bf16.gmra.mrb[0].mxu0 %v2407
        %v2460 = vpop.f32.mrb[0].mxu0
        %v2461 = vadd.f32 %v2381, %v2460
        %v2462 = vpop.f32.mrb[0].mxu0
        %v2463 = vpop.f32.mrb[0].mxu0
        %v2464 = vadd.f32 %v2384, %v2463
        %v2465 = vpop.f32.mrb[0].mxu0
        %2466 = vmatprep.mubr.bf16.mxu0 0
        %2467 = vmatmul.mubr.bf16.gmra.mrb[0].mxu0 %v2410
        %v2468 = vpop.f32.mrb[0].mxu0
        %v2469 = vadd.f32 %v2389, %v2468
        %v2470 = vpop.f32.mrb[0].mxu0
        %v2471 = vpop.f32.mrb[0].mxu0
        %v2472 = vadd.f32 %v2392, %v2471
        %v2473 = vpop.f32.mrb[0].mxu0
        %2474 = vmatprep.mubr.bf16.mxu0 0
        %2475 = vmatmul.mubr.bf16.gmra.mrb[0].mxu0 %v2413
        %v2476 = vpop.f32.mrb[0].mxu0
        %v2477 = vadd.f32 %v2397, %v2476
        %v2478 = vpop.f32.mrb[0].mxu0
        %v2479 = vpop.f32.mrb[0].mxu0
        %v2480 = vadd.f32 %v2400, %v2479
        %v2481 = vpop.f32.mrb[0].mxu0
        %2482 = vdwg.mxu0
        %vm2483 = vcmask 1045504
        %v2484 = vrot.slane %v2242, 2
        %v2485 = vrot.slane %v2243, 2
        %v2486 = vsel %vm2483, %v2484, %v2485
        %v2487 = vrot.slane %v2244, 2
        %v2488 = vrot.slane %v2245, 2
        %v2489 = vsel %vm2483, %v2487, %v2488
        %v2490 = vrot.slane %v2246, 2
        %v2491 = vrot.slane %v2247, 2
        %v2492 = vsel %vm2483, %v2490, %v2491
        %v2493 = vrot.slane %v2248, 2
        %v2494 = vrot.slane %v2249, 2
        %v2495 = vsel %vm2483, %v2493, %v2494
        %v2496 = vrot.slane %v2250, 2
        %v2497 = vrot.slane %v2251, 2
        %v2498 = vsel %vm2483, %v2496, %v2497
        %v2499 = vrot.slane %v2252, 2
        %v2500 = vrot.slane %v2253, 2
        %v2501 = vsel %vm2483, %v2499, %v2500
        %v2502 = vrot.slane %v2254, 2
        %v2503 = vrot.slane %v2255, 2
        %v2504 = vsel %vm2483, %v2502, %v2503
        %v2505 = vrot.slane %v2256, 2
        %v2506 = vrot.slane %v2257, 2
        %v2507 = vsel %vm2483, %v2505, %v2506
        %v2516 = vpack.c.bf16 %v2489, %v2486
        %v2517 = vpack.c.bf16 %v2495, %v2492
        %v2518 = vpack.c.bf16 %v2501, %v2498
        %v2519 = vpack.c.bf16 %v2507, %v2504
        %s2520 = scalar_lea.vmem %s1, 4
        %v2521 = vld [vmem:[%s2520] sm:$0x3]
        %v2523 = vsel %vm1820, %v2516, 0
        %v2526 = vsel %vm1820, %v2517, 0
        %v2529 = vsel %vm1820, %v2518, 0
        %v2532 = vsel %vm1820, %v2519, 0
        %v2535 = vsel %vm2334, %v2521, 0
        %2537 = vmatprep.subr.bf16.mxu0 0
        %2538 = vmatpush1.bf16.msra.mxu0 %v2535
        %2539 = vmatprep.subr.bf16.mxu0 0
        %2540 = vmatpush1.bf16.msra.mxu0 0
        %2541 = vmatprep.subr.bf16.mxu0 0
        %2542 = vmatpush1.bf16.msra.mxu0 0
        %2543 = vmatprep.subr.bf16.mxu0 0
        %2544 = vmatpush1.bf16.msra.mxu0 0
        %2545 = vmatprep.subr.bf16.mxu0 0
        %2546 = vmatpush1.bf16.msra.mxu0 0
        %2547 = vmatprep.subr.bf16.mxu0 0
        %2548 = vmatpush1.bf16.msra.mxu0 0
        %2549 = vmatprep.subr.bf16.mxu0 0
        %2550 = vmatpush1.bf16.msra.mxu0 0
        %2551 = vmatprep.subr.bf16.mxu0 0
        %2552 = vmatpush1.bf16.msra.mxu0 0
        %2553 = vmatprep.subr.bf16.mxu0 0
        %2554 = vmatpush1.bf16.msra.mxu0 0
        %2555 = vmatprep.subr.bf16.mxu0 0
        %2556 = vmatpush1.bf16.msra.mxu0 0
        %2557 = vmatprep.subr.bf16.mxu0 0
        %2558 = vmatpush1.bf16.msra.mxu0 0
        %2559 = vmatprep.subr.bf16.mxu0 0
        %2560 = vmatpush1.bf16.msra.mxu0 0
        %2561 = vmatprep.subr.bf16.mxu0 0
        %2562 = vmatpush1.bf16.msra.mxu0 0
        %2563 = vmatprep.subr.bf16.mxu0 0
        %2564 = vmatpush1.bf16.msra.mxu0 0
        %2565 = vmatprep.subr.bf16.mxu0 0
        %2566 = vmatpush1.bf16.msra.mxu0 0
        %2567 = vmatprep.subr.bf16.mxu0 0
        %2568 = vmatpush1.bf16.msra.mxu0 0
        %2569 = vmatprep.mubr.bf16.mxu0 0
        %2570 = vmatmul.mubr.bf16.gmra.mrb[0].mxu0 %v2523
        %v2571 = vpop.f32.mrb[0].mxu0
        %v2572 = vadd.f32 0.0, %v2571
        %v2573 = vpop.f32.mrb[0].mxu0
        %v2574 = vpop.f32.mrb[0].mxu0
        %v2575 = vadd.f32 0.0, %v2574
        %v2576 = vpop.f32.mrb[0].mxu0
        %2577 = vmatprep.mubr.bf16.mxu0 0
        %2578 = vmatmul.mubr.bf16.gmra.mrb[0].mxu0 %v2526
        %v2579 = vpop.f32.mrb[0].mxu0
        %v2580 = vadd.f32 0.0, %v2579
        %v2581 = vpop.f32.mrb[0].mxu0
        %v2582 = vpop.f32.mrb[0].mxu0
        %v2583 = vadd.f32 0.0, %v2582
        %v2584 = vpop.f32.mrb[0].mxu0
        %2585 = vmatprep.mubr.bf16.mxu0 0
        %2586 = vmatmul.mubr.bf16.gmra.mrb[0].mxu0 %v2529
        %v2587 = vpop.f32.mrb[0].mxu0
        %v2588 = vadd.f32 0.0, %v2587
        %v2589 = vpop.f32.mrb[0].mxu0
        %v2590 = vpop.f32.mrb[0].mxu0
        %v2591 = vadd.f32 0.0, %v2590
        %v2592 = vpop.f32.mrb[0].mxu0
        %2593 = vmatprep.mubr.bf16.mxu0 0
        %2594 = vmatmul.mubr.bf16.gmra.mrb[0].mxu0 %v2532
        %v2595 = vpop.f32.mrb[0].mxu0
        %v2596 = vadd.f32 0.0, %v2595
        %v2597 = vpop.f32.mrb[0].mxu0
        %v2598 = vpop.f32.mrb[0].mxu0
        %v2599 = vadd.f32 0.0, %v2598
        %v2600 = vpop.f32.mrb[0].mxu0
        %2601 = vdwg.mxu0
        %v2602 = vadd.f32 %v2453, %v2572
        %v2603 = vadd.f32 %v2456, %v2575
        %v2604 = vadd.f32 %v2461, %v2580
        %v2605 = vadd.f32 %v2464, %v2583
        %v2606 = vadd.f32 %v2469, %v2588
        %v2607 = vadd.f32 %v2472, %v2591
        %v2608 = vadd.f32 %v2477, %v2596
        %v2609 = vadd.f32 %v2480, %v2599
        %v2610 = vpack.c.bf16 %v2246, %v2244
        %v2611 = vpack.c.bf16 %v2250, %v2248
        %v2612 = vpack.c.bf16 %v2254, %v2252
        %v2613 = vpack.c.bf16 %v2258, %v2256
        %s2614 = scalar_lea.vmem %s1, 6
        %v2615 = vld [vmem:[%s2614] sm:$0x3]
        %v2617 = vsel %vm1820, %v2610, 0
        %v2620 = vsel %vm1820, %v2611, 0
        %v2623 = vsel %vm1820, %v2612, 0
        %v2626 = vsel %vm1820, %v2613, 0
        %v2629 = vsel %vm2334, %v2615, 0
        %2631 = vmatprep.subr.bf16.mxu0 0
        %2632 = vmatpush1.bf16.msra.mxu0 %v2629
        %2633 = vmatprep.subr.bf16.mxu0 0
        %2634 = vmatpush1.bf16.msra.mxu0 0
        %2635 = vmatprep.subr.bf16.mxu0 0
        %2636 = vmatpush1.bf16.msra.mxu0 0
        %2637 = vmatprep.subr.bf16.mxu0 0
        %2638 = vmatpush1.bf16.msra.mxu0 0
        %2639 = vmatprep.subr.bf16.mxu0 0
        %2640 = vmatpush1.bf16.msra.mxu0 0
        %2641 = vmatprep.subr.bf16.mxu0 0
        %2642 = vmatpush1.bf16.msra.mxu0 0
        %2643 = vmatprep.subr.bf16.mxu0 0
        %2644 = vmatpush1.bf16.msra.mxu0 0
        %2645 = vmatprep.subr.bf16.mxu0 0
        %2646 = vmatpush1.bf16.msra.mxu0 0
        %2647 = vmatprep.subr.bf16.mxu0 0
        %2648 = vmatpush1.bf16.msra.mxu0 0
        %2649 = vmatprep.subr.bf16.mxu0 0
        %2650 = vmatpush1.bf16.msra.mxu0 0
        %2651 = vmatprep.subr.bf16.mxu0 0
        %2652 = vmatpush1.bf16.msra.mxu0 0
        %2653 = vmatprep.subr.bf16.mxu0 0
        %2654 = vmatpush1.bf16.msra.mxu0 0
        %2655 = vmatprep.subr.bf16.mxu0 0
        %2656 = vmatpush1.bf16.msra.mxu0 0
        %2657 = vmatprep.subr.bf16.mxu0 0
        %2658 = vmatpush1.bf16.msra.mxu0 0
        %2659 = vmatprep.subr.bf16.mxu0 0
        %2660 = vmatpush1.bf16.msra.mxu0 0
        %2661 = vmatprep.subr.bf16.mxu0 0
        %2662 = vmatpush1.bf16.msra.mxu0 0
        %2663 = vmatprep.mubr.bf16.mxu0 0
        %2664 = vmatmul.mubr.bf16.gmra.mrb[0].mxu0 %v2617
        %v2665 = vpop.f32.mrb[0].mxu0
        %v2666 = vadd.f32 0.0, %v2665
        %v2667 = vpop.f32.mrb[0].mxu0
        %v2668 = vpop.f32.mrb[0].mxu0
        %v2669 = vadd.f32 0.0, %v2668
        %v2670 = vpop.f32.mrb[0].mxu0
        %2671 = vmatprep.mubr.bf16.mxu0 0
        %2672 = vmatmul.mubr.bf16.gmra.mrb[0].mxu0 %v2620
        %v2673 = vpop.f32.mrb[0].mxu0
        %v2674 = vadd.f32 0.0, %v2673
        %v2675 = vpop.f32.mrb[0].mxu0
        %v2676 = vpop.f32.mrb[0].mxu0
        %v2677 = vadd.f32 0.0, %v2676
        %v2678 = vpop.f32.mrb[0].mxu0
        %2679 = vmatprep.mubr.bf16.mxu0 0
        %2680 = vmatmul.mubr.bf16.gmra.mrb[0].mxu0 %v2623
        %v2681 = vpop.f32.mrb[0].mxu0
        %v2682 = vadd.f32 0.0, %v2681
        %v2683 = vpop.f32.mrb[0].mxu0
        %v2684 = vpop.f32.mrb[0].mxu0
        %v2685 = vadd.f32 0.0, %v2684
        %v2686 = vpop.f32.mrb[0].mxu0
        %2687 = vmatprep.mubr.bf16.mxu0 0
        %2688 = vmatmul.mubr.bf16.gmra.mrb[0].mxu0 %v2626
        %v2689 = vpop.f32.mrb[0].mxu0
        %v2690 = vadd.f32 0.0, %v2689
        %v2691 = vpop.f32.mrb[0].mxu0
        %v2692 = vpop.f32.mrb[0].mxu0
        %v2693 = vadd.f32 0.0, %v2692
        %v2694 = vpop.f32.mrb[0].mxu0
        %2695 = vdwg.mxu0
        %v2696 = vadd.f32 %v2602, %v2666
        %v2697 = vadd.f32 %v2603, %v2669
        %v2698 = vadd.f32 %v2604, %v2674
        %v2699 = vadd.f32 %v2605, %v2677
        %v2700 = vadd.f32 %v2606, %v2682
        %v2701 = vadd.f32 %v2607, %v2685
        %v2702 = vadd.f32 %v2608, %v2690
        %v2703 = vadd.f32 %v2609, %v2693
        %v2706 = vrot.slane %v2258, 1
        %v2707 = vrot.slane %v2259, 1
        %v2708 = vsel %vm2283, %v2706, %v2707
        %v2710 = vpack.c.bf16 %v2292, %v2289
        %v2711 = vpack.c.bf16 %v2298, %v2295
        %v2712 = vpack.c.bf16 %v2304, %v2301
        %v2713 = vpack.c.bf16 %v2708, %v2307
        %s2714 = scalar_lea.vmem %s1, 8
        %v2715 = vld [vmem:[%s2714] sm:$0x3]
        %v2717 = vsel %vm1820, %v2710, 0
        %v2720 = vsel %vm1820, %v2711, 0
        %v2723 = vsel %vm1820, %v2712, 0
        %v2726 = vsel %vm1820, %v2713, 0
        %v2729 = vsel %vm2334, %v2715, 0
        %2731 = vmatprep.subr.bf16.mxu0 0
        %2732 = vmatpush1.bf16.msra.mxu0 %v2729
        %2733 = vmatprep.subr.bf16.mxu0 0
        %2734 = vmatpush1.bf16.msra.mxu0 0
        %2735 = vmatprep.subr.bf16.mxu0 0
        %2736 = vmatpush1.bf16.msra.mxu0 0
        %2737 = vmatprep.subr.bf16.mxu0 0
        %2738 = vmatpush1.bf16.msra.mxu0 0
        %2739 = vmatprep.subr.bf16.mxu0 0
        %2740 = vmatpush1.bf16.msra.mxu0 0
        %2741 = vmatprep.subr.bf16.mxu0 0
        %2742 = vmatpush1.bf16.msra.mxu0 0
        %2743 = vmatprep.subr.bf16.mxu0 0
        %2744 = vmatpush1.bf16.msra.mxu0 0
        %2745 = vmatprep.subr.bf16.mxu0 0
        %2746 = vmatpush1.bf16.msra.mxu0 0
        %2747 = vmatprep.subr.bf16.mxu0 0
        %2748 = vmatpush1.bf16.msra.mxu0 0
        %2749 = vmatprep.subr.bf16.mxu0 0
        %2750 = vmatpush1.bf16.msra.mxu0 0
        %2751 = vmatprep.subr.bf16.mxu0 0
        %2752 = vmatpush1.bf16.msra.mxu0 0
        %2753 = vmatprep.subr.bf16.mxu0 0
        %2754 = vmatpush1.bf16.msra.mxu0 0
        %2755 = vmatprep.subr.bf16.mxu0 0
        %2756 = vmatpush1.bf16.msra.mxu0 0
        %2757 = vmatprep.subr.bf16.mxu0 0
        %2758 = vmatpush1.bf16.msra.mxu0 0
        %2759 = vmatprep.subr.bf16.mxu0 0
        %2760 = vmatpush1.bf16.msra.mxu0 0
        %2761 = vmatprep.subr.bf16.mxu0 0
        %2762 = vmatpush1.bf16.msra.mxu0 0
        %2763 = vmatprep.mubr.bf16.mxu0 0
        %2764 = vmatmul.mubr.bf16.gmra.mrb[0].mxu0 %v2717
        %v2765 = vpop.f32.mrb[0].mxu0
        %v2766 = vadd.f32 0.0, %v2765
        %v2767 = vpop.f32.mrb[0].mxu0
        %v2768 = vpop.f32.mrb[0].mxu0
        %v2769 = vadd.f32 0.0, %v2768
        %v2770 = vpop.f32.mrb[0].mxu0
        %2771 = vmatprep.mubr.bf16.mxu0 0
        %2772 = vmatmul.mubr.bf16.gmra.mrb[0].mxu0 %v2720
        %v2773 = vpop.f32.mrb[0].mxu0
        %v2774 = vadd.f32 0.0, %v2773
        %v2775 = vpop.f32.mrb[0].mxu0
        %v2776 = vpop.f32.mrb[0].mxu0
        %v2777 = vadd.f32 0.0, %v2776
        %v2778 = vpop.f32.mrb[0].mxu0
        %2779 = vmatprep.mubr.bf16.mxu0 0
        %2780 = vmatmul.mubr.bf16.gmra.mrb[0].mxu0 %v2723
        %v2781 = vpop.f32.mrb[0].mxu0
        %v2782 = vadd.f32 0.0, %v2781
        %v2783 = vpop.f32.mrb[0].mxu0
        %v2784 = vpop.f32.mrb[0].mxu0
        %v2785 = vadd.f32 0.0, %v2784
        %v2786 = vpop.f32.mrb[0].mxu0
        %2787 = vmatprep.mubr.bf16.mxu0 0
        %2788 = vmatmul.mubr.bf16.gmra.mrb[0].mxu0 %v2726
        %v2789 = vpop.f32.mrb[0].mxu0
        %v2790 = vadd.f32 0.0, %v2789
        %v2791 = vpop.f32.mrb[0].mxu0
        %v2792 = vpop.f32.mrb[0].mxu0
        %v2793 = vadd.f32 0.0, %v2792
        %v2794 = vpop.f32.mrb[0].mxu0
        %2795 = vdwg.mxu0
        %v2796 = vadd.f32 %v2696, %v2766
        %v2797 = vadd.f32 %v2697, %v2769
        %v2798 = vadd.f32 %v2698, %v2774
        %v2799 = vadd.f32 %v2699, %v2777
        %v2800 = vadd.f32 %v2700, %v2782
        %v2801 = vadd.f32 %v2701, %v2785
        %v2802 = vadd.f32 %v2702, %v2790
        %v2803 = vadd.f32 %v2703, %v2793
        %v2804 = vrot.slane %v2258, 2
        %v2805 = vrot.slane %v2259, 2
        %v2806 = vsel %vm2483, %v2804, %v2805
        %v2808 = vpack.c.bf16 %v2492, %v2489
        %v2809 = vpack.c.bf16 %v2498, %v2495
        %v2810 = vpack.c.bf16 %v2504, %v2501
        %v2811 = vpack.c.bf16 %v2806, %v2507
        %s2812 = scalar_lea.vmem %s1, 10
        %v2813 = vld [vmem:[%s2812] sm:$0x3]
        %v2815 = vsel %vm1820, %v2808, 0
        %v2818 = vsel %vm1820, %v2809, 0
        %v2821 = vsel %vm1820, %v2810, 0
        %v2824 = vsel %vm1820, %v2811, 0
        %v2827 = vsel %vm2334, %v2813, 0
        %2829 = vmatprep.subr.bf16.mxu0 0
        %2830 = vmatpush1.bf16.msra.mxu0 %v2827
        %2831 = vmatprep.subr.bf16.mxu0 0
        %2832 = vmatpush1.bf16.msra.mxu0 0
        %2833 = vmatprep.subr.bf16.mxu0 0
        %2834 = vmatpush1.bf16.msra.mxu0 0
        %2835 = vmatprep.subr.bf16.mxu0 0
        %2836 = vmatpush1.bf16.msra.mxu0 0
        %2837 = vmatprep.subr.bf16.mxu0 0
        %2838 = vmatpush1.bf16.msra.mxu0 0
        %2839 = vmatprep.subr.bf16.mxu0 0
        %2840 = vmatpush1.bf16.msra.mxu0 0
        %2841 = vmatprep.subr.bf16.mxu0 0
        %2842 = vmatpush1.bf16.msra.mxu0 0
        %2843 = vmatprep.subr.bf16.mxu0 0
        %2844 = vmatpush1.bf16.msra.mxu0 0
        %2845 = vmatprep.subr.bf16.mxu0 0
        %2846 = vmatpush1.bf16.msra.mxu0 0
        %2847 = vmatprep.subr.bf16.mxu0 0
        %2848 = vmatpush1.bf16.msra.mxu0 0
        %2849 = vmatprep.subr.bf16.mxu0 0
        %2850 = vmatpush1.bf16.msra.mxu0 0
        %2851 = vmatprep.subr.bf16.mxu0 0
        %2852 = vmatpush1.bf16.msra.mxu0 0
        %2853 = vmatprep.subr.bf16.mxu0 0
        %2854 = vmatpush1.bf16.msra.mxu0 0
        %2855 = vmatprep.subr.bf16.mxu0 0
        %2856 = vmatpush1.bf16.msra.mxu0 0
        %2857 = vmatprep.subr.bf16.mxu0 0
        %2858 = vmatpush1.bf16.msra.mxu0 0
        %2859 = vmatprep.subr.bf16.mxu0 0
        %2860 = vmatpush1.bf16.msra.mxu0 0
        %2861 = vmatprep.mubr.bf16.mxu0 0
        %2862 = vmatmul.mubr.bf16.gmra.mrb[0].mxu0 %v2815
        %v2863 = vpop.f32.mrb[0].mxu0
        %v2864 = vadd.f32 0.0, %v2863
        %v2865 = vpop.f32.mrb[0].mxu0
        %v2866 = vpop.f32.mrb[0].mxu0
        %v2867 = vadd.f32 0.0, %v2866
        %v2868 = vpop.f32.mrb[0].mxu0
        %2869 = vmatprep.mubr.bf16.mxu0 0
        %2870 = vmatmul.mubr.bf16.gmra.mrb[0].mxu0 %v2818
        %v2871 = vpop.f32.mrb[0].mxu0
        %v2872 = vadd.f32 0.0, %v2871
        %v2873 = vpop.f32.mrb[0].mxu0
        %v2874 = vpop.f32.mrb[0].mxu0
        %v2875 = vadd.f32 0.0, %v2874
        %v2876 = vpop.f32.mrb[0].mxu0
        %2877 = vmatprep.mubr.bf16.mxu0 0
        %2878 = vmatmul.mubr.bf16.gmra.mrb[0].mxu0 %v2821
        %v2879 = vpop.f32.mrb[0].mxu0
        %v2880 = vadd.f32 0.0, %v2879
        %v2881 = vpop.f32.mrb[0].mxu0
        %v2882 = vpop.f32.mrb[0].mxu0
        %v2883 = vadd.f32 0.0, %v2882
        %v2884 = vpop.f32.mrb[0].mxu0
        %2885 = vmatprep.mubr.bf16.mxu0 0
        %2886 = vmatmul.mubr.bf16.gmra.mrb[0].mxu0 %v2824
        %v2887 = vpop.f32.mrb[0].mxu0
        %v2888 = vadd.f32 0.0, %v2887
        %v2889 = vpop.f32.mrb[0].mxu0
        %v2890 = vpop.f32.mrb[0].mxu0
        %v2891 = vadd.f32 0.0, %v2890
        %v2892 = vpop.f32.mrb[0].mxu0
        %2893 = vdwg.mxu0
        %v2894 = vadd.f32 %v2796, %v2864
        %v2895 = vadd.f32 %v2797, %v2867
        %v2896 = vadd.f32 %v2798, %v2872
        %v2897 = vadd.f32 %v2799, %v2875
        %v2898 = vadd.f32 %v2800, %v2880
        %v2899 = vadd.f32 %v2801, %v2883
        %v2900 = vadd.f32 %v2802, %v2888
        %v2901 = vadd.f32 %v2803, %v2891
        %v2902 = vpack.c.bf16 %v2260, %v2258
        %s2903 = scalar_lea.vmem %s1, 12
        %v2904 = vld [vmem:[%s2903] sm:$0x3]
        %v2906 = vsel %vm1820, %v2902, 0
        %v2909 = vsel %vm2334, %v2904, 0
        %2911 = vmatprep.subr.bf16.mxu0 0
        %2912 = vmatpush1.bf16.msra.mxu0 %v2909
        %2913 = vmatprep.subr.bf16.mxu0 0
        %2914 = vmatpush1.bf16.msra.mxu0 0
        %2915 = vmatprep.subr.bf16.mxu0 0
        %2916 = vmatpush1.bf16.msra.mxu0 0
        %2917 = vmatprep.subr.bf16.mxu0 0
        %2918 = vmatpush1.bf16.msra.mxu0 0
        %2919 = vmatprep.subr.bf16.mxu0 0
        %2920 = vmatpush1.bf16.msra.mxu0 0
        %2921 = vmatprep.subr.bf16.mxu0 0
        %2922 = vmatpush1.bf16.msra.mxu0 0
        %2923 = vmatprep.subr.bf16.mxu0 0
        %2924 = vmatpush1.bf16.msra.mxu0 0
        %2925 = vmatprep.subr.bf16.mxu0 0
        %2926 = vmatpush1.bf16.msra.mxu0 0
        %2927 = vmatprep.subr.bf16.mxu0 0
        %2928 = vmatpush1.bf16.msra.mxu0 0
        %2929 = vmatprep.subr.bf16.mxu0 0
        %2930 = vmatpush1.bf16.msra.mxu0 0
        %2931 = vmatprep.subr.bf16.mxu0 0
        %2932 = vmatpush1.bf16.msra.mxu0 0
        %2933 = vmatprep.subr.bf16.mxu0 0
        %2934 = vmatpush1.bf16.msra.mxu0 0
        %2935 = vmatprep.subr.bf16.mxu0 0
        %2936 = vmatpush1.bf16.msra.mxu0 0
        %2937 = vmatprep.subr.bf16.mxu0 0
        %2938 = vmatpush1.bf16.msra.mxu0 0
        %2939 = vmatprep.subr.bf16.mxu0 0
        %2940 = vmatpush1.bf16.msra.mxu0 0
        %2941 = vmatprep.subr.bf16.mxu0 0
        %2942 = vmatpush1.bf16.msra.mxu0 0
        %2943 = vmatprep.mubr.bf16.mxu0 0
        %2944 = vmatmul.mubr.bf16.gmra.mrb[0].mxu0 %v2407
        %v2945 = vpop.f32.mrb[0].mxu0
        %v2946 = vadd.f32 0.0, %v2945
        %v2947 = vpop.f32.mrb[0].mxu0
        %v2948 = vpop.f32.mrb[0].mxu0
        %v2949 = vadd.f32 0.0, %v2948
        %v2950 = vpop.f32.mrb[0].mxu0
        %2951 = vmatprep.mubr.bf16.mxu0 0
        %2952 = vmatmul.mubr.bf16.gmra.mrb[0].mxu0 %v2410
        %v2953 = vpop.f32.mrb[0].mxu0
        %v2954 = vadd.f32 0.0, %v2953
        %v2955 = vpop.f32.mrb[0].mxu0
        %v2956 = vpop.f32.mrb[0].mxu0
        %v2957 = vadd.f32 0.0, %v2956
        %v2958 = vpop.f32.mrb[0].mxu0
        %2959 = vmatprep.mubr.bf16.mxu0 0
        %2960 = vmatmul.mubr.bf16.gmra.mrb[0].mxu0 %v2413
        %v2961 = vpop.f32.mrb[0].mxu0
        %v2962 = vadd.f32 0.0, %v2961
        %v2963 = vpop.f32.mrb[0].mxu0
        %v2964 = vpop.f32.mrb[0].mxu0
        %v2965 = vadd.f32 0.0, %v2964
        %v2966 = vpop.f32.mrb[0].mxu0
        %2967 = vmatprep.mubr.bf16.mxu0 0
        %2968 = vmatmul.mubr.bf16.gmra.mrb[0].mxu0 %v2906
        %v2969 = vpop.f32.mrb[0].mxu0
        %v2970 = vadd.f32 0.0, %v2969
        %v2971 = vpop.f32.mrb[0].mxu0
        %v2972 = vpop.f32.mrb[0].mxu0
        %v2973 = vadd.f32 0.0, %v2972
        %v2974 = vpop.f32.mrb[0].mxu0
        %2975 = vdwg.mxu0
        %v2976 = vadd.f32 %v2894, %v2946
        %v2977 = vadd.f32 %v2895, %v2949
        %v2978 = vadd.f32 %v2896, %v2954
        %v2979 = vadd.f32 %v2897, %v2957
        %v2980 = vadd.f32 %v2898, %v2962
        %v2981 = vadd.f32 %v2899, %v2965
        %v2982 = vadd.f32 %v2900, %v2970
        %v2983 = vadd.f32 %v2901, %v2973
        %v2986 = vrot.slane %v2260, 1
        %v2987 = vrot.slane %v2261, 1
        %v2988 = vsel %vm2283, %v2986, %v2987
        %v2990 = vpack.c.bf16 %v2988, %v2708
        %s2991 = scalar_lea.vmem %s1, 14
        %v2992 = vld [vmem:[%s2991] sm:$0x3]
        %v2994 = vsel %vm1820, %v2990, 0
        %v2997 = vsel %vm2334, %v2992, 0
        %2999 = vmatprep.subr.bf16.mxu0 0
        %3000 = vmatpush1.bf16.msra.mxu0 %v2997
        %3001 = vmatprep.subr.bf16.mxu0 0
        %3002 = vmatpush1.bf16.msra.mxu0 0
        %3003 = vmatprep.subr.bf16.mxu0 0
        %3004 = vmatpush1.bf16.msra.mxu0 0
        %3005 = vmatprep.subr.bf16.mxu0 0
        %3006 = vmatpush1.bf16.msra.mxu0 0
        %3007 = vmatprep.subr.bf16.mxu0 0
        %3008 = vmatpush1.bf16.msra.mxu0 0
        %3009 = vmatprep.subr.bf16.mxu0 0
        %3010 = vmatpush1.bf16.msra.mxu0 0
        %3011 = vmatprep.subr.bf16.mxu0 0
        %3012 = vmatpush1.bf16.msra.mxu0 0
        %3013 = vmatprep.subr.bf16.mxu0 0
        %3014 = vmatpush1.bf16.msra.mxu0 0
        %3015 = vmatprep.subr.bf16.mxu0 0
        %3016 = vmatpush1.bf16.msra.mxu0 0
        %3017 = vmatprep.subr.bf16.mxu0 0
        %3018 = vmatpush1.bf16.msra.mxu0 0
        %3019 = vmatprep.subr.bf16.mxu0 0
        %3020 = vmatpush1.bf16.msra.mxu0 0
        %3021 = vmatprep.subr.bf16.mxu0 0
        %3022 = vmatpush1.bf16.msra.mxu0 0
        %3023 = vmatprep.subr.bf16.mxu0 0
        %3024 = vmatpush1.bf16.msra.mxu0 0
        %3025 = vmatprep.subr.bf16.mxu0 0
        %3026 = vmatpush1.bf16.msra.mxu0 0
        %3027 = vmatprep.subr.bf16.mxu0 0
        %3028 = vmatpush1.bf16.msra.mxu0 0
        %3029 = vmatprep.subr.bf16.mxu0 0
        %3030 = vmatpush1.bf16.msra.mxu0 0
        %3031 = vmatprep.mubr.bf16.mxu0 0
        %3032 = vmatmul.mubr.bf16.gmra.mrb[0].mxu0 %v2326
        %v3033 = vpop.f32.mrb[0].mxu0
        %v3034 = vadd.f32 0.0, %v3033
        %v3035 = vpop.f32.mrb[0].mxu0
        %v3036 = vpop.f32.mrb[0].mxu0
        %v3037 = vadd.f32 0.0, %v3036
        %v3038 = vpop.f32.mrb[0].mxu0
        %3039 = vmatprep.mubr.bf16.mxu0 0
        %3040 = vmatmul.mubr.bf16.gmra.mrb[0].mxu0 %v2329
        %v3041 = vpop.f32.mrb[0].mxu0
        %v3042 = vadd.f32 0.0, %v3041
        %v3043 = vpop.f32.mrb[0].mxu0
        %v3044 = vpop.f32.mrb[0].mxu0
        %v3045 = vadd.f32 0.0, %v3044
        %v3046 = vpop.f32.mrb[0].mxu0
        %3047 = vmatprep.mubr.bf16.mxu0 0
        %3048 = vmatmul.mubr.bf16.gmra.mrb[0].mxu0 %v2332
        %v3049 = vpop.f32.mrb[0].mxu0
        %v3050 = vadd.f32 0.0, %v3049
        %v3051 = vpop.f32.mrb[0].mxu0
        %v3052 = vpop.f32.mrb[0].mxu0
        %v3053 = vadd.f32 0.0, %v3052
        %v3054 = vpop.f32.mrb[0].mxu0
        %3055 = vmatprep.mubr.bf16.mxu0 0
        %3056 = vmatmul.mubr.bf16.gmra.mrb[0].mxu0 %v2994
        %v3057 = vpop.f32.mrb[0].mxu0
        %v3058 = vadd.f32 0.0, %v3057
        %v3059 = vpop.f32.mrb[0].mxu0
        %v3060 = vpop.f32.mrb[0].mxu0
        %v3061 = vadd.f32 0.0, %v3060
        %v3062 = vpop.f32.mrb[0].mxu0
        %3063 = vdwg.mxu0
        %v3064 = vadd.f32 %v2976, %v3034
        %v3065 = vadd.f32 %v2977, %v3037
        %v3066 = vadd.f32 %v2978, %v3042
        %v3067 = vadd.f32 %v2979, %v3045
        %v3068 = vadd.f32 %v2980, %v3050
        %v3069 = vadd.f32 %v2981, %v3053
        %v3070 = vadd.f32 %v2982, %v3058
        %v3071 = vadd.f32 %v2983, %v3061
        %v3072 = vrot.slane %v2260, 2
        %v3073 = vrot.slane %v2261, 2
        %v3074 = vsel %vm2483, %v3072, %v3073
        %v3076 = vpack.c.bf16 %v3074, %v2806
        %s3077 = scalar_lea.vmem %s1, 16
        %v3078 = vld [vmem:[%s3077] sm:$0x3]
        %v3080 = vsel %vm1820, %v3076, 0
        %v3083 = vsel %vm2334, %v3078, 0
        %3085 = vmatprep.subr.bf16.mxu0 0
        %3086 = vmatpush1.bf16.msra.mxu0 %v3083
        %3087 = vmatprep.subr.bf16.mxu0 0
        %3088 = vmatpush1.bf16.msra.mxu0 0
        %3089 = vmatprep.subr.bf16.mxu0 0
        %3090 = vmatpush1.bf16.msra.mxu0 0
        %3091 = vmatprep.subr.bf16.mxu0 0
        %3092 = vmatpush1.bf16.msra.mxu0 0
        %3093 = vmatprep.subr.bf16.mxu0 0
        %3094 = vmatpush1.bf16.msra.mxu0 0
        %3095 = vmatprep.subr.bf16.mxu0 0
        %3096 = vmatpush1.bf16.msra.mxu0 0
        %3097 = vmatprep.subr.bf16.mxu0 0
        %3098 = vmatpush1.bf16.msra.mxu0 0
        %3099 = vmatprep.subr.bf16.mxu0 0
        %3100 = vmatpush1.bf16.msra.mxu0 0
        %3101 = vmatprep.subr.bf16.mxu0 0
        %3102 = vmatpush1.bf16.msra.mxu0 0
        %3103 = vmatprep.subr.bf16.mxu0 0
        %3104 = vmatpush1.bf16.msra.mxu0 0
        %3105 = vmatprep.subr.bf16.mxu0 0
        %3106 = vmatpush1.bf16.msra.mxu0 0
        %3107 = vmatprep.subr.bf16.mxu0 0
        %3108 = vmatpush1.bf16.msra.mxu0 0
        %3109 = vmatprep.subr.bf16.mxu0 0
        %3110 = vmatpush1.bf16.msra.mxu0 0
        %3111 = vmatprep.subr.bf16.mxu0 0
        %3112 = vmatpush1.bf16.msra.mxu0 0
        %3113 = vmatprep.subr.bf16.mxu0 0
        %3114 = vmatpush1.bf16.msra.mxu0 0
        %3115 = vmatprep.subr.bf16.mxu0 0
        %3116 = vmatpush1.bf16.msra.mxu0 0
        %3117 = vmatprep.mubr.bf16.mxu0 0
        %3118 = vmatmul.mubr.bf16.gmra.mrb[0].mxu0 %v2526
        %v3119 = vpop.f32.mrb[0].mxu0
        %v3120 = vadd.f32 0.0, %v3119
        %v3121 = vpop.f32.mrb[0].mxu0
        %v3122 = vpop.f32.mrb[0].mxu0
        %v3123 = vadd.f32 0.0, %v3122
        %v3124 = vpop.f32.mrb[0].mxu0
        %3125 = vmatprep.mubr.bf16.mxu0 0
        %3126 = vmatmul.mubr.bf16.gmra.mrb[0].mxu0 %v2529
        %v3127 = vpop.f32.mrb[0].mxu0
        %v3128 = vadd.f32 0.0, %v3127
        %v3129 = vpop.f32.mrb[0].mxu0
        %v3130 = vpop.f32.mrb[0].mxu0
        %v3131 = vadd.f32 0.0, %v3130
        %v3132 = vpop.f32.mrb[0].mxu0
        %3133 = vmatprep.mubr.bf16.mxu0 0
        %3134 = vmatmul.mubr.bf16.gmra.mrb[0].mxu0 %v2532
        %v3135 = vpop.f32.mrb[0].mxu0
        %v3136 = vadd.f32 0.0, %v3135
        %v3137 = vpop.f32.mrb[0].mxu0
        %v3138 = vpop.f32.mrb[0].mxu0
        %v3139 = vadd.f32 0.0, %v3138
        %v3140 = vpop.f32.mrb[0].mxu0
        %3141 = vmatprep.mubr.bf16.mxu0 0
        %3142 = vmatmul.mubr.bf16.gmra.mrb[0].mxu0 %v3080
        %v3143 = vpop.f32.mrb[0].mxu0
        %v3144 = vadd.f32 0.0, %v3143
        %v3145 = vpop.f32.mrb[0].mxu0
        %v3146 = vpop.f32.mrb[0].mxu0
        %v3147 = vadd.f32 0.0, %v3146
        %v3148 = vpop.f32.mrb[0].mxu0
        %3149 = vdwg.mxu0
        %v3150 = vadd.f32 %v3064, %v3120
        %v3151 = vadd.f32 %v3065, %v3123
        %v3152 = vadd.f32 %v3066, %v3128
        %v3153 = vadd.f32 %v3067, %v3131
        %v3154 = vadd.f32 %v3068, %v3136
        %v3155 = vadd.f32 %v3069, %v3139
        %v3156 = vadd.f32 %v3070, %v3144
        %v3157 = vadd.f32 %v3071, %v3147
        %v3158 = vld [vmem:[%s2] sm:$0x1]
        %v3160 = vlaneseq
        %v3161 = vshrl.u32 %v3160, 7
        %v3162 = vsub.s32 0, %v3161
        %v3163 = vrot.slane %v3158, %v3162
        %v3165 = vadd.f32 %v3150, %v3163
        %v3166 = vadd.f32 %v3151, %v3163
        %v3167 = vadd.f32 %v3152, %v3163
        %v3168 = vadd.f32 %v3153, %v3163
        %v3169 = vadd.f32 %v3154, %v3163
        %v3170 = vadd.f32 %v3155, %v3163
        %v3171 = vadd.f32 %v3156, %v3163
        %v3172 = vadd.f32 %v3157, %v3163
        %v3173 = vmax.f32 %v3165, 0.0
        %v3174 = vmax.f32 %v3166, 0.0
        %v3175 = vmax.f32 %v3167, 0.0
        %v3176 = vmax.f32 %v3168, 0.0
        %v3177 = vmax.f32 %v3169, 0.0
        %v3178 = vmax.f32 %v3170, 0.0
        %v3179 = vmax.f32 %v3171, 0.0
        %v3180 = vmax.f32 %v3172, 0.0
        %vm3181 = vcmask 261120
        %3182 = vst.msk [vmem:[#allocation3] sm:$0xff] %vm3181, 0.0
        %vm3183 = vcmask 254976
        %3184 = vst.msk [vmem:[#allocation3 + $0x8] sm:$0x3] %vm3183, 0.0
        %3185 = vst.msk [vmem:[#allocation3 + $0x10] sm:$0xff] %vm3181, 0.0
        %3186 = vst.msk [vmem:[#allocation3 + $0x18] sm:$0x3] %vm3183, 0.0
        %3187 = vst.msk [vmem:[#allocation3 + $0x20] sm:$0xff] %vm3181, 0.0
        %3188 = vst.msk [vmem:[#allocation3 + $0x28] sm:$0x3] %vm3183, 0.0
        %3189 = vst.msk [vmem:[#allocation3 + $0x30] sm:$0xff] %vm3181, 0.0
        %3190 = vst.msk [vmem:[#allocation3 + $0x38] sm:$0x3] %vm3183, 0.0
        %3191 = vst.msk [vmem:[#allocation3 + $0x40] sm:$0xff] %vm3181, 0.0
        %3192 = vst.msk [vmem:[#allocation3 + $0x48] sm:$0x3] %vm3183, 0.0
        %3193 = vst.msk [vmem:[#allocation3 + $0x50] sm:$0xff] %vm3181, 0.0
        %3194 = vst.msk [vmem:[#allocation3 + $0x58] sm:$0x3] %vm3183, 0.0
        %3195 = vst.msk [vmem:[#allocation3 + $0x60] sm:$0xff] %vm3181, 0.0
        %3196 = vst.msk [vmem:[#allocation3 + $0x68] sm:$0x3] %vm3183, 0.0
        %3197 = vst.msk [vmem:[#allocation3 + $0x70] sm:$0xff] %vm3181, 0.0
        %3198 = vst.msk [vmem:[#allocation3 + $0x78] sm:$0x3] %vm3183, 0.0
        %3199 = vst.msk [vmem:[#allocation3 + $0x80] sm:$0xff] %vm3181, 0.0
        %3200 = vst.msk [vmem:[#allocation3 + $0x88] sm:$0x3] %vm3183, 0.0
        %3201 = vst.msk [vmem:[#allocation3 + $0x90] sm:$0xff] %vm3181, 0.0
        %3202 = vst.msk [vmem:[#allocation3 + $0x98] sm:$0x3] %vm3183, 0.0
        %s3203 = scalar_lea.vmem [#allocation3], 16
        %3204 = vst.msk [vmem:[%s3203 + $0x1] sm:$0xff] %vm3181, %v3173
        %3205 = vst.msk [vmem:[%s3203 + $0x11] sm:$0xff] %vm3181, %v3174
        %3206 = vst.msk [vmem:[%s3203 + $0x21] sm:$0xff] %vm3181, %v3175
        %3207 = vst.msk [vmem:[%s3203 + $0x31] sm:$0xff] %vm3181, %v3176
        %3208 = vst.msk [vmem:[%s3203 + $0x41] sm:$0xff] %vm3181, %v3177
        %3209 = vst.msk [vmem:[%s3203 + $0x51] sm:$0xff] %vm3181, %v3178
        %3210 = vst.msk [vmem:[%s3203 + $0x61] sm:$0xff] %vm3181, %v3179
        %3211 = vst.msk [vmem:[%s3203 + $0x71] sm:$0xff] %vm3181, %v3180
        %v3212 = vld [vmem:[#allocation3] sm:$0xff]
        %v3213 = vld [vmem:[#allocation3 + $0x8] sm:$0x3]
        %v3214 = vld [vmem:[#allocation3 + $0x10] sm:$0xff]
        %v3215 = vld [vmem:[#allocation3 + $0x18] sm:$0x3]
        %v3216 = vld [vmem:[#allocation3 + $0x20] sm:$0xff]
        %v3217 = vld [vmem:[#allocation3 + $0x28] sm:$0x3]
        %v3218 = vld [vmem:[#allocation3 + $0x30] sm:$0xff]
        %v3219 = vld [vmem:[#allocation3 + $0x38] sm:$0x3]
        %v3220 = vld [vmem:[#allocation3 + $0x40] sm:$0xff]
        %v3221 = vld [vmem:[#allocation3 + $0x48] sm:$0x3]
        %v3222 = vld [vmem:[#allocation3 + $0x50] sm:$0xff]
        %v3223 = vld [vmem:[#allocation3 + $0x58] sm:$0x3]
        %v3224 = vld [vmem:[#allocation3 + $0x60] sm:$0xff]
        %v3225 = vld [vmem:[#allocation3 + $0x68] sm:$0x3]
        %v3226 = vld [vmem:[#allocation3 + $0x70] sm:$0xff]
        %v3227 = vld [vmem:[#allocation3 + $0x78] sm:$0x3]
        %v3228 = vld [vmem:[#allocation3 + $0x80] sm:$0xff]
        %v3229 = vld [vmem:[#allocation3 + $0x88] sm:$0x3]
        %v3230 = vld [vmem:[#allocation3 + $0x90] sm:$0xff]
        %v3231 = vld [vmem:[#allocation3 + $0x98] sm:$0x3]
        %v3232 = vpack.c.bf16 %v3214, %v3212
        %v3233 = vpack.c.bf16 %v3218, %v3216
        %v3234 = vpack.c.bf16 %v3222, %v3220
        %v3235 = vpack.c.bf16 %v3226, %v3224
        %v3236 = vld [vmem:[%s3] sm:$0xf]
        %v3237 = vld [vmem:[%s3 + $0x4] sm:$0xf]
        %v3238 = vld [vmem:[%s3 + $0x8] sm:$0xf]
        %v3239 = vld [vmem:[%s3 + $0xc] sm:$0xf]
        %v3256 = vrot.slane %v3212, 1
        %v3257 = vrot.slane %v3213, 1
        %v3258 = vsel %vm2283, %v3256, %v3257
        %v3259 = vrot.slane %v3214, 1
        %v3260 = vrot.slane %v3215, 1
        %v3261 = vsel %vm2283, %v3259, %v3260
        %v3262 = vrot.slane %v3216, 1
        %v3263 = vrot.slane %v3217, 1
        %v3264 = vsel %vm2283, %v3262, %v3263
        %v3265 = vrot.slane %v3218, 1
        %v3266 = vrot.slane %v3219, 1
        %v3267 = vsel %vm2283, %v3265, %v3266
        %v3268 = vrot.slane %v3220, 1
        %v3269 = vrot.slane %v3221, 1
        %v3270 = vsel %vm2283, %v3268, %v3269
        %v3271 = vrot.slane %v3222, 1
        %v3272 = vrot.slane %v3223, 1
        %v3273 = vsel %vm2283, %v3271, %v3272
        %v3274 = vrot.slane %v3224, 1
        %v3275 = vrot.slane %v3225, 1
        %v3276 = vsel %vm2283, %v3274, %v3275
        %v3277 = vrot.slane %v3226, 1
        %v3278 = vrot.slane %v3227, 1
        %v3279 = vsel %vm2283, %v3277, %v3278
        %v3288 = vpack.c.bf16 %v3261, %v3258
        %v3289 = vpack.c.bf16 %v3267, %v3264
        %v3290 = vpack.c.bf16 %v3273, %v3270
        %v3291 = vpack.c.bf16 %v3279, %v3276
        %s3292 = scalar_lea.vmem %s3, 16
        %v3293 = vld [vmem:[%s3292] sm:$0xf]
        %v3294 = vld [vmem:[%s3292 + $0x4] sm:$0xf]
        %v3295 = vld [vmem:[%s3292 + $0x8] sm:$0xf]
        %v3296 = vld [vmem:[%s3292 + $0xc] sm:$0xf]
        %v3301 = vunpack.c.l.b16 %v3293
        %v3302 = vunpack.c.l.b16 %v3294
        %v3303 = vunpack.c.l.b16 %v3295
        %v3304 = vunpack.c.l.b16 %v3296
        %v3305 = vpack.c.b16 %v3302, %v3301
        %v3306 = vpack.c.b16 %v3304, %v3303
        %v3310 = vsel %vm3181, %v3288, 0
        %v3313 = vsel %vm3181, %v3289, 0
        %v3316 = vsel %vm3181, %v3290, 0
        %v3319 = vsel %vm3181, %v3291, 0
        %3321 = vmatprep.subr.bf16.mxu0 0
        %3322 = vmatpush1.bf16.msra.mxu0 %v3305
        %3323 = vmatprep.subr.bf16.mxu0 0
        %3324 = vmatpush1.bf16.msra.mxu0 %v3306
        %3325 = vmatprep.subr.bf16.mxu0 0
        %3326 = vmatpush1.bf16.msra.mxu0 0
        %3327 = vmatprep.subr.bf16.mxu0 0
        %3328 = vmatpush1.bf16.msra.mxu0 0
        %3329 = vmatprep.subr.bf16.mxu0 0
        %3330 = vmatpush1.bf16.msra.mxu0 0
        %3331 = vmatprep.subr.bf16.mxu0 0
        %3332 = vmatpush1.bf16.msra.mxu0 0
        %3333 = vmatprep.subr.bf16.mxu0 0
        %3334 = vmatpush1.bf16.msra.mxu0 0
        %3335 = vmatprep.subr.bf16.mxu0 0
        %3336 = vmatpush1.bf16.msra.mxu0 0
        %3337 = vmatprep.subr.bf16.mxu0 0
        %3338 = vmatpush1.bf16.msra.mxu0 0
        %3339 = vmatprep.subr.bf16.mxu0 0
        %3340 = vmatpush1.bf16.msra.mxu0 0
        %3341 = vmatprep.subr.bf16.mxu0 0
        %3342 = vmatpush1.bf16.msra.mxu0 0
        %3343 = vmatprep.subr.bf16.mxu0 0
        %3344 = vmatpush1.bf16.msra.mxu0 0
        %3345 = vmatprep.subr.bf16.mxu0 0
        %3346 = vmatpush1.bf16.msra.mxu0 0
        %3347 = vmatprep.subr.bf16.mxu0 0
        %3348 = vmatpush1.bf16.msra.mxu0 0
        %3349 = vmatprep.subr.bf16.mxu0 0
        %3350 = vmatpush1.bf16.msra.mxu0 0
        %3351 = vmatprep.subr.bf16.mxu0 0
        %3352 = vmatpush1.bf16.msra.mxu0 0
        %3353 = vmatprep.mubr.bf16.mxu0 0
        %3354 = vmatmul.mubr.bf16.gmra.mrb[0].mxu0 %v3310
        %v3355 = vpop.f32.mrb[0].mxu0
        %v3356 = vadd.f32 0.0, %v3355
        %v3357 = vpop.f32.mrb[0].mxu0
        %v3358 = vpop.f32.mrb[0].mxu0
        %v3359 = vadd.f32 0.0, %v3358
        %v3360 = vpop.f32.mrb[0].mxu0
        %3361 = vmatprep.mubr.bf16.mxu0 0
        %3362 = vmatmul.mubr.bf16.gmra.mrb[0].mxu0 %v3313
        %v3363 = vpop.f32.mrb[0].mxu0
        %v3364 = vadd.f32 0.0, %v3363
        %v3365 = vpop.f32.mrb[0].mxu0
        %v3366 = vpop.f32.mrb[0].mxu0
        %v3367 = vadd.f32 0.0, %v3366
        %v3368 = vpop.f32.mrb[0].mxu0
        %3369 = vmatprep.mubr.bf16.mxu0 0
        %3370 = vmatmul.mubr.bf16.gmra.mrb[0].mxu0 %v3316
        %v3371 = vpop.f32.mrb[0].mxu0
        %v3372 = vadd.f32 0.0, %v3371
        %v3373 = vpop.f32.mrb[0].mxu0
        %v3374 = vpop.f32.mrb[0].mxu0
        %v3375 = vadd.f32 0.0, %v3374
        %v3376 = vpop.f32.mrb[0].mxu0
        %3377 = vmatprep.mubr.bf16.mxu0 0
        %3378 = vmatmul.mubr.bf16.gmra.mrb[0].mxu0 %v3319
        %v3379 = vpop.f32.mrb[0].mxu0
        %v3380 = vadd.f32 0.0, %v3379
        %v3381 = vpop.f32.mrb[0].mxu0
        %v3382 = vpop.f32.mrb[0].mxu0
        %v3383 = vadd.f32 0.0, %v3382
        %v3384 = vpop.f32.mrb[0].mxu0
        %3385 = vdwg.mxu0
        %v3390 = vunpack.c.l.b16 %v3236
        %v3391 = vunpack.c.l.b16 %v3237
        %v3392 = vunpack.c.l.b16 %v3238
        %v3393 = vunpack.c.l.b16 %v3239
        %v3394 = vpack.c.b16 %v3391, %v3390
        %v3395 = vpack.c.b16 %v3393, %v3392
        %v3399 = vsel %vm3181, %v3232, 0
        %v3402 = vsel %vm3181, %v3233, 0
        %v3405 = vsel %vm3181, %v3234, 0
        %v3408 = vsel %vm3181, %v3235, 0
        %3410 = vmatprep.subr.bf16.mxu0 0
        %3411 = vmatpush1.bf16.msra.mxu0 %v3394
        %3412 = vmatprep.subr.bf16.mxu0 0
        %3413 = vmatpush1.bf16.msra.mxu0 %v3395
        %3414 = vmatprep.subr.bf16.mxu0 0
        %3415 = vmatpush1.bf16.msra.mxu0 0
        %3416 = vmatprep.subr.bf16.mxu0 0
        %3417 = vmatpush1.bf16.msra.mxu0 0
        %3418 = vmatprep.subr.bf16.mxu0 0
        %3419 = vmatpush1.bf16.msra.mxu0 0
        %3420 = vmatprep.subr.bf16.mxu0 0
        %3421 = vmatpush1.bf16.msra.mxu0 0
        %3422 = vmatprep.subr.bf16.mxu0 0
        %3423 = vmatpush1.bf16.msra.mxu0 0
        %3424 = vmatprep.subr.bf16.mxu0 0
        %3425 = vmatpush1.bf16.msra.mxu0 0
        %3426 = vmatprep.subr.bf16.mxu0 0
        %3427 = vmatpush1.bf16.msra.mxu0 0
        %3428 = vmatprep.subr.bf16.mxu0 0
        %3429 = vmatpush1.bf16.msra.mxu0 0
        %3430 = vmatprep.subr.bf16.mxu0 0
        %3431 = vmatpush1.bf16.msra.mxu0 0
        %3432 = vmatprep.subr.bf16.mxu0 0
        %3433 = vmatpush1.bf16.msra.mxu0 0
        %3434 = vmatprep.subr.bf16.mxu0 0
        %3435 = vmatpush1.bf16.msra.mxu0 0
        %3436 = vmatprep.subr.bf16.mxu0 0
        %3437 = vmatpush1.bf16.msra.mxu0 0
        %3438 = vmatprep.subr.bf16.mxu0 0
        %3439 = vmatpush1.bf16.msra.mxu0 0
        %3440 = vmatprep.subr.bf16.mxu0 0
        %3441 = vmatpush1.bf16.msra.mxu0 0
        %3442 = vmatprep.mubr.bf16.mxu0 0
        %3443 = vmatmul.mubr.bf16.gmra.mrb[0].mxu0 %v3399
        %v3444 = vpop.f32.mrb[0].mxu0
        %v3445 = vadd.f32 %v3356, %v3444
        %v3446 = vpop.f32.mrb[0].mxu0
        %v3447 = vpop.f32.mrb[0].mxu0
        %v3448 = vadd.f32 %v3359, %v3447
        %v3449 = vpop.f32.mrb[0].mxu0
        %3450 = vmatprep.mubr.bf16.mxu0 0
        %3451 = vmatmul.mubr.bf16.gmra.mrb[0].mxu0 %v3402
        %v3452 = vpop.f32.mrb[0].mxu0
        %v3453 = vadd.f32 %v3364, %v3452
        %v3454 = vpop.f32.mrb[0].mxu0
        %v3455 = vpop.f32.mrb[0].mxu0
        %v3456 = vadd.f32 %v3367, %v3455
        %v3457 = vpop.f32.mrb[0].mxu0
        %3458 = vmatprep.mubr.bf16.mxu0 0
        %3459 = vmatmul.mubr.bf16.gmra.mrb[0].mxu0 %v3405
        %v3460 = vpop.f32.mrb[0].mxu0
        %v3461 = vadd.f32 %v3372, %v3460
        %v3462 = vpop.f32.mrb[0].mxu0
        %v3463 = vpop.f32.mrb[0].mxu0
        %v3464 = vadd.f32 %v3375, %v3463
        %v3465 = vpop.f32.mrb[0].mxu0
        %3466 = vmatprep.mubr.bf16.mxu0 0
        %3467 = vmatmul.mubr.bf16.gmra.mrb[0].mxu0 %v3408
        %v3468 = vpop.f32.mrb[0].mxu0
        %v3469 = vadd.f32 %v3380, %v3468
        %v3470 = vpop.f32.mrb[0].mxu0
        %v3471 = vpop.f32.mrb[0].mxu0
        %v3472 = vadd.f32 %v3383, %v3471
        %v3473 = vpop.f32.mrb[0].mxu0
        %3474 = vdwg.mxu0
        %v3475 = vrot.slane %v3212, 2
        %v3476 = vrot.slane %v3213, 2
        %v3477 = vsel %vm2483, %v3475, %v3476
        %v3478 = vrot.slane %v3214, 2
        %v3479 = vrot.slane %v3215, 2
        %v3480 = vsel %vm2483, %v3478, %v3479
        %v3481 = vrot.slane %v3216, 2
        %v3482 = vrot.slane %v3217, 2
        %v3483 = vsel %vm2483, %v3481, %v3482
        %v3484 = vrot.slane %v3218, 2
        %v3485 = vrot.slane %v3219, 2
        %v3486 = vsel %vm2483, %v3484, %v3485
        %v3487 = vrot.slane %v3220, 2
        %v3488 = vrot.slane %v3221, 2
        %v3489 = vsel %vm2483, %v3487, %v3488
        %v3490 = vrot.slane %v3222, 2
        %v3491 = vrot.slane %v3223, 2
        %v3492 = vsel %vm2483, %v3490, %v3491
        %v3493 = vrot.slane %v3224, 2
        %v3494 = vrot.slane %v3225, 2
        %v3495 = vsel %vm2483, %v3493, %v3494
        %v3496 = vrot.slane %v3226, 2
        %v3497 = vrot.slane %v3227, 2
        %v3498 = vsel %vm2483, %v3496, %v3497
        %v3507 = vpack.c.bf16 %v3480, %v3477
        %v3508 = vpack.c.bf16 %v3486, %v3483
        %v3509 = vpack.c.bf16 %v3492, %v3489
        %v3510 = vpack.c.bf16 %v3498, %v3495
        %s3511 = scalar_lea.vmem %s3, 32
        %v3512 = vld [vmem:[%s3511] sm:$0xf]
        %v3513 = vld [vmem:[%s3511 + $0x4] sm:$0xf]
        %v3514 = vld [vmem:[%s3511 + $0x8] sm:$0xf]
        %v3515 = vld [vmem:[%s3511 + $0xc] sm:$0xf]
        %v3520 = vunpack.c.l.b16 %v3512
        %v3521 = vunpack.c.l.b16 %v3513
        %v3522 = vunpack.c.l.b16 %v3514
        %v3523 = vunpack.c.l.b16 %v3515
        %v3524 = vpack.c.b16 %v3521, %v3520
        %v3525 = vpack.c.b16 %v3523, %v3522
        %v3529 = vsel %vm3181, %v3507, 0
        %v3532 = vsel %vm3181, %v3508, 0
        %v3535 = vsel %vm3181, %v3509, 0
        %v3538 = vsel %vm3181, %v3510, 0
        %3540 = vmatprep.subr.bf16.mxu0 0
        %3541 = vmatpush1.bf16.msra.mxu0 %v3524
        %3542 = vmatprep.subr.bf16.mxu0 0
        %3543 = vmatpush1.bf16.msra.mxu0 %v3525
        %3544 = vmatprep.subr.bf16.mxu0 0
        %3545 = vmatpush1.bf16.msra.mxu0 0
        %3546 = vmatprep.subr.bf16.mxu0 0
        %3547 = vmatpush1.bf16.msra.mxu0 0
        %3548 = vmatprep.subr.bf16.mxu0 0
        %3549 = vmatpush1.bf16.msra.mxu0 0
        %3550 = vmatprep.subr.bf16.mxu0 0
        %3551 = vmatpush1.bf16.msra.mxu0 0
        %3552 = vmatprep.subr.bf16.mxu0 0
        %3553 = vmatpush1.bf16.msra.mxu0 0
        %3554 = vmatprep.subr.bf16.mxu0 0
        %3555 = vmatpush1.bf16.msra.mxu0 0
        %3556 = vmatprep.subr.bf16.mxu0 0
        %3557 = vmatpush1.bf16.msra.mxu0 0
        %3558 = vmatprep.subr.bf16.mxu0 0
        %3559 = vmatpush1.bf16.msra.mxu0 0
        %3560 = vmatprep.subr.bf16.mxu0 0
        %3561 = vmatpush1.bf16.msra.mxu0 0
        %3562 = vmatprep.subr.bf16.mxu0 0
        %3563 = vmatpush1.bf16.msra.mxu0 0
        %3564 = vmatprep.subr.bf16.mxu0 0
        %3565 = vmatpush1.bf16.msra.mxu0 0
        %3566 = vmatprep.subr.bf16.mxu0 0
        %3567 = vmatpush1.bf16.msra.mxu0 0
        %3568 = vmatprep.subr.bf16.mxu0 0
        %3569 = vmatpush1.bf16.msra.mxu0 0
        %3570 = vmatprep.subr.bf16.mxu0 0
        %3571 = vmatpush1.bf16.msra.mxu0 0
        %3572 = vmatprep.mubr.bf16.mxu0 0
        %3573 = vmatmul.mubr.bf16.gmra.mrb[0].mxu0 %v3529
        %v3574 = vpop.f32.mrb[0].mxu0
        %v3575 = vadd.f32 0.0, %v3574
        %v3576 = vpop.f32.mrb[0].mxu0
        %v3577 = vpop.f32.mrb[0].mxu0
        %v3578 = vadd.f32 0.0, %v3577
        %v3579 = vpop.f32.mrb[0].mxu0
        %3580 = vmatprep.mubr.bf16.mxu0 0
        %3581 = vmatmul.mubr.bf16.gmra.mrb[0].mxu0 %v3532
        %v3582 = vpop.f32.mrb[0].mxu0
        %v3583 = vadd.f32 0.0, %v3582
        %v3584 = vpop.f32.mrb[0].mxu0
        %v3585 = vpop.f32.mrb[0].mxu0
        %v3586 = vadd.f32 0.0, %v3585
        %v3587 = vpop.f32.mrb[0].mxu0
        %3588 = vmatprep.mubr.bf16.mxu0 0
        %3589 = vmatmul.mubr.bf16.gmra.mrb[0].mxu0 %v3535
        %v3590 = vpop.f32.mrb[0].mxu0
        %v3591 = vadd.f32 0.0, %v3590
        %v3592 = vpop.f32.mrb[0].mxu0
        %v3593 = vpop.f32.mrb[0].mxu0
        %v3594 = vadd.f32 0.0, %v3593
        %v3595 = vpop.f32.mrb[0].mxu0
        %3596 = vmatprep.mubr.bf16.mxu0 0
        %3597 = vmatmul.mubr.bf16.gmra.mrb[0].mxu0 %v3538
        %v3598 = vpop.f32.mrb[0].mxu0
        %v3599 = vadd.f32 0.0, %v3598
        %v3600 = vpop.f32.mrb[0].mxu0
        %v3601 = vpop.f32.mrb[0].mxu0
        %v3602 = vadd.f32 0.0, %v3601
        %v3603 = vpop.f32.mrb[0].mxu0
        %3604 = vdwg.mxu0
        %v3605 = vadd.f32 %v3445, %v3575
        %v3606 = vadd.f32 %v3448, %v3578
        %v3607 = vadd.f32 %v3453, %v3583
        %v3608 = vadd.f32 %v3456, %v3586
        %v3609 = vadd.f32 %v3461, %v3591
        %v3610 = vadd.f32 %v3464, %v3594
        %v3611 = vadd.f32 %v3469, %v3599
        %v3612 = vadd.f32 %v3472, %v3602
        %v3613 = vpack.c.bf16 %v3216, %v3214
        %v3614 = vpack.c.bf16 %v3220, %v3218
        %v3615 = vpack.c.bf16 %v3224, %v3222
        %v3616 = vpack.c.bf16 %v3228, %v3226
        %s3617 = scalar_lea.vmem %s3, 48
        %v3618 = vld [vmem:[%s3617] sm:$0xf]
        %v3619 = vld [vmem:[%s3617 + $0x4] sm:$0xf]
        %v3620 = vld [vmem:[%s3617 + $0x8] sm:$0xf]
        %v3621 = vld [vmem:[%s3617 + $0xc] sm:$0xf]
        %v3626 = vunpack.c.l.b16 %v3618
        %v3627 = vunpack.c.l.b16 %v3619
        %v3628 = vunpack.c.l.b16 %v3620
        %v3629 = vunpack.c.l.b16 %v3621
        %v3630 = vpack.c.b16 %v3627, %v3626
        %v3631 = vpack.c.b16 %v3629, %v3628
        %v3635 = vsel %vm3181, %v3613, 0
        %v3638 = vsel %vm3181, %v3614, 0
        %v3641 = vsel %vm3181, %v3615, 0
        %v3644 = vsel %vm3181, %v3616, 0
        %3646 = vmatprep.subr.bf16.mxu0 0
        %3647 = vmatpush1.bf16.msra.mxu0 %v3630
        %3648 = vmatprep.subr.bf16.mxu0 0
        %3649 = vmatpush1.bf16.msra.mxu0 %v3631
        %3650 = vmatprep.subr.bf16.mxu0 0
        %3651 = vmatpush1.bf16.msra.mxu0 0
        %3652 = vmatprep.subr.bf16.mxu0 0
        %3653 = vmatpush1.bf16.msra.mxu0 0
        %3654 = vmatprep.subr.bf16.mxu0 0
        %3655 = vmatpush1.bf16.msra.mxu0 0
        %3656 = vmatprep.subr.bf16.mxu0 0
        %3657 = vmatpush1.bf16.msra.mxu0 0
        %3658 = vmatprep.subr.bf16.mxu0 0
        %3659 = vmatpush1.bf16.msra.mxu0 0
        %3660 = vmatprep.subr.bf16.mxu0 0
        %3661 = vmatpush1.bf16.msra.mxu0 0
        %3662 = vmatprep.subr.bf16.mxu0 0
        %3663 = vmatpush1.bf16.msra.mxu0 0
        %3664 = vmatprep.subr.bf16.mxu0 0
        %3665 = vmatpush1.bf16.msra.mxu0 0
        %3666 = vmatprep.subr.bf16.mxu0 0
        %3667 = vmatpush1.bf16.msra.mxu0 0
        %3668 = vmatprep.subr.bf16.mxu0 0
        %3669 = vmatpush1.bf16.msra.mxu0 0
        %3670 = vmatprep.subr.bf16.mxu0 0
        %3671 = vmatpush1.bf16.msra.mxu0 0
        %3672 = vmatprep.subr.bf16.mxu0 0
        %3673 = vmatpush1.bf16.msra.mxu0 0
        %3674 = vmatprep.subr.bf16.mxu0 0
        %3675 = vmatpush1.bf16.msra.mxu0 0
        %3676 = vmatprep.subr.bf16.mxu0 0
        %3677 = vmatpush1.bf16.msra.mxu0 0
        %3678 = vmatprep.mubr.bf16.mxu0 0
        %3679 = vmatmul.mubr.bf16.gmra.mrb[0].mxu0 %v3635
        %v3680 = vpop.f32.mrb[0].mxu0
        %v3681 = vadd.f32 0.0, %v3680
        %v3682 = vpop.f32.mrb[0].mxu0
        %v3683 = vpop.f32.mrb[0].mxu0
        %v3684 = vadd.f32 0.0, %v3683
        %v3685 = vpop.f32.mrb[0].mxu0
        %3686 = vmatprep.mubr.bf16.mxu0 0
        %3687 = vmatmul.mubr.bf16.gmra.mrb[0].mxu0 %v3638
        %v3688 = vpop.f32.mrb[0].mxu0
        %v3689 = vadd.f32 0.0, %v3688
        %v3690 = vpop.f32.mrb[0].mxu0
        %v3691 = vpop.f32.mrb[0].mxu0
        %v3692 = vadd.f32 0.0, %v3691
        %v3693 = vpop.f32.mrb[0].mxu0
        %3694 = vmatprep.mubr.bf16.mxu0 0
        %3695 = vmatmul.mubr.bf16.gmra.mrb[0].mxu0 %v3641
        %v3696 = vpop.f32.mrb[0].mxu0
        %v3697 = vadd.f32 0.0, %v3696
        %v3698 = vpop.f32.mrb[0].mxu0
        %v3699 = vpop.f32.mrb[0].mxu0
        %v3700 = vadd.f32 0.0, %v3699
        %v3701 = vpop.f32.mrb[0].mxu0
        %3702 = vmatprep.mubr.bf16.mxu0 0
        %3703 = vmatmul.mubr.bf16.gmra.mrb[0].mxu0 %v3644
        %v3704 = vpop.f32.mrb[0].mxu0
        %v3705 = vadd.f32 0.0, %v3704
        %v3706 = vpop.f32.mrb[0].mxu0
        %v3707 = vpop.f32.mrb[0].mxu0
        %v3708 = vadd.f32 0.0, %v3707
        %v3709 = vpop.f32.mrb[0].mxu0
        %3710 = vdwg.mxu0
        %v3711 = vadd.f32 %v3605, %v3681
        %v3712 = vadd.f32 %v3606, %v3684
        %v3713 = vadd.f32 %v3607, %v3689
        %v3714 = vadd.f32 %v3608, %v3692
        %v3715 = vadd.f32 %v3609, %v3697
        %v3716 = vadd.f32 %v3610, %v3700
        %v3717 = vadd.f32 %v3611, %v3705
        %v3718 = vadd.f32 %v3612, %v3708
        %v3721 = vrot.slane %v3228, 1
        %v3722 = vrot.slane %v3229, 1
        %v3723 = vsel %vm2283, %v3721, %v3722
        %v3725 = vpack.c.bf16 %v3264, %v3261
        %v3726 = vpack.c.bf16 %v3270, %v3267
        %v3727 = vpack.c.bf16 %v3276, %v3273
        %v3728 = vpack.c.bf16 %v3723, %v3279
        %s3729 = scalar_lea.vmem %s3, 64
        %v3730 = vld [vmem:[%s3729] sm:$0xf]
        %v3731 = vld [vmem:[%s3729 + $0x4] sm:$0xf]
        %v3732 = vld [vmem:[%s3729 + $0x8] sm:$0xf]
        %v3733 = vld [vmem:[%s3729 + $0xc] sm:$0xf]
        %v3738 = vunpack.c.l.b16 %v3730
        %v3739 = vunpack.c.l.b16 %v3731
        %v3740 = vunpack.c.l.b16 %v3732
        %v3741 = vunpack.c.l.b16 %v3733
        %v3742 = vpack.c.b16 %v3739, %v3738
        %v3743 = vpack.c.b16 %v3741, %v3740
        %v3747 = vsel %vm3181, %v3725, 0
        %v3750 = vsel %vm3181, %v3726, 0
        %v3753 = vsel %vm3181, %v3727, 0
        %v3756 = vsel %vm3181, %v3728, 0
        %3758 = vmatprep.subr.bf16.mxu0 0
        %3759 = vmatpush1.bf16.msra.mxu0 %v3742
        %3760 = vmatprep.subr.bf16.mxu0 0
        %3761 = vmatpush1.bf16.msra.mxu0 %v3743
        %3762 = vmatprep.subr.bf16.mxu0 0
        %3763 = vmatpush1.bf16.msra.mxu0 0
        %3764 = vmatprep.subr.bf16.mxu0 0
        %3765 = vmatpush1.bf16.msra.mxu0 0
        %3766 = vmatprep.subr.bf16.mxu0 0
        %3767 = vmatpush1.bf16.msra.mxu0 0
        %3768 = vmatprep.subr.bf16.mxu0 0
        %3769 = vmatpush1.bf16.msra.mxu0 0
        %3770 = vmatprep.subr.bf16.mxu0 0
        %3771 = vmatpush1.bf16.msra.mxu0 0
        %3772 = vmatprep.subr.bf16.mxu0 0
        %3773 = vmatpush1.bf16.msra.mxu0 0
        %3774 = vmatprep.subr.bf16.mxu0 0
        %3775 = vmatpush1.bf16.msra.mxu0 0
        %3776 = vmatprep.subr.bf16.mxu0 0
        %3777 = vmatpush1.bf16.msra.mxu0 0
        %3778 = vmatprep.subr.bf16.mxu0 0
        %3779 = vmatpush1.bf16.msra.mxu0 0
        %3780 = vmatprep.subr.bf16.mxu0 0
        %3781 = vmatpush1.bf16.msra.mxu0 0
        %3782 = vmatprep.subr.bf16.mxu0 0
        %3783 = vmatpush1.bf16.msra.mxu0 0
        %3784 = vmatprep.subr.bf16.mxu0 0
        %3785 = vmatpush1.bf16.msra.mxu0 0
        %3786 = vmatprep.subr.bf16.mxu0 0
        %3787 = vmatpush1.bf16.msra.mxu0 0
        %3788 = vmatprep.subr.bf16.mxu0 0
        %3789 = vmatpush1.bf16.msra.mxu0 0
        %3790 = vmatprep.mubr.bf16.mxu0 0
        %3791 = vmatmul.mubr.bf16.gmra.mrb[0].mxu0 %v3747
        %v3792 = vpop.f32.mrb[0].mxu0
        %v3793 = vadd.f32 0.0, %v3792
        %v3794 = vpop.f32.mrb[0].mxu0
        %v3795 = vpop.f32.mrb[0].mxu0
        %v3796 = vadd.f32 0.0, %v3795
        %v3797 = vpop.f32.mrb[0].mxu0
        %3798 = vmatprep.mubr.bf16.mxu0 0
        %3799 = vmatmul.mubr.bf16.gmra.mrb[0].mxu0 %v3750
        %v3800 = vpop.f32.mrb[0].mxu0
        %v3801 = vadd.f32 0.0, %v3800
        %v3802 = vpop.f32.mrb[0].mxu0
        %v3803 = vpop.f32.mrb[0].mxu0
        %v3804 = vadd.f32 0.0, %v3803
        %v3805 = vpop.f32.mrb[0].mxu0
        %3806 = vmatprep.mubr.bf16.mxu0 0
        %3807 = vmatmul.mubr.bf16.gmra.mrb[0].mxu0 %v3753
        %v3808 = vpop.f32.mrb[0].mxu0
        %v3809 = vadd.f32 0.0, %v3808
        %v3810 = vpop.f32.mrb[0].mxu0
        %v3811 = vpop.f32.mrb[0].mxu0
        %v3812 = vadd.f32 0.0, %v3811
        %v3813 = vpop.f32.mrb[0].mxu0
        %3814 = vmatprep.mubr.bf16.mxu0 0
        %3815 = vmatmul.mubr.bf16.gmra.mrb[0].mxu0 %v3756
        %v3816 = vpop.f32.mrb[0].mxu0
        %v3817 = vadd.f32 0.0, %v3816
        %v3818 = vpop.f32.mrb[0].mxu0
        %v3819 = vpop.f32.mrb[0].mxu0
        %v3820 = vadd.f32 0.0, %v3819
        %v3821 = vpop.f32.mrb[0].mxu0
        %3822 = vdwg.mxu0
        %v3823 = vadd.f32 %v3711, %v3793
        %v3824 = vadd.f32 %v3712, %v3796
        %v3825 = vadd.f32 %v3713, %v3801
        %v3826 = vadd.f32 %v3714, %v3804
        %v3827 = vadd.f32 %v3715, %v3809
        %v3828 = vadd.f32 %v3716, %v3812
        %v3829 = vadd.f32 %v3717, %v3817
        %v3830 = vadd.f32 %v3718, %v3820
        %v3831 = vrot.slane %v3228, 2
        %v3832 = vrot.slane %v3229, 2
        %v3833 = vsel %vm2483, %v3831, %v3832
        %v3835 = vpack.c.bf16 %v3483, %v3480
        %v3836 = vpack.c.bf16 %v3489, %v3486
        %v3837 = vpack.c.bf16 %v3495, %v3492
        %v3838 = vpack.c.bf16 %v3833, %v3498
        %s3839 = scalar_lea.vmem %s3, 80
        %v3840 = vld [vmem:[%s3839] sm:$0xf]
        %v3841 = vld [vmem:[%s3839 + $0x4] sm:$0xf]
        %v3842 = vld [vmem:[%s3839 + $0x8] sm:$0xf]
        %v3843 = vld [vmem:[%s3839 + $0xc] sm:$0xf]
        %v3848 = vunpack.c.l.b16 %v3840
        %v3849 = vunpack.c.l.b16 %v3841
        %v3850 = vunpack.c.l.b16 %v3842
        %v3851 = vunpack.c.l.b16 %v3843
        %v3852 = vpack.c.b16 %v3849, %v3848
        %v3853 = vpack.c.b16 %v3851, %v3850
        %v3857 = vsel %vm3181, %v3835, 0
        %v3860 = vsel %vm3181, %v3836, 0
        %v3863 = vsel %vm3181, %v3837, 0
        %v3866 = vsel %vm3181, %v3838, 0
        %3868 = vmatprep.subr.bf16.mxu0 0
        %3869 = vmatpush1.bf16.msra.mxu0 %v3852
        %3870 = vmatprep.subr.bf16.mxu0 0
        %3871 = vmatpush1.bf16.msra.mxu0 %v3853
        %3872 = vmatprep.subr.bf16.mxu0 0
        %3873 = vmatpush1.bf16.msra.mxu0 0
        %3874 = vmatprep.subr.bf16.mxu0 0
        %3875 = vmatpush1.bf16.msra.mxu0 0
        %3876 = vmatprep.subr.bf16.mxu0 0
        %3877 = vmatpush1.bf16.msra.mxu0 0
        %3878 = vmatprep.subr.bf16.mxu0 0
        %3879 = vmatpush1.bf16.msra.mxu0 0
        %3880 = vmatprep.subr.bf16.mxu0 0
        %3881 = vmatpush1.bf16.msra.mxu0 0
        %3882 = vmatprep.subr.bf16.mxu0 0
        %3883 = vmatpush1.bf16.msra.mxu0 0
        %3884 = vmatprep.subr.bf16.mxu0 0
        %3885 = vmatpush1.bf16.msra.mxu0 0
        %3886 = vmatprep.subr.bf16.mxu0 0
        %3887 = vmatpush1.bf16.msra.mxu0 0
        %3888 = vmatprep.subr.bf16.mxu0 0
        %3889 = vmatpush1.bf16.msra.mxu0 0
        %3890 = vmatprep.subr.bf16.mxu0 0
        %3891 = vmatpush1.bf16.msra.mxu0 0
        %3892 = vmatprep.subr.bf16.mxu0 0
        %3893 = vmatpush1.bf16.msra.mxu0 0
        %3894 = vmatprep.subr.bf16.mxu0 0
        %3895 = vmatpush1.bf16.msra.mxu0 0
        %3896 = vmatprep.subr.bf16.mxu0 0
        %3897 = vmatpush1.bf16.msra.mxu0 0
        %3898 = vmatprep.subr.bf16.mxu0 0
        %3899 = vmatpush1.bf16.msra.mxu0 0
        %3900 = vmatprep.mubr.bf16.mxu0 0
        %3901 = vmatmul.mubr.bf16.gmra.mrb[0].mxu0 %v3857
        %v3902 = vpop.f32.mrb[0].mxu0
        %v3903 = vadd.f32 0.0, %v3902
        %v3904 = vpop.f32.mrb[0].mxu0
        %v3905 = vpop.f32.mrb[0].mxu0
        %v3906 = vadd.f32 0.0, %v3905
        %v3907 = vpop.f32.mrb[0].mxu0
        %3908 = vmatprep.mubr.bf16.mxu0 0
        %3909 = vmatmul.mubr.bf16.gmra.mrb[0].mxu0 %v3860
        %v3910 = vpop.f32.mrb[0].mxu0
        %v3911 = vadd.f32 0.0, %v3910
        %v3912 = vpop.f32.mrb[0].mxu0
        %v3913 = vpop.f32.mrb[0].mxu0
        %v3914 = vadd.f32 0.0, %v3913
        %v3915 = vpop.f32.mrb[0].mxu0
        %3916 = vmatprep.mubr.bf16.mxu0 0
        %3917 = vmatmul.mubr.bf16.gmra.mrb[0].mxu0 %v3863
        %v3918 = vpop.f32.mrb[0].mxu0
        %v3919 = vadd.f32 0.0, %v3918
        %v3920 = vpop.f32.mrb[0].mxu0
        %v3921 = vpop.f32.mrb[0].mxu0
        %v3922 = vadd.f32 0.0, %v3921
        %v3923 = vpop.f32.mrb[0].mxu0
        %3924 = vmatprep.mubr.bf16.mxu0 0
        %3925 = vmatmul.mubr.bf16.gmra.mrb[0].mxu0 %v3866
        %v3926 = vpop.f32.mrb[0].mxu0
        %v3927 = vadd.f32 0.0, %v3926
        %v3928 = vpop.f32.mrb[0].mxu0
        %v3929 = vpop.f32.mrb[0].mxu0
        %v3930 = vadd.f32 0.0, %v3929
        %v3931 = vpop.f32.mrb[0].mxu0
        %3932 = vdwg.mxu0
        %v3933 = vadd.f32 %v3823, %v3903
        %v3934 = vadd.f32 %v3824, %v3906
        %v3935 = vadd.f32 %v3825, %v3911
        %v3936 = vadd.f32 %v3826, %v3914
        %v3937 = vadd.f32 %v3827, %v3919
        %v3938 = vadd.f32 %v3828, %v3922
        %v3939 = vadd.f32 %v3829, %v3927
        %v3940 = vadd.f32 %v3830, %v3930
        %v3941 = vpack.c.bf16 %v3230, %v3228
        %s3942 = scalar_lea.vmem %s3, 96
        %v3943 = vld [vmem:[%s3942] sm:$0xf]
        %v3944 = vld [vmem:[%s3942 + $0x4] sm:$0xf]
        %v3945 = vld [vmem:[%s3942 + $0x8] sm:$0xf]
        %v3946 = vld [vmem:[%s3942 + $0xc] sm:$0xf]
        %v3951 = vunpack.c.l.b16 %v3943
        %v3952 = vunpack.c.l.b16 %v3944
        %v3953 = vunpack.c.l.b16 %v3945
        %v3954 = vunpack.c.l.b16 %v3946
        %v3955 = vpack.c.b16 %v3952, %v3951
        %v3956 = vpack.c.b16 %v3954, %v3953
        %v3960 = vsel %vm3181, %v3941, 0
        %3962 = vmatprep.subr.bf16.mxu0 0
        %3963 = vmatpush1.bf16.msra.mxu0 %v3955
        %3964 = vmatprep.subr.bf16.mxu0 0
        %3965 = vmatpush1.bf16.msra.mxu0 %v3956
        %3966 = vmatprep.subr.bf16.mxu0 0
        %3967 = vmatpush1.bf16.msra.mxu0 0
        %3968 = vmatprep.subr.bf16.mxu0 0
        %3969 = vmatpush1.bf16.msra.mxu0 0
        %3970 = vmatprep.subr.bf16.mxu0 0
        %3971 = vmatpush1.bf16.msra.mxu0 0
        %3972 = vmatprep.subr.bf16.mxu0 0
        %3973 = vmatpush1.bf16.msra.mxu0 0
        %3974 = vmatprep.subr.bf16.mxu0 0
        %3975 = vmatpush1.bf16.msra.mxu0 0
        %3976 = vmatprep.subr.bf16.mxu0 0
        %3977 = vmatpush1.bf16.msra.mxu0 0
        %3978 = vmatprep.subr.bf16.mxu0 0
        %3979 = vmatpush1.bf16.msra.mxu0 0
        %3980 = vmatprep.subr.bf16.mxu0 0
        %3981 = vmatpush1.bf16.msra.mxu0 0
        %3982 = vmatprep.subr.bf16.mxu0 0
        %3983 = vmatpush1.bf16.msra.mxu0 0
        %3984 = vmatprep.subr.bf16.mxu0 0
        %3985 = vmatpush1.bf16.msra.mxu0 0
        %3986 = vmatprep.subr.bf16.mxu0 0
        %3987 = vmatpush1.bf16.msra.mxu0 0
        %3988 = vmatprep.subr.bf16.mxu0 0
        %3989 = vmatpush1.bf16.msra.mxu0 0
        %3990 = vmatprep.subr.bf16.mxu0 0
        %3991 = vmatpush1.bf16.msra.mxu0 0
        %3992 = vmatprep.subr.bf16.mxu0 0
        %3993 = vmatpush1.bf16.msra.mxu0 0
        %3994 = vmatprep.mubr.bf16.mxu0 0
        %3995 = vmatmul.mubr.bf16.gmra.mrb[0].mxu0 %v3402
        %v3996 = vpop.f32.mrb[0].mxu0
        %v3997 = vadd.f32 0.0, %v3996
        %v3998 = vpop.f32.mrb[0].mxu0
        %v3999 = vpop.f32.mrb[0].mxu0
        %v4000 = vadd.f32 0.0, %v3999
        %v4001 = vpop.f32.mrb[0].mxu0
        %4002 = vmatprep.mubr.bf16.mxu0 0
        %4003 = vmatmul.mubr.bf16.gmra.mrb[0].mxu0 %v3405
        %v4004 = vpop.f32.mrb[0].mxu0
        %v4005 = vadd.f32 0.0, %v4004
        %v4006 = vpop.f32.mrb[0].mxu0
        %v4007 = vpop.f32.mrb[0].mxu0
        %v4008 = vadd.f32 0.0, %v4007
        %v4009 = vpop.f32.mrb[0].mxu0
        %4010 = vmatprep.mubr.bf16.mxu0 0
        %4011 = vmatmul.mubr.bf16.gmra.mrb[0].mxu0 %v3408
        %v4012 = vpop.f32.mrb[0].mxu0
        %v4013 = vadd.f32 0.0, %v4012
        %v4014 = vpop.f32.mrb[0].mxu0
        %v4015 = vpop.f32.mrb[0].mxu0
        %v4016 = vadd.f32 0.0, %v4015
        %v4017 = vpop.f32.mrb[0].mxu0
        %4018 = vmatprep.mubr.bf16.mxu0 0
        %4019 = vmatmul.mubr.bf16.gmra.mrb[0].mxu0 %v3960
        %v4020 = vpop.f32.mrb[0].mxu0
        %v4021 = vadd.f32 0.0, %v4020
        %v4022 = vpop.f32.mrb[0].mxu0
        %v4023 = vpop.f32.mrb[0].mxu0
        %v4024 = vadd.f32 0.0, %v4023
        %v4025 = vpop.f32.mrb[0].mxu0
        %4026 = vdwg.mxu0
        %v4027 = vadd.f32 %v3933, %v3997
        %v4028 = vadd.f32 %v3934, %v4000
        %v4029 = vadd.f32 %v3935, %v4005
        %v4030 = vadd.f32 %v3936, %v4008
        %v4031 = vadd.f32 %v3937, %v4013
        %v4032 = vadd.f32 %v3938, %v4016
        %v4033 = vadd.f32 %v3939, %v4021
        %v4034 = vadd.f32 %v3940, %v4024
        %v4037 = vrot.slane %v3230, 1
        %v4038 = vrot.slane %v3231, 1
        %v4039 = vsel %vm2283, %v4037, %v4038
        %v4041 = vpack.c.bf16 %v4039, %v3723
        %s4042 = scalar_lea.vmem %s3, 112
        %v4043 = vld [vmem:[%s4042] sm:$0xf]
        %v4044 = vld [vmem:[%s4042 + $0x4] sm:$0xf]
        %v4045 = vld [vmem:[%s4042 + $0x8] sm:$0xf]
        %v4046 = vld [vmem:[%s4042 + $0xc] sm:$0xf]
        %v4051 = vunpack.c.l.b16 %v4043
        %v4052 = vunpack.c.l.b16 %v4044
        %v4053 = vunpack.c.l.b16 %v4045
        %v4054 = vunpack.c.l.b16 %v4046
        %v4055 = vpack.c.b16 %v4052, %v4051
        %v4056 = vpack.c.b16 %v4054, %v4053
        %v4060 = vsel %vm3181, %v4041, 0
        %4062 = vmatprep.subr.bf16.mxu0 0
        %4063 = vmatpush1.bf16.msra.mxu0 %v4055
        %4064 = vmatprep.subr.bf16.mxu0 0
        %4065 = vmatpush1.bf16.msra.mxu0 %v4056
        %4066 = vmatprep.subr.bf16.mxu0 0
        %4067 = vmatpush1.bf16.msra.mxu0 0
        %4068 = vmatprep.subr.bf16.mxu0 0
        %4069 = vmatpush1.bf16.msra.mxu0 0
        %4070 = vmatprep.subr.bf16.mxu0 0
        %4071 = vmatpush1.bf16.msra.mxu0 0
        %4072 = vmatprep.subr.bf16.mxu0 0
        %4073 = vmatpush1.bf16.msra.mxu0 0
        %4074 = vmatprep.subr.bf16.mxu0 0
        %4075 = vmatpush1.bf16.msra.mxu0 0
        %4076 = vmatprep.subr.bf16.mxu0 0
        %4077 = vmatpush1.bf16.msra.mxu0 0
        %4078 = vmatprep.subr.bf16.mxu0 0
        %4079 = vmatpush1.bf16.msra.mxu0 0
        %4080 = vmatprep.subr.bf16.mxu0 0
        %4081 = vmatpush1.bf16.msra.mxu0 0
        %4082 = vmatprep.subr.bf16.mxu0 0
        %4083 = vmatpush1.bf16.msra.mxu0 0
        %4084 = vmatprep.subr.bf16.mxu0 0
        %4085 = vmatpush1.bf16.msra.mxu0 0
        %4086 = vmatprep.subr.bf16.mxu0 0
        %4087 = vmatpush1.bf16.msra.mxu0 0
        %4088 = vmatprep.subr.bf16.mxu0 0
        %4089 = vmatpush1.bf16.msra.mxu0 0
        %4090 = vmatprep.subr.bf16.mxu0 0
        %4091 = vmatpush1.bf16.msra.mxu0 0
        %4092 = vmatprep.subr.bf16.mxu0 0
        %4093 = vmatpush1.bf16.msra.mxu0 0
        %4094 = vmatprep.mubr.bf16.mxu0 0
        %4095 = vmatmul.mubr.bf16.gmra.mrb[0].mxu0 %v3313
        %v4096 = vpop.f32.mrb[0].mxu0
        %v4097 = vadd.f32 0.0, %v4096
        %v4098 = vpop.f32.mrb[0].mxu0
        %v4099 = vpop.f32.mrb[0].mxu0
        %v4100 = vadd.f32 0.0, %v4099
        %v4101 = vpop.f32.mrb[0].mxu0
        %4102 = vmatprep.mubr.bf16.mxu0 0
        %4103 = vmatmul.mubr.bf16.gmra.mrb[0].mxu0 %v3316
        %v4104 = vpop.f32.mrb[0].mxu0
        %v4105 = vadd.f32 0.0, %v4104
        %v4106 = vpop.f32.mrb[0].mxu0
        %v4107 = vpop.f32.mrb[0].mxu0
        %v4108 = vadd.f32 0.0, %v4107
        %v4109 = vpop.f32.mrb[0].mxu0
        %4110 = vmatprep.mubr.bf16.mxu0 0
        %4111 = vmatmul.mubr.bf16.gmra.mrb[0].mxu0 %v3319
        %v4112 = vpop.f32.mrb[0].mxu0
        %v4113 = vadd.f32 0.0, %v4112
        %v4114 = vpop.f32.mrb[0].mxu0
        %v4115 = vpop.f32.mrb[0].mxu0
        %v4116 = vadd.f32 0.0, %v4115
        %v4117 = vpop.f32.mrb[0].mxu0
        %4118 = vmatprep.mubr.bf16.mxu0 0
        %4119 = vmatmul.mubr.bf16.gmra.mrb[0].mxu0 %v4060
        %v4120 = vpop.f32.mrb[0].mxu0
        %v4121 = vadd.f32 0.0, %v4120
        %v4122 = vpop.f32.mrb[0].mxu0
        %v4123 = vpop.f32.mrb[0].mxu0
        %v4124 = vadd.f32 0.0, %v4123
        %v4125 = vpop.f32.mrb[0].mxu0
        %4126 = vdwg.mxu0
        %v4127 = vadd.f32 %v4027, %v4097
        %v4128 = vadd.f32 %v4028, %v4100
        %v4129 = vadd.f32 %v4029, %v4105
        %v4130 = vadd.f32 %v4030, %v4108
        %v4131 = vadd.f32 %v4031, %v4113
        %v4132 = vadd.f32 %v4032, %v4116
        %v4133 = vadd.f32 %v4033, %v4121
        %v4134 = vadd.f32 %v4034, %v4124
        %v4135 = vrot.slane %v3230, 2
        %v4136 = vrot.slane %v3231, 2
        %v4137 = vsel %vm2483, %v4135, %v4136
        %v4139 = vpack.c.bf16 %v4137, %v3833
        %s4140 = scalar_lea.vmem %s3, 128
        %v4141 = vld [vmem:[%s4140] sm:$0xf]
        %v4142 = vld [vmem:[%s4140 + $0x4] sm:$0xf]
        %v4143 = vld [vmem:[%s4140 + $0x8] sm:$0xf]
        %v4144 = vld [vmem:[%s4140 + $0xc] sm:$0xf]
        %v4149 = vunpack.c.l.b16 %v4141
        %v4150 = vunpack.c.l.b16 %v4142
        %v4151 = vunpack.c.l.b16 %v4143
        %v4152 = vunpack.c.l.b16 %v4144
        %v4153 = vpack.c.b16 %v4150, %v4149
        %v4154 = vpack.c.b16 %v4152, %v4151
        %v4158 = vsel %vm3181, %v4139, 0
        %4160 = vmatprep.subr.bf16.mxu0 0
        %4161 = vmatpush1.bf16.msra.mxu0 %v4153
        %4162 = vmatprep.subr.bf16.mxu0 0
        %4163 = vmatpush1.bf16.msra.mxu0 %v4154
        %4164 = vmatprep.subr.bf16.mxu0 0
        %4165 = vmatpush1.bf16.msra.mxu0 0
        %4166 = vmatprep.subr.bf16.mxu0 0
        %4167 = vmatpush1.bf16.msra.mxu0 0
        %4168 = vmatprep.subr.bf16.mxu0 0
        %4169 = vmatpush1.bf16.msra.mxu0 0
        %4170 = vmatprep.subr.bf16.mxu0 0
        %4171 = vmatpush1.bf16.msra.mxu0 0
        %4172 = vmatprep.subr.bf16.mxu0 0
        %4173 = vmatpush1.bf16.msra.mxu0 0
        %4174 = vmatprep.subr.bf16.mxu0 0
        %4175 = vmatpush1.bf16.msra.mxu0 0
        %4176 = vmatprep.subr.bf16.mxu0 0
        %4177 = vmatpush1.bf16.msra.mxu0 0
        %4178 = vmatprep.subr.bf16.mxu0 0
        %4179 = vmatpush1.bf16.msra.mxu0 0
        %4180 = vmatprep.subr.bf16.mxu0 0
        %4181 = vmatpush1.bf16.msra.mxu0 0
        %4182 = vmatprep.subr.bf16.mxu0 0
        %4183 = vmatpush1.bf16.msra.mxu0 0
        %4184 = vmatprep.subr.bf16.mxu0 0
        %4185 = vmatpush1.bf16.msra.mxu0 0
        %4186 = vmatprep.subr.bf16.mxu0 0
        %4187 = vmatpush1.bf16.msra.mxu0 0
        %4188 = vmatprep.subr.bf16.mxu0 0
        %4189 = vmatpush1.bf16.msra.mxu0 0
        %4190 = vmatprep.subr.bf16.mxu0 0
        %4191 = vmatpush1.bf16.msra.mxu0 0
        %4192 = vmatprep.mubr.bf16.mxu0 0
        %4193 = vmatmul.mubr.bf16.gmra.mrb[0].mxu0 %v3532
        %v4194 = vpop.f32.mrb[0].mxu0
        %v4195 = vadd.f32 0.0, %v4194
        %v4196 = vpop.f32.mrb[0].mxu0
        %v4197 = vpop.f32.mrb[0].mxu0
        %v4198 = vadd.f32 0.0, %v4197
        %v4199 = vpop.f32.mrb[0].mxu0
        %4200 = vmatprep.mubr.bf16.mxu0 0
        %4201 = vmatmul.mubr.bf16.gmra.mrb[0].mxu0 %v3535
        %v4202 = vpop.f32.mrb[0].mxu0
        %v4203 = vadd.f32 0.0, %v4202
        %v4204 = vpop.f32.mrb[0].mxu0
        %v4205 = vpop.f32.mrb[0].mxu0
        %v4206 = vadd.f32 0.0, %v4205
        %v4207 = vpop.f32.mrb[0].mxu0
        %4208 = vmatprep.mubr.bf16.mxu0 0
        %4209 = vmatmul.mubr.bf16.gmra.mrb[0].mxu0 %v3538
        %v4210 = vpop.f32.mrb[0].mxu0
        %v4211 = vadd.f32 0.0, %v4210
        %v4212 = vpop.f32.mrb[0].mxu0
        %v4213 = vpop.f32.mrb[0].mxu0
        %v4214 = vadd.f32 0.0, %v4213
        %v4215 = vpop.f32.mrb[0].mxu0
        %4216 = vmatprep.mubr.bf16.mxu0 0
        %4217 = vmatmul.mubr.bf16.gmra.mrb[0].mxu0 %v4158
        %v4218 = vpop.f32.mrb[0].mxu0
        %v4219 = vadd.f32 0.0, %v4218
        %v4220 = vpop.f32.mrb[0].mxu0
        %v4221 = vpop.f32.mrb[0].mxu0
        %v4222 = vadd.f32 0.0, %v4221
        %v4223 = vpop.f32.mrb[0].mxu0
        %4224 = vdwg.mxu0
        %v4225 = vadd.f32 %v4127, %v4195
        %v4226 = vadd.f32 %v4128, %v4198
        %v4227 = vadd.f32 %v4129, %v4203
        %v4228 = vadd.f32 %v4130, %v4206
        %v4229 = vadd.f32 %v4131, %v4211
        %v4230 = vadd.f32 %v4132, %v4214
        %v4231 = vadd.f32 %v4133, %v4219
        %v4232 = vadd.f32 %v4134, %v4222
        %v4233 = vld [vmem:[%s4] sm:$0x1]
        %v4235 = vlaneseq
        %v4236 = vshrl.u32 %v4235, 7
        %v4237 = vsub.s32 0, %v4236
        %v4238 = vrot.slane %v4233, %v4237
        %v4240 = vadd.f32 %v4225, %v4238
        %v4241 = vadd.f32 %v4226, %v4238
        %v4242 = vadd.f32 %v4227, %v4238
        %v4243 = vadd.f32 %v4228, %v4238
        %v4244 = vadd.f32 %v4229, %v4238
        %v4245 = vadd.f32 %v4230, %v4238
        %v4246 = vadd.f32 %v4231, %v4238
        %v4247 = vadd.f32 %v4232, %v4238
        %v4248 = vmax.f32 %v4240, 0.0
        %v4249 = vmax.f32 %v4241, 0.0
        %v4250 = vmax.f32 %v4242, 0.0
        %v4251 = vmax.f32 %v4243, 0.0
        %v4252 = vmax.f32 %v4244, 0.0
        %v4253 = vmax.f32 %v4245, 0.0
        %v4254 = vmax.f32 %v4246, 0.0
        %v4255 = vmax.f32 %v4247, 0.0
        %4256 = vst.msk [vmem:[%s3203 + $0x1] sm:$0xff] %vm3181, %v4248
        %4257 = vst.msk [vmem:[%s3203 + $0x11] sm:$0xff] %vm3181, %v4249
        %4258 = vst.msk [vmem:[%s3203 + $0x21] sm:$0xff] %vm3181, %v4250
        %4259 = vst.msk [vmem:[%s3203 + $0x31] sm:$0xff] %vm3181, %v4251
        %4260 = vst.msk [vmem:[%s3203 + $0x41] sm:$0xff] %vm3181, %v4252
        %4261 = vst.msk [vmem:[%s3203 + $0x51] sm:$0xff] %vm3181, %v4253
        %4262 = vst.msk [vmem:[%s3203 + $0x61] sm:$0xff] %vm3181, %v4254
        %4263 = vst.msk [vmem:[%s3203 + $0x71] sm:$0xff] %vm3181, %v4255
        %v4264 = vld [vmem:[#allocation3] sm:$0xff]
        %v4265 = vld [vmem:[#allocation3 + $0x8] sm:$0x3]
        %v4266 = vld [vmem:[#allocation3 + $0x10] sm:$0xff]
        %v4267 = vld [vmem:[#allocation3 + $0x18] sm:$0x3]
        %v4268 = vld [vmem:[#allocation3 + $0x20] sm:$0xff]
        %v4269 = vld [vmem:[#allocation3 + $0x28] sm:$0x3]
        %v4270 = vld [vmem:[#allocation3 + $0x30] sm:$0xff]
        %v4271 = vld [vmem:[#allocation3 + $0x38] sm:$0x3]
        %v4272 = vld [vmem:[#allocation3 + $0x40] sm:$0xff]
        %v4273 = vld [vmem:[#allocation3 + $0x48] sm:$0x3]
        %v4274 = vld [vmem:[#allocation3 + $0x50] sm:$0xff]
        %v4275 = vld [vmem:[#allocation3 + $0x58] sm:$0x3]
        %v4276 = vld [vmem:[#allocation3 + $0x60] sm:$0xff]
        %v4277 = vld [vmem:[#allocation3 + $0x68] sm:$0x3]
        %v4278 = vld [vmem:[#allocation3 + $0x70] sm:$0xff]
        %v4279 = vld [vmem:[#allocation3 + $0x78] sm:$0x3]
        %v4280 = vld [vmem:[#allocation3 + $0x80] sm:$0xff]
        %v4281 = vld [vmem:[#allocation3 + $0x88] sm:$0x3]
        %v4282 = vld [vmem:[#allocation3 + $0x90] sm:$0xff]
        %v4283 = vld [vmem:[#allocation3 + $0x98] sm:$0x3]
        %v4284 = vpack.c.bf16 %v4266, %v4264
        %v4285 = vpack.c.bf16 %v4270, %v4268
        %v4286 = vpack.c.bf16 %v4274, %v4272
        %v4287 = vpack.c.bf16 %v4278, %v4276
        %v4288 = vld [vmem:[%s5] sm:$0xf]
        %v4289 = vld [vmem:[%s5 + $0x4] sm:$0xf]
        %v4290 = vld [vmem:[%s5 + $0x8] sm:$0xf]
        %v4291 = vld [vmem:[%s5 + $0xc] sm:$0xf]
        %v4308 = vrot.slane %v4264, 1
        %v4309 = vrot.slane %v4265, 1
        %v4310 = vsel %vm2283, %v4308, %v4309
        %v4311 = vrot.slane %v4266, 1
        %v4312 = vrot.slane %v4267, 1
        %v4313 = vsel %vm2283, %v4311, %v4312
        %v4314 = vrot.slane %v4268, 1
        %v4315 = vrot.slane %v4269, 1
        %v4316 = vsel %vm2283, %v4314, %v4315
        %v4317 = vrot.slane %v4270, 1
        %v4318 = vrot.slane %v4271, 1
        %v4319 = vsel %vm2283, %v4317, %v4318
        %v4320 = vrot.slane %v4272, 1
        %v4321 = vrot.slane %v4273, 1
        %v4322 = vsel %vm2283, %v4320, %v4321
        %v4323 = vrot.slane %v4274, 1
        %v4324 = vrot.slane %v4275, 1
        %v4325 = vsel %vm2283, %v4323, %v4324
        %v4326 = vrot.slane %v4276, 1
        %v4327 = vrot.slane %v4277, 1
        %v4328 = vsel %vm2283, %v4326, %v4327
        %v4329 = vrot.slane %v4278, 1
        %v4330 = vrot.slane %v4279, 1
        %v4331 = vsel %vm2283, %v4329, %v4330
        %v4340 = vpack.c.bf16 %v4313, %v4310
        %v4341 = vpack.c.bf16 %v4319, %v4316
        %v4342 = vpack.c.bf16 %v4325, %v4322
        %v4343 = vpack.c.bf16 %v4331, %v4328
        %s4344 = scalar_lea.vmem %s5, 16
        %v4345 = vld [vmem:[%s4344] sm:$0xf]
        %v4346 = vld [vmem:[%s4344 + $0x4] sm:$0xf]
        %v4347 = vld [vmem:[%s4344 + $0x8] sm:$0xf]
        %v4348 = vld [vmem:[%s4344 + $0xc] sm:$0xf]
        %v4353 = vunpack.c.l.b16 %v4345
        %v4354 = vunpack.c.l.b16 %v4346
        %v4355 = vunpack.c.l.b16 %v4347
        %v4356 = vunpack.c.l.b16 %v4348
        %v4357 = vpack.c.b16 %v4354, %v4353
        %v4358 = vpack.c.b16 %v4356, %v4355
        %v4362 = vsel %vm3181, %v4340, 0
        %v4365 = vsel %vm3181, %v4341, 0
        %v4368 = vsel %vm3181, %v4342, 0
        %v4371 = vsel %vm3181, %v4343, 0
        %4373 = vmatprep.subr.bf16.mxu0 0
        %4374 = vmatpush1.bf16.msra.mxu0 %v4357
        %4375 = vmatprep.subr.bf16.mxu0 0
        %4376 = vmatpush1.bf16.msra.mxu0 %v4358
        %4377 = vmatprep.subr.bf16.mxu0 0
        %4378 = vmatpush1.bf16.msra.mxu0 0
        %4379 = vmatprep.subr.bf16.mxu0 0
        %4380 = vmatpush1.bf16.msra.mxu0 0
        %4381 = vmatprep.subr.bf16.mxu0 0
        %4382 = vmatpush1.bf16.msra.mxu0 0
        %4383 = vmatprep.subr.bf16.mxu0 0
        %4384 = vmatpush1.bf16.msra.mxu0 0
        %4385 = vmatprep.subr.bf16.mxu0 0
        %4386 = vmatpush1.bf16.msra.mxu0 0
        %4387 = vmatprep.subr.bf16.mxu0 0
        %4388 = vmatpush1.bf16.msra.mxu0 0
        %4389 = vmatprep.subr.bf16.mxu0 0
        %4390 = vmatpush1.bf16.msra.mxu0 0
        %4391 = vmatprep.subr.bf16.mxu0 0
        %4392 = vmatpush1.bf16.msra.mxu0 0
        %4393 = vmatprep.subr.bf16.mxu0 0
        %4394 = vmatpush1.bf16.msra.mxu0 0
        %4395 = vmatprep.subr.bf16.mxu0 0
        %4396 = vmatpush1.bf16.msra.mxu0 0
        %4397 = vmatprep.subr.bf16.mxu0 0
        %4398 = vmatpush1.bf16.msra.mxu0 0
        %4399 = vmatprep.subr.bf16.mxu0 0
        %4400 = vmatpush1.bf16.msra.mxu0 0
        %4401 = vmatprep.subr.bf16.mxu0 0
        %4402 = vmatpush1.bf16.msra.mxu0 0
        %4403 = vmatprep.subr.bf16.mxu0 0
        %4404 = vmatpush1.bf16.msra.mxu0 0
        %4405 = vmatprep.mubr.bf16.mxu0 0
        %4406 = vmatmul.mubr.bf16.gmra.mrb[0].mxu0 %v4362
        %v4407 = vpop.f32.mrb[0].mxu0
        %v4408 = vadd.f32 0.0, %v4407
        %v4409 = vpop.f32.mrb[0].mxu0
        %v4410 = vpop.f32.mrb[0].mxu0
        %v4411 = vadd.f32 0.0, %v4410
        %v4412 = vpop.f32.mrb[0].mxu0
        %4413 = vmatprep.mubr.bf16.mxu0 0
        %4414 = vmatmul.mubr.bf16.gmra.mrb[0].mxu0 %v4365
        %v4415 = vpop.f32.mrb[0].mxu0
        %v4416 = vadd.f32 0.0, %v4415
        %v4417 = vpop.f32.mrb[0].mxu0
        %v4418 = vpop.f32.mrb[0].mxu0
        %v4419 = vadd.f32 0.0, %v4418
        %v4420 = vpop.f32.mrb[0].mxu0
        %4421 = vmatprep.mubr.bf16.mxu0 0
        %4422 = vmatmul.mubr.bf16.gmra.mrb[0].mxu0 %v4368
        %v4423 = vpop.f32.mrb[0].mxu0
        %v4424 = vadd.f32 0.0, %v4423
        %v4425 = vpop.f32.mrb[0].mxu0
        %v4426 = vpop.f32.mrb[0].mxu0
        %v4427 = vadd.f32 0.0, %v4426
        %v4428 = vpop.f32.mrb[0].mxu0
        %4429 = vmatprep.mubr.bf16.mxu0 0
        %4430 = vmatmul.mubr.bf16.gmra.mrb[0].mxu0 %v4371
        %v4431 = vpop.f32.mrb[0].mxu0
        %v4432 = vadd.f32 0.0, %v4431
        %v4433 = vpop.f32.mrb[0].mxu0
        %v4434 = vpop.f32.mrb[0].mxu0
        %v4435 = vadd.f32 0.0, %v4434
        %v4436 = vpop.f32.mrb[0].mxu0
        %4437 = vdwg.mxu0
        %v4442 = vunpack.c.l.b16 %v4288
        %v4443 = vunpack.c.l.b16 %v4289
        %v4444 = vunpack.c.l.b16 %v4290
        %v4445 = vunpack.c.l.b16 %v4291
        %v4446 = vpack.c.b16 %v4443, %v4442
        %v4447 = vpack.c.b16 %v4445, %v4444
        %v4451 = vsel %vm3181, %v4284, 0
        %v4454 = vsel %vm3181, %v4285, 0
        %v4457 = vsel %vm3181, %v4286, 0
        %v4460 = vsel %vm3181, %v4287, 0
        %4462 = vmatprep.subr.bf16.mxu0 0
        %4463 = vmatpush1.bf16.msra.mxu0 %v4446
        %4464 = vmatprep.subr.bf16.mxu0 0
        %4465 = vmatpush1.bf16.msra.mxu0 %v4447
        %4466 = vmatprep.subr.bf16.mxu0 0
        %4467 = vmatpush1.bf16.msra.mxu0 0
        %4468 = vmatprep.subr.bf16.mxu0 0
        %4469 = vmatpush1.bf16.msra.mxu0 0
        %4470 = vmatprep.subr.bf16.mxu0 0
        %4471 = vmatpush1.bf16.msra.mxu0 0
        %4472 = vmatprep.subr.bf16.mxu0 0
        %4473 = vmatpush1.bf16.msra.mxu0 0
        %4474 = vmatprep.subr.bf16.mxu0 0
        %4475 = vmatpush1.bf16.msra.mxu0 0
        %4476 = vmatprep.subr.bf16.mxu0 0
        %4477 = vmatpush1.bf16.msra.mxu0 0
        %4478 = vmatprep.subr.bf16.mxu0 0
        %4479 = vmatpush1.bf16.msra.mxu0 0
        %4480 = vmatprep.subr.bf16.mxu0 0
        %4481 = vmatpush1.bf16.msra.mxu0 0
        %4482 = vmatprep.subr.bf16.mxu0 0
        %4483 = vmatpush1.bf16.msra.mxu0 0
        %4484 = vmatprep.subr.bf16.mxu0 0
        %4485 = vmatpush1.bf16.msra.mxu0 0
        %4486 = vmatprep.subr.bf16.mxu0 0
        %4487 = vmatpush1.bf16.msra.mxu0 0
        %4488 = vmatprep.subr.bf16.mxu0 0
        %4489 = vmatpush1.bf16.msra.mxu0 0
        %4490 = vmatprep.subr.bf16.mxu0 0
        %4491 = vmatpush1.bf16.msra.mxu0 0
        %4492 = vmatprep.subr.bf16.mxu0 0
        %4493 = vmatpush1.bf16.msra.mxu0 0
        %4494 = vmatprep.mubr.bf16.mxu0 0
        %4495 = vmatmul.mubr.bf16.gmra.mrb[0].mxu0 %v4451
        %v4496 = vpop.f32.mrb[0].mxu0
        %v4497 = vadd.f32 %v4408, %v4496
        %v4498 = vpop.f32.mrb[0].mxu0
        %v4499 = vpop.f32.mrb[0].mxu0
        %v4500 = vadd.f32 %v4411, %v4499
        %v4501 = vpop.f32.mrb[0].mxu0
        %4502 = vmatprep.mubr.bf16.mxu0 0
        %4503 = vmatmul.mubr.bf16.gmra.mrb[0].mxu0 %v4454
        %v4504 = vpop.f32.mrb[0].mxu0
        %v4505 = vadd.f32 %v4416, %v4504
        %v4506 = vpop.f32.mrb[0].mxu0
        %v4507 = vpop.f32.mrb[0].mxu0
        %v4508 = vadd.f32 %v4419, %v4507
        %v4509 = vpop.f32.mrb[0].mxu0
        %4510 = vmatprep.mubr.bf16.mxu0 0
        %4511 = vmatmul.mubr.bf16.gmra.mrb[0].mxu0 %v4457
        %v4512 = vpop.f32.mrb[0].mxu0
        %v4513 = vadd.f32 %v4424, %v4512
        %v4514 = vpop.f32.mrb[0].mxu0
        %v4515 = vpop.f32.mrb[0].mxu0
        %v4516 = vadd.f32 %v4427, %v4515
        %v4517 = vpop.f32.mrb[0].mxu0
        %4518 = vmatprep.mubr.bf16.mxu0 0
        %4519 = vmatmul.mubr.bf16.gmra.mrb[0].mxu0 %v4460
        %v4520 = vpop.f32.mrb[0].mxu0
        %v4521 = vadd.f32 %v4432, %v4520
        %v4522 = vpop.f32.mrb[0].mxu0
        %v4523 = vpop.f32.mrb[0].mxu0
        %v4524 = vadd.f32 %v4435, %v4523
        %v4525 = vpop.f32.mrb[0].mxu0
        %4526 = vdwg.mxu0
        %v4527 = vrot.slane %v4264, 2
        %v4528 = vrot.slane %v4265, 2
        %v4529 = vsel %vm2483, %v4527, %v4528
        %v4530 = vrot.slane %v4266, 2
        %v4531 = vrot.slane %v4267, 2
        %v4532 = vsel %vm2483, %v4530, %v4531
        %v4533 = vrot.slane %v4268, 2
        %v4534 = vrot.slane %v4269, 2
        %v4535 = vsel %vm2483, %v4533, %v4534
        %v4536 = vrot.slane %v4270, 2
        %v4537 = vrot.slane %v4271, 2
        %v4538 = vsel %vm2483, %v4536, %v4537
        %v4539 = vrot.slane %v4272, 2
        %v4540 = vrot.slane %v4273, 2
        %v4541 = vsel %vm2483, %v4539, %v4540
        %v4542 = vrot.slane %v4274, 2
        %v4543 = vrot.slane %v4275, 2
        %v4544 = vsel %vm2483, %v4542, %v4543
        %v4545 = vrot.slane %v4276, 2
        %v4546 = vrot.slane %v4277, 2
        %v4547 = vsel %vm2483, %v4545, %v4546
        %v4548 = vrot.slane %v4278, 2
        %v4549 = vrot.slane %v4279, 2
        %v4550 = vsel %vm2483, %v4548, %v4549
        %v4559 = vpack.c.bf16 %v4532, %v4529
        %v4560 = vpack.c.bf16 %v4538, %v4535
        %v4561 = vpack.c.bf16 %v4544, %v4541
        %v4562 = vpack.c.bf16 %v4550, %v4547
        %s4563 = scalar_lea.vmem %s5, 32
        %v4564 = vld [vmem:[%s4563] sm:$0xf]
        %v4565 = vld [vmem:[%s4563 + $0x4] sm:$0xf]
        %v4566 = vld [vmem:[%s4563 + $0x8] sm:$0xf]
        %v4567 = vld [vmem:[%s4563 + $0xc] sm:$0xf]
        %v4572 = vunpack.c.l.b16 %v4564
        %v4573 = vunpack.c.l.b16 %v4565
        %v4574 = vunpack.c.l.b16 %v4566
        %v4575 = vunpack.c.l.b16 %v4567
        %v4576 = vpack.c.b16 %v4573, %v4572
        %v4577 = vpack.c.b16 %v4575, %v4574
        %v4581 = vsel %vm3181, %v4559, 0
        %v4584 = vsel %vm3181, %v4560, 0
        %v4587 = vsel %vm3181, %v4561, 0
        %v4590 = vsel %vm3181, %v4562, 0
        %4592 = vmatprep.subr.bf16.mxu0 0
        %4593 = vmatpush1.bf16.msra.mxu0 %v4576
        %4594 = vmatprep.subr.bf16.mxu0 0
        %4595 = vmatpush1.bf16.msra.mxu0 %v4577
        %4596 = vmatprep.subr.bf16.mxu0 0
        %4597 = vmatpush1.bf16.msra.mxu0 0
        %4598 = vmatprep.subr.bf16.mxu0 0
        %4599 = vmatpush1.bf16.msra.mxu0 0
        %4600 = vmatprep.subr.bf16.mxu0 0
        %4601 = vmatpush1.bf16.msra.mxu0 0
        %4602 = vmatprep.subr.bf16.mxu0 0
        %4603 = vmatpush1.bf16.msra.mxu0 0
        %4604 = vmatprep.subr.bf16.mxu0 0
        %4605 = vmatpush1.bf16.msra.mxu0 0
        %4606 = vmatprep.subr.bf16.mxu0 0
        %4607 = vmatpush1.bf16.msra.mxu0 0
        %4608 = vmatprep.subr.bf16.mxu0 0
        %4609 = vmatpush1.bf16.msra.mxu0 0
        %4610 = vmatprep.subr.bf16.mxu0 0
        %4611 = vmatpush1.bf16.msra.mxu0 0
        %4612 = vmatprep.subr.bf16.mxu0 0
        %4613 = vmatpush1.bf16.msra.mxu0 0
        %4614 = vmatprep.subr.bf16.mxu0 0
        %4615 = vmatpush1.bf16.msra.mxu0 0
        %4616 = vmatprep.subr.bf16.mxu0 0
        %4617 = vmatpush1.bf16.msra.mxu0 0
        %4618 = vmatprep.subr.bf16.mxu0 0
        %4619 = vmatpush1.bf16.msra.mxu0 0
        %4620 = vmatprep.subr.bf16.mxu0 0
        %4621 = vmatpush1.bf16.msra.mxu0 0
        %4622 = vmatprep.subr.bf16.mxu0 0
        %4623 = vmatpush1.bf16.msra.mxu0 0
        %4624 = vmatprep.mubr.bf16.mxu0 0
        %4625 = vmatmul.mubr.bf16.gmra.mrb[0].mxu0 %v4581
        %v4626 = vpop.f32.mrb[0].mxu0
        %v4627 = vadd.f32 0.0, %v4626
        %v4628 = vpop.f32.mrb[0].mxu0
        %v4629 = vpop.f32.mrb[0].mxu0
        %v4630 = vadd.f32 0.0, %v4629
        %v4631 = vpop.f32.mrb[0].mxu0
        %4632 = vmatprep.mubr.bf16.mxu0 0
        %4633 = vmatmul.mubr.bf16.gmra.mrb[0].mxu0 %v4584
        %v4634 = vpop.f32.mrb[0].mxu0
        %v4635 = vadd.f32 0.0, %v4634
        %v4636 = vpop.f32.mrb[0].mxu0
        %v4637 = vpop.f32.mrb[0].mxu0
        %v4638 = vadd.f32 0.0, %v4637
        %v4639 = vpop.f32.mrb[0].mxu0
        %4640 = vmatprep.mubr.bf16.mxu0 0
        %4641 = vmatmul.mubr.bf16.gmra.mrb[0].mxu0 %v4587
        %v4642 = vpop.f32.mrb[0].mxu0
        %v4643 = vadd.f32 0.0, %v4642
        %v4644 = vpop.f32.mrb[0].mxu0
        %v4645 = vpop.f32.mrb[0].mxu0
        %v4646 = vadd.f32 0.0, %v4645
        %v4647 = vpop.f32.mrb[0].mxu0
        %4648 = vmatprep.mubr.bf16.mxu0 0
        %4649 = vmatmul.mubr.bf16.gmra.mrb[0].mxu0 %v4590
        %v4650 = vpop.f32.mrb[0].mxu0
        %v4651 = vadd.f32 0.0, %v4650
        %v4652 = vpop.f32.mrb[0].mxu0
        %v4653 = vpop.f32.mrb[0].mxu0
        %v4654 = vadd.f32 0.0, %v4653
        %v4655 = vpop.f32.mrb[0].mxu0
        %4656 = vdwg.mxu0
        %v4657 = vadd.f32 %v4497, %v4627
        %v4658 = vadd.f32 %v4500, %v4630
        %v4659 = vadd.f32 %v4505, %v4635
        %v4660 = vadd.f32 %v4508, %v4638
        %v4661 = vadd.f32 %v4513, %v4643
        %v4662 = vadd.f32 %v4516, %v4646
        %v4663 = vadd.f32 %v4521, %v4651
        %v4664 = vadd.f32 %v4524, %v4654
        %v4665 = vpack.c.bf16 %v4268, %v4266
        %v4666 = vpack.c.bf16 %v4272, %v4270
        %v4667 = vpack.c.bf16 %v4276, %v4274
        %v4668 = vpack.c.bf16 %v4280, %v4278
        %s4669 = scalar_lea.vmem %s5, 48
        %v4670 = vld [vmem:[%s4669] sm:$0xf]
        %v4671 = vld [vmem:[%s4669 + $0x4] sm:$0xf]
        %v4672 = vld [vmem:[%s4669 + $0x8] sm:$0xf]
        %v4673 = vld [vmem:[%s4669 + $0xc] sm:$0xf]
        %v4678 = vunpack.c.l.b16 %v4670
        %v4679 = vunpack.c.l.b16 %v4671
        %v4680 = vunpack.c.l.b16 %v4672
        %v4681 = vunpack.c.l.b16 %v4673
        %v4682 = vpack.c.b16 %v4679, %v4678
        %v4683 = vpack.c.b16 %v4681, %v4680
        %v4687 = vsel %vm3181, %v4665, 0
        %v4690 = vsel %vm3181, %v4666, 0
        %v4693 = vsel %vm3181, %v4667, 0
        %v4696 = vsel %vm3181, %v4668, 0
        %4698 = vmatprep.subr.bf16.mxu0 0
        %4699 = vmatpush1.bf16.msra.mxu0 %v4682
        %4700 = vmatprep.subr.bf16.mxu0 0
        %4701 = vmatpush1.bf16.msra.mxu0 %v4683
        %4702 = vmatprep.subr.bf16.mxu0 0
        %4703 = vmatpush1.bf16.msra.mxu0 0
        %4704 = vmatprep.subr.bf16.mxu0 0
        %4705 = vmatpush1.bf16.msra.mxu0 0
        %4706 = vmatprep.subr.bf16.mxu0 0
        %4707 = vmatpush1.bf16.msra.mxu0 0
        %4708 = vmatprep.subr.bf16.mxu0 0
        %4709 = vmatpush1.bf16.msra.mxu0 0
        %4710 = vmatprep.subr.bf16.mxu0 0
        %4711 = vmatpush1.bf16.msra.mxu0 0
        %4712 = vmatprep.subr.bf16.mxu0 0
        %4713 = vmatpush1.bf16.msra.mxu0 0
        %4714 = vmatprep.subr.bf16.mxu0 0
        %4715 = vmatpush1.bf16.msra.mxu0 0
        %4716 = vmatprep.subr.bf16.mxu0 0
        %4717 = vmatpush1.bf16.msra.mxu0 0
        %4718 = vmatprep.subr.bf16.mxu0 0
        %4719 = vmatpush1.bf16.msra.mxu0 0
        %4720 = vmatprep.subr.bf16.mxu0 0
        %4721 = vmatpush1.bf16.msra.mxu0 0
        %4722 = vmatprep.subr.bf16.mxu0 0
        %4723 = vmatpush1.bf16.msra.mxu0 0
        %4724 = vmatprep.subr.bf16.mxu0 0
        %4725 = vmatpush1.bf16.msra.mxu0 0
        %4726 = vmatprep.subr.bf16.mxu0 0
        %4727 = vmatpush1.bf16.msra.mxu0 0
        %4728 = vmatprep.subr.bf16.mxu0 0
        %4729 = vmatpush1.bf16.msra.mxu0 0
        %4730 = vmatprep.mubr.bf16.mxu0 0
        %4731 = vmatmul.mubr.bf16.gmra.mrb[0].mxu0 %v4687
        %v4732 = vpop.f32.mrb[0].mxu0
        %v4733 = vadd.f32 0.0, %v4732
        %v4734 = vpop.f32.mrb[0].mxu0
        %v4735 = vpop.f32.mrb[0].mxu0
        %v4736 = vadd.f32 0.0, %v4735
        %v4737 = vpop.f32.mrb[0].mxu0
        %4738 = vmatprep.mubr.bf16.mxu0 0
        %4739 = vmatmul.mubr.bf16.gmra.mrb[0].mxu0 %v4690
        %v4740 = vpop.f32.mrb[0].mxu0
        %v4741 = vadd.f32 0.0, %v4740
        %v4742 = vpop.f32.mrb[0].mxu0
        %v4743 = vpop.f32.mrb[0].mxu0
        %v4744 = vadd.f32 0.0, %v4743
        %v4745 = vpop.f32.mrb[0].mxu0
        %4746 = vmatprep.mubr.bf16.mxu0 0
        %4747 = vmatmul.mubr.bf16.gmra.mrb[0].mxu0 %v4693
        %v4748 = vpop.f32.mrb[0].mxu0
        %v4749 = vadd.f32 0.0, %v4748
        %v4750 = vpop.f32.mrb[0].mxu0
        %v4751 = vpop.f32.mrb[0].mxu0
        %v4752 = vadd.f32 0.0, %v4751
        %v4753 = vpop.f32.mrb[0].mxu0
        %4754 = vmatprep.mubr.bf16.mxu0 0
        %4755 = vmatmul.mubr.bf16.gmra.mrb[0].mxu0 %v4696
        %v4756 = vpop.f32.mrb[0].mxu0
        %v4757 = vadd.f32 0.0, %v4756
        %v4758 = vpop.f32.mrb[0].mxu0
        %v4759 = vpop.f32.mrb[0].mxu0
        %v4760 = vadd.f32 0.0, %v4759
        %v4761 = vpop.f32.mrb[0].mxu0
        %4762 = vdwg.mxu0
        %v4763 = vadd.f32 %v4657, %v4733
        %v4764 = vadd.f32 %v4658, %v4736
        %v4765 = vadd.f32 %v4659, %v4741
        %v4766 = vadd.f32 %v4660, %v4744
        %v4767 = vadd.f32 %v4661, %v4749
        %v4768 = vadd.f32 %v4662, %v4752
        %v4769 = vadd.f32 %v4663, %v4757
        %v4770 = vadd.f32 %v4664, %v4760
        %v4773 = vrot.slane %v4280, 1
        %v4774 = vrot.slane %v4281, 1
        %v4775 = vsel %vm2283, %v4773, %v4774
        %v4777 = vpack.c.bf16 %v4316, %v4313
        %v4778 = vpack.c.bf16 %v4322, %v4319
        %v4779 = vpack.c.bf16 %v4328, %v4325
        %v4780 = vpack.c.bf16 %v4775, %v4331
        %s4781 = scalar_lea.vmem %s5, 64
        %v4782 = vld [vmem:[%s4781] sm:$0xf]
        %v4783 = vld [vmem:[%s4781 + $0x4] sm:$0xf]
        %v4784 = vld [vmem:[%s4781 + $0x8] sm:$0xf]
        %v4785 = vld [vmem:[%s4781 + $0xc] sm:$0xf]
        %v4790 = vunpack.c.l.b16 %v4782
        %v4791 = vunpack.c.l.b16 %v4783
        %v4792 = vunpack.c.l.b16 %v4784
        %v4793 = vunpack.c.l.b16 %v4785
        %v4794 = vpack.c.b16 %v4791, %v4790
        %v4795 = vpack.c.b16 %v4793, %v4792
        %v4799 = vsel %vm3181, %v4777, 0
        %v4802 = vsel %vm3181, %v4778, 0
        %v4805 = vsel %vm3181, %v4779, 0
        %v4808 = vsel %vm3181, %v4780, 0
        %4810 = vmatprep.subr.bf16.mxu0 0
        %4811 = vmatpush1.bf16.msra.mxu0 %v4794
        %4812 = vmatprep.subr.bf16.mxu0 0
        %4813 = vmatpush1.bf16.msra.mxu0 %v4795
        %4814 = vmatprep.subr.bf16.mxu0 0
        %4815 = vmatpush1.bf16.msra.mxu0 0
        %4816 = vmatprep.subr.bf16.mxu0 0
        %4817 = vmatpush1.bf16.msra.mxu0 0
        %4818 = vmatprep.subr.bf16.mxu0 0
        %4819 = vmatpush1.bf16.msra.mxu0 0
        %4820 = vmatprep.subr.bf16.mxu0 0
        %4821 = vmatpush1.bf16.msra.mxu0 0
        %4822 = vmatprep.subr.bf16.mxu0 0
        %4823 = vmatpush1.bf16.msra.mxu0 0
        %4824 = vmatprep.subr.bf16.mxu0 0
        %4825 = vmatpush1.bf16.msra.mxu0 0
        %4826 = vmatprep.subr.bf16.mxu0 0
        %4827 = vmatpush1.bf16.msra.mxu0 0
        %4828 = vmatprep.subr.bf16.mxu0 0
        %4829 = vmatpush1.bf16.msra.mxu0 0
        %4830 = vmatprep.subr.bf16.mxu0 0
        %4831 = vmatpush1.bf16.msra.mxu0 0
        %4832 = vmatprep.subr.bf16.mxu0 0
        %4833 = vmatpush1.bf16.msra.mxu0 0
        %4834 = vmatprep.subr.bf16.mxu0 0
        %4835 = vmatpush1.bf16.msra.mxu0 0
        %4836 = vmatprep.subr.bf16.mxu0 0
        %4837 = vmatpush1.bf16.msra.mxu0 0
        %4838 = vmatprep.subr.bf16.mxu0 0
        %4839 = vmatpush1.bf16.msra.mxu0 0
        %4840 = vmatprep.subr.bf16.mxu0 0
        %4841 = vmatpush1.bf16.msra.mxu0 0
        %4842 = vmatprep.mubr.bf16.mxu0 0
        %4843 = vmatmul.mubr.bf16.gmra.mrb[0].mxu0 %v4799
        %v4844 = vpop.f32.mrb[0].mxu0
        %v4845 = vadd.f32 0.0, %v4844
        %v4846 = vpop.f32.mrb[0].mxu0
        %v4847 = vpop.f32.mrb[0].mxu0
        %v4848 = vadd.f32 0.0, %v4847
        %v4849 = vpop.f32.mrb[0].mxu0
        %4850 = vmatprep.mubr.bf16.mxu0 0
        %4851 = vmatmul.mubr.bf16.gmra.mrb[0].mxu0 %v4802
        %v4852 = vpop.f32.mrb[0].mxu0
        %v4853 = vadd.f32 0.0, %v4852
        %v4854 = vpop.f32.mrb[0].mxu0
        %v4855 = vpop.f32.mrb[0].mxu0
        %v4856 = vadd.f32 0.0, %v4855
        %v4857 = vpop.f32.mrb[0].mxu0
        %4858 = vmatprep.mubr.bf16.mxu0 0
        %4859 = vmatmul.mubr.bf16.gmra.mrb[0].mxu0 %v4805
        %v4860 = vpop.f32.mrb[0].mxu0
        %v4861 = vadd.f32 0.0, %v4860
        %v4862 = vpop.f32.mrb[0].mxu0
        %v4863 = vpop.f32.mrb[0].mxu0
        %v4864 = vadd.f32 0.0, %v4863
        %v4865 = vpop.f32.mrb[0].mxu0
        %4866 = vmatprep.mubr.bf16.mxu0 0
        %4867 = vmatmul.mubr.bf16.gmra.mrb[0].mxu0 %v4808
        %v4868 = vpop.f32.mrb[0].mxu0
        %v4869 = vadd.f32 0.0, %v4868
        %v4870 = vpop.f32.mrb[0].mxu0
        %v4871 = vpop.f32.mrb[0].mxu0
        %v4872 = vadd.f32 0.0, %v4871
        %v4873 = vpop.f32.mrb[0].mxu0
        %4874 = vdwg.mxu0
        %v4875 = vadd.f32 %v4763, %v4845
        %v4876 = vadd.f32 %v4764, %v4848
        %v4877 = vadd.f32 %v4765, %v4853
        %v4878 = vadd.f32 %v4766, %v4856
        %v4879 = vadd.f32 %v4767, %v4861
        %v4880 = vadd.f32 %v4768, %v4864
        %v4881 = vadd.f32 %v4769, %v4869
        %v4882 = vadd.f32 %v4770, %v4872
        %v4883 = vrot.slane %v4280, 2
        %v4884 = vrot.slane %v4281, 2
        %v4885 = vsel %vm2483, %v4883, %v4884
        %v4887 = vpack.c.bf16 %v4535, %v4532
        %v4888 = vpack.c.bf16 %v4541, %v4538
        %v4889 = vpack.c.bf16 %v4547, %v4544
        %v4890 = vpack.c.bf16 %v4885, %v4550
        %s4891 = scalar_lea.vmem %s5, 80
        %v4892 = vld [vmem:[%s4891] sm:$0xf]
        %v4893 = vld [vmem:[%s4891 + $0x4] sm:$0xf]
        %v4894 = vld [vmem:[%s4891 + $0x8] sm:$0xf]
        %v4895 = vld [vmem:[%s4891 + $0xc] sm:$0xf]
        %v4900 = vunpack.c.l.b16 %v4892
        %v4901 = vunpack.c.l.b16 %v4893
        %v4902 = vunpack.c.l.b16 %v4894
        %v4903 = vunpack.c.l.b16 %v4895
        %v4904 = vpack.c.b16 %v4901, %v4900
        %v4905 = vpack.c.b16 %v4903, %v4902
        %v4909 = vsel %vm3181, %v4887, 0
        %v4912 = vsel %vm3181, %v4888, 0
        %v4915 = vsel %vm3181, %v4889, 0
        %v4918 = vsel %vm3181, %v4890, 0
        %4920 = vmatprep.subr.bf16.mxu0 0
        %4921 = vmatpush1.bf16.msra.mxu0 %v4904
        %4922 = vmatprep.subr.bf16.mxu0 0
        %4923 = vmatpush1.bf16.msra.mxu0 %v4905
        %4924 = vmatprep.subr.bf16.mxu0 0
        %4925 = vmatpush1.bf16.msra.mxu0 0
        %4926 = vmatprep.subr.bf16.mxu0 0
        %4927 = vmatpush1.bf16.msra.mxu0 0
        %4928 = vmatprep.subr.bf16.mxu0 0
        %4929 = vmatpush1.bf16.msra.mxu0 0
        %4930 = vmatprep.subr.bf16.mxu0 0
        %4931 = vmatpush1.bf16.msra.mxu0 0
        %4932 = vmatprep.subr.bf16.mxu0 0
        %4933 = vmatpush1.bf16.msra.mxu0 0
        %4934 = vmatprep.subr.bf16.mxu0 0
        %4935 = vmatpush1.bf16.msra.mxu0 0
        %4936 = vmatprep.subr.bf16.mxu0 0
        %4937 = vmatpush1.bf16.msra.mxu0 0
        %4938 = vmatprep.subr.bf16.mxu0 0
        %4939 = vmatpush1.bf16.msra.mxu0 0
        %4940 = vmatprep.subr.bf16.mxu0 0
        %4941 = vmatpush1.bf16.msra.mxu0 0
        %4942 = vmatprep.subr.bf16.mxu0 0
        %4943 = vmatpush1.bf16.msra.mxu0 0
        %4944 = vmatprep.subr.bf16.mxu0 0
        %4945 = vmatpush1.bf16.msra.mxu0 0
        %4946 = vmatprep.subr.bf16.mxu0 0
        %4947 = vmatpush1.bf16.msra.mxu0 0
        %4948 = vmatprep.subr.bf16.mxu0 0
        %4949 = vmatpush1.bf16.msra.mxu0 0
        %4950 = vmatprep.subr.bf16.mxu0 0
        %4951 = vmatpush1.bf16.msra.mxu0 0
        %4952 = vmatprep.mubr.bf16.mxu0 0
        %4953 = vmatmul.mubr.bf16.gmra.mrb[0].mxu0 %v4909
        %v4954 = vpop.f32.mrb[0].mxu0
        %v4955 = vadd.f32 0.0, %v4954
        %v4956 = vpop.f32.mrb[0].mxu0
        %v4957 = vpop.f32.mrb[0].mxu0
        %v4958 = vadd.f32 0.0, %v4957
        %v4959 = vpop.f32.mrb[0].mxu0
        %4960 = vmatprep.mubr.bf16.mxu0 0
        %4961 = vmatmul.mubr.bf16.gmra.mrb[0].mxu0 %v4912
        %v4962 = vpop.f32.mrb[0].mxu0
        %v4963 = vadd.f32 0.0, %v4962
        %v4964 = vpop.f32.mrb[0].mxu0
        %v4965 = vpop.f32.mrb[0].mxu0
        %v4966 = vadd.f32 0.0, %v4965
        %v4967 = vpop.f32.mrb[0].mxu0
        %4968 = vmatprep.mubr.bf16.mxu0 0
        %4969 = vmatmul.mubr.bf16.gmra.mrb[0].mxu0 %v4915
        %v4970 = vpop.f32.mrb[0].mxu0
        %v4971 = vadd.f32 0.0, %v4970
        %v4972 = vpop.f32.mrb[0].mxu0
        %v4973 = vpop.f32.mrb[0].mxu0
        %v4974 = vadd.f32 0.0, %v4973
        %v4975 = vpop.f32.mrb[0].mxu0
        %4976 = vmatprep.mubr.bf16.mxu0 0
        %4977 = vmatmul.mubr.bf16.gmra.mrb[0].mxu0 %v4918
        %v4978 = vpop.f32.mrb[0].mxu0
        %v4979 = vadd.f32 0.0, %v4978
        %v4980 = vpop.f32.mrb[0].mxu0
        %v4981 = vpop.f32.mrb[0].mxu0
        %v4982 = vadd.f32 0.0, %v4981
        %v4983 = vpop.f32.mrb[0].mxu0
        %4984 = vdwg.mxu0
        %v4985 = vadd.f32 %v4875, %v4955
        %v4986 = vadd.f32 %v4876, %v4958
        %v4987 = vadd.f32 %v4877, %v4963
        %v4988 = vadd.f32 %v4878, %v4966
        %v4989 = vadd.f32 %v4879, %v4971
        %v4990 = vadd.f32 %v4880, %v4974
        %v4991 = vadd.f32 %v4881, %v4979
        %v4992 = vadd.f32 %v4882, %v4982
        %v4993 = vpack.c.bf16 %v4282, %v4280
        %s4994 = scalar_lea.vmem %s5, 96
        %v4995 = vld [vmem:[%s4994] sm:$0xf]
        %v4996 = vld [vmem:[%s4994 + $0x4] sm:$0xf]
        %v4997 = vld [vmem:[%s4994 + $0x8] sm:$0xf]
        %v4998 = vld [vmem:[%s4994 + $0xc] sm:$0xf]
        %v5003 = vunpack.c.l.b16 %v4995
        %v5004 = vunpack.c.l.b16 %v4996
        %v5005 = vunpack.c.l.b16 %v4997
        %v5006 = vunpack.c.l.b16 %v4998
        %v5007 = vpack.c.b16 %v5004, %v5003
        %v5008 = vpack.c.b16 %v5006, %v5005
        %v5012 = vsel %vm3181, %v4993, 0
        %5014 = vmatprep.subr.bf16.mxu0 0
        %5015 = vmatpush1.bf16.msra.mxu0 %v5007
        %5016 = vmatprep.subr.bf16.mxu0 0
        %5017 = vmatpush1.bf16.msra.mxu0 %v5008
        %5018 = vmatprep.subr.bf16.mxu0 0
        %5019 = vmatpush1.bf16.msra.mxu0 0
        %5020 = vmatprep.subr.bf16.mxu0 0
        %5021 = vmatpush1.bf16.msra.mxu0 0
        %5022 = vmatprep.subr.bf16.mxu0 0
        %5023 = vmatpush1.bf16.msra.mxu0 0
        %5024 = vmatprep.subr.bf16.mxu0 0
        %5025 = vmatpush1.bf16.msra.mxu0 0
        %5026 = vmatprep.subr.bf16.mxu0 0
        %5027 = vmatpush1.bf16.msra.mxu0 0
        %5028 = vmatprep.subr.bf16.mxu0 0
        %5029 = vmatpush1.bf16.msra.mxu0 0
        %5030 = vmatprep.subr.bf16.mxu0 0
        %5031 = vmatpush1.bf16.msra.mxu0 0
        %5032 = vmatprep.subr.bf16.mxu0 0
        %5033 = vmatpush1.bf16.msra.mxu0 0
        %5034 = vmatprep.subr.bf16.mxu0 0
        %5035 = vmatpush1.bf16.msra.mxu0 0
        %5036 = vmatprep.subr.bf16.mxu0 0
        %5037 = vmatpush1.bf16.msra.mxu0 0
        %5038 = vmatprep.subr.bf16.mxu0 0
        %5039 = vmatpush1.bf16.msra.mxu0 0
        %5040 = vmatprep.subr.bf16.mxu0 0
        %5041 = vmatpush1.bf16.msra.mxu0 0
        %5042 = vmatprep.subr.bf16.mxu0 0
        %5043 = vmatpush1.bf16.msra.mxu0 0
        %5044 = vmatprep.subr.bf16.mxu0 0
        %5045 = vmatpush1.bf16.msra.mxu0 0
        %5046 = vmatprep.mubr.bf16.mxu0 0
        %5047 = vmatmul.mubr.bf16.gmra.mrb[0].mxu0 %v4454
        %v5048 = vpop.f32.mrb[0].mxu0
        %v5049 = vadd.f32 0.0, %v5048
        %v5050 = vpop.f32.mrb[0].mxu0
        %v5051 = vpop.f32.mrb[0].mxu0
        %v5052 = vadd.f32 0.0, %v5051
        %v5053 = vpop.f32.mrb[0].mxu0
        %5054 = vmatprep.mubr.bf16.mxu0 0
        %5055 = vmatmul.mubr.bf16.gmra.mrb[0].mxu0 %v4457
        %v5056 = vpop.f32.mrb[0].mxu0
        %v5057 = vadd.f32 0.0, %v5056
        %v5058 = vpop.f32.mrb[0].mxu0
        %v5059 = vpop.f32.mrb[0].mxu0
        %v5060 = vadd.f32 0.0, %v5059
        %v5061 = vpop.f32.mrb[0].mxu0
        %5062 = vmatprep.mubr.bf16.mxu0 0
        %5063 = vmatmul.mubr.bf16.gmra.mrb[0].mxu0 %v4460
        %v5064 = vpop.f32.mrb[0].mxu0
        %v5065 = vadd.f32 0.0, %v5064
        %v5066 = vpop.f32.mrb[0].mxu0
        %v5067 = vpop.f32.mrb[0].mxu0
        %v5068 = vadd.f32 0.0, %v5067
        %v5069 = vpop.f32.mrb[0].mxu0
        %5070 = vmatprep.mubr.bf16.mxu0 0
        %5071 = vmatmul.mubr.bf16.gmra.mrb[0].mxu0 %v5012
        %v5072 = vpop.f32.mrb[0].mxu0
        %v5073 = vadd.f32 0.0, %v5072
        %v5074 = vpop.f32.mrb[0].mxu0
        %v5075 = vpop.f32.mrb[0].mxu0
        %v5076 = vadd.f32 0.0, %v5075
        %v5077 = vpop.f32.mrb[0].mxu0
        %5078 = vdwg.mxu0
        %v5079 = vadd.f32 %v4985, %v5049
        %v5080 = vadd.f32 %v4986, %v5052
        %v5081 = vadd.f32 %v4987, %v5057
        %v5082 = vadd.f32 %v4988, %v5060
        %v5083 = vadd.f32 %v4989, %v5065
        %v5084 = vadd.f32 %v4990, %v5068
        %v5085 = vadd.f32 %v4991, %v5073
        %v5086 = vadd.f32 %v4992, %v5076
        %v5089 = vrot.slane %v4282, 1
        %v5090 = vrot.slane %v4283, 1
        %v5091 = vsel %vm2283, %v5089, %v5090
        %v5093 = vpack.c.bf16 %v5091, %v4775
        %s5094 = scalar_lea.vmem %s5, 112
        %v5095 = vld [vmem:[%s5094] sm:$0xf]
        %v5096 = vld [vmem:[%s5094 + $0x4] sm:$0xf]
        %v5097 = vld [vmem:[%s5094 + $0x8] sm:$0xf]
        %v5098 = vld [vmem:[%s5094 + $0xc] sm:$0xf]
        %v5103 = vunpack.c.l.b16 %v5095
        %v5104 = vunpack.c.l.b16 %v5096
        %v5105 = vunpack.c.l.b16 %v5097
        %v5106 = vunpack.c.l.b16 %v5098
        %v5107 = vpack.c.b16 %v5104, %v5103
        %v5108 = vpack.c.b16 %v5106, %v5105
        %v5112 = vsel %vm3181, %v5093, 0
        %5114 = vmatprep.subr.bf16.mxu0 0
        %5115 = vmatpush1.bf16.msra.mxu0 %v5107
        %5116 = vmatprep.subr.bf16.mxu0 0
        %5117 = vmatpush1.bf16.msra.mxu0 %v5108
        %5118 = vmatprep.subr.bf16.mxu0 0
        %5119 = vmatpush1.bf16.msra.mxu0 0
        %5120 = vmatprep.subr.bf16.mxu0 0
        %5121 = vmatpush1.bf16.msra.mxu0 0
        %5122 = vmatprep.subr.bf16.mxu0 0
        %5123 = vmatpush1.bf16.msra.mxu0 0
        %5124 = vmatprep.subr.bf16.mxu0 0
        %5125 = vmatpush1.bf16.msra.mxu0 0
        %5126 = vmatprep.subr.bf16.mxu0 0
        %5127 = vmatpush1.bf16.msra.mxu0 0
        %5128 = vmatprep.subr.bf16.mxu0 0
        %5129 = vmatpush1.bf16.msra.mxu0 0
        %5130 = vmatprep.subr.bf16.mxu0 0
        %5131 = vmatpush1.bf16.msra.mxu0 0
        %5132 = vmatprep.subr.bf16.mxu0 0
        %5133 = vmatpush1.bf16.msra.mxu0 0
        %5134 = vmatprep.subr.bf16.mxu0 0
        %5135 = vmatpush1.bf16.msra.mxu0 0
        %5136 = vmatprep.subr.bf16.mxu0 0
        %5137 = vmatpush1.bf16.msra.mxu0 0
        %5138 = vmatprep.subr.bf16.mxu0 0
        %5139 = vmatpush1.bf16.msra.mxu0 0
        %5140 = vmatprep.subr.bf16.mxu0 0
        %5141 = vmatpush1.bf16.msra.mxu0 0
        %5142 = vmatprep.subr.bf16.mxu0 0
        %5143 = vmatpush1.bf16.msra.mxu0 0
        %5144 = vmatprep.subr.bf16.mxu0 0
        %5145 = vmatpush1.bf16.msra.mxu0 0
        %5146 = vmatprep.mubr.bf16.mxu0 0
        %5147 = vmatmul.mubr.bf16.gmra.mrb[0].mxu0 %v4365
        %v5148 = vpop.f32.mrb[0].mxu0
        %v5149 = vadd.f32 0.0, %v5148
        %v5150 = vpop.f32.mrb[0].mxu0
        %v5151 = vpop.f32.mrb[0].mxu0
        %v5152 = vadd.f32 0.0, %v5151
        %v5153 = vpop.f32.mrb[0].mxu0
        %5154 = vmatprep.mubr.bf16.mxu0 0
        %5155 = vmatmul.mubr.bf16.gmra.mrb[0].mxu0 %v4368
        %v5156 = vpop.f32.mrb[0].mxu0
        %v5157 = vadd.f32 0.0, %v5156
        %v5158 = vpop.f32.mrb[0].mxu0
        %v5159 = vpop.f32.mrb[0].mxu0
        %v5160 = vadd.f32 0.0, %v5159
        %v5161 = vpop.f32.mrb[0].mxu0
        %5162 = vmatprep.mubr.bf16.mxu0 0
        %5163 = vmatmul.mubr.bf16.gmra.mrb[0].mxu0 %v4371
        %v5164 = vpop.f32.mrb[0].mxu0
        %v5165 = vadd.f32 0.0, %v5164
        %v5166 = vpop.f32.mrb[0].mxu0
        %v5167 = vpop.f32.mrb[0].mxu0
        %v5168 = vadd.f32 0.0, %v5167
        %v5169 = vpop.f32.mrb[0].mxu0
        %5170 = vmatprep.mubr.bf16.mxu0 0
        %5171 = vmatmul.mubr.bf16.gmra.mrb[0].mxu0 %v5112
        %v5172 = vpop.f32.mrb[0].mxu0
        %v5173 = vadd.f32 0.0, %v5172
        %v5174 = vpop.f32.mrb[0].mxu0
        %v5175 = vpop.f32.mrb[0].mxu0
        %v5176 = vadd.f32 0.0, %v5175
        %v5177 = vpop.f32.mrb[0].mxu0
        %5178 = vdwg.mxu0
        %v5179 = vadd.f32 %v5079, %v5149
        %v5180 = vadd.f32 %v5080, %v5152
        %v5181 = vadd.f32 %v5081, %v5157
        %v5182 = vadd.f32 %v5082, %v5160
        %v5183 = vadd.f32 %v5083, %v5165
        %v5184 = vadd.f32 %v5084, %v5168
        %v5185 = vadd.f32 %v5085, %v5173
        %v5186 = vadd.f32 %v5086, %v5176
        %v5187 = vrot.slane %v4282, 2
        %v5188 = vrot.slane %v4283, 2
        %v5189 = vsel %vm2483, %v5187, %v5188
        %v5191 = vpack.c.bf16 %v5189, %v4885
        %s5192 = scalar_lea.vmem %s5, 128
        %v5193 = vld [vmem:[%s5192] sm:$0xf]
        %v5194 = vld [vmem:[%s5192 + $0x4] sm:$0xf]
        %v5195 = vld [vmem:[%s5192 + $0x8] sm:$0xf]
        %v5196 = vld [vmem:[%s5192 + $0xc] sm:$0xf]
        %v5201 = vunpack.c.l.b16 %v5193
        %v5202 = vunpack.c.l.b16 %v5194
        %v5203 = vunpack.c.l.b16 %v5195
        %v5204 = vunpack.c.l.b16 %v5196
        %v5205 = vpack.c.b16 %v5202, %v5201
        %v5206 = vpack.c.b16 %v5204, %v5203
        %v5210 = vsel %vm3181, %v5191, 0
        %5212 = vmatprep.subr.bf16.mxu0 0
        %5213 = vmatpush1.bf16.msra.mxu0 %v5205
        %5214 = vmatprep.subr.bf16.mxu0 0
        %5215 = vmatpush1.bf16.msra.mxu0 %v5206
        %5216 = vmatprep.subr.bf16.mxu0 0
        %5217 = vmatpush1.bf16.msra.mxu0 0
        %5218 = vmatprep.subr.bf16.mxu0 0
        %5219 = vmatpush1.bf16.msra.mxu0 0
        %5220 = vmatprep.subr.bf16.mxu0 0
        %5221 = vmatpush1.bf16.msra.mxu0 0
        %5222 = vmatprep.subr.bf16.mxu0 0
        %5223 = vmatpush1.bf16.msra.mxu0 0
        %5224 = vmatprep.subr.bf16.mxu0 0
        %5225 = vmatpush1.bf16.msra.mxu0 0
        %5226 = vmatprep.subr.bf16.mxu0 0
        %5227 = vmatpush1.bf16.msra.mxu0 0
        %5228 = vmatprep.subr.bf16.mxu0 0
        %5229 = vmatpush1.bf16.msra.mxu0 0
        %5230 = vmatprep.subr.bf16.mxu0 0
        %5231 = vmatpush1.bf16.msra.mxu0 0
        %5232 = vmatprep.subr.bf16.mxu0 0
        %5233 = vmatpush1.bf16.msra.mxu0 0
        %5234 = vmatprep.subr.bf16.mxu0 0
        %5235 = vmatpush1.bf16.msra.mxu0 0
        %5236 = vmatprep.subr.bf16.mxu0 0
        %5237 = vmatpush1.bf16.msra.mxu0 0
        %5238 = vmatprep.subr.bf16.mxu0 0
        %5239 = vmatpush1.bf16.msra.mxu0 0
        %5240 = vmatprep.subr.bf16.mxu0 0
        %5241 = vmatpush1.bf16.msra.mxu0 0
        %5242 = vmatprep.subr.bf16.mxu0 0
        %5243 = vmatpush1.bf16.msra.mxu0 0
        %5244 = vmatprep.mubr.bf16.mxu0 0
        %5245 = vmatmul.mubr.bf16.gmra.mrb[0].mxu0 %v4584
        %v5246 = vpop.f32.mrb[0].mxu0
        %v5247 = vadd.f32 0.0, %v5246
        %v5248 = vpop.f32.mrb[0].mxu0
        %v5249 = vpop.f32.mrb[0].mxu0
        %v5250 = vadd.f32 0.0, %v5249
        %v5251 = vpop.f32.mrb[0].mxu0
        %5252 = vmatprep.mubr.bf16.mxu0 0
        %5253 = vmatmul.mubr.bf16.gmra.mrb[0].mxu0 %v4587
        %v5254 = vpop.f32.mrb[0].mxu0
        %v5255 = vadd.f32 0.0, %v5254
        %v5256 = vpop.f32.mrb[0].mxu0
        %v5257 = vpop.f32.mrb[0].mxu0
        %v5258 = vadd.f32 0.0, %v5257
        %v5259 = vpop.f32.mrb[0].mxu0
        %5260 = vmatprep.mubr.bf16.mxu0 0
        %5261 = vmatmul.mubr.bf16.gmra.mrb[0].mxu0 %v4590
        %v5262 = vpop.f32.mrb[0].mxu0
        %v5263 = vadd.f32 0.0, %v5262
        %v5264 = vpop.f32.mrb[0].mxu0
        %v5265 = vpop.f32.mrb[0].mxu0
        %v5266 = vadd.f32 0.0, %v5265
        %v5267 = vpop.f32.mrb[0].mxu0
        %5268 = vmatprep.mubr.bf16.mxu0 0
        %5269 = vmatmul.mubr.bf16.gmra.mrb[0].mxu0 %v5210
        %v5270 = vpop.f32.mrb[0].mxu0
        %v5271 = vadd.f32 0.0, %v5270
        %v5272 = vpop.f32.mrb[0].mxu0
        %v5273 = vpop.f32.mrb[0].mxu0
        %v5274 = vadd.f32 0.0, %v5273
        %v5275 = vpop.f32.mrb[0].mxu0
        %5276 = vdwg.mxu0
        %v5277 = vadd.f32 %v5179, %v5247
        %v5278 = vadd.f32 %v5180, %v5250
        %v5279 = vadd.f32 %v5181, %v5255
        %v5280 = vadd.f32 %v5182, %v5258
        %v5281 = vadd.f32 %v5183, %v5263
        %v5282 = vadd.f32 %v5184, %v5266
        %v5283 = vadd.f32 %v5185, %v5271
        %v5284 = vadd.f32 %v5186, %v5274
        %v5285 = vld [vmem:[%s6] sm:$0x1]
        %v5287 = vlaneseq
        %v5288 = vshrl.u32 %v5287, 7
        %v5289 = vsub.s32 0, %v5288
        %v5290 = vrot.slane %v5285, %v5289
        %v5292 = vadd.f32 %v5277, %v5290
        %v5293 = vadd.f32 %v5278, %v5290
        %v5294 = vadd.f32 %v5279, %v5290
        %v5295 = vadd.f32 %v5280, %v5290
        %v5296 = vadd.f32 %v5281, %v5290
        %v5297 = vadd.f32 %v5282, %v5290
        %v5298 = vadd.f32 %v5283, %v5290
        %v5299 = vadd.f32 %v5284, %v5290
        %v5300 = vsel %vm3181, %v5292, -inf
        %5301 = vmax.xlane.f32.xlu0 %v5300
        %v5302 = vpop.xlane.xlu0 %5301
        %v5303 = vsel %vm3181, %v5293, -inf
        %5304 = vmax.xlane.f32.xlu0 %v5303
        %v5305 = vpop.xlane.xlu0 %5304
        %v5306 = vsel %vm3181, %v5294, -inf
        %5307 = vmax.xlane.f32.xlu0 %v5306
        %v5308 = vpop.xlane.xlu0 %5307
        %v5309 = vsel %vm3181, %v5295, -inf
        %5310 = vmax.xlane.f32.xlu0 %v5309
        %v5311 = vpop.xlane.xlu0 %5310
        %v5312 = vsel %vm3181, %v5296, -inf
        %5313 = vmax.xlane.f32.xlu0 %v5312
        %v5314 = vpop.xlane.xlu0 %5313
        %v5315 = vsel %vm3181, %v5297, -inf
        %5316 = vmax.xlane.f32.xlu0 %v5315
        %v5317 = vpop.xlane.xlu0 %5316
        %v5318 = vsel %vm3181, %v5298, -inf
        %5319 = vmax.xlane.f32.xlu0 %v5318
        %v5320 = vpop.xlane.xlu0 %5319
        %v5321 = vsel %vm3181, %v5299, -inf
        %5322 = vmax.xlane.f32.xlu0 %v5321
        %v5323 = vpop.xlane.xlu0 %5322
        %v5324 = vsel %vm3181, %v5292, 0.0
        %5325 = vadd.xlane.f32.xlu0 %v5324
        %v5326 = vpop.xlane.xlu0 %5325
        %v5327 = vsel %vm3181, %v5293, 0.0
        %5328 = vadd.xlane.f32.xlu0 %v5327
        %v5329 = vpop.xlane.xlu0 %5328
        %v5330 = vsel %vm3181, %v5294, 0.0
        %5331 = vadd.xlane.f32.xlu0 %v5330
        %v5332 = vpop.xlane.xlu0 %5331
        %v5333 = vsel %vm3181, %v5295, 0.0
        %5334 = vadd.xlane.f32.xlu0 %v5333
        %v5335 = vpop.xlane.xlu0 %5334
        %v5336 = vsel %vm3181, %v5296, 0.0
        %5337 = vadd.xlane.f32.xlu0 %v5336
        %v5338 = vpop.xlane.xlu0 %5337
        %v5339 = vsel %vm3181, %v5297, 0.0
        %5340 = vadd.xlane.f32.xlu0 %v5339
        %v5341 = vpop.xlane.xlu0 %5340
        %v5342 = vsel %vm3181, %v5298, 0.0
        %5343 = vadd.xlane.f32.xlu0 %v5342
        %v5344 = vpop.xlane.xlu0 %5343
        %v5345 = vsel %vm3181, %v5299, 0.0
        %5346 = vadd.xlane.f32.xlu0 %v5345
        %v5347 = vpop.xlane.xlu0 %5346
        %v5348 = vrcp.pop 32.0
        %v5349 = vmul.f32 %v5326, %v5348
        %v5350 = vmul.f32 %v5329, %v5348
        %v5351 = vmul.f32 %v5332, %v5348
        %v5352 = vmul.f32 %v5335, %v5348
        %v5353 = vmul.f32 %v5338, %v5348
        %v5354 = vmul.f32 %v5341, %v5348
        %v5355 = vmul.f32 %v5344, %v5348
        %v5356 = vmul.f32 %v5347, %v5348
        %vm5357 = vcmask 7168
        %5358 = vst.msk [vmem:[#allocation4] sm:$0xff] %vm5357, 0.0
        %vm5359 = vcmask 1024
        %5360 = vst.msk [vmem:[#allocation4 + $0x8] sm:$0x3] %vm5359, 0.0
        %5361 = vst.msk [vmem:[#allocation4 + $0x10] sm:$0xff] %vm5357, 0.0
        %5362 = vst.msk [vmem:[#allocation4 + $0x18] sm:$0x3] %vm5359, 0.0
        %5363 = vst.msk [vmem:[#allocation4 + $0x20] sm:$0xff] %vm5357, 0.0
        %5364 = vst.msk [vmem:[#allocation4 + $0x28] sm:$0x3] %vm5359, 0.0
        %5365 = vst.msk [vmem:[#allocation4 + $0x30] sm:$0xff] %vm5357, 0.0
        %5366 = vst.msk [vmem:[#allocation4 + $0x38] sm:$0x3] %vm5359, 0.0
        %5367 = vst.msk [vmem:[#allocation4 + $0x40] sm:$0xff] %vm5357, 0.0
        %5368 = vst.msk [vmem:[#allocation4 + $0x48] sm:$0x3] %vm5359, 0.0
        %5369 = vst.msk [vmem:[#allocation4 + $0x50] sm:$0xff] %vm5357, 0.0
        %5370 = vst.msk [vmem:[#allocation4 + $0x58] sm:$0x3] %vm5359, 0.0
        %5371 = vst.msk [vmem:[#allocation4 + $0x60] sm:$0xff] %vm5357, 0.0
        %5372 = vst.msk [vmem:[#allocation4 + $0x68] sm:$0x3] %vm5359, 0.0
        %5373 = vst.msk [vmem:[#allocation4 + $0x70] sm:$0xff] %vm5357, 0.0
        %5374 = vst.msk [vmem:[#allocation4 + $0x78] sm:$0x3] %vm5359, 0.0
        %5375 = vst.msk [vmem:[#allocation4 + $0x80] sm:$0xff] %vm5357, 0.0
        %5376 = vst.msk [vmem:[#allocation4 + $0x88] sm:$0x3] %vm5359, 0.0
        %5377 = vst.msk [vmem:[#allocation4 + $0x90] sm:$0xff] %vm5357, 0.0
        %5378 = vst.msk [vmem:[#allocation4 + $0x98] sm:$0x3] %vm5359, 0.0
        %5379 = vst.msk [vmem:[#allocation5] sm:$0xff] %vm5357, 0.0
        %5380 = vst.msk [vmem:[#allocation5 + $0x8] sm:$0x3] %vm5359, 0.0
        %5381 = vst.msk [vmem:[#allocation5 + $0x10] sm:$0xff] %vm5357, 0.0
        %5382 = vst.msk [vmem:[#allocation5 + $0x18] sm:$0x3] %vm5359, 0.0
        %5383 = vst.msk [vmem:[#allocation5 + $0x20] sm:$0xff] %vm5357, 0.0
        %5384 = vst.msk [vmem:[#allocation5 + $0x28] sm:$0x3] %vm5359, 0.0
        %5385 = vst.msk [vmem:[#allocation5 + $0x30] sm:$0xff] %vm5357, 0.0
        %5386 = vst.msk [vmem:[#allocation5 + $0x38] sm:$0x3] %vm5359, 0.0
        %5387 = vst.msk [vmem:[#allocation5 + $0x40] sm:$0xff] %vm5357, 0.0
        %5388 = vst.msk [vmem:[#allocation5 + $0x48] sm:$0x3] %vm5359, 0.0
        %5389 = vst.msk [vmem:[#allocation5 + $0x50] sm:$0xff] %vm5357, 0.0
        %5390 = vst.msk [vmem:[#allocation5 + $0x58] sm:$0x3] %vm5359, 0.0
        %5391 = vst.msk [vmem:[#allocation5 + $0x60] sm:$0xff] %vm5357, 0.0
        %5392 = vst.msk [vmem:[#allocation5 + $0x68] sm:$0x3] %vm5359, 0.0
        %5393 = vst.msk [vmem:[#allocation5 + $0x70] sm:$0xff] %vm5357, 0.0
        %5394 = vst.msk [vmem:[#allocation5 + $0x78] sm:$0x3] %vm5359, 0.0
        %5395 = vst.msk [vmem:[#allocation5 + $0x80] sm:$0xff] %vm5357, 0.0
        %5396 = vst.msk [vmem:[#allocation5 + $0x88] sm:$0x3] %vm5359, 0.0
        %5397 = vst.msk [vmem:[#allocation5 + $0x90] sm:$0xff] %vm5357, 0.0
        %5398 = vst.msk [vmem:[#allocation5 + $0x98] sm:$0x3] %vm5359, 0.0
        %s5399 = scalar_lea.vmem [#allocation4], 16
        %5400 = vst.msk [vmem:[%s5399 + $0x1] sm:$0xff] %vm5357, %v5302
        %5401 = vst.msk [vmem:[%s5399 + $0x11] sm:$0xff] %vm5357, %v5305
        %5402 = vst.msk [vmem:[%s5399 + $0x21] sm:$0xff] %vm5357, %v5308
        %5403 = vst.msk [vmem:[%s5399 + $0x31] sm:$0xff] %vm5357, %v5311
        %5404 = vst.msk [vmem:[%s5399 + $0x41] sm:$0xff] %vm5357, %v5314
        %5405 = vst.msk [vmem:[%s5399 + $0x51] sm:$0xff] %vm5357, %v5317
        %5406 = vst.msk [vmem:[%s5399 + $0x61] sm:$0xff] %vm5357, %v5320
        %5407 = vst.msk [vmem:[%s5399 + $0x71] sm:$0xff] %vm5357, %v5323
        %s5408 = scalar_lea.vmem [#allocation5], 16
        %5409 = vst.msk [vmem:[%s5408 + $0x1] sm:$0xff] %vm5357, %v5349
        %5410 = vst.msk [vmem:[%s5408 + $0x11] sm:$0xff] %vm5357, %v5350
        %5411 = vst.msk [vmem:[%s5408 + $0x21] sm:$0xff] %vm5357, %v5351
        %5412 = vst.msk [vmem:[%s5408 + $0x31] sm:$0xff] %vm5357, %v5352
        %5413 = vst.msk [vmem:[%s5408 + $0x41] sm:$0xff] %vm5357, %v5353
        %5414 = vst.msk [vmem:[%s5408 + $0x51] sm:$0xff] %vm5357, %v5354
        %5415 = vst.msk [vmem:[%s5408 + $0x61] sm:$0xff] %vm5357, %v5355
        %5416 = vst.msk [vmem:[%s5408 + $0x71] sm:$0xff] %vm5357, %v5356
        %v5417 = vld [vmem:[#allocation4] sm:$0xff]
        %v5418 = vld [vmem:[#allocation4 + $0x8] sm:$0x3]
        %v5419 = vld [vmem:[#allocation4 + $0x10] sm:$0xff]
        %v5420 = vld [vmem:[#allocation4 + $0x18] sm:$0x3]
        %v5421 = vld [vmem:[#allocation4 + $0x20] sm:$0xff]
        %v5422 = vld [vmem:[#allocation4 + $0x28] sm:$0x3]
        %v5423 = vld [vmem:[#allocation4 + $0x30] sm:$0xff]
        %v5424 = vld [vmem:[#allocation4 + $0x38] sm:$0x3]
        %v5425 = vld [vmem:[#allocation4 + $0x40] sm:$0xff]
        %v5426 = vld [vmem:[#allocation4 + $0x48] sm:$0x3]
        %v5427 = vld [vmem:[#allocation4 + $0x50] sm:$0xff]
        %v5428 = vld [vmem:[#allocation4 + $0x58] sm:$0x3]
        %v5429 = vld [vmem:[#allocation4 + $0x60] sm:$0xff]
        %v5430 = vld [vmem:[#allocation4 + $0x68] sm:$0x3]
        %v5431 = vld [vmem:[#allocation4 + $0x70] sm:$0xff]
        %v5432 = vld [vmem:[#allocation4 + $0x78] sm:$0x3]
        %v5433 = vld [vmem:[#allocation4 + $0x80] sm:$0xff]
        %v5434 = vld [vmem:[#allocation4 + $0x88] sm:$0x3]
        %v5435 = vld [vmem:[#allocation4 + $0x90] sm:$0xff]
        %v5436 = vld [vmem:[#allocation4 + $0x98] sm:$0x3]
        %v5437 = vld [vmem:[#allocation5] sm:$0xff]
        %v5438 = vld [vmem:[#allocation5 + $0x8] sm:$0x3]
        %v5439 = vld [vmem:[#allocation5 + $0x10] sm:$0xff]
        %v5440 = vld [vmem:[#allocation5 + $0x18] sm:$0x3]
        %v5441 = vld [vmem:[#allocation5 + $0x20] sm:$0xff]
        %v5442 = vld [vmem:[#allocation5 + $0x28] sm:$0x3]
        %v5443 = vld [vmem:[#allocation5 + $0x30] sm:$0xff]
        %v5444 = vld [vmem:[#allocation5 + $0x38] sm:$0x3]
        %v5445 = vld [vmem:[#allocation5 + $0x40] sm:$0xff]
        %v5446 = vld [vmem:[#allocation5 + $0x48] sm:$0x3]
        %v5447 = vld [vmem:[#allocation5 + $0x50] sm:$0xff]
        %v5448 = vld [vmem:[#allocation5 + $0x58] sm:$0x3]
        %v5449 = vld [vmem:[#allocation5 + $0x60] sm:$0xff]
        %v5450 = vld [vmem:[#allocation5 + $0x68] sm:$0x3]
        %v5451 = vld [vmem:[#allocation5 + $0x70] sm:$0xff]
        %v5452 = vld [vmem:[#allocation5 + $0x78] sm:$0x3]
        %v5453 = vld [vmem:[#allocation5 + $0x80] sm:$0xff]
        %v5454 = vld [vmem:[#allocation5 + $0x88] sm:$0x3]
        %v5455 = vld [vmem:[#allocation5 + $0x90] sm:$0xff]
        %v5456 = vld [vmem:[#allocation5 + $0x98] sm:$0x3]
        %s5457 = sld [smem:[#allocation6]]
        %v5458 = vstv %s5457
        %v5459 = vmul.f32 %v5417, %v5458
        %v5460 = vmul.f32 %v5419, %v5458
        %v5461 = vmul.f32 %v5421, %v5458
        %v5462 = vmul.f32 %v5423, %v5458
        %v5463 = vmul.f32 %v5425, %v5458
        %v5464 = vmul.f32 %v5427, %v5458
        %v5465 = vmul.f32 %v5429, %v5458
        %v5466 = vmul.f32 %v5431, %v5458
        %v5467 = vadd.f32 %v5459, 0.0
        %v5468 = vadd.f32 %v5460, 0.0
        %v5469 = vadd.f32 %v5461, 0.0
        %v5470 = vadd.f32 %v5462, 0.0
        %v5471 = vadd.f32 %v5463, 0.0
        %v5472 = vadd.f32 %v5464, 0.0
        %v5473 = vadd.f32 %v5465, 0.0
        %v5474 = vadd.f32 %v5466, 0.0
        %s5475 = sld [smem:[#allocation6 + $0x1]]
        %v5476 = vstv %s5475
        %v5477 = vmul.f32 %v5437, %v5476
        %v5478 = vmul.f32 %v5439, %v5476
        %v5479 = vmul.f32 %v5441, %v5476
        %v5480 = vmul.f32 %v5443, %v5476
        %v5481 = vmul.f32 %v5445, %v5476
        %v5482 = vmul.f32 %v5447, %v5476
        %v5483 = vmul.f32 %v5449, %v5476
        %v5484 = vmul.f32 %v5451, %v5476
        %v5485 = vadd.f32 %v5467, %v5477
        %v5486 = vadd.f32 %v5468, %v5478
        %v5487 = vadd.f32 %v5469, %v5479
        %v5488 = vadd.f32 %v5470, %v5480
        %v5489 = vadd.f32 %v5471, %v5481
        %v5490 = vadd.f32 %v5472, %v5482
        %v5491 = vadd.f32 %v5473, %v5483
        %v5492 = vadd.f32 %v5474, %v5484
        %s5493 = sld [smem:[#allocation6 + $0x2]]
        %v5494 = vstv %s5493
        %v5495 = vmul.f32 %v5417, %v5494
        %v5496 = vmul.f32 %v5418, %v5494
        %v5497 = vmul.f32 %v5419, %v5494
        %v5498 = vmul.f32 %v5420, %v5494
        %v5499 = vmul.f32 %v5421, %v5494
        %v5500 = vmul.f32 %v5422, %v5494
        %v5501 = vmul.f32 %v5423, %v5494
        %v5502 = vmul.f32 %v5424, %v5494
        %v5503 = vmul.f32 %v5425, %v5494
        %v5504 = vmul.f32 %v5426, %v5494
        %v5505 = vmul.f32 %v5427, %v5494
        %v5506 = vmul.f32 %v5428, %v5494
        %v5507 = vmul.f32 %v5429, %v5494
        %v5508 = vmul.f32 %v5430, %v5494
        %v5509 = vmul.f32 %v5431, %v5494
        %v5510 = vmul.f32 %v5432, %v5494
        %v5527 = vrot.slane %v5495, 1
        %v5528 = vrot.slane %v5496, 1
        %v5529 = vsel %vm2283, %v5527, %v5528
        %v5530 = vrot.slane %v5497, 1
        %v5531 = vrot.slane %v5498, 1
        %v5532 = vsel %vm2283, %v5530, %v5531
        %v5533 = vrot.slane %v5499, 1
        %v5534 = vrot.slane %v5500, 1
        %v5535 = vsel %vm2283, %v5533, %v5534
        %v5536 = vrot.slane %v5501, 1
        %v5537 = vrot.slane %v5502, 1
        %v5538 = vsel %vm2283, %v5536, %v5537
        %v5539 = vrot.slane %v5503, 1
        %v5540 = vrot.slane %v5504, 1
        %v5541 = vsel %vm2283, %v5539, %v5540
        %v5542 = vrot.slane %v5505, 1
        %v5543 = vrot.slane %v5506, 1
        %v5544 = vsel %vm2283, %v5542, %v5543
        %v5545 = vrot.slane %v5507, 1
        %v5546 = vrot.slane %v5508, 1
        %v5547 = vsel %vm2283, %v5545, %v5546
        %v5548 = vrot.slane %v5509, 1
        %v5549 = vrot.slane %v5510, 1
        %v5550 = vsel %vm2283, %v5548, %v5549
        %v5559 = vadd.f32 %v5485, %v5529
        %v5560 = vadd.f32 %v5486, %v5532
        %v5561 = vadd.f32 %v5487, %v5535
        %v5562 = vadd.f32 %v5488, %v5538
        %v5563 = vadd.f32 %v5489, %v5541
        %v5564 = vadd.f32 %v5490, %v5544
        %v5565 = vadd.f32 %v5491, %v5547
        %v5566 = vadd.f32 %v5492, %v5550
        %s5567 = sld [smem:[#allocation6 + $0x3]]
        %v5568 = vstv %s5567
        %v5569 = vmul.f32 %v5437, %v5568
        %v5570 = vmul.f32 %v5438, %v5568
        %v5571 = vmul.f32 %v5439, %v5568
        %v5572 = vmul.f32 %v5440, %v5568
        %v5573 = vmul.f32 %v5441, %v5568
        %v5574 = vmul.f32 %v5442, %v5568
        %v5575 = vmul.f32 %v5443, %v5568
        %v5576 = vmul.f32 %v5444, %v5568
        %v5577 = vmul.f32 %v5445, %v5568
        %v5578 = vmul.f32 %v5446, %v5568
        %v5579 = vmul.f32 %v5447, %v5568
        %v5580 = vmul.f32 %v5448, %v5568
        %v5581 = vmul.f32 %v5449, %v5568
        %v5582 = vmul.f32 %v5450, %v5568
        %v5583 = vmul.f32 %v5451, %v5568
        %v5584 = vmul.f32 %v5452, %v5568
        %v5601 = vrot.slane %v5569, 1
        %v5602 = vrot.slane %v5570, 1
        %v5603 = vsel %vm2283, %v5601, %v5602
        %v5604 = vrot.slane %v5571, 1
        %v5605 = vrot.slane %v5572, 1
        %v5606 = vsel %vm2283, %v5604, %v5605
        %v5607 = vrot.slane %v5573, 1
        %v5608 = vrot.slane %v5574, 1
        %v5609 = vsel %vm2283, %v5607, %v5608
        %v5610 = vrot.slane %v5575, 1
        %v5611 = vrot.slane %v5576, 1
        %v5612 = vsel %vm2283, %v5610, %v5611
        %v5613 = vrot.slane %v5577, 1
        %v5614 = vrot.slane %v5578, 1
        %v5615 = vsel %vm2283, %v5613, %v5614
        %v5616 = vrot.slane %v5579, 1
        %v5617 = vrot.slane %v5580, 1
        %v5618 = vsel %vm2283, %v5616, %v5617
        %v5619 = vrot.slane %v5581, 1
        %v5620 = vrot.slane %v5582, 1
        %v5621 = vsel %vm2283, %v5619, %v5620
        %v5622 = vrot.slane %v5583, 1
        %v5623 = vrot.slane %v5584, 1
        %v5624 = vsel %vm2283, %v5622, %v5623
        %v5633 = vadd.f32 %v5559, %v5603
        %v5634 = vadd.f32 %v5560, %v5606
        %v5635 = vadd.f32 %v5561, %v5609
        %v5636 = vadd.f32 %v5562, %v5612
        %v5637 = vadd.f32 %v5563, %v5615
        %v5638 = vadd.f32 %v5564, %v5618
        %v5639 = vadd.f32 %v5565, %v5621
        %v5640 = vadd.f32 %v5566, %v5624
        %s5641 = sld [smem:[#allocation6 + $0x4]]
        %v5642 = vstv %s5641
        %v5643 = vmul.f32 %v5417, %v5642
        %v5644 = vmul.f32 %v5418, %v5642
        %v5645 = vmul.f32 %v5419, %v5642
        %v5646 = vmul.f32 %v5420, %v5642
        %v5647 = vmul.f32 %v5421, %v5642
        %v5648 = vmul.f32 %v5422, %v5642
        %v5649 = vmul.f32 %v5423, %v5642
        %v5650 = vmul.f32 %v5424, %v5642
        %v5651 = vmul.f32 %v5425, %v5642
        %v5652 = vmul.f32 %v5426, %v5642
        %v5653 = vmul.f32 %v5427, %v5642
        %v5654 = vmul.f32 %v5428, %v5642
        %v5655 = vmul.f32 %v5429, %v5642
        %v5656 = vmul.f32 %v5430, %v5642
        %v5657 = vmul.f32 %v5431, %v5642
        %v5658 = vmul.f32 %v5432, %v5642
        %v5675 = vrot.slane %v5643, 2
        %v5676 = vrot.slane %v5644, 2
        %v5677 = vsel %vm2483, %v5675, %v5676
        %v5678 = vrot.slane %v5645, 2
        %v5679 = vrot.slane %v5646, 2
        %v5680 = vsel %vm2483, %v5678, %v5679
        %v5681 = vrot.slane %v5647, 2
        %v5682 = vrot.slane %v5648, 2
        %v5683 = vsel %vm2483, %v5681, %v5682
        %v5684 = vrot.slane %v5649, 2
        %v5685 = vrot.slane %v5650, 2
        %v5686 = vsel %vm2483, %v5684, %v5685
        %v5687 = vrot.slane %v5651, 2
        %v5688 = vrot.slane %v5652, 2
        %v5689 = vsel %vm2483, %v5687, %v5688
        %v5690 = vrot.slane %v5653, 2
        %v5691 = vrot.slane %v5654, 2
        %v5692 = vsel %vm2483, %v5690, %v5691
        %v5693 = vrot.slane %v5655, 2
        %v5694 = vrot.slane %v5656, 2
        %v5695 = vsel %vm2483, %v5693, %v5694
        %v5696 = vrot.slane %v5657, 2
        %v5697 = vrot.slane %v5658, 2
        %v5698 = vsel %vm2483, %v5696, %v5697
        %v5707 = vadd.f32 %v5633, %v5677
        %v5708 = vadd.f32 %v5634, %v5680
        %v5709 = vadd.f32 %v5635, %v5683
        %v5710 = vadd.f32 %v5636, %v5686
        %v5711 = vadd.f32 %v5637, %v5689
        %v5712 = vadd.f32 %v5638, %v5692
        %v5713 = vadd.f32 %v5639, %v5695
        %v5714 = vadd.f32 %v5640, %v5698
        %s5715 = sld [smem:[#allocation6 + $0x5]]
        %v5716 = vstv %s5715
        %v5717 = vmul.f32 %v5437, %v5716
        %v5718 = vmul.f32 %v5438, %v5716
        %v5719 = vmul.f32 %v5439, %v5716
        %v5720 = vmul.f32 %v5440, %v5716
        %v5721 = vmul.f32 %v5441, %v5716
        %v5722 = vmul.f32 %v5442, %v5716
        %v5723 = vmul.f32 %v5443, %v5716
        %v5724 = vmul.f32 %v5444, %v5716
        %v5725 = vmul.f32 %v5445, %v5716
        %v5726 = vmul.f32 %v5446, %v5716
        %v5727 = vmul.f32 %v5447, %v5716
        %v5728 = vmul.f32 %v5448, %v5716
        %v5729 = vmul.f32 %v5449, %v5716
        %v5730 = vmul.f32 %v5450, %v5716
        %v5731 = vmul.f32 %v5451, %v5716
        %v5732 = vmul.f32 %v5452, %v5716
        %v5749 = vrot.slane %v5717, 2
        %v5750 = vrot.slane %v5718, 2
        %v5751 = vsel %vm2483, %v5749, %v5750
        %v5752 = vrot.slane %v5719, 2
        %v5753 = vrot.slane %v5720, 2
        %v5754 = vsel %vm2483, %v5752, %v5753
        %v5755 = vrot.slane %v5721, 2
        %v5756 = vrot.slane %v5722, 2
        %v5757 = vsel %vm2483, %v5755, %v5756
        %v5758 = vrot.slane %v5723, 2
        %v5759 = vrot.slane %v5724, 2
        %v5760 = vsel %vm2483, %v5758, %v5759
        %v5761 = vrot.slane %v5725, 2
        %v5762 = vrot.slane %v5726, 2
        %v5763 = vsel %vm2483, %v5761, %v5762
        %v5764 = vrot.slane %v5727, 2
        %v5765 = vrot.slane %v5728, 2
        %v5766 = vsel %vm2483, %v5764, %v5765
        %v5767 = vrot.slane %v5729, 2
        %v5768 = vrot.slane %v5730, 2
        %v5769 = vsel %vm2483, %v5767, %v5768
        %v5770 = vrot.slane %v5731, 2
        %v5771 = vrot.slane %v5732, 2
        %v5772 = vsel %vm2483, %v5770, %v5771
        %v5781 = vadd.f32 %v5707, %v5751
        %v5782 = vadd.f32 %v5708, %v5754
        %v5783 = vadd.f32 %v5709, %v5757
        %v5784 = vadd.f32 %v5710, %v5760
        %v5785 = vadd.f32 %v5711, %v5763
        %v5786 = vadd.f32 %v5712, %v5766
        %v5787 = vadd.f32 %v5713, %v5769
        %v5788 = vadd.f32 %v5714, %v5772
        %s5789 = sld [smem:[#allocation6 + $0x6]]
        %v5790 = vstv %s5789
        %v5791 = vmul.f32 %v5419, %v5790
        %v5792 = vmul.f32 %v5421, %v5790
        %v5793 = vmul.f32 %v5423, %v5790
        %v5794 = vmul.f32 %v5425, %v5790
        %v5795 = vmul.f32 %v5427, %v5790
        %v5796 = vmul.f32 %v5429, %v5790
        %v5797 = vmul.f32 %v5431, %v5790
        %v5798 = vmul.f32 %v5433, %v5790
        %v5799 = vadd.f32 %v5781, %v5791
        %v5800 = vadd.f32 %v5782, %v5792
        %v5801 = vadd.f32 %v5783, %v5793
        %v5802 = vadd.f32 %v5784, %v5794
        %v5803 = vadd.f32 %v5785, %v5795
        %v5804 = vadd.f32 %v5786, %v5796
        %v5805 = vadd.f32 %v5787, %v5797
        %v5806 = vadd.f32 %v5788, %v5798
        %s5807 = sld [smem:[#allocation6 + $0x7]]
        %v5808 = vstv %s5807
        %v5809 = vmul.f32 %v5439, %v5808
        %v5810 = vmul.f32 %v5441, %v5808
        %v5811 = vmul.f32 %v5443, %v5808
        %v5812 = vmul.f32 %v5445, %v5808
        %v5813 = vmul.f32 %v5447, %v5808
        %v5814 = vmul.f32 %v5449, %v5808
        %v5815 = vmul.f32 %v5451, %v5808
        %v5816 = vmul.f32 %v5453, %v5808
        %v5817 = vadd.f32 %v5799, %v5809
        %v5818 = vadd.f32 %v5800, %v5810
        %v5819 = vadd.f32 %v5801, %v5811
        %v5820 = vadd.f32 %v5802, %v5812
        %v5821 = vadd.f32 %v5803, %v5813
        %v5822 = vadd.f32 %v5804, %v5814
        %v5823 = vadd.f32 %v5805, %v5815
        %v5824 = vadd.f32 %v5806, %v5816
        %s5825 = sld [smem:[#allocation6 + $0x8]]
        %v5826 = vstv %s5825
        %v5827 = vmul.f32 %v5419, %v5826
        %v5828 = vmul.f32 %v5420, %v5826
        %v5829 = vmul.f32 %v5421, %v5826
        %v5830 = vmul.f32 %v5422, %v5826
        %v5831 = vmul.f32 %v5423, %v5826
        %v5832 = vmul.f32 %v5424, %v5826
        %v5833 = vmul.f32 %v5425, %v5826
        %v5834 = vmul.f32 %v5426, %v5826
        %v5835 = vmul.f32 %v5427, %v5826
        %v5836 = vmul.f32 %v5428, %v5826
        %v5837 = vmul.f32 %v5429, %v5826
        %v5838 = vmul.f32 %v5430, %v5826
        %v5839 = vmul.f32 %v5431, %v5826
        %v5840 = vmul.f32 %v5432, %v5826
        %v5841 = vmul.f32 %v5433, %v5826
        %v5842 = vmul.f32 %v5434, %v5826
        %v5859 = vrot.slane %v5827, 1
        %v5860 = vrot.slane %v5828, 1
        %v5861 = vsel %vm2283, %v5859, %v5860
        %v5862 = vrot.slane %v5829, 1
        %v5863 = vrot.slane %v5830, 1
        %v5864 = vsel %vm2283, %v5862, %v5863
        %v5865 = vrot.slane %v5831, 1
        %v5866 = vrot.slane %v5832, 1
        %v5867 = vsel %vm2283, %v5865, %v5866
        %v5868 = vrot.slane %v5833, 1
        %v5869 = vrot.slane %v5834, 1
        %v5870 = vsel %vm2283, %v5868, %v5869
        %v5871 = vrot.slane %v5835, 1
        %v5872 = vrot.slane %v5836, 1
        %v5873 = vsel %vm2283, %v5871, %v5872
        %v5874 = vrot.slane %v5837, 1
        %v5875 = vrot.slane %v5838, 1
        %v5876 = vsel %vm2283, %v5874, %v5875
        %v5877 = vrot.slane %v5839, 1
        %v5878 = vrot.slane %v5840, 1
        %v5879 = vsel %vm2283, %v5877, %v5878
        %v5880 = vrot.slane %v5841, 1
        %v5881 = vrot.slane %v5842, 1
        %v5882 = vsel %vm2283, %v5880, %v5881
        %v5891 = vadd.f32 %v5817, %v5861
        %v5892 = vadd.f32 %v5818, %v5864
        %v5893 = vadd.f32 %v5819, %v5867
        %v5894 = vadd.f32 %v5820, %v5870
        %v5895 = vadd.f32 %v5821, %v5873
        %v5896 = vadd.f32 %v5822, %v5876
        %v5897 = vadd.f32 %v5823, %v5879
        %v5898 = vadd.f32 %v5824, %v5882
        %s5899 = sld [smem:[#allocation6 + $0x9]]
        %v5900 = vstv %s5899
        %v5901 = vmul.f32 %v5439, %v5900
        %v5902 = vmul.f32 %v5440, %v5900
        %v5903 = vmul.f32 %v5441, %v5900
        %v5904 = vmul.f32 %v5442, %v5900
        %v5905 = vmul.f32 %v5443, %v5900
        %v5906 = vmul.f32 %v5444, %v5900
        %v5907 = vmul.f32 %v5445, %v5900
        %v5908 = vmul.f32 %v5446, %v5900
        %v5909 = vmul.f32 %v5447, %v5900
        %v5910 = vmul.f32 %v5448, %v5900
        %v5911 = vmul.f32 %v5449, %v5900
        %v5912 = vmul.f32 %v5450, %v5900
        %v5913 = vmul.f32 %v5451, %v5900
        %v5914 = vmul.f32 %v5452, %v5900
        %v5915 = vmul.f32 %v5453, %v5900
        %v5916 = vmul.f32 %v5454, %v5900
        %v5933 = vrot.slane %v5901, 1
        %v5934 = vrot.slane %v5902, 1
        %v5935 = vsel %vm2283, %v5933, %v5934
        %v5936 = vrot.slane %v5903, 1
        %v5937 = vrot.slane %v5904, 1
        %v5938 = vsel %vm2283, %v5936, %v5937
        %v5939 = vrot.slane %v5905, 1
        %v5940 = vrot.slane %v5906, 1
        %v5941 = vsel %vm2283, %v5939, %v5940
        %v5942 = vrot.slane %v5907, 1
        %v5943 = vrot.slane %v5908, 1
        %v5944 = vsel %vm2283, %v5942, %v5943
        %v5945 = vrot.slane %v5909, 1
        %v5946 = vrot.slane %v5910, 1
        %v5947 = vsel %vm2283, %v5945, %v5946
        %v5948 = vrot.slane %v5911, 1
        %v5949 = vrot.slane %v5912, 1
        %v5950 = vsel %vm2283, %v5948, %v5949
        %v5951 = vrot.slane %v5913, 1
        %v5952 = vrot.slane %v5914, 1
        %v5953 = vsel %vm2283, %v5951, %v5952
        %v5954 = vrot.slane %v5915, 1
        %v5955 = vrot.slane %v5916, 1
        %v5956 = vsel %vm2283, %v5954, %v5955
        %v5965 = vadd.f32 %v5891, %v5935
        %v5966 = vadd.f32 %v5892, %v5938
        %v5967 = vadd.f32 %v5893, %v5941
        %v5968 = vadd.f32 %v5894, %v5944
        %v5969 = vadd.f32 %v5895, %v5947
        %v5970 = vadd.f32 %v5896, %v5950
        %v5971 = vadd.f32 %v5897, %v5953
        %v5972 = vadd.f32 %v5898, %v5956
        %s5973 = sld [smem:[#allocation6 + $0xa]]
        %v5974 = vstv %s5973
        %v5975 = vmul.f32 %v5419, %v5974
        %v5976 = vmul.f32 %v5420, %v5974
        %v5977 = vmul.f32 %v5421, %v5974
        %v5978 = vmul.f32 %v5422, %v5974
        %v5979 = vmul.f32 %v5423, %v5974
        %v5980 = vmul.f32 %v5424, %v5974
        %v5981 = vmul.f32 %v5425, %v5974
        %v5982 = vmul.f32 %v5426, %v5974
        %v5983 = vmul.f32 %v5427, %v5974
        %v5984 = vmul.f32 %v5428, %v5974
        %v5985 = vmul.f32 %v5429, %v5974
        %v5986 = vmul.f32 %v5430, %v5974
        %v5987 = vmul.f32 %v5431, %v5974
        %v5988 = vmul.f32 %v5432, %v5974
        %v5989 = vmul.f32 %v5433, %v5974
        %v5990 = vmul.f32 %v5434, %v5974
        %v6007 = vrot.slane %v5975, 2
        %v6008 = vrot.slane %v5976, 2
        %v6009 = vsel %vm2483, %v6007, %v6008
        %v6010 = vrot.slane %v5977, 2
        %v6011 = vrot.slane %v5978, 2
        %v6012 = vsel %vm2483, %v6010, %v6011
        %v6013 = vrot.slane %v5979, 2
        %v6014 = vrot.slane %v5980, 2
        %v6015 = vsel %vm2483, %v6013, %v6014
        %v6016 = vrot.slane %v5981, 2
        %v6017 = vrot.slane %v5982, 2
        %v6018 = vsel %vm2483, %v6016, %v6017
        %v6019 = vrot.slane %v5983, 2
        %v6020 = vrot.slane %v5984, 2
        %v6021 = vsel %vm2483, %v6019, %v6020
        %v6022 = vrot.slane %v5985, 2
        %v6023 = vrot.slane %v5986, 2
        %v6024 = vsel %vm2483, %v6022, %v6023
        %v6025 = vrot.slane %v5987, 2
        %v6026 = vrot.slane %v5988, 2
        %v6027 = vsel %vm2483, %v6025, %v6026
        %v6028 = vrot.slane %v5989, 2
        %v6029 = vrot.slane %v5990, 2
        %v6030 = vsel %vm2483, %v6028, %v6029
        %v6039 = vadd.f32 %v5965, %v6009
        %v6040 = vadd.f32 %v5966, %v6012
        %v6041 = vadd.f32 %v5967, %v6015
        %v6042 = vadd.f32 %v5968, %v6018
        %v6043 = vadd.f32 %v5969, %v6021
        %v6044 = vadd.f32 %v5970, %v6024
        %v6045 = vadd.f32 %v5971, %v6027
        %v6046 = vadd.f32 %v5972, %v6030
        %s6047 = sld [smem:[#allocation6 + $0xb]]
        %v6048 = vstv %s6047
        %v6049 = vmul.f32 %v5439, %v6048
        %v6050 = vmul.f32 %v5440, %v6048
        %v6051 = vmul.f32 %v5441, %v6048
        %v6052 = vmul.f32 %v5442, %v6048
        %v6053 = vmul.f32 %v5443, %v6048
        %v6054 = vmul.f32 %v5444, %v6048
        %v6055 = vmul.f32 %v5445, %v6048
        %v6056 = vmul.f32 %v5446, %v6048
        %v6057 = vmul.f32 %v5447, %v6048
        %v6058 = vmul.f32 %v5448, %v6048
        %v6059 = vmul.f32 %v5449, %v6048
        %v6060 = vmul.f32 %v5450, %v6048
        %v6061 = vmul.f32 %v5451, %v6048
        %v6062 = vmul.f32 %v5452, %v6048
        %v6063 = vmul.f32 %v5453, %v6048
        %v6064 = vmul.f32 %v5454, %v6048
        %v6081 = vrot.slane %v6049, 2
        %v6082 = vrot.slane %v6050, 2
        %v6083 = vsel %vm2483, %v6081, %v6082
        %v6084 = vrot.slane %v6051, 2
        %v6085 = vrot.slane %v6052, 2
        %v6086 = vsel %vm2483, %v6084, %v6085
        %v6087 = vrot.slane %v6053, 2
        %v6088 = vrot.slane %v6054, 2
        %v6089 = vsel %vm2483, %v6087, %v6088
        %v6090 = vrot.slane %v6055, 2
        %v6091 = vrot.slane %v6056, 2
        %v6092 = vsel %vm2483, %v6090, %v6091
        %v6093 = vrot.slane %v6057, 2
        %v6094 = vrot.slane %v6058, 2
        %v6095 = vsel %vm2483, %v6093, %v6094
        %v6096 = vrot.slane %v6059, 2
        %v6097 = vrot.slane %v6060, 2
        %v6098 = vsel %vm2483, %v6096, %v6097
        %v6099 = vrot.slane %v6061, 2
        %v6100 = vrot.slane %v6062, 2
        %v6101 = vsel %vm2483, %v6099, %v6100
        %v6102 = vrot.slane %v6063, 2
        %v6103 = vrot.slane %v6064, 2
        %v6104 = vsel %vm2483, %v6102, %v6103
        %v6113 = vadd.f32 %v6039, %v6083
        %v6114 = vadd.f32 %v6040, %v6086
        %v6115 = vadd.f32 %v6041, %v6089
        %v6116 = vadd.f32 %v6042, %v6092
        %v6117 = vadd.f32 %v6043, %v6095
        %v6118 = vadd.f32 %v6044, %v6098
        %v6119 = vadd.f32 %v6045, %v6101
        %v6120 = vadd.f32 %v6046, %v6104
        %s6121 = sld [smem:[#allocation6 + $0xc]]
        %v6122 = vstv %s6121
        %v6123 = vmul.f32 %v5421, %v6122
        %v6124 = vmul.f32 %v5423, %v6122
        %v6125 = vmul.f32 %v5425, %v6122
        %v6126 = vmul.f32 %v5427, %v6122
        %v6127 = vmul.f32 %v5429, %v6122
        %v6128 = vmul.f32 %v5431, %v6122
        %v6129 = vmul.f32 %v5433, %v6122
        %v6130 = vmul.f32 %v5435, %v6122
        %v6131 = vadd.f32 %v6113, %v6123
        %v6132 = vadd.f32 %v6114, %v6124
        %v6133 = vadd.f32 %v6115, %v6125
        %v6134 = vadd.f32 %v6116, %v6126
        %v6135 = vadd.f32 %v6117, %v6127
        %v6136 = vadd.f32 %v6118, %v6128
        %v6137 = vadd.f32 %v6119, %v6129
        %v6138 = vadd.f32 %v6120, %v6130
        %s6139 = sld [smem:[#allocation6 + $0xd]]
        %v6140 = vstv %s6139
        %v6141 = vmul.f32 %v5441, %v6140
        %v6142 = vmul.f32 %v5443, %v6140
        %v6143 = vmul.f32 %v5445, %v6140
        %v6144 = vmul.f32 %v5447, %v6140
        %v6145 = vmul.f32 %v5449, %v6140
        %v6146 = vmul.f32 %v5451, %v6140
        %v6147 = vmul.f32 %v5453, %v6140
        %v6148 = vmul.f32 %v5455, %v6140
        %v6149 = vadd.f32 %v6131, %v6141
        %v6150 = vadd.f32 %v6132, %v6142
        %v6151 = vadd.f32 %v6133, %v6143
        %v6152 = vadd.f32 %v6134, %v6144
        %v6153 = vadd.f32 %v6135, %v6145
        %v6154 = vadd.f32 %v6136, %v6146
        %v6155 = vadd.f32 %v6137, %v6147
        %v6156 = vadd.f32 %v6138, %v6148
        %s6157 = sld [smem:[#allocation6 + $0xe]]
        %v6158 = vstv %s6157
        %v6159 = vmul.f32 %v5421, %v6158
        %v6160 = vmul.f32 %v5422, %v6158
        %v6161 = vmul.f32 %v5423, %v6158
        %v6162 = vmul.f32 %v5424, %v6158
        %v6163 = vmul.f32 %v5425, %v6158
        %v6164 = vmul.f32 %v5426, %v6158
        %v6165 = vmul.f32 %v5427, %v6158
        %v6166 = vmul.f32 %v5428, %v6158
        %v6167 = vmul.f32 %v5429, %v6158
        %v6168 = vmul.f32 %v5430, %v6158
        %v6169 = vmul.f32 %v5431, %v6158
        %v6170 = vmul.f32 %v5432, %v6158
        %v6171 = vmul.f32 %v5433, %v6158
        %v6172 = vmul.f32 %v5434, %v6158
        %v6173 = vmul.f32 %v5435, %v6158
        %v6174 = vmul.f32 %v5436, %v6158
        %v6191 = vrot.slane %v6159, 1
        %v6192 = vrot.slane %v6160, 1
        %v6193 = vsel %vm2283, %v6191, %v6192
        %v6194 = vrot.slane %v6161, 1
        %v6195 = vrot.slane %v6162, 1
        %v6196 = vsel %vm2283, %v6194, %v6195
        %v6197 = vrot.slane %v6163, 1
        %v6198 = vrot.slane %v6164, 1
        %v6199 = vsel %vm2283, %v6197, %v6198
        %v6200 = vrot.slane %v6165, 1
        %v6201 = vrot.slane %v6166, 1
        %v6202 = vsel %vm2283, %v6200, %v6201
        %v6203 = vrot.slane %v6167, 1
        %v6204 = vrot.slane %v6168, 1
        %v6205 = vsel %vm2283, %v6203, %v6204
        %v6206 = vrot.slane %v6169, 1
        %v6207 = vrot.slane %v6170, 1
        %v6208 = vsel %vm2283, %v6206, %v6207
        %v6209 = vrot.slane %v6171, 1
        %v6210 = vrot.slane %v6172, 1
        %v6211 = vsel %vm2283, %v6209, %v6210
        %v6212 = vrot.slane %v6173, 1
        %v6213 = vrot.slane %v6174, 1
        %v6214 = vsel %vm2283, %v6212, %v6213
        %v6223 = vadd.f32 %v6149, %v6193
        %v6224 = vadd.f32 %v6150, %v6196
        %v6225 = vadd.f32 %v6151, %v6199
        %v6226 = vadd.f32 %v6152, %v6202
        %v6227 = vadd.f32 %v6153, %v6205
        %v6228 = vadd.f32 %v6154, %v6208
        %v6229 = vadd.f32 %v6155, %v6211
        %v6230 = vadd.f32 %v6156, %v6214
        %s6231 = sld [smem:[#allocation6 + $0xf]]
        %v6232 = vstv %s6231
        %v6233 = vmul.f32 %v5441, %v6232
        %v6234 = vmul.f32 %v5442, %v6232
        %v6235 = vmul.f32 %v5443, %v6232
        %v6236 = vmul.f32 %v5444, %v6232
        %v6237 = vmul.f32 %v5445, %v6232
        %v6238 = vmul.f32 %v5446, %v6232
        %v6239 = vmul.f32 %v5447, %v6232
        %v6240 = vmul.f32 %v5448, %v6232
        %v6241 = vmul.f32 %v5449, %v6232
        %v6242 = vmul.f32 %v5450, %v6232
        %v6243 = vmul.f32 %v5451, %v6232
        %v6244 = vmul.f32 %v5452, %v6232
        %v6245 = vmul.f32 %v5453, %v6232
        %v6246 = vmul.f32 %v5454, %v6232
        %v6247 = vmul.f32 %v5455, %v6232
        %v6248 = vmul.f32 %v5456, %v6232
        %v6265 = vrot.slane %v6233, 1
        %v6266 = vrot.slane %v6234, 1
        %v6267 = vsel %vm2283, %v6265, %v6266
        %v6268 = vrot.slane %v6235, 1
        %v6269 = vrot.slane %v6236, 1
        %v6270 = vsel %vm2283, %v6268, %v6269
        %v6271 = vrot.slane %v6237, 1
        %v6272 = vrot.slane %v6238, 1
        %v6273 = vsel %vm2283, %v6271, %v6272
        %v6274 = vrot.slane %v6239, 1
        %v6275 = vrot.slane %v6240, 1
        %v6276 = vsel %vm2283, %v6274, %v6275
        %v6277 = vrot.slane %v6241, 1
        %v6278 = vrot.slane %v6242, 1
        %v6279 = vsel %vm2283, %v6277, %v6278
        %v6280 = vrot.slane %v6243, 1
        %v6281 = vrot.slane %v6244, 1
        %v6282 = vsel %vm2283, %v6280, %v6281
        %v6283 = vrot.slane %v6245, 1
        %v6284 = vrot.slane %v6246, 1
        %v6285 = vsel %vm2283, %v6283, %v6284
        %v6286 = vrot.slane %v6247, 1
        %v6287 = vrot.slane %v6248, 1
        %v6288 = vsel %vm2283, %v6286, %v6287
        %v6297 = vadd.f32 %v6223, %v6267
        %v6298 = vadd.f32 %v6224, %v6270
        %v6299 = vadd.f32 %v6225, %v6273
        %v6300 = vadd.f32 %v6226, %v6276
        %v6301 = vadd.f32 %v6227, %v6279
        %v6302 = vadd.f32 %v6228, %v6282
        %v6303 = vadd.f32 %v6229, %v6285
        %v6304 = vadd.f32 %v6230, %v6288
        %s6305 = sld [smem:[#allocation6 + $0x10]]
        %v6306 = vstv %s6305
        %v6307 = vmul.f32 %v5421, %v6306
        %v6308 = vmul.f32 %v5422, %v6306
        %v6309 = vmul.f32 %v5423, %v6306
        %v6310 = vmul.f32 %v5424, %v6306
        %v6311 = vmul.f32 %v5425, %v6306
        %v6312 = vmul.f32 %v5426, %v6306
        %v6313 = vmul.f32 %v5427, %v6306
        %v6314 = vmul.f32 %v5428, %v6306
        %v6315 = vmul.f32 %v5429, %v6306
        %v6316 = vmul.f32 %v5430, %v6306
        %v6317 = vmul.f32 %v5431, %v6306
        %v6318 = vmul.f32 %v5432, %v6306
        %v6319 = vmul.f32 %v5433, %v6306
        %v6320 = vmul.f32 %v5434, %v6306
        %v6321 = vmul.f32 %v5435, %v6306
        %v6322 = vmul.f32 %v5436, %v6306
        %v6339 = vrot.slane %v6307, 2
        %v6340 = vrot.slane %v6308, 2
        %v6341 = vsel %vm2483, %v6339, %v6340
        %v6342 = vrot.slane %v6309, 2
        %v6343 = vrot.slane %v6310, 2
        %v6344 = vsel %vm2483, %v6342, %v6343
        %v6345 = vrot.slane %v6311, 2
        %v6346 = vrot.slane %v6312, 2
        %v6347 = vsel %vm2483, %v6345, %v6346
        %v6348 = vrot.slane %v6313, 2
        %v6349 = vrot.slane %v6314, 2
        %v6350 = vsel %vm2483, %v6348, %v6349
        %v6351 = vrot.slane %v6315, 2
        %v6352 = vrot.slane %v6316, 2
        %v6353 = vsel %vm2483, %v6351, %v6352
        %v6354 = vrot.slane %v6317, 2
        %v6355 = vrot.slane %v6318, 2
        %v6356 = vsel %vm2483, %v6354, %v6355
        %v6357 = vrot.slane %v6319, 2
        %v6358 = vrot.slane %v6320, 2
        %v6359 = vsel %vm2483, %v6357, %v6358
        %v6360 = vrot.slane %v6321, 2
        %v6361 = vrot.slane %v6322, 2
        %v6362 = vsel %vm2483, %v6360, %v6361
        %v6371 = vadd.f32 %v6297, %v6341
        %v6372 = vadd.f32 %v6298, %v6344
        %v6373 = vadd.f32 %v6299, %v6347
        %v6374 = vadd.f32 %v6300, %v6350
        %v6375 = vadd.f32 %v6301, %v6353
        %v6376 = vadd.f32 %v6302, %v6356
        %v6377 = vadd.f32 %v6303, %v6359
        %v6378 = vadd.f32 %v6304, %v6362
        %s6379 = sld [smem:[#allocation6 + $0x11]]
        %v6380 = vstv %s6379
        %v6381 = vmul.f32 %v5441, %v6380
        %v6382 = vmul.f32 %v5442, %v6380
        %v6383 = vmul.f32 %v5443, %v6380
        %v6384 = vmul.f32 %v5444, %v6380
        %v6385 = vmul.f32 %v5445, %v6380
        %v6386 = vmul.f32 %v5446, %v6380
        %v6387 = vmul.f32 %v5447, %v6380
        %v6388 = vmul.f32 %v5448, %v6380
        %v6389 = vmul.f32 %v5449, %v6380
        %v6390 = vmul.f32 %v5450, %v6380
        %v6391 = vmul.f32 %v5451, %v6380
        %v6392 = vmul.f32 %v5452, %v6380
        %v6393 = vmul.f32 %v5453, %v6380
        %v6394 = vmul.f32 %v5454, %v6380
        %v6395 = vmul.f32 %v5455, %v6380
        %v6396 = vmul.f32 %v5456, %v6380
        %v6413 = vrot.slane %v6381, 2
        %v6414 = vrot.slane %v6382, 2
        %v6415 = vsel %vm2483, %v6413, %v6414
        %v6416 = vrot.slane %v6383, 2
        %v6417 = vrot.slane %v6384, 2
        %v6418 = vsel %vm2483, %v6416, %v6417
        %v6419 = vrot.slane %v6385, 2
        %v6420 = vrot.slane %v6386, 2
        %v6421 = vsel %vm2483, %v6419, %v6420
        %v6422 = vrot.slane %v6387, 2
        %v6423 = vrot.slane %v6388, 2
        %v6424 = vsel %vm2483, %v6422, %v6423
        %v6425 = vrot.slane %v6389, 2
        %v6426 = vrot.slane %v6390, 2
        %v6427 = vsel %vm2483, %v6425, %v6426
        %v6428 = vrot.slane %v6391, 2
        %v6429 = vrot.slane %v6392, 2
        %v6430 = vsel %vm2483, %v6428, %v6429
        %v6431 = vrot.slane %v6393, 2
        %v6432 = vrot.slane %v6394, 2
        %v6433 = vsel %vm2483, %v6431, %v6432
        %v6434 = vrot.slane %v6395, 2
        %v6435 = vrot.slane %v6396, 2
        %v6436 = vsel %vm2483, %v6434, %v6435
        %v6445 = vadd.f32 %v6371, %v6415
        %v6446 = vadd.f32 %v6372, %v6418
        %v6447 = vadd.f32 %v6373, %v6421
        %v6448 = vadd.f32 %v6374, %v6424
        %v6449 = vadd.f32 %v6375, %v6427
        %v6450 = vadd.f32 %v6376, %v6430
        %v6451 = vadd.f32 %v6377, %v6433
        %v6452 = vadd.f32 %v6378, %v6436
        %v6453 = vxor.u32 %v6445, 2147483648
        %v6454 = vxor.u32 %v6446, 2147483648
        %v6455 = vxor.u32 %v6447, 2147483648
        %v6456 = vxor.u32 %v6448, 2147483648
        %v6457 = vxor.u32 %v6449, 2147483648
        %v6458 = vxor.u32 %v6450, 2147483648
        %v6459 = vxor.u32 %v6451, 2147483648
        %v6460 = vxor.u32 %v6452, 2147483648
        %v6461 = vmul.f32 %v6453, 1.442695
        %v6462 = vpow.pop %v6461
        %v6463 = vmul.f32 %v6454, 1.442695
        %v6464 = vpow.pop %v6463
        %v6465 = vmul.f32 %v6455, 1.442695
        %v6466 = vpow.pop %v6465
        %v6467 = vmul.f32 %v6456, 1.442695
        %v6468 = vpow.pop %v6467
        %v6469 = vmul.f32 %v6457, 1.442695
        %v6470 = vpow.pop %v6469
        %v6471 = vmul.f32 %v6458, 1.442695
        %v6472 = vpow.pop %v6471
        %v6473 = vmul.f32 %v6459, 1.442695
        %v6474 = vpow.pop %v6473
        %v6475 = vmul.f32 %v6460, 1.442695
        %v6476 = vpow.pop %v6475
        %v6477 = vadd.f32 %v6462, 1.0
        %v6478 = vadd.f32 %v6464, 1.0
        %v6479 = vadd.f32 %v6466, 1.0
        %v6480 = vadd.f32 %v6468, 1.0
        %v6481 = vadd.f32 %v6470, 1.0
        %v6482 = vadd.f32 %v6472, 1.0
        %v6483 = vadd.f32 %v6474, 1.0
        %v6484 = vadd.f32 %v6476, 1.0
        %v6485 = vrcp.pop %v6477
        %v6486 = vmul.f32 1.0, %v6485
        %v6487 = vrcp.pop %v6478
        %v6488 = vmul.f32 1.0, %v6487
        %v6489 = vrcp.pop %v6479
        %v6490 = vmul.f32 1.0, %v6489
        %v6491 = vrcp.pop %v6480
        %v6492 = vmul.f32 1.0, %v6491
        %v6493 = vrcp.pop %v6481
        %v6494 = vmul.f32 1.0, %v6493
        %v6495 = vrcp.pop %v6482
        %v6496 = vmul.f32 1.0, %v6495
        %v6497 = vrcp.pop %v6483
        %v6498 = vmul.f32 1.0, %v6497
        %v6499 = vrcp.pop %v6484
        %v6500 = vmul.f32 1.0, %v6499
        %6502 = vset.pattern.permute.xlu0 0
        %6503 = vperm.xlu0 %6502, %v6486
        %v6504 = vpop.permute.xlu0 %6503
        %6507 = vset.pattern.permute.xlu0 0
        %6508 = vperm.xlu0 %6507, %v6488
        %v6509 = vpop.permute.xlu0 %6508
        %6512 = vset.pattern.permute.xlu0 0
        %6513 = vperm.xlu0 %6512, %v6490
        %v6514 = vpop.permute.xlu0 %6513
        %6517 = vset.pattern.permute.xlu0 0
        %6518 = vperm.xlu0 %6517, %v6492
        %v6519 = vpop.permute.xlu0 %6518
        %6522 = vset.pattern.permute.xlu0 0
        %6523 = vperm.xlu0 %6522, %v6494
        %v6524 = vpop.permute.xlu0 %6523
        %6527 = vset.pattern.permute.xlu0 0
        %6528 = vperm.xlu0 %6527, %v6496
        %v6529 = vpop.permute.xlu0 %6528
        %6532 = vset.pattern.permute.xlu0 0
        %6533 = vperm.xlu0 %6532, %v6498
        %v6534 = vpop.permute.xlu0 %6533
        %6537 = vset.pattern.permute.xlu0 0
        %6538 = vperm.xlu0 %6537, %v6500
        %v6539 = vpop.permute.xlu0 %6538
        %v6541 = vmul.f32 %v5292, %v6504
        %v6542 = vmul.f32 %v5293, %v6509
        %v6543 = vmul.f32 %v5294, %v6514
        %v6544 = vmul.f32 %v5295, %v6519
        %v6545 = vmul.f32 %v5296, %v6524
        %v6546 = vmul.f32 %v5297, %v6529
        %v6547 = vmul.f32 %v5298, %v6534
        %v6548 = vmul.f32 %v5299, %v6539
        %v6549 = vadd.f32 %v5324, %v5327
        %v6550 = vadd.f32 %v6549, %v5330
        %v6551 = vadd.f32 %v6550, %v5333
        %v6552 = vadd.f32 %v6551, %v5336
        %v6553 = vadd.f32 %v6552, %v5339
        %v6554 = vadd.f32 %v6553, %v5342
        %v6555 = vadd.f32 %v6554, %v5345
        %v6556 = vrot.slane %v6555, 4
        %v6557 = vadd.f32 %v6555, %v6556
        %v6558 = vrot.slane %v6557, 2
        %v6559 = vadd.f32 %v6557, %v6558
        %v6560 = vrot.slane %v6559, 1
        %v6561 = vadd.f32 %v6559, %v6560
        %v6562 = vrcp.pop 64.0
        %v6563 = vmul.f32 %v6561, %v6562
        %v6564 = vld [vmem:[%s8] sm:$0x3]
        %v6565 = vmul.f32 %v6564, %v6563
        %v6566 = vsel %vm3183, %v6565, 0.0
        %6567 = vadd.xlane.f32.xlu0 %v6566
        %v6568 = vpop.xlane.xlu0 %6567
        %v6569 = vld [vmem:[%s9] sm:$0x3]
        %v6570 = vadd.f32 %v6568, %v6569
        %v6571 = vmax.f32 %v6570, 0.0
        %v6572 = vld [vmem:[%s10] sm:$0x3]
        %6574 = vset.pattern.permute.xlu0 0
        %6575 = vperm.xlu0 %6574, %v6571
        %v6576 = vpop.permute.xlu0 %6575
        %v6578 = vmul.f32 %v6572, %v6576
        %v6579 = vsel %vm3183, %v6578, 0.0
        %v6580 = vrot.slane %v6579, 4
        %v6581 = vadd.f32 %v6579, %v6580
        %v6582 = vrot.slane %v6581, 2
        %v6583 = vadd.f32 %v6581, %v6582
        %v6584 = vrot.slane %v6583, 1
        %v6585 = vadd.f32 %v6583, %v6584
        %v6586 = vld [vmem:[%s11] sm:$0x1]
        %v6587 = vadd.f32 %v6585, %v6586
        %v6588 = vxor.u32 %v6587, 2147483648
        %v6589 = vmul.f32 %v6588, 1.442695
        %v6590 = vpow.pop %v6589
        %v6591 = vadd.f32 %v6590, 1.0
        %v6592 = vrcp.pop %v6591
        %v6593 = vmul.f32 1.0, %v6592
        %v6594 = vlaneseq
        %v6595 = vshrl.u32 %v6594, 7
        %v6596 = vsub.s32 0, %v6595
        %v6597 = vrot.slane %v6593, %v6596
        %v6598 = vmul.f32 %v5292, %v6597
        %v6599 = vmul.f32 %v5293, %v6597
        %v6600 = vmul.f32 %v5294, %v6597
        %v6601 = vmul.f32 %v5295, %v6597
        %v6602 = vmul.f32 %v5296, %v6597
        %v6603 = vmul.f32 %v5297, %v6597
        %v6604 = vmul.f32 %v5298, %v6597
        %v6605 = vmul.f32 %v5299, %v6597
        %v6606 = vpack.c.bf16 %v6542, %v6541
        %v6607 = vpack.c.bf16 %v6544, %v6543
        %v6608 = vpack.c.bf16 %v6546, %v6545
        %v6609 = vpack.c.bf16 %v6548, %v6547
        %v6610 = vld [vmem:[%s12] sm:$0xf]
        %v6611 = vld [vmem:[%s12 + $0x4] sm:$0xf]
        %v6612 = vld [vmem:[%s12 + $0x8] sm:$0xf]
        %v6613 = vld [vmem:[%s12 + $0xc] sm:$0xf]
        %v6614 = vpack.c.bf16 %v6599, %v6598
        %v6615 = vpack.c.bf16 %v6601, %v6600
        %v6616 = vpack.c.bf16 %v6603, %v6602
        %v6617 = vpack.c.bf16 %v6605, %v6604
        %v6618 = vld [vmem:[%s13] sm:$0xf]
        %v6619 = vld [vmem:[%s13 + $0x4] sm:$0xf]
        %v6620 = vld [vmem:[%s13 + $0x8] sm:$0xf]
        %v6621 = vld [vmem:[%s13 + $0xc] sm:$0xf]
        %v6626 = vunpack.c.l.b16 %v6618
        %v6627 = vunpack.c.l.b16 %v6619
        %v6628 = vunpack.c.l.b16 %v6620
        %v6629 = vunpack.c.l.b16 %v6621
        %v6630 = vpack.c.b16 %v6627, %v6626
        %v6631 = vpack.c.b16 %v6629, %v6628
        %v6635 = vsel %vm3181, %v6614, 0
        %v6638 = vsel %vm3181, %v6615, 0
        %v6641 = vsel %vm3181, %v6616, 0
        %v6644 = vsel %vm3181, %v6617, 0
        %6646 = vmatprep.subr.bf16.mxu0 0
        %6647 = vmatpush1.bf16.msra.mxu0 %v6630
        %6648 = vmatprep.subr.bf16.mxu0 0
        %6649 = vmatpush1.bf16.msra.mxu0 %v6631
        %6650 = vmatprep.subr.bf16.mxu0 0
        %6651 = vmatpush1.bf16.msra.mxu0 0
        %6652 = vmatprep.subr.bf16.mxu0 0
        %6653 = vmatpush1.bf16.msra.mxu0 0
        %6654 = vmatprep.subr.bf16.mxu0 0
        %6655 = vmatpush1.bf16.msra.mxu0 0
        %6656 = vmatprep.subr.bf16.mxu0 0
        %6657 = vmatpush1.bf16.msra.mxu0 0
        %6658 = vmatprep.subr.bf16.mxu0 0
        %6659 = vmatpush1.bf16.msra.mxu0 0
        %6660 = vmatprep.subr.bf16.mxu0 0
        %6661 = vmatpush1.bf16.msra.mxu0 0
        %6662 = vmatprep.subr.bf16.mxu0 0
        %6663 = vmatpush1.bf16.msra.mxu0 0
        %6664 = vmatprep.subr.bf16.mxu0 0
        %6665 = vmatpush1.bf16.msra.mxu0 0
        %6666 = vmatprep.subr.bf16.mxu0 0
        %6667 = vmatpush1.bf16.msra.mxu0 0
        %6668 = vmatprep.subr.bf16.mxu0 0
        %6669 = vmatpush1.bf16.msra.mxu0 0
        %6670 = vmatprep.subr.bf16.mxu0 0
        %6671 = vmatpush1.bf16.msra.mxu0 0
        %6672 = vmatprep.subr.bf16.mxu0 0
        %6673 = vmatpush1.bf16.msra.mxu0 0
        %6674 = vmatprep.subr.bf16.mxu0 0
        %6675 = vmatpush1.bf16.msra.mxu0 0
        %6676 = vmatprep.subr.bf16.mxu0 0
        %6677 = vmatpush1.bf16.msra.mxu0 0
        %6678 = vmatprep.mubr.bf16.mxu0 0
        %6679 = vmatmul.mubr.bf16.gmra.mrb[0].mxu0 %v6635
        %v6680 = vpop.f32.mrb[0].mxu0
        %v6681 = vadd.f32 0.0, %v6680
        %v6682 = vpop.f32.mrb[0].mxu0
        %v6683 = vpop.f32.mrb[0].mxu0
        %v6684 = vadd.f32 0.0, %v6683
        %v6685 = vpop.f32.mrb[0].mxu0
        %6686 = vmatprep.mubr.bf16.mxu0 0
        %6687 = vmatmul.mubr.bf16.gmra.mrb[0].mxu0 %v6638
        %v6688 = vpop.f32.mrb[0].mxu0
        %v6689 = vadd.f32 0.0, %v6688
        %v6690 = vpop.f32.mrb[0].mxu0
        %v6691 = vpop.f32.mrb[0].mxu0
        %v6692 = vadd.f32 0.0, %v6691
        %v6693 = vpop.f32.mrb[0].mxu0
        %6694 = vmatprep.mubr.bf16.mxu0 0
        %6695 = vmatmul.mubr.bf16.gmra.mrb[0].mxu0 %v6641
        %v6696 = vpop.f32.mrb[0].mxu0
        %v6697 = vadd.f32 0.0, %v6696
        %v6698 = vpop.f32.mrb[0].mxu0
        %v6699 = vpop.f32.mrb[0].mxu0
        %v6700 = vadd.f32 0.0, %v6699
        %v6701 = vpop.f32.mrb[0].mxu0
        %6702 = vmatprep.mubr.bf16.mxu0 0
        %6703 = vmatmul.mubr.bf16.gmra.mrb[0].mxu0 %v6644
        %v6704 = vpop.f32.mrb[0].mxu0
        %v6705 = vadd.f32 0.0, %v6704
        %v6706 = vpop.f32.mrb[0].mxu0
        %v6707 = vpop.f32.mrb[0].mxu0
        %v6708 = vadd.f32 0.0, %v6707
        %v6709 = vpop.f32.mrb[0].mxu0
        %6710 = vdwg.mxu0
        %v6715 = vunpack.c.l.b16 %v6610
        %v6716 = vunpack.c.l.b16 %v6611
        %v6717 = vunpack.c.l.b16 %v6612
        %v6718 = vunpack.c.l.b16 %v6613
        %v6719 = vpack.c.b16 %v6716, %v6715
        %v6720 = vpack.c.b16 %v6718, %v6717
        %v6724 = vsel %vm3181, %v6606, 0
        %v6727 = vsel %vm3181, %v6607, 0
        %v6730 = vsel %vm3181, %v6608, 0
        %v6733 = vsel %vm3181, %v6609, 0
        %6735 = vmatprep.subr.bf16.mxu0 0
        %6736 = vmatpush1.bf16.msra.mxu0 %v6719
        %6737 = vmatprep.subr.bf16.mxu0 0
        %6738 = vmatpush1.bf16.msra.mxu0 %v6720
        %6739 = vmatprep.subr.bf16.mxu0 0
        %6740 = vmatpush1.bf16.msra.mxu0 0
        %6741 = vmatprep.subr.bf16.mxu0 0
        %6742 = vmatpush1.bf16.msra.mxu0 0
        %6743 = vmatprep.subr.bf16.mxu0 0
        %6744 = vmatpush1.bf16.msra.mxu0 0
        %6745 = vmatprep.subr.bf16.mxu0 0
        %6746 = vmatpush1.bf16.msra.mxu0 0
        %6747 = vmatprep.subr.bf16.mxu0 0
        %6748 = vmatpush1.bf16.msra.mxu0 0
        %6749 = vmatprep.subr.bf16.mxu0 0
        %6750 = vmatpush1.bf16.msra.mxu0 0
        %6751 = vmatprep.subr.bf16.mxu0 0
        %6752 = vmatpush1.bf16.msra.mxu0 0
        %6753 = vmatprep.subr.bf16.mxu0 0
        %6754 = vmatpush1.bf16.msra.mxu0 0
        %6755 = vmatprep.subr.bf16.mxu0 0
        %6756 = vmatpush1.bf16.msra.mxu0 0
        %6757 = vmatprep.subr.bf16.mxu0 0
        %6758 = vmatpush1.bf16.msra.mxu0 0
        %6759 = vmatprep.subr.bf16.mxu0 0
        %6760 = vmatpush1.bf16.msra.mxu0 0
        %6761 = vmatprep.subr.bf16.mxu0 0
        %6762 = vmatpush1.bf16.msra.mxu0 0
        %6763 = vmatprep.subr.bf16.mxu0 0
        %6764 = vmatpush1.bf16.msra.mxu0 0
        %6765 = vmatprep.subr.bf16.mxu0 0
        %6766 = vmatpush1.bf16.msra.mxu0 0
        %6767 = vmatprep.mubr.bf16.mxu0 0
        %6768 = vmatmul.mubr.bf16.gmra.mrb[0].mxu0 %v6724
        %v6769 = vpop.f32.mrb[0].mxu0
        %v6770 = vadd.f32 %v6681, %v6769
        %v6771 = vpop.f32.mrb[0].mxu0
        %v6772 = vpop.f32.mrb[0].mxu0
        %v6773 = vadd.f32 %v6684, %v6772
        %v6774 = vpop.f32.mrb[0].mxu0
        %6775 = vmatprep.mubr.bf16.mxu0 0
        %6776 = vmatmul.mubr.bf16.gmra.mrb[0].mxu0 %v6727
        %v6777 = vpop.f32.mrb[0].mxu0
        %v6778 = vadd.f32 %v6689, %v6777
        %v6779 = vpop.f32.mrb[0].mxu0
        %v6780 = vpop.f32.mrb[0].mxu0
        %v6781 = vadd.f32 %v6692, %v6780
        %v6782 = vpop.f32.mrb[0].mxu0
        %6783 = vmatprep.mubr.bf16.mxu0 0
        %6784 = vmatmul.mubr.bf16.gmra.mrb[0].mxu0 %v6730
        %v6785 = vpop.f32.mrb[0].mxu0
        %v6786 = vadd.f32 %v6697, %v6785
        %v6787 = vpop.f32.mrb[0].mxu0
        %v6788 = vpop.f32.mrb[0].mxu0
        %v6789 = vadd.f32 %v6700, %v6788
        %v6790 = vpop.f32.mrb[0].mxu0
        %6791 = vmatprep.mubr.bf16.mxu0 0
        %6792 = vmatmul.mubr.bf16.gmra.mrb[0].mxu0 %v6733
        %v6793 = vpop.f32.mrb[0].mxu0
        %v6794 = vadd.f32 %v6705, %v6793
        %v6795 = vpop.f32.mrb[0].mxu0
        %v6796 = vpop.f32.mrb[0].mxu0
        %v6797 = vadd.f32 %v6708, %v6796
        %v6798 = vpop.f32.mrb[0].mxu0
        %6799 = vdwg.mxu0
        %v6800 = vld [vmem:[%s14] sm:$0x1]
        %v6802 = vlaneseq
        %v6803 = vshrl.u32 %v6802, 7
        %v6804 = vsub.s32 0, %v6803
        %v6805 = vrot.slane %v6800, %v6804
        %v6807 = vadd.f32 %v6770, %v6805
        %v6808 = vadd.f32 %v6773, %v6805
        %v6809 = vadd.f32 %v6778, %v6805
        %v6810 = vadd.f32 %v6781, %v6805
        %v6811 = vadd.f32 %v6786, %v6805
        %v6812 = vadd.f32 %v6789, %v6805
        %v6813 = vadd.f32 %v6794, %v6805
        %v6814 = vadd.f32 %v6797, %v6805
        %v6815 = vadd.f32 %v6807, %v3173
        %v6816 = vadd.f32 %v6808, %v3174
        %v6817 = vadd.f32 %v6809, %v3175
        %v6818 = vadd.f32 %v6810, %v3176
        %v6819 = vadd.f32 %v6811, %v3177
        %v6820 = vadd.f32 %v6812, %v3178
        %v6821 = vadd.f32 %v6813, %v3179
        %v6822 = vadd.f32 %v6814, %v3180
        %6823 = vst.msk [vmem:[%s501] sm:$0xff] %vm3181, %v6815
        %6824 = vst.msk [vmem:[%s501 + $0x8] sm:$0xff] %vm3181, %v6816
        %6825 = vst.msk [vmem:[%s501 + $0x10] sm:$0xff] %vm3181, %v6817
        %6826 = vst.msk [vmem:[%s501 + $0x18] sm:$0xff] %vm3181, %v6818
        %6827 = vst.msk [vmem:[%s501 + $0x20] sm:$0xff] %vm3181, %v6819
        %6828 = vst.msk [vmem:[%s501 + $0x28] sm:$0xff] %vm3181, %v6820
        %6829 = vst.msk [vmem:[%s501 + $0x30] sm:$0xff] %vm3181, %v6821
        %6830 = vst.msk [vmem:[%s501 + $0x38] sm:$0xff] %vm3181, %v6822
        %s6831 = sand.u32 %s358, 1
        %s6832 = scalar_lea.sflag [#allocation7], %s6831
        %s6833 = sand.u32 %s358, 1
        %s6834 = smul.addr %s6833, 64
        %s6835 = scalar_lea.vmem [#allocation9], %s6834
        // Predicated region
        $region85: #{down_att_forward.1} parent=79 // pred_check
          %p6836 = pneg %p368
        $region86: #{down_att_forward.1} parent=79 // pred_check_branch
          %6838 = sbr.rel (%p6836) target = $region88
        $region87: #{down_att_forward.1} parent=79 // pred_region
          %s6840 = ssub.s32 1024, 1024
          %6841 = vsyncadd %s6832, %s6840
          %s6842 = smul.addr %s30, 8
          %s6843 = smul.addr %s6842, 128
          %s6844 = scalar_lea.hbm %s15, %s6843
          %s6845 = sshll.u32 %s6835, 4
          %s6846 = int_to_ptr.vmem [resolvable:$true] %s6845
          %6851 = dma.vmem_to_hbm [thread:$0]  %s6846, 1024, %s6844, %s6832, 128, 128, 8
        $region88: #{down_att_forward.1} parent=79 // pred_fallthru
          _
      $region80: #{down_att_forward.1} parent=5 // pred_fallthru
        _
      %p6852 = scmp.le.s32.totalorder 2, %s25
      // Predicated region
      $region89: #{down_att_forward.1} parent=5 // pred_check
        %p6853 = pneg %p6852
      $region90: #{down_att_forward.1} parent=5 // pred_check_branch
        %6855 = sbr.rel (%p6853) target = $region92
      $region91: #{down_att_forward.1} parent=5 // pred_region
        %s6856 = ssub.s32 %s25, 2
        // Predicated region
        $region93: #{down_att_forward.1} parent=91 // pred_check
          %p6857 = pneg %p374
        $region94: #{down_att_forward.1} parent=91 // pred_check_branch
          %6859 = sbr.rel (%p6857) target = $region96
        $region95: #{down_att_forward.1} parent=91 // pred_region
          %s6860 = sand.u32 %s359, 1
          %s6861 = scalar_lea.sflag [#allocation7], %s6860
          %s6862 = sand.u32 %s359, 1
          %s6863 = smul.addr %s6862, 64
          %s6864 = scalar_lea.vmem [#allocation9], %s6863
          %6865 = dma.done %s6861, 1024
        $region96: #{down_att_forward.1} parent=91 // pred_fallthru
          _
      $region92: #{down_att_forward.1} parent=5 // pred_fallthru
        _
    $region6: #{down_att_forward.1} parent=1 // loop_footer
      %s29 = sadd.s32 1, %s25
    $region7: #{down_att_forward.1} parent=1 // loop_footer_branch
      %24 = sbr.rel target = $region3
    $region8: #{down_att_forward.1} parent=1 // loop_exit
      _
    %6866 = vsyncpa [#allocation7], 1
    %s6867 = scalar_lea.sflag [#allocation7], 1
    %6868 = vsyncpa %s6867, 1
    %6869 = vsyncpa [#allocation8], 1
    %s6870 = scalar_lea.sflag [#allocation8], 1
    %6871 = vsyncpa %s6870, 1

</llo_original>
